<compile_context>
chip_gen: v6e
topology: v6e:2x2x1
jax: 0.10.0
libtpu: 0.0.40
codegen_flags: <defaults>
</compile_context>

<pallas_src>
import functools

import jax
import jax.numpy as jnp
from jax.experimental import pallas as pl
from jax.experimental.pallas import tpu as pltpu


def _lstm_recurrence_kernel(preact0_ref, wbig_ref, b1_ref, hout_ref,
                            *, hidden_size, seq_len):
    """Two-layer LSTM recurrence; one timestep == one fused MXU call.

    preact0_ref: (T, B, 4H) f32   x_t @ W_ih0^T + b_ih0 + b_hh0 (hoisted)
    wbig_ref:    (2H, 8H)  bf16   [[W_hh0^T, W_ih1^T], [0, W_hh1^T]]
    b1_ref:      (1, 4H)   f32    b_ih1 + b_hh1
    hout_ref:    (T, B, H) f32    top-layer hidden state per step (lane-dense)
    """
    H = hidden_size
    B = hout_ref.shape[1]

    # Hoisted once: layer-1 bias broadcast (JAX does not CSE broadcast_in_dim).
    b1 = jnp.broadcast_to(b1_ref[...], (B, 4 * H))

    def step(t, carry):
        # r1 = h1(t-1) @ W_hh0^T, produced by the previous step's fused dot.
        c1, r1, h2, c2 = carry

        # ---- layer 0: gates from hoisted input proj + carried recurrent term ----
        g1 = preact0_ref[t] + r1
        i1 = jax.nn.sigmoid(g1[:, 0 * H:1 * H])
        f1 = jax.nn.sigmoid(g1[:, 1 * H:2 * H])
        u1 = jnp.tanh(g1[:, 2 * H:3 * H])
        o1 = jax.nn.sigmoid(g1[:, 3 * H:4 * H])
        c1 = f1 * c1 + i1 * u1
        h1 = o1 * jnp.tanh(c1)

        # ---- wavefront-fused dot: single MXU call per timestep -----------------
        # [h1(t), h2(t-1)] @ [[Whh0^T, Wih1^T], [0, Whh1^T]]   (bf16 in, f32 acc)
        lhs = jnp.concatenate([h1.astype(jnp.bfloat16),
                               h2.astype(jnp.bfloat16)], axis=-1)
        fused = jnp.dot(lhs, wbig_ref[...], preferred_element_type=jnp.float32)
        r1_next = fused[:, :4 * H]      # layer-0 recurrent term for step t+1
        g2 = fused[:, 4 * H:] + b1      # layer-1 gate pre-activations for step t

        # ---- layer 1 nonlinearities --------------------------------------------
        i2 = jax.nn.sigmoid(g2[:, 0 * H:1 * H])
        f2 = jax.nn.sigmoid(g2[:, 1 * H:2 * H])
        u2 = jnp.tanh(g2[:, 2 * H:3 * H])
        o2 = jax.nn.sigmoid(g2[:, 3 * H:4 * H])
        c2 = f2 * c2 + i2 * u2
        h2 = o2 * jnp.tanh(c2)

        hout_ref[t] = h2                # lane-dense (B, H) slab store
        return (c1, r1_next, h2, c2)

    zH = jnp.zeros((B, H), jnp.float32)        # h0 / c0 are zeros in the module
    z4H = jnp.zeros((B, 4 * H), jnp.float32)   # r1(0) = h1(-1) @ Whh0^T = 0
    # Full unroll only for small static T; modest unroll beyond that keeps the
    # LLO scheduler visible without blowing up live ranges / causing spills.
    unroll = True if seq_len <= 32 else 4
    jax.lax.fori_loop(0, seq_len, step, (zH, z4H, zH, zH), unroll=unroll)


def lstm_model_forward(x, params, *, hidden_size):
    """x: (B, T, input_size) float32 -> (B, T, output_size) float32."""
    B, T, I = x.shape
    H = hidden_size

    # (1) Hoisted layer-0 input projection: one (B*T, I) @ (I, 4H) matmul,
    #     produced time-major so the kernel slices preact0[t] contiguously.
    preact0 = jnp.einsum("bti,ig->tbg", x, params["w_ih0_t"]) + params["b0"]

    full = lambda a: pl.BlockSpec(a.shape, lambda i: (0,) * a.ndim)

    h_all = pl.pallas_call(
        functools.partial(_lstm_recurrence_kernel, hidden_size=H, seq_len=T),
        out_shape=jax.ShapeDtypeStruct((T, B, H), jnp.float32),
        grid=(1,),
        in_specs=[
            full(preact0),           # (T, B, 4H) f32
            full(params["w_big"]),   # (2H, 8H)  bf16
            full(params["b1"]),      # (1, 4H)   f32
        ],
        out_specs=pl.BlockSpec((T, B, H), lambda i: (0, 0, 0)),
        compiler_params=pltpu.CompilerParams(
            dimension_semantics=("arbitrary",)),  # time recurrence is sequential
    )(preact0, params["w_big"], params["b1"])

    # (2) Hoisted FC over all timesteps; 'tbh,ho->bto' folds the back-to-
    #     batch_first transpose into the matmul output.
    return jnp.einsum("tbh,ho->bto", h_all, params["w_fc_t"]) + params["b_fc"]


def init_params(key, input_size, hidden_size, output_size):
    """Deterministic init matching PyTorch shapes (uniform +-1/sqrt(H))."""
    H = hidden_size
    k = 1.0 / jnp.sqrt(jnp.float32(H))
    keys = jax.random.split(key, 10)
    u = lambda kk, shape: jax.random.uniform(kk, shape, jnp.float32, -k, k)

    # PyTorch nn.LSTM layout: weight_ih_l* is (4H, in), gate order i, f, g, o.
    w_ih0 = u(keys[0], (4 * H, input_size))
    w_hh0 = u(keys[1], (4 * H, H))
    b_ih0 = u(keys[2], (4 * H,))
    b_hh0 = u(keys[3], (4 * H,))
    w_ih1 = u(keys[4], (4 * H, H))
    w_hh1 = u(keys[5], (4 * H, H))
    b_ih1 = u(keys[6], (4 * H,))
    b_hh1 = u(keys[7], (4 * H,))
    w_fc = u(keys[8], (output_size, H))
    b_fc = u(keys[9], (output_size,))

    # Wavefront-fused recurrent weight block, pre-cast to bf16 for the MXU:
    #   [h1(t), h2(t-1)] @ W_big -> [ r1(t+1) | layer-1 gate pre-activations ]
    w_big = jnp.concatenate(
        [jnp.concatenate([w_hh0.T, w_ih1.T], axis=1),                        # (H, 8H)
         jnp.concatenate([jnp.zeros((H, 4 * H), jnp.float32), w_hh1.T], axis=1)],
        axis=0).astype(jnp.bfloat16)                                          # (2H, 8H)

    return {
        "w_ih0_t": w_ih0.T,                                  # (I, 4H)
        "b0": (b_ih0 + b_hh0).reshape(1, 4 * H),             # fused layer-0 bias
        "w_big": w_big,                                      # (2H, 8H) bf16, fused
        "b1": (b_ih1 + b_hh1).reshape(1, 4 * H),             # fused layer-1 bias
        "w_fc_t": w_fc.T,                                    # (H, O)
        "b_fc": b_fc.reshape(1, output_size),
        # f32 copies kept only for the pure-JAX reference check.
        "w_hh0_t": w_hh0.T,
        "w_ih1_t": w_ih1.T,
        "w_hh1_t": w_hh1.T,
    }


def reference_forward(x, params, *, hidden_size):
    """Pure-JAX f32 reference (lax.scan, unfused dots) with PyTorch-exact math."""
    H = hidden_size
    B = x.shape[0]

    def cell(h, c, inp, w_ih_t, w_hh_t, b):
        g = inp @ w_ih_t + h @ w_hh_t + b
        i = jax.nn.sigmoid(g[:, 0 * H:1 * H])
        f = jax.nn.sigmoid(g[:, 1 * H:2 * H])
        u = jnp.tanh(g[:, 2 * H:3 * H])
        o = jax.nn.sigmoid(g[:, 3 * H:4 * H])
        c = f * c + i * u
        h = o * jnp.tanh(c)
        return h, c

    def step(carry, x_t):
        h1, c1, h2, c2 = carry
        h1, c1 = cell(h1, c1, x_t, params["w_ih0_t"], params["w_hh0_t"], params["b0"])
        h2, c2 = cell(h2, c2, h1, params["w_ih1_t"], params["w_hh1_t"], params["b1"])
        y = h2 @ params["w_fc_t"] + params["b_fc"]
        return (h1, c1, h2, c2), y

    z = jnp.zeros((B, H), jnp.float32)
    _, ys = jax.lax.scan(step, (z, z, z, z), jnp.transpose(x, (1, 0, 2)))
    return jnp.transpose(ys, (1, 0, 2))


if __name__ == "__main__":
    INPUT_SIZE, HIDDEN_SIZE, OUTPUT_SIZE = 10, 128, 4
    B, T = 8, 8

    key = jax.random.PRNGKey(0)
    kx, kp = jax.random.split(key)
    x = jax.random.normal(kx, (B, T, INPUT_SIZE), jnp.float32)
    params = init_params(kp, INPUT_SIZE, HIDDEN_SIZE, OUTPUT_SIZE)

    fwd = jax.jit(functools.partial(lstm_model_forward, hidden_size=HIDDEN_SIZE))
    out = jax.block_until_ready(fwd(x, params))

    ref = reference_forward(x, params, hidden_size=HIDDEN_SIZE)
    assert out.shape == (B, T, OUTPUT_SIZE)
    # bf16 MXU operands (f32 accumulation) vs. the f32 reference: loosened tol.
    assert jnp.allclose(out, ref, atol=2e-2, rtol=2e-2), "mismatch vs JAX reference"

    print("KERNEL_OK")
</pallas_src>

<mosaic_0001>
module attributes {stable_mosaic.version = 11 : i64} {
  func.func @_lstm_recurrence_kernel(%arg0: i32, %arg1: memref<8x8x512xf32, #tpu.memory_space<vmem>>, %arg2: memref<256x1024xbf16, #tpu.memory_space<vmem>>, %arg3: memref<1x512xf32, #tpu.memory_space<vmem>>, %arg4: memref<8x8x128xf32, #tpu.memory_space<vmem>>) attributes {dimension_semantics = [#tpu.dimension_semantics<arbitrary>], iteration_bounds = array<i64: 1>, scalar_prefetch = 0 : i64, scratch_operands = 0 : i64, tpu.core_type = #tpu.core_type<tc>, window_params = [{pipeline_mode = #tpu.pipeline_mode<synchronous>, transform_indices = @transform_0, window_bounds = array<i64: 8, 8, 512>}, {pipeline_mode = #tpu.pipeline_mode<synchronous>, transform_indices = @transform_1, window_bounds = array<i64: 256, 1024>}, {pipeline_mode = #tpu.pipeline_mode<synchronous>, transform_indices = @transform_2, window_bounds = array<i64: 1, 512>}, {pipeline_mode = #tpu.pipeline_mode<synchronous>, transform_indices = @transform_3, window_bounds = array<i64: 8, 8, 128>}]} {
    %c0 = arith.constant 0 : index
    %c0_0 = arith.constant 0 : index
    %0 = vector.load %arg3[%c0, %c0_0] : memref<1x512xf32, #tpu.memory_space<vmem>>, vector<1x512xf32>
    %1 = vector.shape_cast %0 : vector<1x512xf32> to vector<1x512xf32>
    %2 = vector.broadcast %1 : vector<1x512xf32> to vector<8x512xf32>
    %cst = arith.constant 0.000000e+00 : f32
    %3 = vector.broadcast %cst : f32 to vector<8x128xf32>
    %cst_1 = arith.constant 0.000000e+00 : f32
    %4 = vector.broadcast %cst_1 : f32 to vector<8x512xf32>
    %c0_i32 = arith.constant 0 : i32
    %5 = arith.index_cast %c0_i32 : i32 to index
    %c0_2 = arith.constant 0 : index
    %c0_3 = arith.constant 0 : index
    %6 = vector.load %arg1[%5, %c0_2, %c0_3] : memref<8x8x512xf32, #tpu.memory_space<vmem>>, vector<1x8x512xf32>
    %7 = vector.shape_cast %6 : vector<1x8x512xf32> to vector<8x512xf32>
    %8 = arith.addf %7, %4 : vector<8x512xf32>
    %9 = vector.extract_strided_slice %8 {offsets = [0, 0], sizes = [8, 128], strides = [1, 1]} : vector<8x512xf32> to vector<8x128xf32>
    %10 = arith.negf %9 : vector<8x128xf32>
    %11 = math.exp %10 : vector<8x128xf32>
    %cst_4 = arith.constant 1.000000e+00 : f32
    %12 = vector.broadcast %cst_4 : f32 to vector<8x128xf32>
    %13 = arith.addf %12, %11 : vector<8x128xf32>
    %14 = arith.divf %12, %13 : vector<8x128xf32>
    %15 = vector.extract_strided_slice %8 {offsets = [0, 128], sizes = [8, 128], strides = [1, 1]} : vector<8x512xf32> to vector<8x128xf32>
    %16 = arith.negf %15 : vector<8x128xf32>
    %17 = math.exp %16 : vector<8x128xf32>
    %cst_5 = arith.constant 1.000000e+00 : f32
    %18 = vector.broadcast %cst_5 : f32 to vector<8x128xf32>
    %19 = arith.addf %18, %17 : vector<8x128xf32>
    %20 = arith.divf %18, %19 : vector<8x128xf32>
    %21 = vector.extract_strided_slice %8 {offsets = [0, 256], sizes = [8, 128], strides = [1, 1]} : vector<8x512xf32> to vector<8x128xf32>
    %22 = math.tanh %21 : vector<8x128xf32>
    %23 = vector.extract_strided_slice %8 {offsets = [0, 384], sizes = [8, 128], strides = [1, 1]} : vector<8x512xf32> to vector<8x128xf32>
    %24 = arith.negf %23 : vector<8x128xf32>
    %25 = math.exp %24 : vector<8x128xf32>
    %cst_6 = arith.constant 1.000000e+00 : f32
    %26 = vector.broadcast %cst_6 : f32 to vector<8x128xf32>
    %27 = arith.addf %26, %25 : vector<8x128xf32>
    %28 = arith.divf %26, %27 : vector<8x128xf32>
    %29 = arith.mulf %20, %3 : vector<8x128xf32>
    %30 = arith.mulf %14, %22 : vector<8x128xf32>
    %31 = arith.addf %29, %30 : vector<8x128xf32>
    %32 = math.tanh %31 : vector<8x128xf32>
    %33 = arith.mulf %28, %32 : vector<8x128xf32>
    %34 = arith.truncf %33 : vector<8x128xf32> to vector<8x128xbf16>
    %35 = arith.truncf %3 : vector<8x128xf32> to vector<8x128xbf16>
    %36 = tpu.concatenate %34, %35 in 1 : vector<8x128xbf16>, vector<8x128xbf16> -> vector<8x256xbf16>
    %c0_7 = arith.constant 0 : index
    %c0_8 = arith.constant 0 : index
    %37 = vector.load %arg2[%c0_7, %c0_8] : memref<256x1024xbf16, #tpu.memory_space<vmem>>, vector<256x1024xbf16>
    %cst_9 = arith.constant dense<0.000000e+00> : vector<8x1024xf32>
    %38 = tpu.matmul %36, %37, %cst_9 {dimension_numbers = #tpu.dot_dimension_numbers<[1], [0], [0], [1], [0, 0, 1, 1], [], []>} : vector<8x256xbf16>, vector<256x1024xbf16>, vector<8x1024xf32> -> vector<8x1024xf32>
    %39 = vector.extract_strided_slice %38 {offsets = [0, 0], sizes = [8, 512], strides = [1, 1]} : vector<8x1024xf32> to vector<8x512xf32>
    %40 = vector.extract_strided_slice %38 {offsets = [0, 512], sizes = [8, 512], strides = [1, 1]} : vector<8x1024xf32> to vector<8x512xf32>
    %41 = arith.addf %40, %2 : vector<8x512xf32>
    %42 = vector.extract_strided_slice %41 {offsets = [0, 0], sizes = [8, 128], strides = [1, 1]} : vector<8x512xf32> to vector<8x128xf32>
    %43 = arith.negf %42 : vector<8x128xf32>
    %44 = math.exp %43 : vector<8x128xf32>
    %cst_10 = arith.constant 1.000000e+00 : f32
    %45 = vector.broadcast %cst_10 : f32 to vector<8x128xf32>
    %46 = arith.addf %45, %44 : vector<8x128xf32>
    %47 = arith.divf %45, %46 : vector<8x128xf32>
    %48 = vector.extract_strided_slice %41 {offsets = [0, 128], sizes = [8, 128], strides = [1, 1]} : vector<8x512xf32> to vector<8x128xf32>
    %49 = arith.negf %48 : vector<8x128xf32>
    %50 = math.exp %49 : vector<8x128xf32>
    %cst_11 = arith.constant 1.000000e+00 : f32
    %51 = vector.broadcast %cst_11 : f32 to vector<8x128xf32>
    %52 = arith.addf %51, %50 : vector<8x128xf32>
    %53 = arith.divf %51, %52 : vector<8x128xf32>
    %54 = vector.extract_strided_slice %41 {offsets = [0, 256], sizes = [8, 128], strides = [1, 1]} : vector<8x512xf32> to vector<8x128xf32>
    %55 = math.tanh %54 : vector<8x128xf32>
    %56 = vector.extract_strided_slice %41 {offsets = [0, 384], sizes = [8, 128], strides = [1, 1]} : vector<8x512xf32> to vector<8x128xf32>
    %57 = arith.negf %56 : vector<8x128xf32>
    %58 = math.exp %57 : vector<8x128xf32>
    %cst_12 = arith.constant 1.000000e+00 : f32
    %59 = vector.broadcast %cst_12 : f32 to vector<8x128xf32>
    %60 = arith.addf %59, %58 : vector<8x128xf32>
    %61 = arith.divf %59, %60 : vector<8x128xf32>
    %62 = arith.mulf %53, %3 : vector<8x128xf32>
    %63 = arith.mulf %47, %55 : vector<8x128xf32>
    %64 = arith.addf %62, %63 : vector<8x128xf32>
    %65 = math.tanh %64 : vector<8x128xf32>
    %66 = arith.mulf %61, %65 : vector<8x128xf32>
    %67 = arith.index_cast %c0_i32 : i32 to index
    %c0_13 = arith.constant 0 : index
    %c0_14 = arith.constant 0 : index
    %68 = vector.load %arg4[%67, %c0_13, %c0_14] : memref<8x8x128xf32, #tpu.memory_space<vmem>>, vector<1x8x128xf32>
    %69 = vector.shape_cast %68 : vector<1x8x128xf32> to vector<8x128xf32>
    %70 = vector.shape_cast %66 : vector<8x128xf32> to vector<1x8x128xf32>
    tpu.vector_store %arg4[%67, %c0_13, %c0_14], %70 {strides = array<i32>} : memref<8x8x128xf32, #tpu.memory_space<vmem>>, vector<1x8x128xf32>,
    %c1_i32 = arith.constant 1 : i32
    %71 = arith.index_cast %c1_i32 : i32 to index
    %c0_15 = arith.constant 0 : index
    %c0_16 = arith.constant 0 : index
    %72 = vector.load %arg1[%71, %c0_15, %c0_16] : memref<8x8x512xf32, #tpu.memory_space<vmem>>, vector<1x8x512xf32>
    %73 = vector.shape_cast %72 : vector<1x8x512xf32> to vector<8x512xf32>
    %74 = arith.addf %73, %39 : vector<8x512xf32>
    %75 = vector.extract_strided_slice %74 {offsets = [0, 0], sizes = [8, 128], strides = [1, 1]} : vector<8x512xf32> to vector<8x128xf32>
    %76 = arith.negf %75 : vector<8x128xf32>
    %77 = math.exp %76 : vector<8x128xf32>
    %cst_17 = arith.constant 1.000000e+00 : f32
    %78 = vector.broadcast %cst_17 : f32 to vector<8x128xf32>
    %79 = arith.addf %78, %77 : vector<8x128xf32>
    %80 = arith.divf %78, %79 : vector<8x128xf32>
    %81 = vector.extract_strided_slice %74 {offsets = [0, 128], sizes = [8, 128], strides = [1, 1]} : vector<8x512xf32> to vector<8x128xf32>
    %82 = arith.negf %81 : vector<8x128xf32>
    %83 = math.exp %82 : vector<8x128xf32>
    %cst_18 = arith.constant 1.000000e+00 : f32
    %84 = vector.broadcast %cst_18 : f32 to vector<8x128xf32>
    %85 = arith.addf %84, %83 : vector<8x128xf32>
    %86 = arith.divf %84, %85 : vector<8x128xf32>
    %87 = vector.extract_strided_slice %74 {offsets = [0, 256], sizes = [8, 128], strides = [1, 1]} : vector<8x512xf32> to vector<8x128xf32>
    %88 = math.tanh %87 : vector<8x128xf32>
    %89 = vector.extract_strided_slice %74 {offsets = [0, 384], sizes = [8, 128], strides = [1, 1]} : vector<8x512xf32> to vector<8x128xf32>
    %90 = arith.negf %89 : vector<8x128xf32>
    %91 = math.exp %90 : vector<8x128xf32>
    %cst_19 = arith.constant 1.000000e+00 : f32
    %92 = vector.broadcast %cst_19 : f32 to vector<8x128xf32>
    %93 = arith.addf %92, %91 : vector<8x128xf32>
    %94 = arith.divf %92, %93 : vector<8x128xf32>
    %95 = arith.mulf %86, %31 : vector<8x128xf32>
    %96 = arith.mulf %80, %88 : vector<8x128xf32>
    %97 = arith.addf %95, %96 : vector<8x128xf32>
    %98 = math.tanh %97 : vector<8x128xf32>
    %99 = arith.mulf %94, %98 : vector<8x128xf32>
    %100 = arith.truncf %99 : vector<8x128xf32> to vector<8x128xbf16>
    %101 = arith.truncf %66 : vector<8x128xf32> to vector<8x128xbf16>
    %102 = tpu.concatenate %100, %101 in 1 : vector<8x128xbf16>, vector<8x128xbf16> -> vector<8x256xbf16>
    %c0_20 = arith.constant 0 : index
    %c0_21 = arith.constant 0 : index
    %103 = vector.load %arg2[%c0_20, %c0_21] : memref<256x1024xbf16, #tpu.memory_space<vmem>>, vector<256x1024xbf16>
    %cst_22 = arith.constant dense<0.000000e+00> : vector<8x1024xf32>
    %104 = tpu.matmul %102, %103, %cst_22 {dimension_numbers = #tpu.dot_dimension_numbers<[1], [0], [0], [1], [0, 0, 1, 1], [], []>} : vector<8x256xbf16>, vector<256x1024xbf16>, vector<8x1024xf32> -> vector<8x1024xf32>
    %105 = vector.extract_strided_slice %104 {offsets = [0, 0], sizes = [8, 512], strides = [1, 1]} : vector<8x1024xf32> to vector<8x512xf32>
    %106 = vector.extract_strided_slice %104 {offsets = [0, 512], sizes = [8, 512], strides = [1, 1]} : vector<8x1024xf32> to vector<8x512xf32>
    %107 = arith.addf %106, %2 : vector<8x512xf32>
    %108 = vector.extract_strided_slice %107 {offsets = [0, 0], sizes = [8, 128], strides = [1, 1]} : vector<8x512xf32> to vector<8x128xf32>
    %109 = arith.negf %108 : vector<8x128xf32>
    %110 = math.exp %109 : vector<8x128xf32>
    %cst_23 = arith.constant 1.000000e+00 : f32
    %111 = vector.broadcast %cst_23 : f32 to vector<8x128xf32>
    %112 = arith.addf %111, %110 : vector<8x128xf32>
    %113 = arith.divf %111, %112 : vector<8x128xf32>
    %114 = vector.extract_strided_slice %107 {offsets = [0, 128], sizes = [8, 128], strides = [1, 1]} : vector<8x512xf32> to vector<8x128xf32>
    %115 = arith.negf %114 : vector<8x128xf32>
    %116 = math.exp %115 : vector<8x128xf32>
    %cst_24 = arith.constant 1.000000e+00 : f32
    %117 = vector.broadcast %cst_24 : f32 to vector<8x128xf32>
    %118 = arith.addf %117, %116 : vector<8x128xf32>
    %119 = arith.divf %117, %118 : vector<8x128xf32>
    %120 = vector.extract_strided_slice %107 {offsets = [0, 256], sizes = [8, 128], strides = [1, 1]} : vector<8x512xf32> to vector<8x128xf32>
    %121 = math.tanh %120 : vector<8x128xf32>
    %122 = vector.extract_strided_slice %107 {offsets = [0, 384], sizes = [8, 128], strides = [1, 1]} : vector<8x512xf32> to vector<8x128xf32>
    %123 = arith.negf %122 : vector<8x128xf32>
    %124 = math.exp %123 : vector<8x128xf32>
    %cst_25 = arith.constant 1.000000e+00 : f32
    %125 = vector.broadcast %cst_25 : f32 to vector<8x128xf32>
    %126 = arith.addf %125, %124 : vector<8x128xf32>
    %127 = arith.divf %125, %126 : vector<8x128xf32>
    %128 = arith.mulf %119, %64 : vector<8x128xf32>
    %129 = arith.mulf %113, %121 : vector<8x128xf32>
    %130 = arith.addf %128, %129 : vector<8x128xf32>
    %131 = math.tanh %130 : vector<8x128xf32>
    %132 = arith.mulf %127, %131 : vector<8x128xf32>
    %133 = arith.index_cast %c1_i32 : i32 to index
    %c0_26 = arith.constant 0 : index
    %c0_27 = arith.constant 0 : index
    %134 = vector.load %arg4[%133, %c0_26, %c0_27] : memref<8x8x128xf32, #tpu.memory_space<vmem>>, vector<1x8x128xf32>
    %135 = vector.shape_cast %134 : vector<1x8x128xf32> to vector<8x128xf32>
    %136 = vector.shape_cast %132 : vector<8x128xf32> to vector<1x8x128xf32>
    tpu.vector_store %arg4[%133, %c0_26, %c0_27], %136 {strides = array<i32>} : memref<8x8x128xf32, #tpu.memory_space<vmem>>, vector<1x8x128xf32>,
    %c2_i32 = arith.constant 2 : i32
    %137 = arith.index_cast %c2_i32 : i32 to index
    %c0_28 = arith.constant 0 : index
    %c0_29 = arith.constant 0 : index
    %138 = vector.load %arg1[%137, %c0_28, %c0_29] : memref<8x8x512xf32, #tpu.memory_space<vmem>>, vector<1x8x512xf32>
    %139 = vector.shape_cast %138 : vector<1x8x512xf32> to vector<8x512xf32>
    %140 = arith.addf %139, %105 : vector<8x512xf32>
    %141 = vector.extract_strided_slice %140 {offsets = [0, 0], sizes = [8, 128], strides = [1, 1]} : vector<8x512xf32> to vector<8x128xf32>
    %142 = arith.negf %141 : vector<8x128xf32>
    %143 = math.exp %142 : vector<8x128xf32>
    %cst_30 = arith.constant 1.000000e+00 : f32
    %144 = vector.broadcast %cst_30 : f32 to vector<8x128xf32>
    %145 = arith.addf %144, %143 : vector<8x128xf32>
    %146 = arith.divf %144, %145 : vector<8x128xf32>
    %147 = vector.extract_strided_slice %140 {offsets = [0, 128], sizes = [8, 128], strides = [1, 1]} : vector<8x512xf32> to vector<8x128xf32>
    %148 = arith.negf %147 : vector<8x128xf32>
    %149 = math.exp %148 : vector<8x128xf32>
    %cst_31 = arith.constant 1.000000e+00 : f32
    %150 = vector.broadcast %cst_31 : f32 to vector<8x128xf32>
    %151 = arith.addf %150, %149 : vector<8x128xf32>
    %152 = arith.divf %150, %151 : vector<8x128xf32>
    %153 = vector.extract_strided_slice %140 {offsets = [0, 256], sizes = [8, 128], strides = [1, 1]} : vector<8x512xf32> to vector<8x128xf32>
    %154 = math.tanh %153 : vector<8x128xf32>
    %155 = vector.extract_strided_slice %140 {offsets = [0, 384], sizes = [8, 128], strides = [1, 1]} : vector<8x512xf32> to vector<8x128xf32>
    %156 = arith.negf %155 : vector<8x128xf32>
    %157 = math.exp %156 : vector<8x128xf32>
    %cst_32 = arith.constant 1.000000e+00 : f32
    %158 = vector.broadcast %cst_32 : f32 to vector<8x128xf32>
    %159 = arith.addf %158, %157 : vector<8x128xf32>
    %160 = arith.divf %158, %159 : vector<8x128xf32>
    %161 = arith.mulf %152, %97 : vector<8x128xf32>
    %162 = arith.mulf %146, %154 : vector<8x128xf32>
    %163 = arith.addf %161, %162 : vector<8x128xf32>
    %164 = math.tanh %163 : vector<8x128xf32>
    %165 = arith.mulf %160, %164 : vector<8x128xf32>
    %166 = arith.truncf %165 : vector<8x128xf32> to vector<8x128xbf16>
    %167 = arith.truncf %132 : vector<8x128xf32> to vector<8x128xbf16>
    %168 = tpu.concatenate %166, %167 in 1 : vector<8x128xbf16>, vector<8x128xbf16> -> vector<8x256xbf16>
    %c0_33 = arith.constant 0 : index
    %c0_34 = arith.constant 0 : index
    %169 = vector.load %arg2[%c0_33, %c0_34] : memref<256x1024xbf16, #tpu.memory_space<vmem>>, vector<256x1024xbf16>
    %cst_35 = arith.constant dense<0.000000e+00> : vector<8x1024xf32>
    %170 = tpu.matmul %168, %169, %cst_35 {dimension_numbers = #tpu.dot_dimension_numbers<[1], [0], [0], [1], [0, 0, 1, 1], [], []>} : vector<8x256xbf16>, vector<256x1024xbf16>, vector<8x1024xf32> -> vector<8x1024xf32>
    %171 = vector.extract_strided_slice %170 {offsets = [0, 0], sizes = [8, 512], strides = [1, 1]} : vector<8x1024xf32> to vector<8x512xf32>
    %172 = vector.extract_strided_slice %170 {offsets = [0, 512], sizes = [8, 512], strides = [1, 1]} : vector<8x1024xf32> to vector<8x512xf32>
    %173 = arith.addf %172, %2 : vector<8x512xf32>
    %174 = vector.extract_strided_slice %173 {offsets = [0, 0], sizes = [8, 128], strides = [1, 1]} : vector<8x512xf32> to vector<8x128xf32>
    %175 = arith.negf %174 : vector<8x128xf32>
    %176 = math.exp %175 : vector<8x128xf32>
    %cst_36 = arith.constant 1.000000e+00 : f32
    %177 = vector.broadcast %cst_36 : f32 to vector<8x128xf32>
    %178 = arith.addf %177, %176 : vector<8x128xf32>
    %179 = arith.divf %177, %178 : vector<8x128xf32>
    %180 = vector.extract_strided_slice %173 {offsets = [0, 128], sizes = [8, 128], strides = [1, 1]} : vector<8x512xf32> to vector<8x128xf32>
    %181 = arith.negf %180 : vector<8x128xf32>
    %182 = math.exp %181 : vector<8x128xf32>
    %cst_37 = arith.constant 1.000000e+00 : f32
    %183 = vector.broadcast %cst_37 : f32 to vector<8x128xf32>
    %184 = arith.addf %183, %182 : vector<8x128xf32>
    %185 = arith.divf %183, %184 : vector<8x128xf32>
    %186 = vector.extract_strided_slice %173 {offsets = [0, 256], sizes = [8, 128], strides = [1, 1]} : vector<8x512xf32> to vector<8x128xf32>
    %187 = math.tanh %186 : vector<8x128xf32>
    %188 = vector.extract_strided_slice %173 {offsets = [0, 384], sizes = [8, 128], strides = [1, 1]} : vector<8x512xf32> to vector<8x128xf32>
    %189 = arith.negf %188 : vector<8x128xf32>
    %190 = math.exp %189 : vector<8x128xf32>
    %cst_38 = arith.constant 1.000000e+00 : f32
    %191 = vector.broadcast %cst_38 : f32 to vector<8x128xf32>
    %192 = arith.addf %191, %190 : vector<8x128xf32>
    %193 = arith.divf %191, %192 : vector<8x128xf32>
    %194 = arith.mulf %185, %130 : vector<8x128xf32>
    %195 = arith.mulf %179, %187 : vector<8x128xf32>
    %196 = arith.addf %194, %195 : vector<8x128xf32>
    %197 = math.tanh %196 : vector<8x128xf32>
    %198 = arith.mulf %193, %197 : vector<8x128xf32>
    %199 = arith.index_cast %c2_i32 : i32 to index
    %c0_39 = arith.constant 0 : index
    %c0_40 = arith.constant 0 : index
    %200 = vector.load %arg4[%199, %c0_39, %c0_40] : memref<8x8x128xf32, #tpu.memory_space<vmem>>, vector<1x8x128xf32>
    %201 = vector.shape_cast %200 : vector<1x8x128xf32> to vector<8x128xf32>
    %202 = vector.shape_cast %198 : vector<8x128xf32> to vector<1x8x128xf32>
    tpu.vector_store %arg4[%199, %c0_39, %c0_40], %202 {strides = array<i32>} : memref<8x8x128xf32, #tpu.memory_space<vmem>>, vector<1x8x128xf32>,
    %c3_i32 = arith.constant 3 : i32
    %203 = arith.index_cast %c3_i32 : i32 to index
    %c0_41 = arith.constant 0 : index
    %c0_42 = arith.constant 0 : index
    %204 = vector.load %arg1[%203, %c0_41, %c0_42] : memref<8x8x512xf32, #tpu.memory_space<vmem>>, vector<1x8x512xf32>
    %205 = vector.shape_cast %204 : vector<1x8x512xf32> to vector<8x512xf32>
    %206 = arith.addf %205, %171 : vector<8x512xf32>
    %207 = vector.extract_strided_slice %206 {offsets = [0, 0], sizes = [8, 128], strides = [1, 1]} : vector<8x512xf32> to vector<8x128xf32>
    %208 = arith.negf %207 : vector<8x128xf32>
    %209 = math.exp %208 : vector<8x128xf32>
    %cst_43 = arith.constant 1.000000e+00 : f32
    %210 = vector.broadcast %cst_43 : f32 to vector<8x128xf32>
    %211 = arith.addf %210, %209 : vector<8x128xf32>
    %212 = arith.divf %210, %211 : vector<8x128xf32>
    %213 = vector.extract_strided_slice %206 {offsets = [0, 128], sizes = [8, 128], strides = [1, 1]} : vector<8x512xf32> to vector<8x128xf32>
    %214 = arith.negf %213 : vector<8x128xf32>
    %215 = math.exp %214 : vector<8x128xf32>
    %cst_44 = arith.constant 1.000000e+00 : f32
    %216 = vector.broadcast %cst_44 : f32 to vector<8x128xf32>
    %217 = arith.addf %216, %215 : vector<8x128xf32>
    %218 = arith.divf %216, %217 : vector<8x128xf32>
    %219 = vector.extract_strided_slice %206 {offsets = [0, 256], sizes = [8, 128], strides = [1, 1]} : vector<8x512xf32> to vector<8x128xf32>
    %220 = math.tanh %219 : vector<8x128xf32>
    %221 = vector.extract_strided_slice %206 {offsets = [0, 384], sizes = [8, 128], strides = [1, 1]} : vector<8x512xf32> to vector<8x128xf32>
    %222 = arith.negf %221 : vector<8x128xf32>
    %223 = math.exp %222 : vector<8x128xf32>
    %cst_45 = arith.constant 1.000000e+00 : f32
    %224 = vector.broadcast %cst_45 : f32 to vector<8x128xf32>
    %225 = arith.addf %224, %223 : vector<8x128xf32>
    %226 = arith.divf %224, %225 : vector<8x128xf32>
    %227 = arith.mulf %218, %163 : vector<8x128xf32>
    %228 = arith.mulf %212, %220 : vector<8x128xf32>
    %229 = arith.addf %227, %228 : vector<8x128xf32>
    %230 = math.tanh %229 : vector<8x128xf32>
    %231 = arith.mulf %226, %230 : vector<8x128xf32>
    %232 = arith.truncf %231 : vector<8x128xf32> to vector<8x128xbf16>
    %233 = arith.truncf %198 : vector<8x128xf32> to vector<8x128xbf16>
    %234 = tpu.concatenate %232, %233 in 1 : vector<8x128xbf16>, vector<8x128xbf16> -> vector<8x256xbf16>
    %c0_46 = arith.constant 0 : index
    %c0_47 = arith.constant 0 : index
    %235 = vector.load %arg2[%c0_46, %c0_47] : memref<256x1024xbf16, #tpu.memory_space<vmem>>, vector<256x1024xbf16>
    %cst_48 = arith.constant dense<0.000000e+00> : vector<8x1024xf32>
    %236 = tpu.matmul %234, %235, %cst_48 {dimension_numbers = #tpu.dot_dimension_numbers<[1], [0], [0], [1], [0, 0, 1, 1], [], []>} : vector<8x256xbf16>, vector<256x1024xbf16>, vector<8x1024xf32> -> vector<8x1024xf32>
    %237 = vector.extract_strided_slice %236 {offsets = [0, 0], sizes = [8, 512], strides = [1, 1]} : vector<8x1024xf32> to vector<8x512xf32>
    %238 = vector.extract_strided_slice %236 {offsets = [0, 512], sizes = [8, 512], strides = [1, 1]} : vector<8x1024xf32> to vector<8x512xf32>
    %239 = arith.addf %238, %2 : vector<8x512xf32>
    %240 = vector.extract_strided_slice %239 {offsets = [0, 0], sizes = [8, 128], strides = [1, 1]} : vector<8x512xf32> to vector<8x128xf32>
    %241 = arith.negf %240 : vector<8x128xf32>
    %242 = math.exp %241 : vector<8x128xf32>
    %cst_49 = arith.constant 1.000000e+00 : f32
    %243 = vector.broadcast %cst_49 : f32 to vector<8x128xf32>
    %244 = arith.addf %243, %242 : vector<8x128xf32>
    %245 = arith.divf %243, %244 : vector<8x128xf32>
    %246 = vector.extract_strided_slice %239 {offsets = [0, 128], sizes = [8, 128], strides = [1, 1]} : vector<8x512xf32> to vector<8x128xf32>
    %247 = arith.negf %246 : vector<8x128xf32>
    %248 = math.exp %247 : vector<8x128xf32>
    %cst_50 = arith.constant 1.000000e+00 : f32
    %249 = vector.broadcast %cst_50 : f32 to vector<8x128xf32>
    %250 = arith.addf %249, %248 : vector<8x128xf32>
    %251 = arith.divf %249, %250 : vector<8x128xf32>
    %252 = vector.extract_strided_slice %239 {offsets = [0, 256], sizes = [8, 128], strides = [1, 1]} : vector<8x512xf32> to vector<8x128xf32>
    %253 = math.tanh %252 : vector<8x128xf32>
    %254 = vector.extract_strided_slice %239 {offsets = [0, 384], sizes = [8, 128], strides = [1, 1]} : vector<8x512xf32> to vector<8x128xf32>
    %255 = arith.negf %254 : vector<8x128xf32>
    %256 = math.exp %255 : vector<8x128xf32>
    %cst_51 = arith.constant 1.000000e+00 : f32
    %257 = vector.broadcast %cst_51 : f32 to vector<8x128xf32>
    %258 = arith.addf %257, %256 : vector<8x128xf32>
    %259 = arith.divf %257, %258 : vector<8x128xf32>
    %260 = arith.mulf %251, %196 : vector<8x128xf32>
    %261 = arith.mulf %245, %253 : vector<8x128xf32>
    %262 = arith.addf %260, %261 : vector<8x128xf32>
    %263 = math.tanh %262 : vector<8x128xf32>
    %264 = arith.mulf %259, %263 : vector<8x128xf32>
    %265 = arith.index_cast %c3_i32 : i32 to index
    %c0_52 = arith.constant 0 : index
    %c0_53 = arith.constant 0 : index
    %266 = vector.load %arg4[%265, %c0_52, %c0_53] : memref<8x8x128xf32, #tpu.memory_space<vmem>>, vector<1x8x128xf32>
    %267 = vector.shape_cast %266 : vector<1x8x128xf32> to vector<8x128xf32>
    %268 = vector.shape_cast %264 : vector<8x128xf32> to vector<1x8x128xf32>
    tpu.vector_store %arg4[%265, %c0_52, %c0_53], %268 {strides = array<i32>} : memref<8x8x128xf32, #tpu.memory_space<vmem>>, vector<1x8x128xf32>,
    %c4_i32 = arith.constant 4 : i32
    %269 = arith.index_cast %c4_i32 : i32 to index
    %c0_54 = arith.constant 0 : index
    %c0_55 = arith.constant 0 : index
    %270 = vector.load %arg1[%269, %c0_54, %c0_55] : memref<8x8x512xf32, #tpu.memory_space<vmem>>, vector<1x8x512xf32>
    %271 = vector.shape_cast %270 : vector<1x8x512xf32> to vector<8x512xf32>
    %272 = arith.addf %271, %237 : vector<8x512xf32>
    %273 = vector.extract_strided_slice %272 {offsets = [0, 0], sizes = [8, 128], strides = [1, 1]} : vector<8x512xf32> to vector<8x128xf32>
    %274 = arith.negf %273 : vector<8x128xf32>
    %275 = math.exp %274 : vector<8x128xf32>
    %cst_56 = arith.constant 1.000000e+00 : f32
    %276 = vector.broadcast %cst_56 : f32 to vector<8x128xf32>
    %277 = arith.addf %276, %275 : vector<8x128xf32>
    %278 = arith.divf %276, %277 : vector<8x128xf32>
    %279 = vector.extract_strided_slice %272 {offsets = [0, 128], sizes = [8, 128], strides = [1, 1]} : vector<8x512xf32> to vector<8x128xf32>
    %280 = arith.negf %279 : vector<8x128xf32>
    %281 = math.exp %280 : vector<8x128xf32>
    %cst_57 = arith.constant 1.000000e+00 : f32
    %282 = vector.broadcast %cst_57 : f32 to vector<8x128xf32>
    %283 = arith.addf %282, %281 : vector<8x128xf32>
    %284 = arith.divf %282, %283 : vector<8x128xf32>
    %285 = vector.extract_strided_slice %272 {offsets = [0, 256], sizes = [8, 128], strides = [1, 1]} : vector<8x512xf32> to vector<8x128xf32>
    %286 = math.tanh %285 : vector<8x128xf32>
    %287 = vector.extract_strided_slice %272 {offsets = [0, 384], sizes = [8, 128], strides = [1, 1]} : vector<8x512xf32> to vector<8x128xf32>
    %288 = arith.negf %287 : vector<8x128xf32>
    %289 = math.exp %288 : vector<8x128xf32>
    %cst_58 = arith.constant 1.000000e+00 : f32
    %290 = vector.broadcast %cst_58 : f32 to vector<8x128xf32>
    %291 = arith.addf %290, %289 : vector<8x128xf32>
    %292 = arith.divf %290, %291 : vector<8x128xf32>
    %293 = arith.mulf %284, %229 : vector<8x128xf32>
    %294 = arith.mulf %278, %286 : vector<8x128xf32>
    %295 = arith.addf %293, %294 : vector<8x128xf32>
    %296 = math.tanh %295 : vector<8x128xf32>
    %297 = arith.mulf %292, %296 : vector<8x128xf32>
    %298 = arith.truncf %297 : vector<8x128xf32> to vector<8x128xbf16>
    %299 = arith.truncf %264 : vector<8x128xf32> to vector<8x128xbf16>
    %300 = tpu.concatenate %298, %299 in 1 : vector<8x128xbf16>, vector<8x128xbf16> -> vector<8x256xbf16>
    %c0_59 = arith.constant 0 : index
    %c0_60 = arith.constant 0 : index
    %301 = vector.load %arg2[%c0_59, %c0_60] : memref<256x1024xbf16, #tpu.memory_space<vmem>>, vector<256x1024xbf16>
    %cst_61 = arith.constant dense<0.000000e+00> : vector<8x1024xf32>
    %302 = tpu.matmul %300, %301, %cst_61 {dimension_numbers = #tpu.dot_dimension_numbers<[1], [0], [0], [1], [0, 0, 1, 1], [], []>} : vector<8x256xbf16>, vector<256x1024xbf16>, vector<8x1024xf32> -> vector<8x1024xf32>
    %303 = vector.extract_strided_slice %302 {offsets = [0, 0], sizes = [8, 512], strides = [1, 1]} : vector<8x1024xf32> to vector<8x512xf32>
    %304 = vector.extract_strided_slice %302 {offsets = [0, 512], sizes = [8, 512], strides = [1, 1]} : vector<8x1024xf32> to vector<8x512xf32>
    %305 = arith.addf %304, %2 : vector<8x512xf32>
    %306 = vector.extract_strided_slice %305 {offsets = [0, 0], sizes = [8, 128], strides = [1, 1]} : vector<8x512xf32> to vector<8x128xf32>
    %307 = arith.negf %306 : vector<8x128xf32>
    %308 = math.exp %307 : vector<8x128xf32>
    %cst_62 = arith.constant 1.000000e+00 : f32
    %309 = vector.broadcast %cst_62 : f32 to vector<8x128xf32>
    %310 = arith.addf %309, %308 : vector<8x128xf32>
    %311 = arith.divf %309, %310 : vector<8x128xf32>
    %312 = vector.extract_strided_slice %305 {offsets = [0, 128], sizes = [8, 128], strides = [1, 1]} : vector<8x512xf32> to vector<8x128xf32>
    %313 = arith.negf %312 : vector<8x128xf32>
    %314 = math.exp %313 : vector<8x128xf32>
    %cst_63 = arith.constant 1.000000e+00 : f32
    %315 = vector.broadcast %cst_63 : f32 to vector<8x128xf32>
    %316 = arith.addf %315, %314 : vector<8x128xf32>
    %317 = arith.divf %315, %316 : vector<8x128xf32>
    %318 = vector.extract_strided_slice %305 {offsets = [0, 256], sizes = [8, 128], strides = [1, 1]} : vector<8x512xf32> to vector<8x128xf32>
    %319 = math.tanh %318 : vector<8x128xf32>
    %320 = vector.extract_strided_slice %305 {offsets = [0, 384], sizes = [8, 128], strides = [1, 1]} : vector<8x512xf32> to vector<8x128xf32>
    %321 = arith.negf %320 : vector<8x128xf32>
    %322 = math.exp %321 : vector<8x128xf32>
    %cst_64 = arith.constant 1.000000e+00 : f32
    %323 = vector.broadcast %cst_64 : f32 to vector<8x128xf32>
    %324 = arith.addf %323, %322 : vector<8x128xf32>
    %325 = arith.divf %323, %324 : vector<8x128xf32>
    %326 = arith.mulf %317, %262 : vector<8x128xf32>
    %327 = arith.mulf %311, %319 : vector<8x128xf32>
    %328 = arith.addf %326, %327 : vector<8x128xf32>
    %329 = math.tanh %328 : vector<8x128xf32>
    %330 = arith.mulf %325, %329 : vector<8x128xf32>
    %331 = arith.index_cast %c4_i32 : i32 to index
    %c0_65 = arith.constant 0 : index
    %c0_66 = arith.constant 0 : index
    %332 = vector.load %arg4[%331, %c0_65, %c0_66] : memref<8x8x128xf32, #tpu.memory_space<vmem>>, vector<1x8x128xf32>
    %333 = vector.shape_cast %332 : vector<1x8x128xf32> to vector<8x128xf32>
    %334 = vector.shape_cast %330 : vector<8x128xf32> to vector<1x8x128xf32>
    tpu.vector_store %arg4[%331, %c0_65, %c0_66], %334 {strides = array<i32>} : memref<8x8x128xf32, #tpu.memory_space<vmem>>, vector<1x8x128xf32>,
    %c5_i32 = arith.constant 5 : i32
    %335 = arith.index_cast %c5_i32 : i32 to index
    %c0_67 = arith.constant 0 : index
    %c0_68 = arith.constant 0 : index
    %336 = vector.load %arg1[%335, %c0_67, %c0_68] : memref<8x8x512xf32, #tpu.memory_space<vmem>>, vector<1x8x512xf32>
    %337 = vector.shape_cast %336 : vector<1x8x512xf32> to vector<8x512xf32>
    %338 = arith.addf %337, %303 : vector<8x512xf32>
    %339 = vector.extract_strided_slice %338 {offsets = [0, 0], sizes = [8, 128], strides = [1, 1]} : vector<8x512xf32> to vector<8x128xf32>
    %340 = arith.negf %339 : vector<8x128xf32>
    %341 = math.exp %340 : vector<8x128xf32>
    %cst_69 = arith.constant 1.000000e+00 : f32
    %342 = vector.broadcast %cst_69 : f32 to vector<8x128xf32>
    %343 = arith.addf %342, %341 : vector<8x128xf32>
    %344 = arith.divf %342, %343 : vector<8x128xf32>
    %345 = vector.extract_strided_slice %338 {offsets = [0, 128], sizes = [8, 128], strides = [1, 1]} : vector<8x512xf32> to vector<8x128xf32>
    %346 = arith.negf %345 : vector<8x128xf32>
    %347 = math.exp %346 : vector<8x128xf32>
    %cst_70 = arith.constant 1.000000e+00 : f32
    %348 = vector.broadcast %cst_70 : f32 to vector<8x128xf32>
    %349 = arith.addf %348, %347 : vector<8x128xf32>
    %350 = arith.divf %348, %349 : vector<8x128xf32>
    %351 = vector.extract_strided_slice %338 {offsets = [0, 256], sizes = [8, 128], strides = [1, 1]} : vector<8x512xf32> to vector<8x128xf32>
    %352 = math.tanh %351 : vector<8x128xf32>
    %353 = vector.extract_strided_slice %338 {offsets = [0, 384], sizes = [8, 128], strides = [1, 1]} : vector<8x512xf32> to vector<8x128xf32>
    %354 = arith.negf %353 : vector<8x128xf32>
    %355 = math.exp %354 : vector<8x128xf32>
    %cst_71 = arith.constant 1.000000e+00 : f32
    %356 = vector.broadcast %cst_71 : f32 to vector<8x128xf32>
    %357 = arith.addf %356, %355 : vector<8x128xf32>
    %358 = arith.divf %356, %357 : vector<8x128xf32>
    %359 = arith.mulf %350, %295 : vector<8x128xf32>
    %360 = arith.mulf %344, %352 : vector<8x128xf32>
    %361 = arith.addf %359, %360 : vector<8x128xf32>
    %362 = math.tanh %361 : vector<8x128xf32>
    %363 = arith.mulf %358, %362 : vector<8x128xf32>
    %364 = arith.truncf %363 : vector<8x128xf32> to vector<8x128xbf16>
    %365 = arith.truncf %330 : vector<8x128xf32> to vector<8x128xbf16>
    %366 = tpu.concatenate %364, %365 in 1 : vector<8x128xbf16>, vector<8x128xbf16> -> vector<8x256xbf16>
    %c0_72 = arith.constant 0 : index
    %c0_73 = arith.constant 0 : index
    %367 = vector.load %arg2[%c0_72, %c0_73] : memref<256x1024xbf16, #tpu.memory_space<vmem>>, vector<256x1024xbf16>
    %cst_74 = arith.constant dense<0.000000e+00> : vector<8x1024xf32>
    %368 = tpu.matmul %366, %367, %cst_74 {dimension_numbers = #tpu.dot_dimension_numbers<[1], [0], [0], [1], [0, 0, 1, 1], [], []>} : vector<8x256xbf16>, vector<256x1024xbf16>, vector<8x1024xf32> -> vector<8x1024xf32>
    %369 = vector.extract_strided_slice %368 {offsets = [0, 0], sizes = [8, 512], strides = [1, 1]} : vector<8x1024xf32> to vector<8x512xf32>
    %370 = vector.extract_strided_slice %368 {offsets = [0, 512], sizes = [8, 512], strides = [1, 1]} : vector<8x1024xf32> to vector<8x512xf32>
    %371 = arith.addf %370, %2 : vector<8x512xf32>
    %372 = vector.extract_strided_slice %371 {offsets = [0, 0], sizes = [8, 128], strides = [1, 1]} : vector<8x512xf32> to vector<8x128xf32>
    %373 = arith.negf %372 : vector<8x128xf32>
    %374 = math.exp %373 : vector<8x128xf32>
    %cst_75 = arith.constant 1.000000e+00 : f32
    %375 = vector.broadcast %cst_75 : f32 to vector<8x128xf32>
    %376 = arith.addf %375, %374 : vector<8x128xf32>
    %377 = arith.divf %375, %376 : vector<8x128xf32>
    %378 = vector.extract_strided_slice %371 {offsets = [0, 128], sizes = [8, 128], strides = [1, 1]} : vector<8x512xf32> to vector<8x128xf32>
    %379 = arith.negf %378 : vector<8x128xf32>
    %380 = math.exp %379 : vector<8x128xf32>
    %cst_76 = arith.constant 1.000000e+00 : f32
    %381 = vector.broadcast %cst_76 : f32 to vector<8x128xf32>
    %382 = arith.addf %381, %380 : vector<8x128xf32>
    %383 = arith.divf %381, %382 : vector<8x128xf32>
    %384 = vector.extract_strided_slice %371 {offsets = [0, 256], sizes = [8, 128], strides = [1, 1]} : vector<8x512xf32> to vector<8x128xf32>
    %385 = math.tanh %384 : vector<8x128xf32>
    %386 = vector.extract_strided_slice %371 {offsets = [0, 384], sizes = [8, 128], strides = [1, 1]} : vector<8x512xf32> to vector<8x128xf32>
    %387 = arith.negf %386 : vector<8x128xf32>
    %388 = math.exp %387 : vector<8x128xf32>
    %cst_77 = arith.constant 1.000000e+00 : f32
    %389 = vector.broadcast %cst_77 : f32 to vector<8x128xf32>
    %390 = arith.addf %389, %388 : vector<8x128xf32>
    %391 = arith.divf %389, %390 : vector<8x128xf32>
    %392 = arith.mulf %383, %328 : vector<8x128xf32>
    %393 = arith.mulf %377, %385 : vector<8x128xf32>
    %394 = arith.addf %392, %393 : vector<8x128xf32>
    %395 = math.tanh %394 : vector<8x128xf32>
    %396 = arith.mulf %391, %395 : vector<8x128xf32>
    %397 = arith.index_cast %c5_i32 : i32 to index
    %c0_78 = arith.constant 0 : index
    %c0_79 = arith.constant 0 : index
    %398 = vector.load %arg4[%397, %c0_78, %c0_79] : memref<8x8x128xf32, #tpu.memory_space<vmem>>, vector<1x8x128xf32>
    %399 = vector.shape_cast %398 : vector<1x8x128xf32> to vector<8x128xf32>
    %400 = vector.shape_cast %396 : vector<8x128xf32> to vector<1x8x128xf32>
    tpu.vector_store %arg4[%397, %c0_78, %c0_79], %400 {strides = array<i32>} : memref<8x8x128xf32, #tpu.memory_space<vmem>>, vector<1x8x128xf32>,
    %c6_i32 = arith.constant 6 : i32
    %401 = arith.index_cast %c6_i32 : i32 to index
    %c0_80 = arith.constant 0 : index
    %c0_81 = arith.constant 0 : index
    %402 = vector.load %arg1[%401, %c0_80, %c0_81] : memref<8x8x512xf32, #tpu.memory_space<vmem>>, vector<1x8x512xf32>
    %403 = vector.shape_cast %402 : vector<1x8x512xf32> to vector<8x512xf32>
    %404 = arith.addf %403, %369 : vector<8x512xf32>
    %405 = vector.extract_strided_slice %404 {offsets = [0, 0], sizes = [8, 128], strides = [1, 1]} : vector<8x512xf32> to vector<8x128xf32>
    %406 = arith.negf %405 : vector<8x128xf32>
    %407 = math.exp %406 : vector<8x128xf32>
    %cst_82 = arith.constant 1.000000e+00 : f32
    %408 = vector.broadcast %cst_82 : f32 to vector<8x128xf32>
    %409 = arith.addf %408, %407 : vector<8x128xf32>
    %410 = arith.divf %408, %409 : vector<8x128xf32>
    %411 = vector.extract_strided_slice %404 {offsets = [0, 128], sizes = [8, 128], strides = [1, 1]} : vector<8x512xf32> to vector<8x128xf32>
    %412 = arith.negf %411 : vector<8x128xf32>
    %413 = math.exp %412 : vector<8x128xf32>
    %cst_83 = arith.constant 1.000000e+00 : f32
    %414 = vector.broadcast %cst_83 : f32 to vector<8x128xf32>
    %415 = arith.addf %414, %413 : vector<8x128xf32>
    %416 = arith.divf %414, %415 : vector<8x128xf32>
    %417 = vector.extract_strided_slice %404 {offsets = [0, 256], sizes = [8, 128], strides = [1, 1]} : vector<8x512xf32> to vector<8x128xf32>
    %418 = math.tanh %417 : vector<8x128xf32>
    %419 = vector.extract_strided_slice %404 {offsets = [0, 384], sizes = [8, 128], strides = [1, 1]} : vector<8x512xf32> to vector<8x128xf32>
    %420 = arith.negf %419 : vector<8x128xf32>
    %421 = math.exp %420 : vector<8x128xf32>
    %cst_84 = arith.constant 1.000000e+00 : f32
    %422 = vector.broadcast %cst_84 : f32 to vector<8x128xf32>
    %423 = arith.addf %422, %421 : vector<8x128xf32>
    %424 = arith.divf %422, %423 : vector<8x128xf32>
    %425 = arith.mulf %416, %361 : vector<8x128xf32>
    %426 = arith.mulf %410, %418 : vector<8x128xf32>
    %427 = arith.addf %425, %426 : vector<8x128xf32>
    %428 = math.tanh %427 : vector<8x128xf32>
    %429 = arith.mulf %424, %428 : vector<8x128xf32>
    %430 = arith.truncf %429 : vector<8x128xf32> to vector<8x128xbf16>
    %431 = arith.truncf %396 : vector<8x128xf32> to vector<8x128xbf16>
    %432 = tpu.concatenate %430, %431 in 1 : vector<8x128xbf16>, vector<8x128xbf16> -> vector<8x256xbf16>
    %c0_85 = arith.constant 0 : index
    %c0_86 = arith.constant 0 : index
    %433 = vector.load %arg2[%c0_85, %c0_86] : memref<256x1024xbf16, #tpu.memory_space<vmem>>, vector<256x1024xbf16>
    %cst_87 = arith.constant dense<0.000000e+00> : vector<8x1024xf32>
    %434 = tpu.matmul %432, %433, %cst_87 {dimension_numbers = #tpu.dot_dimension_numbers<[1], [0], [0], [1], [0, 0, 1, 1], [], []>} : vector<8x256xbf16>, vector<256x1024xbf16>, vector<8x1024xf32> -> vector<8x1024xf32>
    %435 = vector.extract_strided_slice %434 {offsets = [0, 0], sizes = [8, 512], strides = [1, 1]} : vector<8x1024xf32> to vector<8x512xf32>
    %436 = vector.extract_strided_slice %434 {offsets = [0, 512], sizes = [8, 512], strides = [1, 1]} : vector<8x1024xf32> to vector<8x512xf32>
    %437 = arith.addf %436, %2 : vector<8x512xf32>
    %438 = vector.extract_strided_slice %437 {offsets = [0, 0], sizes = [8, 128], strides = [1, 1]} : vector<8x512xf32> to vector<8x128xf32>
    %439 = arith.negf %438 : vector<8x128xf32>
    %440 = math.exp %439 : vector<8x128xf32>
    %cst_88 = arith.constant 1.000000e+00 : f32
    %441 = vector.broadcast %cst_88 : f32 to vector<8x128xf32>
    %442 = arith.addf %441, %440 : vector<8x128xf32>
    %443 = arith.divf %441, %442 : vector<8x128xf32>
    %444 = vector.extract_strided_slice %437 {offsets = [0, 128], sizes = [8, 128], strides = [1, 1]} : vector<8x512xf32> to vector<8x128xf32>
    %445 = arith.negf %444 : vector<8x128xf32>
    %446 = math.exp %445 : vector<8x128xf32>
    %cst_89 = arith.constant 1.000000e+00 : f32
    %447 = vector.broadcast %cst_89 : f32 to vector<8x128xf32>
    %448 = arith.addf %447, %446 : vector<8x128xf32>
    %449 = arith.divf %447, %448 : vector<8x128xf32>
    %450 = vector.extract_strided_slice %437 {offsets = [0, 256], sizes = [8, 128], strides = [1, 1]} : vector<8x512xf32> to vector<8x128xf32>
    %451 = math.tanh %450 : vector<8x128xf32>
    %452 = vector.extract_strided_slice %437 {offsets = [0, 384], sizes = [8, 128], strides = [1, 1]} : vector<8x512xf32> to vector<8x128xf32>
    %453 = arith.negf %452 : vector<8x128xf32>
    %454 = math.exp %453 : vector<8x128xf32>
    %cst_90 = arith.constant 1.000000e+00 : f32
    %455 = vector.broadcast %cst_90 : f32 to vector<8x128xf32>
    %456 = arith.addf %455, %454 : vector<8x128xf32>
    %457 = arith.divf %455, %456 : vector<8x128xf32>
    %458 = arith.mulf %449, %394 : vector<8x128xf32>
    %459 = arith.mulf %443, %451 : vector<8x128xf32>
    %460 = arith.addf %458, %459 : vector<8x128xf32>
    %461 = math.tanh %460 : vector<8x128xf32>
    %462 = arith.mulf %457, %461 : vector<8x128xf32>
    %463 = arith.index_cast %c6_i32 : i32 to index
    %c0_91 = arith.constant 0 : index
    %c0_92 = arith.constant 0 : index
    %464 = vector.load %arg4[%463, %c0_91, %c0_92] : memref<8x8x128xf32, #tpu.memory_space<vmem>>, vector<1x8x128xf32>
    %465 = vector.shape_cast %464 : vector<1x8x128xf32> to vector<8x128xf32>
    %466 = vector.shape_cast %462 : vector<8x128xf32> to vector<1x8x128xf32>
    tpu.vector_store %arg4[%463, %c0_91, %c0_92], %466 {strides = array<i32>} : memref<8x8x128xf32, #tpu.memory_space<vmem>>, vector<1x8x128xf32>,
    %c7_i32 = arith.constant 7 : i32
    %467 = arith.index_cast %c7_i32 : i32 to index
    %c0_93 = arith.constant 0 : index
    %c0_94 = arith.constant 0 : index
    %468 = vector.load %arg1[%467, %c0_93, %c0_94] : memref<8x8x512xf32, #tpu.memory_space<vmem>>, vector<1x8x512xf32>
    %469 = vector.shape_cast %468 : vector<1x8x512xf32> to vector<8x512xf32>
    %470 = arith.addf %469, %435 : vector<8x512xf32>
    %471 = vector.extract_strided_slice %470 {offsets = [0, 0], sizes = [8, 128], strides = [1, 1]} : vector<8x512xf32> to vector<8x128xf32>
    %472 = arith.negf %471 : vector<8x128xf32>
    %473 = math.exp %472 : vector<8x128xf32>
    %cst_95 = arith.constant 1.000000e+00 : f32
    %474 = vector.broadcast %cst_95 : f32 to vector<8x128xf32>
    %475 = arith.addf %474, %473 : vector<8x128xf32>
    %476 = arith.divf %474, %475 : vector<8x128xf32>
    %477 = vector.extract_strided_slice %470 {offsets = [0, 128], sizes = [8, 128], strides = [1, 1]} : vector<8x512xf32> to vector<8x128xf32>
    %478 = arith.negf %477 : vector<8x128xf32>
    %479 = math.exp %478 : vector<8x128xf32>
    %cst_96 = arith.constant 1.000000e+00 : f32
    %480 = vector.broadcast %cst_96 : f32 to vector<8x128xf32>
    %481 = arith.addf %480, %479 : vector<8x128xf32>
    %482 = arith.divf %480, %481 : vector<8x128xf32>
    %483 = vector.extract_strided_slice %470 {offsets = [0, 256], sizes = [8, 128], strides = [1, 1]} : vector<8x512xf32> to vector<8x128xf32>
    %484 = math.tanh %483 : vector<8x128xf32>
    %485 = vector.extract_strided_slice %470 {offsets = [0, 384], sizes = [8, 128], strides = [1, 1]} : vector<8x512xf32> to vector<8x128xf32>
    %486 = arith.negf %485 : vector<8x128xf32>
    %487 = math.exp %486 : vector<8x128xf32>
    %cst_97 = arith.constant 1.000000e+00 : f32
    %488 = vector.broadcast %cst_97 : f32 to vector<8x128xf32>
    %489 = arith.addf %488, %487 : vector<8x128xf32>
    %490 = arith.divf %488, %489 : vector<8x128xf32>
    %491 = arith.mulf %482, %427 : vector<8x128xf32>
    %492 = arith.mulf %476, %484 : vector<8x128xf32>
    %493 = arith.addf %491, %492 : vector<8x128xf32>
    %494 = math.tanh %493 : vector<8x128xf32>
    %495 = arith.mulf %490, %494 : vector<8x128xf32>
    %496 = arith.truncf %495 : vector<8x128xf32> to vector<8x128xbf16>
    %497 = arith.truncf %462 : vector<8x128xf32> to vector<8x128xbf16>
    %498 = tpu.concatenate %496, %497 in 1 : vector<8x128xbf16>, vector<8x128xbf16> -> vector<8x256xbf16>
    %c0_98 = arith.constant 0 : index
    %c0_99 = arith.constant 0 : index
    %499 = vector.load %arg2[%c0_98, %c0_99] : memref<256x1024xbf16, #tpu.memory_space<vmem>>, vector<256x1024xbf16>
    %cst_100 = arith.constant dense<0.000000e+00> : vector<8x1024xf32>
    %500 = tpu.matmul %498, %499, %cst_100 {dimension_numbers = #tpu.dot_dimension_numbers<[1], [0], [0], [1], [0, 0, 1, 1], [], []>} : vector<8x256xbf16>, vector<256x1024xbf16>, vector<8x1024xf32> -> vector<8x1024xf32>
    %501 = vector.extract_strided_slice %500 {offsets = [0, 0], sizes = [8, 512], strides = [1, 1]} : vector<8x1024xf32> to vector<8x512xf32>
    %502 = vector.extract_strided_slice %500 {offsets = [0, 512], sizes = [8, 512], strides = [1, 1]} : vector<8x1024xf32> to vector<8x512xf32>
    %503 = arith.addf %502, %2 : vector<8x512xf32>
    %504 = vector.extract_strided_slice %503 {offsets = [0, 0], sizes = [8, 128], strides = [1, 1]} : vector<8x512xf32> to vector<8x128xf32>
    %505 = arith.negf %504 : vector<8x128xf32>
    %506 = math.exp %505 : vector<8x128xf32>
    %cst_101 = arith.constant 1.000000e+00 : f32
    %507 = vector.broadcast %cst_101 : f32 to vector<8x128xf32>
    %508 = arith.addf %507, %506 : vector<8x128xf32>
    %509 = arith.divf %507, %508 : vector<8x128xf32>
    %510 = vector.extract_strided_slice %503 {offsets = [0, 128], sizes = [8, 128], strides = [1, 1]} : vector<8x512xf32> to vector<8x128xf32>
    %511 = arith.negf %510 : vector<8x128xf32>
    %512 = math.exp %511 : vector<8x128xf32>
    %cst_102 = arith.constant 1.000000e+00 : f32
    %513 = vector.broadcast %cst_102 : f32 to vector<8x128xf32>
    %514 = arith.addf %513, %512 : vector<8x128xf32>
    %515 = arith.divf %513, %514 : vector<8x128xf32>
    %516 = vector.extract_strided_slice %503 {offsets = [0, 256], sizes = [8, 128], strides = [1, 1]} : vector<8x512xf32> to vector<8x128xf32>
    %517 = math.tanh %516 : vector<8x128xf32>
    %518 = vector.extract_strided_slice %503 {offsets = [0, 384], sizes = [8, 128], strides = [1, 1]} : vector<8x512xf32> to vector<8x128xf32>
    %519 = arith.negf %518 : vector<8x128xf32>
    %520 = math.exp %519 : vector<8x128xf32>
    %cst_103 = arith.constant 1.000000e+00 : f32
    %521 = vector.broadcast %cst_103 : f32 to vector<8x128xf32>
    %522 = arith.addf %521, %520 : vector<8x128xf32>
    %523 = arith.divf %521, %522 : vector<8x128xf32>
    %524 = arith.mulf %515, %460 : vector<8x128xf32>
    %525 = arith.mulf %509, %517 : vector<8x128xf32>
    %526 = arith.addf %524, %525 : vector<8x128xf32>
    %527 = math.tanh %526 : vector<8x128xf32>
    %528 = arith.mulf %523, %527 : vector<8x128xf32>
    %529 = arith.index_cast %c7_i32 : i32 to index
    %c0_104 = arith.constant 0 : index
    %c0_105 = arith.constant 0 : index
    %530 = vector.load %arg4[%529, %c0_104, %c0_105] : memref<8x8x128xf32, #tpu.memory_space<vmem>>, vector<1x8x128xf32>
    %531 = vector.shape_cast %530 : vector<1x8x128xf32> to vector<8x128xf32>
    %532 = vector.shape_cast %528 : vector<8x128xf32> to vector<1x8x128xf32>
    tpu.vector_store %arg4[%529, %c0_104, %c0_105], %532 {strides = array<i32>} : memref<8x8x128xf32, #tpu.memory_space<vmem>>, vector<1x8x128xf32>,
    %c8_i32 = arith.constant 8 : i32
    return
  }
  func.func @transform_0(%arg0: i32) -> (i32, i32, i32) {
    %c0_i32 = arith.constant 0 : i32
    %c0_i32_0 = arith.constant 0 : i32
    %c0_i32_1 = arith.constant 0 : i32
    %c0_i32_2 = arith.constant 0 : i32
    return %c0_i32, %c0_i32_0, %c0_i32_1 : i32, i32, i32
  }
  func.func @transform_1(%arg0: i32) -> (i32, i32) {
    %c0_i32 = arith.constant 0 : i32
    %c0_i32_0 = arith.constant 0 : i32
    %c0_i32_1 = arith.constant 0 : i32
    return %c0_i32, %c0_i32_0 : i32, i32
  }
  func.func @transform_2(%arg0: i32) -> (i32, i32) {
    %c0_i32 = arith.constant 0 : i32
    %c0_i32_0 = arith.constant 0 : i32
    %c0_i32_1 = arith.constant 0 : i32
    return %c0_i32, %c0_i32_0 : i32, i32
  }
  func.func @transform_3(%arg0: i32) -> (i32, i32, i32) {
    %c0_i32 = arith.constant 0 : i32
    %c0_i32_0 = arith.constant 0 : i32
    %c0_i32_1 = arith.constant 0 : i32
    %c0_i32_2 = arith.constant 0 : i32
    return %c0_i32, %c0_i32_0, %c0_i32_1 : i32, i32, i32
  }
}

</mosaic_0001>

<llo_original>
// kernel: lstm_model_forward.1
$region0: #{lstm_model_forward.1}
  #allocation0 [shape = 'u32[]', space=smem, size = 0x4, offset = 0x4, fixed_abs, tag = 'smem constant byte address 0x4 - core index']
  #allocation1 [shape = 'u32[144,128]{1,0:T(1,128)}', space=vmem, size = 0x12000, scoped, tag = 'internal scratch']
  %s0 = inlined_call_operand.vmem [shape: f32[8,8,512], index: 0, kind: input, shape index: {}]
  %s1 = inlined_call_operand.hbm [shape: bf16[256,1024], index: 1, kind: input, shape index: {}]
  %s2 = inlined_call_operand.vmem [shape: f32[1,512], index: 2, kind: input, shape index: {}]
  %s3 = inlined_call_operand.vmem [shape: f32[8,8,128], index: 3, kind: output, shape index: {}]
  %s4 = sld [smem:[#allocation0]]
  $region26: #{lstm_model_forward.1} parent=0
    _
  %s6 = ssub.s32 1, %s4
  %s7 = scalar_select 0, %s6, %s4
  $region1: #{lstm_model_forward.1} parent=0
    #allocation2 [shape = 'u8[524288]{0}', space=vmem, size = 0x80000, scoped, tag = 'input window, operand 1, single buffered']
    #allocation3 [shape = 's32[1]{0}', space=sflag, size = 0x4, scoped, tag = 'scoped memory for lstm_model_forward.1']
    %8 = vsyncpa [#allocation3], 0
    // Predicated region
    $region2: #{lstm_model_forward.1} parent=1 // pred_check
      _
    $region3: #{lstm_model_forward.1} parent=1 // pred_check_branch
      %10 = sbr.rel (0) target = $region5
    $region4: #{lstm_model_forward.1} parent=1 // pred_region
      _
    $region5: #{lstm_model_forward.1} parent=1 // pred_fallthru
      _
    // Predicated region
    $region6: #{lstm_model_forward.1} parent=1 // pred_check
      _
    $region7: #{lstm_model_forward.1} parent=1 // pred_check_branch
      %12 = sbr.rel (0) target = $region9
    $region8: #{lstm_model_forward.1} parent=1 // pred_region
      %s14 = ssub.s32 16384, 16384
      %15 = vsyncadd [#allocation3], %s14
      %s16 = sshll.u32 [#allocation2], 4
      %s17 = int_to_ptr.vmem [resolvable:$true] %s16
      %22 = dma.hbm_to_vmem [thread:$0]  %s1, 16384, %s17, [#allocation3], 512, 512, 32
    $region9: #{lstm_model_forward.1} parent=1 // pred_fallthru
      _
    // Predicated region
    $region10: #{lstm_model_forward.1} parent=1 // pred_check
      _
    $region11: #{lstm_model_forward.1} parent=1 // pred_check_branch
      %24 = sbr.rel (0) target = $region13
    $region12: #{lstm_model_forward.1} parent=1 // pred_region
      _
    $region13: #{lstm_model_forward.1} parent=1 // pred_fallthru
      _
    // Predicated region
    $region14: #{lstm_model_forward.1} parent=1 // pred_check
      _
    $region15: #{lstm_model_forward.1} parent=1 // pred_check_branch
      %26 = sbr.rel (0) target = $region17
    $region16: #{lstm_model_forward.1} parent=1 // pred_region
      %27 = dma.done [#allocation3], 16384
    $region17: #{lstm_model_forward.1} parent=1 // pred_fallthru
      _
    %v29 = vld [vmem:[%s2] sm:$0xf]
    %v31 = vlaneseq
    %v32 = vshrl.u32 %v31, 7
    %v33 = vsub.s32 0, %v32
    %v34 = vrot.slane %v29, %v33
    %v35 = vlaneseq
    %v36 = vshrl.u32 %v35, 7
    %v37 = vsub.s32 1, %v36
    %v38 = vrot.slane %v29, %v37
    %v39 = vlaneseq
    %v40 = vshrl.u32 %v39, 7
    %v41 = vsub.s32 2, %v40
    %v42 = vrot.slane %v29, %v41
    %v43 = vlaneseq
    %v44 = vshrl.u32 %v43, 7
    %v45 = vsub.s32 3, %v44
    %v46 = vrot.slane %v29, %v45
    %v51 = vld [vmem:[%s0] sm:$0xff]
    %v52 = vld [vmem:[%s0 + $0x8] sm:$0xff]
    %v53 = vld [vmem:[%s0 + $0x10] sm:$0xff]
    %v54 = vld [vmem:[%s0 + $0x18] sm:$0xff]
    %v55 = vadd.f32 %v51, 0.0
    %v56 = vadd.f32 %v52, 0.0
    %v57 = vadd.f32 %v53, 0.0
    %v58 = vadd.f32 %v54, 0.0
    %v59 = vxor.u32 %v55, 2147483648
    %v60 = vmul.f32 %v59, 1.442695
    %v61 = vpow.pop %v60
    %v62 = vadd.f32 %v61, 1.0
    %v63 = vrcp.pop %v62
    %v64 = vmul.f32 1.0, %v63
    %v65 = vxor.u32 %v56, 2147483648
    %v66 = vmul.f32 %v65, 1.442695
    %v67 = vpow.pop %v66
    %v68 = vadd.f32 %v67, 1.0
    %v69 = vrcp.pop %v68
    %v70 = vmul.f32 1.0, %v69
    %v71 = vtanh.pop %v57
    %v72 = vxor.u32 %v58, 2147483648
    %v73 = vmul.f32 %v72, 1.442695
    %v74 = vpow.pop %v73
    %v75 = vadd.f32 %v74, 1.0
    %v76 = vrcp.pop %v75
    %v77 = vmul.f32 1.0, %v76
    %v78 = vmul.f32 %v70, 0.0
    %v79 = vmul.f32 %v64, %v71
    %v80 = vadd.f32 %v78, %v79
    %v81 = vtanh.pop %v80
    %v82 = vmul.f32 %v77, %v81
    %v83 = vpack.c.bf16 %v82, %v82
    %v84 = vld [vmem:[#allocation2] sm:$0xff]
    %v85 = vld [vmem:[#allocation2 + $0x8] sm:$0xff]
    %v86 = vld [vmem:[#allocation2 + $0x10] sm:$0xff]
    %v87 = vld [vmem:[#allocation2 + $0x18] sm:$0xff]
    %v88 = vld [vmem:[#allocation2 + $0x20] sm:$0xff]
    %v89 = vld [vmem:[#allocation2 + $0x28] sm:$0xff]
    %v90 = vld [vmem:[#allocation2 + $0x30] sm:$0xff]
    %v91 = vld [vmem:[#allocation2 + $0x38] sm:$0xff]
    %v92 = vld [vmem:[#allocation2 + $0x40] sm:$0xff]
    %v93 = vld [vmem:[#allocation2 + $0x48] sm:$0xff]
    %v94 = vld [vmem:[#allocation2 + $0x50] sm:$0xff]
    %v95 = vld [vmem:[#allocation2 + $0x58] sm:$0xff]
    %v96 = vld [vmem:[#allocation2 + $0x60] sm:$0xff]
    %v97 = vld [vmem:[#allocation2 + $0x68] sm:$0xff]
    %v98 = vld [vmem:[#allocation2 + $0x70] sm:$0xff]
    %v99 = vld [vmem:[#allocation2 + $0x78] sm:$0xff]
    %v100 = vld [vmem:[#allocation2 + $0x80] sm:$0xff]
    %v101 = vld [vmem:[#allocation2 + $0x88] sm:$0xff]
    %v102 = vld [vmem:[#allocation2 + $0x90] sm:$0xff]
    %v103 = vld [vmem:[#allocation2 + $0x98] sm:$0xff]
    %v104 = vld [vmem:[#allocation2 + $0xa0] sm:$0xff]
    %v105 = vld [vmem:[#allocation2 + $0xa8] sm:$0xff]
    %v106 = vld [vmem:[#allocation2 + $0xb0] sm:$0xff]
    %v107 = vld [vmem:[#allocation2 + $0xb8] sm:$0xff]
    %v108 = vld [vmem:[#allocation2 + $0xc0] sm:$0xff]
    %v109 = vld [vmem:[#allocation2 + $0xc8] sm:$0xff]
    %v110 = vld [vmem:[#allocation2 + $0xd0] sm:$0xff]
    %v111 = vld [vmem:[#allocation2 + $0xd8] sm:$0xff]
    %v112 = vld [vmem:[#allocation2 + $0xe0] sm:$0xff]
    %v113 = vld [vmem:[#allocation2 + $0xe8] sm:$0xff]
    %v114 = vld [vmem:[#allocation2 + $0xf0] sm:$0xff]
    %v115 = vld [vmem:[#allocation2 + $0xf8] sm:$0xff]
    %v116 = vld [vmem:[#allocation2 + $0x100] sm:$0xff]
    %v117 = vld [vmem:[#allocation2 + $0x108] sm:$0xff]
    %v118 = vld [vmem:[#allocation2 + $0x110] sm:$0xff]
    %v119 = vld [vmem:[#allocation2 + $0x118] sm:$0xff]
    %v120 = vld [vmem:[#allocation2 + $0x120] sm:$0xff]
    %v121 = vld [vmem:[#allocation2 + $0x128] sm:$0xff]
    %v122 = vld [vmem:[#allocation2 + $0x130] sm:$0xff]
    %v123 = vld [vmem:[#allocation2 + $0x138] sm:$0xff]
    %v124 = vld [vmem:[#allocation2 + $0x140] sm:$0xff]
    %v125 = vld [vmem:[#allocation2 + $0x148] sm:$0xff]
    %v126 = vld [vmem:[#allocation2 + $0x150] sm:$0xff]
    %v127 = vld [vmem:[#allocation2 + $0x158] sm:$0xff]
    %v128 = vld [vmem:[#allocation2 + $0x160] sm:$0xff]
    %v129 = vld [vmem:[#allocation2 + $0x168] sm:$0xff]
    %v130 = vld [vmem:[#allocation2 + $0x170] sm:$0xff]
    %v131 = vld [vmem:[#allocation2 + $0x178] sm:$0xff]
    %v132 = vld [vmem:[#allocation2 + $0x180] sm:$0xff]
    %v133 = vld [vmem:[#allocation2 + $0x188] sm:$0xff]
    %v134 = vld [vmem:[#allocation2 + $0x190] sm:$0xff]
    %v135 = vld [vmem:[#allocation2 + $0x198] sm:$0xff]
    %v136 = vld [vmem:[#allocation2 + $0x1a0] sm:$0xff]
    %v137 = vld [vmem:[#allocation2 + $0x1a8] sm:$0xff]
    %v138 = vld [vmem:[#allocation2 + $0x1b0] sm:$0xff]
    %v139 = vld [vmem:[#allocation2 + $0x1b8] sm:$0xff]
    %v140 = vld [vmem:[#allocation2 + $0x1c0] sm:$0xff]
    %v141 = vld [vmem:[#allocation2 + $0x1c8] sm:$0xff]
    %v142 = vld [vmem:[#allocation2 + $0x1d0] sm:$0xff]
    %v143 = vld [vmem:[#allocation2 + $0x1d8] sm:$0xff]
    %v144 = vld [vmem:[#allocation2 + $0x1e0] sm:$0xff]
    %v145 = vld [vmem:[#allocation2 + $0x1e8] sm:$0xff]
    %v146 = vld [vmem:[#allocation2 + $0x1f0] sm:$0xff]
    %v147 = vld [vmem:[#allocation2 + $0x1f8] sm:$0xff]
    %v148 = vld [vmem:[#allocation2 + $0x200] sm:$0xff]
    %v149 = vld [vmem:[#allocation2 + $0x208] sm:$0xff]
    %v150 = vld [vmem:[#allocation2 + $0x210] sm:$0xff]
    %v151 = vld [vmem:[#allocation2 + $0x218] sm:$0xff]
    %v152 = vld [vmem:[#allocation2 + $0x220] sm:$0xff]
    %v153 = vld [vmem:[#allocation2 + $0x228] sm:$0xff]
    %v154 = vld [vmem:[#allocation2 + $0x230] sm:$0xff]
    %v155 = vld [vmem:[#allocation2 + $0x238] sm:$0xff]
    %v156 = vld [vmem:[#allocation2 + $0x240] sm:$0xff]
    %v157 = vld [vmem:[#allocation2 + $0x248] sm:$0xff]
    %v158 = vld [vmem:[#allocation2 + $0x250] sm:$0xff]
    %v159 = vld [vmem:[#allocation2 + $0x258] sm:$0xff]
    %v160 = vld [vmem:[#allocation2 + $0x260] sm:$0xff]
    %v161 = vld [vmem:[#allocation2 + $0x268] sm:$0xff]
    %v162 = vld [vmem:[#allocation2 + $0x270] sm:$0xff]
    %v163 = vld [vmem:[#allocation2 + $0x278] sm:$0xff]
    %v164 = vld [vmem:[#allocation2 + $0x280] sm:$0xff]
    %v165 = vld [vmem:[#allocation2 + $0x288] sm:$0xff]
    %v166 = vld [vmem:[#allocation2 + $0x290] sm:$0xff]
    %v167 = vld [vmem:[#allocation2 + $0x298] sm:$0xff]
    %v168 = vld [vmem:[#allocation2 + $0x2a0] sm:$0xff]
    %v169 = vld [vmem:[#allocation2 + $0x2a8] sm:$0xff]
    %v170 = vld [vmem:[#allocation2 + $0x2b0] sm:$0xff]
    %v171 = vld [vmem:[#allocation2 + $0x2b8] sm:$0xff]
    %v172 = vld [vmem:[#allocation2 + $0x2c0] sm:$0xff]
    %v173 = vld [vmem:[#allocation2 + $0x2c8] sm:$0xff]
    %v174 = vld [vmem:[#allocation2 + $0x2d0] sm:$0xff]
    %v175 = vld [vmem:[#allocation2 + $0x2d8] sm:$0xff]
    %v176 = vld [vmem:[#allocation2 + $0x2e0] sm:$0xff]
    %v177 = vld [vmem:[#allocation2 + $0x2e8] sm:$0xff]
    %v178 = vld [vmem:[#allocation2 + $0x2f0] sm:$0xff]
    %v179 = vld [vmem:[#allocation2 + $0x2f8] sm:$0xff]
    %v180 = vld [vmem:[#allocation2 + $0x300] sm:$0xff]
    %v181 = vld [vmem:[#allocation2 + $0x308] sm:$0xff]
    %v182 = vld [vmem:[#allocation2 + $0x310] sm:$0xff]
    %v183 = vld [vmem:[#allocation2 + $0x318] sm:$0xff]
    %v184 = vld [vmem:[#allocation2 + $0x320] sm:$0xff]
    %v185 = vld [vmem:[#allocation2 + $0x328] sm:$0xff]
    %v186 = vld [vmem:[#allocation2 + $0x330] sm:$0xff]
    %v187 = vld [vmem:[#allocation2 + $0x338] sm:$0xff]
    %v188 = vld [vmem:[#allocation2 + $0x340] sm:$0xff]
    %v189 = vld [vmem:[#allocation2 + $0x348] sm:$0xff]
    %v190 = vld [vmem:[#allocation2 + $0x350] sm:$0xff]
    %v191 = vld [vmem:[#allocation2 + $0x358] sm:$0xff]
    %v192 = vld [vmem:[#allocation2 + $0x360] sm:$0xff]
    %v193 = vld [vmem:[#allocation2 + $0x368] sm:$0xff]
    %v194 = vld [vmem:[#allocation2 + $0x370] sm:$0xff]
    %v195 = vld [vmem:[#allocation2 + $0x378] sm:$0xff]
    %v196 = vld [vmem:[#allocation2 + $0x380] sm:$0xff]
    %v197 = vld [vmem:[#allocation2 + $0x388] sm:$0xff]
    %v198 = vld [vmem:[#allocation2 + $0x390] sm:$0xff]
    %v199 = vld [vmem:[#allocation2 + $0x398] sm:$0xff]
    %v200 = vld [vmem:[#allocation2 + $0x3a0] sm:$0xff]
    %v201 = vld [vmem:[#allocation2 + $0x3a8] sm:$0xff]
    %v202 = vld [vmem:[#allocation2 + $0x3b0] sm:$0xff]
    %v203 = vld [vmem:[#allocation2 + $0x3b8] sm:$0xff]
    %v204 = vld [vmem:[#allocation2 + $0x3c0] sm:$0xff]
    %v205 = vld [vmem:[#allocation2 + $0x3c8] sm:$0xff]
    %v206 = vld [vmem:[#allocation2 + $0x3d0] sm:$0xff]
    %v207 = vld [vmem:[#allocation2 + $0x3d8] sm:$0xff]
    %v208 = vld [vmem:[#allocation2 + $0x3e0] sm:$0xff]
    %v209 = vld [vmem:[#allocation2 + $0x3e8] sm:$0xff]
    %v210 = vld [vmem:[#allocation2 + $0x3f0] sm:$0xff]
    %v211 = vld [vmem:[#allocation2 + $0x3f8] sm:$0xff]
    %v340 = vunpack.c.l.b16 %v84
    %v341 = vunpack.c.h.b16 %v84
    %v342 = vunpack.c.l.b16 %v85
    %v343 = vunpack.c.h.b16 %v85
    %v344 = vunpack.c.l.b16 %v86
    %v345 = vunpack.c.h.b16 %v86
    %v346 = vunpack.c.l.b16 %v87
    %v347 = vunpack.c.h.b16 %v87
    %v348 = vunpack.c.l.b16 %v88
    %v349 = vunpack.c.h.b16 %v88
    %v350 = vunpack.c.l.b16 %v89
    %v351 = vunpack.c.h.b16 %v89
    %v352 = vunpack.c.l.b16 %v90
    %v353 = vunpack.c.h.b16 %v90
    %v354 = vunpack.c.l.b16 %v91
    %v355 = vunpack.c.h.b16 %v91
    %v356 = vunpack.c.l.b16 %v92
    %v357 = vunpack.c.h.b16 %v92
    %v358 = vunpack.c.l.b16 %v93
    %v359 = vunpack.c.h.b16 %v93
    %v360 = vunpack.c.l.b16 %v94
    %v361 = vunpack.c.h.b16 %v94
    %v362 = vunpack.c.l.b16 %v95
    %v363 = vunpack.c.h.b16 %v95
    %v364 = vunpack.c.l.b16 %v96
    %v365 = vunpack.c.h.b16 %v96
    %v366 = vunpack.c.l.b16 %v97
    %v367 = vunpack.c.h.b16 %v97
    %v368 = vunpack.c.l.b16 %v98
    %v369 = vunpack.c.h.b16 %v98
    %v370 = vunpack.c.l.b16 %v99
    %v371 = vunpack.c.h.b16 %v99
    %v372 = vunpack.c.l.b16 %v100
    %v373 = vunpack.c.h.b16 %v100
    %v374 = vunpack.c.l.b16 %v101
    %v375 = vunpack.c.h.b16 %v101
    %v376 = vunpack.c.l.b16 %v102
    %v377 = vunpack.c.h.b16 %v102
    %v378 = vunpack.c.l.b16 %v103
    %v379 = vunpack.c.h.b16 %v103
    %v380 = vunpack.c.l.b16 %v104
    %v381 = vunpack.c.h.b16 %v104
    %v382 = vunpack.c.l.b16 %v105
    %v383 = vunpack.c.h.b16 %v105
    %v384 = vunpack.c.l.b16 %v106
    %v385 = vunpack.c.h.b16 %v106
    %v386 = vunpack.c.l.b16 %v107
    %v387 = vunpack.c.h.b16 %v107
    %v388 = vunpack.c.l.b16 %v108
    %v389 = vunpack.c.h.b16 %v108
    %v390 = vunpack.c.l.b16 %v109
    %v391 = vunpack.c.h.b16 %v109
    %v392 = vunpack.c.l.b16 %v110
    %v393 = vunpack.c.h.b16 %v110
    %v394 = vunpack.c.l.b16 %v111
    %v395 = vunpack.c.h.b16 %v111
    %v396 = vunpack.c.l.b16 %v112
    %v397 = vunpack.c.h.b16 %v112
    %v398 = vunpack.c.l.b16 %v113
    %v399 = vunpack.c.h.b16 %v113
    %v400 = vunpack.c.l.b16 %v114
    %v401 = vunpack.c.h.b16 %v114
    %v402 = vunpack.c.l.b16 %v115
    %v403 = vunpack.c.h.b16 %v115
    %v404 = vunpack.c.l.b16 %v116
    %v405 = vunpack.c.h.b16 %v116
    %v406 = vunpack.c.l.b16 %v117
    %v407 = vunpack.c.h.b16 %v117
    %v408 = vunpack.c.l.b16 %v118
    %v409 = vunpack.c.h.b16 %v118
    %v410 = vunpack.c.l.b16 %v119
    %v411 = vunpack.c.h.b16 %v119
    %v412 = vunpack.c.l.b16 %v120
    %v413 = vunpack.c.h.b16 %v120
    %v414 = vunpack.c.l.b16 %v121
    %v415 = vunpack.c.h.b16 %v121
    %v416 = vunpack.c.l.b16 %v122
    %v417 = vunpack.c.h.b16 %v122
    %v418 = vunpack.c.l.b16 %v123
    %v419 = vunpack.c.h.b16 %v123
    %v420 = vunpack.c.l.b16 %v124
    %v421 = vunpack.c.h.b16 %v124
    %v422 = vunpack.c.l.b16 %v125
    %v423 = vunpack.c.h.b16 %v125
    %v424 = vunpack.c.l.b16 %v126
    %v425 = vunpack.c.h.b16 %v126
    %v426 = vunpack.c.l.b16 %v127
    %v427 = vunpack.c.h.b16 %v127
    %v428 = vunpack.c.l.b16 %v128
    %v429 = vunpack.c.h.b16 %v128
    %v430 = vunpack.c.l.b16 %v129
    %v431 = vunpack.c.h.b16 %v129
    %v432 = vunpack.c.l.b16 %v130
    %v433 = vunpack.c.h.b16 %v130
    %v434 = vunpack.c.l.b16 %v131
    %v435 = vunpack.c.h.b16 %v131
    %v436 = vunpack.c.l.b16 %v132
    %v437 = vunpack.c.h.b16 %v132
    %v438 = vunpack.c.l.b16 %v133
    %v439 = vunpack.c.h.b16 %v133
    %v440 = vunpack.c.l.b16 %v134
    %v441 = vunpack.c.h.b16 %v134
    %v442 = vunpack.c.l.b16 %v135
    %v443 = vunpack.c.h.b16 %v135
    %v444 = vunpack.c.l.b16 %v136
    %v445 = vunpack.c.h.b16 %v136
    %v446 = vunpack.c.l.b16 %v137
    %v447 = vunpack.c.h.b16 %v137
    %v448 = vunpack.c.l.b16 %v138
    %v449 = vunpack.c.h.b16 %v138
    %v450 = vunpack.c.l.b16 %v139
    %v451 = vunpack.c.h.b16 %v139
    %v452 = vunpack.c.l.b16 %v140
    %v453 = vunpack.c.h.b16 %v140
    %v454 = vunpack.c.l.b16 %v141
    %v455 = vunpack.c.h.b16 %v141
    %v456 = vunpack.c.l.b16 %v142
    %v457 = vunpack.c.h.b16 %v142
    %v458 = vunpack.c.l.b16 %v143
    %v459 = vunpack.c.h.b16 %v143
    %v460 = vunpack.c.l.b16 %v144
    %v461 = vunpack.c.h.b16 %v144
    %v462 = vunpack.c.l.b16 %v145
    %v463 = vunpack.c.h.b16 %v145
    %v464 = vunpack.c.l.b16 %v146
    %v465 = vunpack.c.h.b16 %v146
    %v466 = vunpack.c.l.b16 %v147
    %v467 = vunpack.c.h.b16 %v147
    %v468 = vunpack.c.l.b16 %v148
    %v469 = vunpack.c.h.b16 %v148
    %v470 = vunpack.c.l.b16 %v149
    %v471 = vunpack.c.h.b16 %v149
    %v472 = vunpack.c.l.b16 %v150
    %v473 = vunpack.c.h.b16 %v150
    %v474 = vunpack.c.l.b16 %v151
    %v475 = vunpack.c.h.b16 %v151
    %v476 = vunpack.c.l.b16 %v152
    %v477 = vunpack.c.h.b16 %v152
    %v478 = vunpack.c.l.b16 %v153
    %v479 = vunpack.c.h.b16 %v153
    %v480 = vunpack.c.l.b16 %v154
    %v481 = vunpack.c.h.b16 %v154
    %v482 = vunpack.c.l.b16 %v155
    %v483 = vunpack.c.h.b16 %v155
    %v484 = vunpack.c.l.b16 %v156
    %v485 = vunpack.c.h.b16 %v156
    %v486 = vunpack.c.l.b16 %v157
    %v487 = vunpack.c.h.b16 %v157
    %v488 = vunpack.c.l.b16 %v158
    %v489 = vunpack.c.h.b16 %v158
    %v490 = vunpack.c.l.b16 %v159
    %v491 = vunpack.c.h.b16 %v159
    %v492 = vunpack.c.l.b16 %v160
    %v493 = vunpack.c.h.b16 %v160
    %v494 = vunpack.c.l.b16 %v161
    %v495 = vunpack.c.h.b16 %v161
    %v496 = vunpack.c.l.b16 %v162
    %v497 = vunpack.c.h.b16 %v162
    %v498 = vunpack.c.l.b16 %v163
    %v499 = vunpack.c.h.b16 %v163
    %v500 = vunpack.c.l.b16 %v164
    %v501 = vunpack.c.h.b16 %v164
    %v502 = vunpack.c.l.b16 %v165
    %v503 = vunpack.c.h.b16 %v165
    %v504 = vunpack.c.l.b16 %v166
    %v505 = vunpack.c.h.b16 %v166
    %v506 = vunpack.c.l.b16 %v167
    %v507 = vunpack.c.h.b16 %v167
    %v508 = vunpack.c.l.b16 %v168
    %v509 = vunpack.c.h.b16 %v168
    %v510 = vunpack.c.l.b16 %v169
    %v511 = vunpack.c.h.b16 %v169
    %v512 = vunpack.c.l.b16 %v170
    %v513 = vunpack.c.h.b16 %v170
    %v514 = vunpack.c.l.b16 %v171
    %v515 = vunpack.c.h.b16 %v171
    %v516 = vunpack.c.l.b16 %v172
    %v517 = vunpack.c.h.b16 %v172
    %v518 = vunpack.c.l.b16 %v173
    %v519 = vunpack.c.h.b16 %v173
    %v520 = vunpack.c.l.b16 %v174
    %v521 = vunpack.c.h.b16 %v174
    %v522 = vunpack.c.l.b16 %v175
    %v523 = vunpack.c.h.b16 %v175
    %v524 = vunpack.c.l.b16 %v176
    %v525 = vunpack.c.h.b16 %v176
    %v526 = vunpack.c.l.b16 %v177
    %v527 = vunpack.c.h.b16 %v177
    %v528 = vunpack.c.l.b16 %v178
    %v529 = vunpack.c.h.b16 %v178
    %v530 = vunpack.c.l.b16 %v179
    %v531 = vunpack.c.h.b16 %v179
    %v532 = vunpack.c.l.b16 %v180
    %v533 = vunpack.c.h.b16 %v180
    %v534 = vunpack.c.l.b16 %v181
    %v535 = vunpack.c.h.b16 %v181
    %v536 = vunpack.c.l.b16 %v182
    %v537 = vunpack.c.h.b16 %v182
    %v538 = vunpack.c.l.b16 %v183
    %v539 = vunpack.c.h.b16 %v183
    %v540 = vunpack.c.l.b16 %v184
    %v541 = vunpack.c.h.b16 %v184
    %v542 = vunpack.c.l.b16 %v185
    %v543 = vunpack.c.h.b16 %v185
    %v544 = vunpack.c.l.b16 %v186
    %v545 = vunpack.c.h.b16 %v186
    %v546 = vunpack.c.l.b16 %v187
    %v547 = vunpack.c.h.b16 %v187
    %v548 = vunpack.c.l.b16 %v188
    %v549 = vunpack.c.h.b16 %v188
    %v550 = vunpack.c.l.b16 %v189
    %v551 = vunpack.c.h.b16 %v189
    %v552 = vunpack.c.l.b16 %v190
    %v553 = vunpack.c.h.b16 %v190
    %v554 = vunpack.c.l.b16 %v191
    %v555 = vunpack.c.h.b16 %v191
    %v556 = vunpack.c.l.b16 %v192
    %v557 = vunpack.c.h.b16 %v192
    %v558 = vunpack.c.l.b16 %v193
    %v559 = vunpack.c.h.b16 %v193
    %v560 = vunpack.c.l.b16 %v194
    %v561 = vunpack.c.h.b16 %v194
    %v562 = vunpack.c.l.b16 %v195
    %v563 = vunpack.c.h.b16 %v195
    %v564 = vunpack.c.l.b16 %v196
    %v565 = vunpack.c.h.b16 %v196
    %v566 = vunpack.c.l.b16 %v197
    %v567 = vunpack.c.h.b16 %v197
    %v568 = vunpack.c.l.b16 %v198
    %v569 = vunpack.c.h.b16 %v198
    %v570 = vunpack.c.l.b16 %v199
    %v571 = vunpack.c.h.b16 %v199
    %v572 = vunpack.c.l.b16 %v200
    %v573 = vunpack.c.h.b16 %v200
    %v574 = vunpack.c.l.b16 %v201
    %v575 = vunpack.c.h.b16 %v201
    %v576 = vunpack.c.l.b16 %v202
    %v577 = vunpack.c.h.b16 %v202
    %v578 = vunpack.c.l.b16 %v203
    %v579 = vunpack.c.h.b16 %v203
    %v580 = vunpack.c.l.b16 %v204
    %v581 = vunpack.c.h.b16 %v204
    %v582 = vunpack.c.l.b16 %v205
    %v583 = vunpack.c.h.b16 %v205
    %v584 = vunpack.c.l.b16 %v206
    %v585 = vunpack.c.h.b16 %v206
    %v586 = vunpack.c.l.b16 %v207
    %v587 = vunpack.c.h.b16 %v207
    %v588 = vunpack.c.l.b16 %v208
    %v589 = vunpack.c.h.b16 %v208
    %v590 = vunpack.c.l.b16 %v209
    %v591 = vunpack.c.h.b16 %v209
    %v592 = vunpack.c.l.b16 %v210
    %v593 = vunpack.c.h.b16 %v210
    %v594 = vunpack.c.l.b16 %v211
    %v595 = vunpack.c.h.b16 %v211
    %v596 = vpack.c.b16 %v348, %v340
    %v597 = vpack.c.b16 %v349, %v341
    %v598 = vpack.c.b16 %v350, %v342
    %v599 = vpack.c.b16 %v351, %v343
    %v600 = vpack.c.b16 %v352, %v344
    %v601 = vpack.c.b16 %v353, %v345
    %v602 = vpack.c.b16 %v354, %v346
    %v603 = vpack.c.b16 %v355, %v347
    %v604 = vpack.c.b16 %v364, %v356
    %v605 = vpack.c.b16 %v365, %v357
    %v606 = vpack.c.b16 %v366, %v358
    %v607 = vpack.c.b16 %v367, %v359
    %v608 = vpack.c.b16 %v368, %v360
    %v609 = vpack.c.b16 %v369, %v361
    %v610 = vpack.c.b16 %v370, %v362
    %v611 = vpack.c.b16 %v371, %v363
    %v612 = vpack.c.b16 %v380, %v372
    %v613 = vpack.c.b16 %v381, %v373
    %v614 = vpack.c.b16 %v382, %v374
    %v615 = vpack.c.b16 %v383, %v375
    %v616 = vpack.c.b16 %v384, %v376
    %v617 = vpack.c.b16 %v385, %v377
    %v618 = vpack.c.b16 %v386, %v378
    %v619 = vpack.c.b16 %v387, %v379
    %v620 = vpack.c.b16 %v396, %v388
    %v621 = vpack.c.b16 %v397, %v389
    %v622 = vpack.c.b16 %v398, %v390
    %v623 = vpack.c.b16 %v399, %v391
    %v624 = vpack.c.b16 %v400, %v392
    %v625 = vpack.c.b16 %v401, %v393
    %v626 = vpack.c.b16 %v402, %v394
    %v627 = vpack.c.b16 %v403, %v395
    %v628 = vpack.c.b16 %v412, %v404
    %v629 = vpack.c.b16 %v413, %v405
    %v630 = vpack.c.b16 %v414, %v406
    %v631 = vpack.c.b16 %v415, %v407
    %v632 = vpack.c.b16 %v416, %v408
    %v633 = vpack.c.b16 %v417, %v409
    %v634 = vpack.c.b16 %v418, %v410
    %v635 = vpack.c.b16 %v419, %v411
    %v636 = vpack.c.b16 %v428, %v420
    %v637 = vpack.c.b16 %v429, %v421
    %v638 = vpack.c.b16 %v430, %v422
    %v639 = vpack.c.b16 %v431, %v423
    %v640 = vpack.c.b16 %v432, %v424
    %v641 = vpack.c.b16 %v433, %v425
    %v642 = vpack.c.b16 %v434, %v426
    %v643 = vpack.c.b16 %v435, %v427
    %v644 = vpack.c.b16 %v444, %v436
    %v645 = vpack.c.b16 %v445, %v437
    %v646 = vpack.c.b16 %v446, %v438
    %v647 = vpack.c.b16 %v447, %v439
    %v648 = vpack.c.b16 %v448, %v440
    %v649 = vpack.c.b16 %v449, %v441
    %v650 = vpack.c.b16 %v450, %v442
    %v651 = vpack.c.b16 %v451, %v443
    %v652 = vpack.c.b16 %v460, %v452
    %v653 = vpack.c.b16 %v461, %v453
    %v654 = vpack.c.b16 %v462, %v454
    %v655 = vpack.c.b16 %v463, %v455
    %v656 = vpack.c.b16 %v464, %v456
    %v657 = vpack.c.b16 %v465, %v457
    %v658 = vpack.c.b16 %v466, %v458
    %v659 = vpack.c.b16 %v467, %v459
    %v660 = vpack.c.b16 %v476, %v468
    %v661 = vpack.c.b16 %v477, %v469
    %v662 = vpack.c.b16 %v478, %v470
    %v663 = vpack.c.b16 %v479, %v471
    %v664 = vpack.c.b16 %v480, %v472
    %v665 = vpack.c.b16 %v481, %v473
    %v666 = vpack.c.b16 %v482, %v474
    %v667 = vpack.c.b16 %v483, %v475
    %v668 = vpack.c.b16 %v492, %v484
    %v669 = vpack.c.b16 %v493, %v485
    %v670 = vpack.c.b16 %v494, %v486
    %v671 = vpack.c.b16 %v495, %v487
    %v672 = vpack.c.b16 %v496, %v488
    %v673 = vpack.c.b16 %v497, %v489
    %v674 = vpack.c.b16 %v498, %v490
    %v675 = vpack.c.b16 %v499, %v491
    %v676 = vpack.c.b16 %v508, %v500
    %v677 = vpack.c.b16 %v509, %v501
    %v678 = vpack.c.b16 %v510, %v502
    %v679 = vpack.c.b16 %v511, %v503
    %v680 = vpack.c.b16 %v512, %v504
    %v681 = vpack.c.b16 %v513, %v505
    %v682 = vpack.c.b16 %v514, %v506
    %v683 = vpack.c.b16 %v515, %v507
    %v684 = vpack.c.b16 %v524, %v516
    %v685 = vpack.c.b16 %v525, %v517
    %v686 = vpack.c.b16 %v526, %v518
    %v687 = vpack.c.b16 %v527, %v519
    %v688 = vpack.c.b16 %v528, %v520
    %v689 = vpack.c.b16 %v529, %v521
    %v690 = vpack.c.b16 %v530, %v522
    %v691 = vpack.c.b16 %v531, %v523
    %v692 = vpack.c.b16 %v540, %v532
    %v693 = vpack.c.b16 %v541, %v533
    %v694 = vpack.c.b16 %v542, %v534
    %v695 = vpack.c.b16 %v543, %v535
    %v696 = vpack.c.b16 %v544, %v536
    %v697 = vpack.c.b16 %v545, %v537
    %v698 = vpack.c.b16 %v546, %v538
    %v699 = vpack.c.b16 %v547, %v539
    %v700 = vpack.c.b16 %v556, %v548
    %v701 = vpack.c.b16 %v557, %v549
    %v702 = vpack.c.b16 %v558, %v550
    %v703 = vpack.c.b16 %v559, %v551
    %v704 = vpack.c.b16 %v560, %v552
    %v705 = vpack.c.b16 %v561, %v553
    %v706 = vpack.c.b16 %v562, %v554
    %v707 = vpack.c.b16 %v563, %v555
    %v708 = vpack.c.b16 %v572, %v564
    %v709 = vpack.c.b16 %v573, %v565
    %v710 = vpack.c.b16 %v574, %v566
    %v711 = vpack.c.b16 %v575, %v567
    %v712 = vpack.c.b16 %v576, %v568
    %v713 = vpack.c.b16 %v577, %v569
    %v714 = vpack.c.b16 %v578, %v570
    %v715 = vpack.c.b16 %v579, %v571
    %v716 = vpack.c.b16 %v588, %v580
    %v717 = vpack.c.b16 %v589, %v581
    %v718 = vpack.c.b16 %v590, %v582
    %v719 = vpack.c.b16 %v591, %v583
    %v720 = vpack.c.b16 %v592, %v584
    %v721 = vpack.c.b16 %v593, %v585
    %v722 = vpack.c.b16 %v594, %v586
    %v723 = vpack.c.b16 %v595, %v587
    %852 = vmatprep.subr.bf16.mxu0 %v653
    %853 = vmatpush1.bf16.msra.mxu0 %v652
    %854 = vmatprep.subr.bf16.mxu0 %v645
    %855 = vmatpush1.bf16.msra.mxu0 %v644
    %856 = vmatprep.subr.bf16.mxu0 %v637
    %857 = vmatpush1.bf16.msra.mxu0 %v636
    %858 = vmatprep.subr.bf16.mxu0 %v629
    %859 = vmatpush1.bf16.msra.mxu0 %v628
    %860 = vmatprep.subr.bf16.mxu0 %v621
    %861 = vmatpush1.bf16.msra.mxu0 %v620
    %862 = vmatprep.subr.bf16.mxu0 %v613
    %863 = vmatpush1.bf16.msra.mxu0 %v612
    %864 = vmatprep.subr.bf16.mxu0 %v605
    %865 = vmatpush1.bf16.msra.mxu0 %v604
    %866 = vmatprep.subr.bf16.mxu0 %v597
    %867 = vmatpush1.bf16.msra.mxu0 %v596
    %868 = vmatprep.subr.bf16.mxu0 %v717
    %869 = vmatpush2.bf16.msra.mxu0 %v716
    %870 = vmatprep.subr.bf16.mxu0 %v709
    %871 = vmatpush2.bf16.msra.mxu0 %v708
    %872 = vmatprep.subr.bf16.mxu0 %v701
    %873 = vmatpush2.bf16.msra.mxu0 %v700
    %874 = vmatprep.subr.bf16.mxu0 %v693
    %875 = vmatpush2.bf16.msra.mxu0 %v692
    %876 = vmatprep.subr.bf16.mxu0 %v685
    %877 = vmatpush2.bf16.msra.mxu0 %v684
    %878 = vmatprep.subr.bf16.mxu0 %v677
    %879 = vmatpush2.bf16.msra.mxu0 %v676
    %880 = vmatprep.subr.bf16.mxu0 %v669
    %881 = vmatpush2.bf16.msra.mxu0 %v668
    %882 = vmatprep.subr.bf16.mxu0 %v661
    %883 = vmatpush2.bf16.msra.mxu0 %v660
    %884 = vmatprep.mubr.bf16.mxu0 0
    %885 = vmatmul.mubr.bf16.gmra.mxu0 %v83
    %v886 = vpop.f32.mrf.mxu0
    %v887 = vadd.f32 0.0, %v886
    %v888 = vpop.f32.mrf.mxu0
    %v889 = vadd.f32 0.0, %v888
    %v890 = vpop.f32.mrf.mxu0
    %v891 = vpop.f32.mrf.mxu0
    %892 = vdwg.mxu0
    %893 = vmatprep.subr.bf16.mxu0 %v655
    %894 = vmatpush1.bf16.msra.mxu0 %v654
    %895 = vmatprep.subr.bf16.mxu0 %v647
    %896 = vmatpush1.bf16.msra.mxu0 %v646
    %897 = vmatprep.subr.bf16.mxu0 %v639
    %898 = vmatpush1.bf16.msra.mxu0 %v638
    %899 = vmatprep.subr.bf16.mxu0 %v631
    %900 = vmatpush1.bf16.msra.mxu0 %v630
    %901 = vmatprep.subr.bf16.mxu0 %v623
    %902 = vmatpush1.bf16.msra.mxu0 %v622
    %903 = vmatprep.subr.bf16.mxu0 %v615
    %904 = vmatpush1.bf16.msra.mxu0 %v614
    %905 = vmatprep.subr.bf16.mxu0 %v607
    %906 = vmatpush1.bf16.msra.mxu0 %v606
    %907 = vmatprep.subr.bf16.mxu0 %v599
    %908 = vmatpush1.bf16.msra.mxu0 %v598
    %909 = vmatprep.subr.bf16.mxu0 %v719
    %910 = vmatpush2.bf16.msra.mxu0 %v718
    %911 = vmatprep.subr.bf16.mxu0 %v711
    %912 = vmatpush2.bf16.msra.mxu0 %v710
    %913 = vmatprep.subr.bf16.mxu0 %v703
    %914 = vmatpush2.bf16.msra.mxu0 %v702
    %915 = vmatprep.subr.bf16.mxu0 %v695
    %916 = vmatpush2.bf16.msra.mxu0 %v694
    %917 = vmatprep.subr.bf16.mxu0 %v687
    %918 = vmatpush2.bf16.msra.mxu0 %v686
    %919 = vmatprep.subr.bf16.mxu0 %v679
    %920 = vmatpush2.bf16.msra.mxu0 %v678
    %921 = vmatprep.subr.bf16.mxu0 %v671
    %922 = vmatpush2.bf16.msra.mxu0 %v670
    %923 = vmatprep.subr.bf16.mxu0 %v663
    %924 = vmatpush2.bf16.msra.mxu0 %v662
    %925 = vmatprep.mubr.bf16.mxu0 0
    %926 = vmatmul.mubr.bf16.gmra.mxu0 %v83
    %v927 = vpop.f32.mrf.mxu0
    %v928 = vadd.f32 0.0, %v927
    %v929 = vpop.f32.mrf.mxu0
    %v930 = vadd.f32 0.0, %v929
    %v931 = vpop.f32.mrf.mxu0
    %v932 = vpop.f32.mrf.mxu0
    %933 = vdwg.mxu0
    %934 = vmatprep.subr.bf16.mxu0 %v657
    %935 = vmatpush1.bf16.msra.mxu0 %v656
    %936 = vmatprep.subr.bf16.mxu0 %v649
    %937 = vmatpush1.bf16.msra.mxu0 %v648
    %938 = vmatprep.subr.bf16.mxu0 %v641
    %939 = vmatpush1.bf16.msra.mxu0 %v640
    %940 = vmatprep.subr.bf16.mxu0 %v633
    %941 = vmatpush1.bf16.msra.mxu0 %v632
    %942 = vmatprep.subr.bf16.mxu0 %v625
    %943 = vmatpush1.bf16.msra.mxu0 %v624
    %944 = vmatprep.subr.bf16.mxu0 %v617
    %945 = vmatpush1.bf16.msra.mxu0 %v616
    %946 = vmatprep.subr.bf16.mxu0 %v609
    %947 = vmatpush1.bf16.msra.mxu0 %v608
    %948 = vmatprep.subr.bf16.mxu0 %v601
    %949 = vmatpush1.bf16.msra.mxu0 %v600
    %950 = vmatprep.subr.bf16.mxu0 %v721
    %951 = vmatpush2.bf16.msra.mxu0 %v720
    %952 = vmatprep.subr.bf16.mxu0 %v713
    %953 = vmatpush2.bf16.msra.mxu0 %v712
    %954 = vmatprep.subr.bf16.mxu0 %v705
    %955 = vmatpush2.bf16.msra.mxu0 %v704
    %956 = vmatprep.subr.bf16.mxu0 %v697
    %957 = vmatpush2.bf16.msra.mxu0 %v696
    %958 = vmatprep.subr.bf16.mxu0 %v689
    %959 = vmatpush2.bf16.msra.mxu0 %v688
    %960 = vmatprep.subr.bf16.mxu0 %v681
    %961 = vmatpush2.bf16.msra.mxu0 %v680
    %962 = vmatprep.subr.bf16.mxu0 %v673
    %963 = vmatpush2.bf16.msra.mxu0 %v672
    %964 = vmatprep.subr.bf16.mxu0 %v665
    %965 = vmatpush2.bf16.msra.mxu0 %v664
    %966 = vmatprep.mubr.bf16.mxu0 0
    %967 = vmatmul.mubr.bf16.gmra.mxu0 %v83
    %v968 = vpop.f32.mrf.mxu0
    %v969 = vadd.f32 0.0, %v968
    %v970 = vpop.f32.mrf.mxu0
    %v971 = vadd.f32 0.0, %v970
    %v972 = vpop.f32.mrf.mxu0
    %v973 = vpop.f32.mrf.mxu0
    %974 = vdwg.mxu0
    %975 = vmatprep.subr.bf16.mxu0 %v659
    %976 = vmatpush1.bf16.msra.mxu0 %v658
    %977 = vmatprep.subr.bf16.mxu0 %v651
    %978 = vmatpush1.bf16.msra.mxu0 %v650
    %979 = vmatprep.subr.bf16.mxu0 %v643
    %980 = vmatpush1.bf16.msra.mxu0 %v642
    %981 = vmatprep.subr.bf16.mxu0 %v635
    %982 = vmatpush1.bf16.msra.mxu0 %v634
    %983 = vmatprep.subr.bf16.mxu0 %v627
    %984 = vmatpush1.bf16.msra.mxu0 %v626
    %985 = vmatprep.subr.bf16.mxu0 %v619
    %986 = vmatpush1.bf16.msra.mxu0 %v618
    %987 = vmatprep.subr.bf16.mxu0 %v611
    %988 = vmatpush1.bf16.msra.mxu0 %v610
    %989 = vmatprep.subr.bf16.mxu0 %v603
    %990 = vmatpush1.bf16.msra.mxu0 %v602
    %991 = vmatprep.subr.bf16.mxu0 %v723
    %992 = vmatpush2.bf16.msra.mxu0 %v722
    %993 = vmatprep.subr.bf16.mxu0 %v715
    %994 = vmatpush2.bf16.msra.mxu0 %v714
    %995 = vmatprep.subr.bf16.mxu0 %v707
    %996 = vmatpush2.bf16.msra.mxu0 %v706
    %997 = vmatprep.subr.bf16.mxu0 %v699
    %998 = vmatpush2.bf16.msra.mxu0 %v698
    %999 = vmatprep.subr.bf16.mxu0 %v691
    %1000 = vmatpush2.bf16.msra.mxu0 %v690
    %1001 = vmatprep.subr.bf16.mxu0 %v683
    %1002 = vmatpush2.bf16.msra.mxu0 %v682
    %1003 = vmatprep.subr.bf16.mxu0 %v675
    %1004 = vmatpush2.bf16.msra.mxu0 %v674
    %1005 = vmatprep.subr.bf16.mxu0 %v667
    %1006 = vmatpush2.bf16.msra.mxu0 %v666
    %1007 = vmatprep.mubr.bf16.mxu0 0
    %1008 = vmatmul.mubr.bf16.gmra.mxu0 %v83
    %v1009 = vpop.f32.mrf.mxu0
    %v1010 = vadd.f32 0.0, %v1009
    %v1011 = vpop.f32.mrf.mxu0
    %v1012 = vadd.f32 0.0, %v1011
    %v1013 = vpop.f32.mrf.mxu0
    %v1014 = vpop.f32.mrf.mxu0
    %1015 = vdwg.mxu0
    %v1016 = vadd.f32 %v969, %v34
    %v1017 = vadd.f32 %v971, %v38
    %v1018 = vadd.f32 %v1010, %v42
    %v1019 = vadd.f32 %v1012, %v46
    %v1020 = vxor.u32 %v1016, 2147483648
    %v1021 = vmul.f32 %v1020, 1.442695
    %v1022 = vpow.pop %v1021
    %v1023 = vadd.f32 %v1022, 1.0
    %v1024 = vrcp.pop %v1023
    %v1025 = vmul.f32 1.0, %v1024
    %v1026 = vxor.u32 %v1017, 2147483648
    %v1027 = vmul.f32 %v1026, 1.442695
    %v1028 = vpow.pop %v1027
    %v1029 = vadd.f32 %v1028, 1.0
    %v1030 = vrcp.pop %v1029
    %v1031 = vmul.f32 1.0, %v1030
    %v1032 = vtanh.pop %v1018
    %v1033 = vxor.u32 %v1019, 2147483648
    %v1034 = vmul.f32 %v1033, 1.442695
    %v1035 = vpow.pop %v1034
    %v1036 = vadd.f32 %v1035, 1.0
    %v1037 = vrcp.pop %v1036
    %v1038 = vmul.f32 1.0, %v1037
    %v1039 = vmul.f32 %v1031, 0.0
    %v1040 = vmul.f32 %v1025, %v1032
    %v1041 = vadd.f32 %v1039, %v1040
    %v1042 = vtanh.pop %v1041
    %v1043 = vmul.f32 %v1038, %v1042
    %1044 = vst [vmem:[%s3] sm:$0xff] %v1043
    %s1045 = scalar_lea.vmem %s0, 32
    %v1046 = vld [vmem:[%s1045] sm:$0xff]
    %v1047 = vld [vmem:[%s1045 + $0x8] sm:$0xff]
    %v1048 = vld [vmem:[%s1045 + $0x10] sm:$0xff]
    %v1049 = vld [vmem:[%s1045 + $0x18] sm:$0xff]
    %v1050 = vadd.f32 %v1046, %v887
    %v1051 = vadd.f32 %v1047, %v889
    %v1052 = vadd.f32 %v1048, %v928
    %v1053 = vadd.f32 %v1049, %v930
    %v1054 = vxor.u32 %v1050, 2147483648
    %v1055 = vmul.f32 %v1054, 1.442695
    %v1056 = vpow.pop %v1055
    %v1057 = vadd.f32 %v1056, 1.0
    %v1058 = vrcp.pop %v1057
    %v1059 = vmul.f32 1.0, %v1058
    %v1060 = vxor.u32 %v1051, 2147483648
    %v1061 = vmul.f32 %v1060, 1.442695
    %v1062 = vpow.pop %v1061
    %v1063 = vadd.f32 %v1062, 1.0
    %v1064 = vrcp.pop %v1063
    %v1065 = vmul.f32 1.0, %v1064
    %v1066 = vtanh.pop %v1052
    %v1067 = vxor.u32 %v1053, 2147483648
    %v1068 = vmul.f32 %v1067, 1.442695
    %v1069 = vpow.pop %v1068
    %v1070 = vadd.f32 %v1069, 1.0
    %v1071 = vrcp.pop %v1070
    %v1072 = vmul.f32 1.0, %v1071
    %v1073 = vmul.f32 %v1065, %v80
    %v1074 = vmul.f32 %v1059, %v1066
    %v1075 = vadd.f32 %v1073, %v1074
    %v1076 = vtanh.pop %v1075
    %v1077 = vmul.f32 %v1072, %v1076
    %v1078 = vpack.c.bf16 %v1077, %v1077
    %v1079 = vpack.c.bf16 %v1043, %v1043
    %v1080 = vld [vmem:[#allocation2] sm:$0xff]
    %v1081 = vld [vmem:[#allocation2 + $0x8] sm:$0xff]
    %v1082 = vld [vmem:[#allocation2 + $0x10] sm:$0xff]
    %v1083 = vld [vmem:[#allocation2 + $0x18] sm:$0xff]
    %v1084 = vld [vmem:[#allocation2 + $0x20] sm:$0xff]
    %v1085 = vld [vmem:[#allocation2 + $0x28] sm:$0xff]
    %v1086 = vld [vmem:[#allocation2 + $0x30] sm:$0xff]
    %v1087 = vld [vmem:[#allocation2 + $0x38] sm:$0xff]
    %v1088 = vld [vmem:[#allocation2 + $0x40] sm:$0xff]
    %v1089 = vld [vmem:[#allocation2 + $0x48] sm:$0xff]
    %v1090 = vld [vmem:[#allocation2 + $0x50] sm:$0xff]
    %v1091 = vld [vmem:[#allocation2 + $0x58] sm:$0xff]
    %v1092 = vld [vmem:[#allocation2 + $0x60] sm:$0xff]
    %v1093 = vld [vmem:[#allocation2 + $0x68] sm:$0xff]
    %v1094 = vld [vmem:[#allocation2 + $0x70] sm:$0xff]
    %v1095 = vld [vmem:[#allocation2 + $0x78] sm:$0xff]
    %v1096 = vld [vmem:[#allocation2 + $0x80] sm:$0xff]
    %v1097 = vld [vmem:[#allocation2 + $0x88] sm:$0xff]
    %v1098 = vld [vmem:[#allocation2 + $0x90] sm:$0xff]
    %v1099 = vld [vmem:[#allocation2 + $0x98] sm:$0xff]
    %v1100 = vld [vmem:[#allocation2 + $0xa0] sm:$0xff]
    %v1101 = vld [vmem:[#allocation2 + $0xa8] sm:$0xff]
    %v1102 = vld [vmem:[#allocation2 + $0xb0] sm:$0xff]
    %v1103 = vld [vmem:[#allocation2 + $0xb8] sm:$0xff]
    %v1104 = vld [vmem:[#allocation2 + $0xc0] sm:$0xff]
    %v1105 = vld [vmem:[#allocation2 + $0xc8] sm:$0xff]
    %v1106 = vld [vmem:[#allocation2 + $0xd0] sm:$0xff]
    %v1107 = vld [vmem:[#allocation2 + $0xd8] sm:$0xff]
    %v1108 = vld [vmem:[#allocation2 + $0xe0] sm:$0xff]
    %v1109 = vld [vmem:[#allocation2 + $0xe8] sm:$0xff]
    %v1110 = vld [vmem:[#allocation2 + $0xf0] sm:$0xff]
    %v1111 = vld [vmem:[#allocation2 + $0xf8] sm:$0xff]
    %v1112 = vld [vmem:[#allocation2 + $0x100] sm:$0xff]
    %v1113 = vld [vmem:[#allocation2 + $0x108] sm:$0xff]
    %v1114 = vld [vmem:[#allocation2 + $0x110] sm:$0xff]
    %v1115 = vld [vmem:[#allocation2 + $0x118] sm:$0xff]
    %v1116 = vld [vmem:[#allocation2 + $0x120] sm:$0xff]
    %v1117 = vld [vmem:[#allocation2 + $0x128] sm:$0xff]
    %v1118 = vld [vmem:[#allocation2 + $0x130] sm:$0xff]
    %v1119 = vld [vmem:[#allocation2 + $0x138] sm:$0xff]
    %v1120 = vld [vmem:[#allocation2 + $0x140] sm:$0xff]
    %v1121 = vld [vmem:[#allocation2 + $0x148] sm:$0xff]
    %v1122 = vld [vmem:[#allocation2 + $0x150] sm:$0xff]
    %v1123 = vld [vmem:[#allocation2 + $0x158] sm:$0xff]
    %v1124 = vld [vmem:[#allocation2 + $0x160] sm:$0xff]
    %v1125 = vld [vmem:[#allocation2 + $0x168] sm:$0xff]
    %v1126 = vld [vmem:[#allocation2 + $0x170] sm:$0xff]
    %v1127 = vld [vmem:[#allocation2 + $0x178] sm:$0xff]
    %v1128 = vld [vmem:[#allocation2 + $0x180] sm:$0xff]
    %v1129 = vld [vmem:[#allocation2 + $0x188] sm:$0xff]
    %v1130 = vld [vmem:[#allocation2 + $0x190] sm:$0xff]
    %v1131 = vld [vmem:[#allocation2 + $0x198] sm:$0xff]
    %v1132 = vld [vmem:[#allocation2 + $0x1a0] sm:$0xff]
    %v1133 = vld [vmem:[#allocation2 + $0x1a8] sm:$0xff]
    %v1134 = vld [vmem:[#allocation2 + $0x1b0] sm:$0xff]
    %v1135 = vld [vmem:[#allocation2 + $0x1b8] sm:$0xff]
    %v1136 = vld [vmem:[#allocation2 + $0x1c0] sm:$0xff]
    %v1137 = vld [vmem:[#allocation2 + $0x1c8] sm:$0xff]
    %v1138 = vld [vmem:[#allocation2 + $0x1d0] sm:$0xff]
    %v1139 = vld [vmem:[#allocation2 + $0x1d8] sm:$0xff]
    %v1140 = vld [vmem:[#allocation2 + $0x1e0] sm:$0xff]
    %v1141 = vld [vmem:[#allocation2 + $0x1e8] sm:$0xff]
    %v1142 = vld [vmem:[#allocation2 + $0x1f0] sm:$0xff]
    %v1143 = vld [vmem:[#allocation2 + $0x1f8] sm:$0xff]
    %v1144 = vld [vmem:[#allocation2 + $0x200] sm:$0xff]
    %v1145 = vld [vmem:[#allocation2 + $0x208] sm:$0xff]
    %v1146 = vld [vmem:[#allocation2 + $0x210] sm:$0xff]
    %v1147 = vld [vmem:[#allocation2 + $0x218] sm:$0xff]
    %v1148 = vld [vmem:[#allocation2 + $0x220] sm:$0xff]
    %v1149 = vld [vmem:[#allocation2 + $0x228] sm:$0xff]
    %v1150 = vld [vmem:[#allocation2 + $0x230] sm:$0xff]
    %v1151 = vld [vmem:[#allocation2 + $0x238] sm:$0xff]
    %v1152 = vld [vmem:[#allocation2 + $0x240] sm:$0xff]
    %v1153 = vld [vmem:[#allocation2 + $0x248] sm:$0xff]
    %v1154 = vld [vmem:[#allocation2 + $0x250] sm:$0xff]
    %v1155 = vld [vmem:[#allocation2 + $0x258] sm:$0xff]
    %v1156 = vld [vmem:[#allocation2 + $0x260] sm:$0xff]
    %v1157 = vld [vmem:[#allocation2 + $0x268] sm:$0xff]
    %v1158 = vld [vmem:[#allocation2 + $0x270] sm:$0xff]
    %v1159 = vld [vmem:[#allocation2 + $0x278] sm:$0xff]
    %v1160 = vld [vmem:[#allocation2 + $0x280] sm:$0xff]
    %v1161 = vld [vmem:[#allocation2 + $0x288] sm:$0xff]
    %v1162 = vld [vmem:[#allocation2 + $0x290] sm:$0xff]
    %v1163 = vld [vmem:[#allocation2 + $0x298] sm:$0xff]
    %v1164 = vld [vmem:[#allocation2 + $0x2a0] sm:$0xff]
    %v1165 = vld [vmem:[#allocation2 + $0x2a8] sm:$0xff]
    %v1166 = vld [vmem:[#allocation2 + $0x2b0] sm:$0xff]
    %v1167 = vld [vmem:[#allocation2 + $0x2b8] sm:$0xff]
    %v1168 = vld [vmem:[#allocation2 + $0x2c0] sm:$0xff]
    %v1169 = vld [vmem:[#allocation2 + $0x2c8] sm:$0xff]
    %v1170 = vld [vmem:[#allocation2 + $0x2d0] sm:$0xff]
    %v1171 = vld [vmem:[#allocation2 + $0x2d8] sm:$0xff]
    %v1172 = vld [vmem:[#allocation2 + $0x2e0] sm:$0xff]
    %v1173 = vld [vmem:[#allocation2 + $0x2e8] sm:$0xff]
    %v1174 = vld [vmem:[#allocation2 + $0x2f0] sm:$0xff]
    %v1175 = vld [vmem:[#allocation2 + $0x2f8] sm:$0xff]
    %v1176 = vld [vmem:[#allocation2 + $0x300] sm:$0xff]
    %v1177 = vld [vmem:[#allocation2 + $0x308] sm:$0xff]
    %v1178 = vld [vmem:[#allocation2 + $0x310] sm:$0xff]
    %v1179 = vld [vmem:[#allocation2 + $0x318] sm:$0xff]
    %v1180 = vld [vmem:[#allocation2 + $0x320] sm:$0xff]
    %v1181 = vld [vmem:[#allocation2 + $0x328] sm:$0xff]
    %v1182 = vld [vmem:[#allocation2 + $0x330] sm:$0xff]
    %v1183 = vld [vmem:[#allocation2 + $0x338] sm:$0xff]
    %v1184 = vld [vmem:[#allocation2 + $0x340] sm:$0xff]
    %v1185 = vld [vmem:[#allocation2 + $0x348] sm:$0xff]
    %v1186 = vld [vmem:[#allocation2 + $0x350] sm:$0xff]
    %v1187 = vld [vmem:[#allocation2 + $0x358] sm:$0xff]
    %v1188 = vld [vmem:[#allocation2 + $0x360] sm:$0xff]
    %v1189 = vld [vmem:[#allocation2 + $0x368] sm:$0xff]
    %v1190 = vld [vmem:[#allocation2 + $0x370] sm:$0xff]
    %v1191 = vld [vmem:[#allocation2 + $0x378] sm:$0xff]
    %v1192 = vld [vmem:[#allocation2 + $0x380] sm:$0xff]
    %v1193 = vld [vmem:[#allocation2 + $0x388] sm:$0xff]
    %v1194 = vld [vmem:[#allocation2 + $0x390] sm:$0xff]
    %v1195 = vld [vmem:[#allocation2 + $0x398] sm:$0xff]
    %v1196 = vld [vmem:[#allocation2 + $0x3a0] sm:$0xff]
    %v1197 = vld [vmem:[#allocation2 + $0x3a8] sm:$0xff]
    %v1198 = vld [vmem:[#allocation2 + $0x3b0] sm:$0xff]
    %v1199 = vld [vmem:[#allocation2 + $0x3b8] sm:$0xff]
    %v1200 = vld [vmem:[#allocation2 + $0x3c0] sm:$0xff]
    %v1201 = vld [vmem:[#allocation2 + $0x3c8] sm:$0xff]
    %v1202 = vld [vmem:[#allocation2 + $0x3d0] sm:$0xff]
    %v1203 = vld [vmem:[#allocation2 + $0x3d8] sm:$0xff]
    %v1204 = vld [vmem:[#allocation2 + $0x3e0] sm:$0xff]
    %v1205 = vld [vmem:[#allocation2 + $0x3e8] sm:$0xff]
    %v1206 = vld [vmem:[#allocation2 + $0x3f0] sm:$0xff]
    %v1207 = vld [vmem:[#allocation2 + $0x3f8] sm:$0xff]
    %v1336 = vunpack.c.l.b16 %v1080
    %v1337 = vunpack.c.h.b16 %v1080
    %v1338 = vunpack.c.l.b16 %v1081
    %v1339 = vunpack.c.h.b16 %v1081
    %v1340 = vunpack.c.l.b16 %v1082
    %v1341 = vunpack.c.h.b16 %v1082
    %v1342 = vunpack.c.l.b16 %v1083
    %v1343 = vunpack.c.h.b16 %v1083
    %v1344 = vunpack.c.l.b16 %v1084
    %v1345 = vunpack.c.h.b16 %v1084
    %v1346 = vunpack.c.l.b16 %v1085
    %v1347 = vunpack.c.h.b16 %v1085
    %v1348 = vunpack.c.l.b16 %v1086
    %v1349 = vunpack.c.h.b16 %v1086
    %v1350 = vunpack.c.l.b16 %v1087
    %v1351 = vunpack.c.h.b16 %v1087
    %v1352 = vunpack.c.l.b16 %v1088
    %v1353 = vunpack.c.h.b16 %v1088
    %v1354 = vunpack.c.l.b16 %v1089
    %v1355 = vunpack.c.h.b16 %v1089
    %v1356 = vunpack.c.l.b16 %v1090
    %v1357 = vunpack.c.h.b16 %v1090
    %v1358 = vunpack.c.l.b16 %v1091
    %v1359 = vunpack.c.h.b16 %v1091
    %v1360 = vunpack.c.l.b16 %v1092
    %v1361 = vunpack.c.h.b16 %v1092
    %v1362 = vunpack.c.l.b16 %v1093
    %v1363 = vunpack.c.h.b16 %v1093
    %v1364 = vunpack.c.l.b16 %v1094
    %v1365 = vunpack.c.h.b16 %v1094
    %v1366 = vunpack.c.l.b16 %v1095
    %v1367 = vunpack.c.h.b16 %v1095
    %v1368 = vunpack.c.l.b16 %v1096
    %v1369 = vunpack.c.h.b16 %v1096
    %v1370 = vunpack.c.l.b16 %v1097
    %v1371 = vunpack.c.h.b16 %v1097
    %v1372 = vunpack.c.l.b16 %v1098
    %v1373 = vunpack.c.h.b16 %v1098
    %v1374 = vunpack.c.l.b16 %v1099
    %v1375 = vunpack.c.h.b16 %v1099
    %v1376 = vunpack.c.l.b16 %v1100
    %v1377 = vunpack.c.h.b16 %v1100
    %v1378 = vunpack.c.l.b16 %v1101
    %v1379 = vunpack.c.h.b16 %v1101
    %v1380 = vunpack.c.l.b16 %v1102
    %v1381 = vunpack.c.h.b16 %v1102
    %v1382 = vunpack.c.l.b16 %v1103
    %v1383 = vunpack.c.h.b16 %v1103
    %v1384 = vunpack.c.l.b16 %v1104
    %v1385 = vunpack.c.h.b16 %v1104
    %v1386 = vunpack.c.l.b16 %v1105
    %v1387 = vunpack.c.h.b16 %v1105
    %v1388 = vunpack.c.l.b16 %v1106
    %v1389 = vunpack.c.h.b16 %v1106
    %v1390 = vunpack.c.l.b16 %v1107
    %v1391 = vunpack.c.h.b16 %v1107
    %v1392 = vunpack.c.l.b16 %v1108
    %v1393 = vunpack.c.h.b16 %v1108
    %v1394 = vunpack.c.l.b16 %v1109
    %v1395 = vunpack.c.h.b16 %v1109
    %v1396 = vunpack.c.l.b16 %v1110
    %v1397 = vunpack.c.h.b16 %v1110
    %v1398 = vunpack.c.l.b16 %v1111
    %v1399 = vunpack.c.h.b16 %v1111
    %v1400 = vunpack.c.l.b16 %v1112
    %v1401 = vunpack.c.h.b16 %v1112
    %v1402 = vunpack.c.l.b16 %v1113
    %v1403 = vunpack.c.h.b16 %v1113
    %v1404 = vunpack.c.l.b16 %v1114
    %v1405 = vunpack.c.h.b16 %v1114
    %v1406 = vunpack.c.l.b16 %v1115
    %v1407 = vunpack.c.h.b16 %v1115
    %v1408 = vunpack.c.l.b16 %v1116
    %v1409 = vunpack.c.h.b16 %v1116
    %v1410 = vunpack.c.l.b16 %v1117
    %v1411 = vunpack.c.h.b16 %v1117
    %v1412 = vunpack.c.l.b16 %v1118
    %v1413 = vunpack.c.h.b16 %v1118
    %v1414 = vunpack.c.l.b16 %v1119
    %v1415 = vunpack.c.h.b16 %v1119
    %v1416 = vunpack.c.l.b16 %v1120
    %v1417 = vunpack.c.h.b16 %v1120
    %v1418 = vunpack.c.l.b16 %v1121
    %v1419 = vunpack.c.h.b16 %v1121
    %v1420 = vunpack.c.l.b16 %v1122
    %v1421 = vunpack.c.h.b16 %v1122
    %v1422 = vunpack.c.l.b16 %v1123
    %v1423 = vunpack.c.h.b16 %v1123
    %v1424 = vunpack.c.l.b16 %v1124
    %v1425 = vunpack.c.h.b16 %v1124
    %v1426 = vunpack.c.l.b16 %v1125
    %v1427 = vunpack.c.h.b16 %v1125
    %v1428 = vunpack.c.l.b16 %v1126
    %v1429 = vunpack.c.h.b16 %v1126
    %v1430 = vunpack.c.l.b16 %v1127
    %v1431 = vunpack.c.h.b16 %v1127
    %v1432 = vunpack.c.l.b16 %v1128
    %v1433 = vunpack.c.h.b16 %v1128
    %v1434 = vunpack.c.l.b16 %v1129
    %v1435 = vunpack.c.h.b16 %v1129
    %v1436 = vunpack.c.l.b16 %v1130
    %v1437 = vunpack.c.h.b16 %v1130
    %v1438 = vunpack.c.l.b16 %v1131
    %v1439 = vunpack.c.h.b16 %v1131
    %v1440 = vunpack.c.l.b16 %v1132
    %v1441 = vunpack.c.h.b16 %v1132
    %v1442 = vunpack.c.l.b16 %v1133
    %v1443 = vunpack.c.h.b16 %v1133
    %v1444 = vunpack.c.l.b16 %v1134
    %v1445 = vunpack.c.h.b16 %v1134
    %v1446 = vunpack.c.l.b16 %v1135
    %v1447 = vunpack.c.h.b16 %v1135
    %v1448 = vunpack.c.l.b16 %v1136
    %v1449 = vunpack.c.h.b16 %v1136
    %v1450 = vunpack.c.l.b16 %v1137
    %v1451 = vunpack.c.h.b16 %v1137
    %v1452 = vunpack.c.l.b16 %v1138
    %v1453 = vunpack.c.h.b16 %v1138
    %v1454 = vunpack.c.l.b16 %v1139
    %v1455 = vunpack.c.h.b16 %v1139
    %v1456 = vunpack.c.l.b16 %v1140
    %v1457 = vunpack.c.h.b16 %v1140
    %v1458 = vunpack.c.l.b16 %v1141
    %v1459 = vunpack.c.h.b16 %v1141
    %v1460 = vunpack.c.l.b16 %v1142
    %v1461 = vunpack.c.h.b16 %v1142
    %v1462 = vunpack.c.l.b16 %v1143
    %v1463 = vunpack.c.h.b16 %v1143
    %v1464 = vunpack.c.l.b16 %v1144
    %v1465 = vunpack.c.h.b16 %v1144
    %v1466 = vunpack.c.l.b16 %v1145
    %v1467 = vunpack.c.h.b16 %v1145
    %v1468 = vunpack.c.l.b16 %v1146
    %v1469 = vunpack.c.h.b16 %v1146
    %v1470 = vunpack.c.l.b16 %v1147
    %v1471 = vunpack.c.h.b16 %v1147
    %v1472 = vunpack.c.l.b16 %v1148
    %v1473 = vunpack.c.h.b16 %v1148
    %v1474 = vunpack.c.l.b16 %v1149
    %v1475 = vunpack.c.h.b16 %v1149
    %v1476 = vunpack.c.l.b16 %v1150
    %v1477 = vunpack.c.h.b16 %v1150
    %v1478 = vunpack.c.l.b16 %v1151
    %v1479 = vunpack.c.h.b16 %v1151
    %v1480 = vunpack.c.l.b16 %v1152
    %v1481 = vunpack.c.h.b16 %v1152
    %v1482 = vunpack.c.l.b16 %v1153
    %v1483 = vunpack.c.h.b16 %v1153
    %v1484 = vunpack.c.l.b16 %v1154
    %v1485 = vunpack.c.h.b16 %v1154
    %v1486 = vunpack.c.l.b16 %v1155
    %v1487 = vunpack.c.h.b16 %v1155
    %v1488 = vunpack.c.l.b16 %v1156
    %v1489 = vunpack.c.h.b16 %v1156
    %v1490 = vunpack.c.l.b16 %v1157
    %v1491 = vunpack.c.h.b16 %v1157
    %v1492 = vunpack.c.l.b16 %v1158
    %v1493 = vunpack.c.h.b16 %v1158
    %v1494 = vunpack.c.l.b16 %v1159
    %v1495 = vunpack.c.h.b16 %v1159
    %v1496 = vunpack.c.l.b16 %v1160
    %v1497 = vunpack.c.h.b16 %v1160
    %v1498 = vunpack.c.l.b16 %v1161
    %v1499 = vunpack.c.h.b16 %v1161
    %v1500 = vunpack.c.l.b16 %v1162
    %v1501 = vunpack.c.h.b16 %v1162
    %v1502 = vunpack.c.l.b16 %v1163
    %v1503 = vunpack.c.h.b16 %v1163
    %v1504 = vunpack.c.l.b16 %v1164
    %v1505 = vunpack.c.h.b16 %v1164
    %v1506 = vunpack.c.l.b16 %v1165
    %v1507 = vunpack.c.h.b16 %v1165
    %v1508 = vunpack.c.l.b16 %v1166
    %v1509 = vunpack.c.h.b16 %v1166
    %v1510 = vunpack.c.l.b16 %v1167
    %v1511 = vunpack.c.h.b16 %v1167
    %v1512 = vunpack.c.l.b16 %v1168
    %v1513 = vunpack.c.h.b16 %v1168
    %v1514 = vunpack.c.l.b16 %v1169
    %v1515 = vunpack.c.h.b16 %v1169
    %v1516 = vunpack.c.l.b16 %v1170
    %v1517 = vunpack.c.h.b16 %v1170
    %v1518 = vunpack.c.l.b16 %v1171
    %v1519 = vunpack.c.h.b16 %v1171
    %v1520 = vunpack.c.l.b16 %v1172
    %v1521 = vunpack.c.h.b16 %v1172
    %v1522 = vunpack.c.l.b16 %v1173
    %v1523 = vunpack.c.h.b16 %v1173
    %v1524 = vunpack.c.l.b16 %v1174
    %v1525 = vunpack.c.h.b16 %v1174
    %v1526 = vunpack.c.l.b16 %v1175
    %v1527 = vunpack.c.h.b16 %v1175
    %v1528 = vunpack.c.l.b16 %v1176
    %v1529 = vunpack.c.h.b16 %v1176
    %v1530 = vunpack.c.l.b16 %v1177
    %v1531 = vunpack.c.h.b16 %v1177
    %v1532 = vunpack.c.l.b16 %v1178
    %v1533 = vunpack.c.h.b16 %v1178
    %v1534 = vunpack.c.l.b16 %v1179
    %v1535 = vunpack.c.h.b16 %v1179
    %v1536 = vunpack.c.l.b16 %v1180
    %v1537 = vunpack.c.h.b16 %v1180
    %v1538 = vunpack.c.l.b16 %v1181
    %v1539 = vunpack.c.h.b16 %v1181
    %v1540 = vunpack.c.l.b16 %v1182
    %v1541 = vunpack.c.h.b16 %v1182
    %v1542 = vunpack.c.l.b16 %v1183
    %v1543 = vunpack.c.h.b16 %v1183
    %v1544 = vunpack.c.l.b16 %v1184
    %v1545 = vunpack.c.h.b16 %v1184
    %v1546 = vunpack.c.l.b16 %v1185
    %v1547 = vunpack.c.h.b16 %v1185
    %v1548 = vunpack.c.l.b16 %v1186
    %v1549 = vunpack.c.h.b16 %v1186
    %v1550 = vunpack.c.l.b16 %v1187
    %v1551 = vunpack.c.h.b16 %v1187
    %v1552 = vunpack.c.l.b16 %v1188
    %v1553 = vunpack.c.h.b16 %v1188
    %v1554 = vunpack.c.l.b16 %v1189
    %v1555 = vunpack.c.h.b16 %v1189
    %v1556 = vunpack.c.l.b16 %v1190
    %v1557 = vunpack.c.h.b16 %v1190
    %v1558 = vunpack.c.l.b16 %v1191
    %v1559 = vunpack.c.h.b16 %v1191
    %v1560 = vunpack.c.l.b16 %v1192
    %v1561 = vunpack.c.h.b16 %v1192
    %v1562 = vunpack.c.l.b16 %v1193
    %v1563 = vunpack.c.h.b16 %v1193
    %v1564 = vunpack.c.l.b16 %v1194
    %v1565 = vunpack.c.h.b16 %v1194
    %v1566 = vunpack.c.l.b16 %v1195
    %v1567 = vunpack.c.h.b16 %v1195
    %v1568 = vunpack.c.l.b16 %v1196
    %v1569 = vunpack.c.h.b16 %v1196
    %v1570 = vunpack.c.l.b16 %v1197
    %v1571 = vunpack.c.h.b16 %v1197
    %v1572 = vunpack.c.l.b16 %v1198
    %v1573 = vunpack.c.h.b16 %v1198
    %v1574 = vunpack.c.l.b16 %v1199
    %v1575 = vunpack.c.h.b16 %v1199
    %v1576 = vunpack.c.l.b16 %v1200
    %v1577 = vunpack.c.h.b16 %v1200
    %v1578 = vunpack.c.l.b16 %v1201
    %v1579 = vunpack.c.h.b16 %v1201
    %v1580 = vunpack.c.l.b16 %v1202
    %v1581 = vunpack.c.h.b16 %v1202
    %v1582 = vunpack.c.l.b16 %v1203
    %v1583 = vunpack.c.h.b16 %v1203
    %v1584 = vunpack.c.l.b16 %v1204
    %v1585 = vunpack.c.h.b16 %v1204
    %v1586 = vunpack.c.l.b16 %v1205
    %v1587 = vunpack.c.h.b16 %v1205
    %v1588 = vunpack.c.l.b16 %v1206
    %v1589 = vunpack.c.h.b16 %v1206
    %v1590 = vunpack.c.l.b16 %v1207
    %v1591 = vunpack.c.h.b16 %v1207
    %v1592 = vpack.c.b16 %v1344, %v1336
    %v1593 = vpack.c.b16 %v1345, %v1337
    %v1594 = vpack.c.b16 %v1346, %v1338
    %v1595 = vpack.c.b16 %v1347, %v1339
    %v1596 = vpack.c.b16 %v1348, %v1340
    %v1597 = vpack.c.b16 %v1349, %v1341
    %v1598 = vpack.c.b16 %v1350, %v1342
    %v1599 = vpack.c.b16 %v1351, %v1343
    %v1600 = vpack.c.b16 %v1360, %v1352
    %v1601 = vpack.c.b16 %v1361, %v1353
    %v1602 = vpack.c.b16 %v1362, %v1354
    %v1603 = vpack.c.b16 %v1363, %v1355
    %v1604 = vpack.c.b16 %v1364, %v1356
    %v1605 = vpack.c.b16 %v1365, %v1357
    %v1606 = vpack.c.b16 %v1366, %v1358
    %v1607 = vpack.c.b16 %v1367, %v1359
    %v1608 = vpack.c.b16 %v1376, %v1368
    %v1609 = vpack.c.b16 %v1377, %v1369
    %v1610 = vpack.c.b16 %v1378, %v1370
    %v1611 = vpack.c.b16 %v1379, %v1371
    %v1612 = vpack.c.b16 %v1380, %v1372
    %v1613 = vpack.c.b16 %v1381, %v1373
    %v1614 = vpack.c.b16 %v1382, %v1374
    %v1615 = vpack.c.b16 %v1383, %v1375
    %v1616 = vpack.c.b16 %v1392, %v1384
    %v1617 = vpack.c.b16 %v1393, %v1385
    %v1618 = vpack.c.b16 %v1394, %v1386
    %v1619 = vpack.c.b16 %v1395, %v1387
    %v1620 = vpack.c.b16 %v1396, %v1388
    %v1621 = vpack.c.b16 %v1397, %v1389
    %v1622 = vpack.c.b16 %v1398, %v1390
    %v1623 = vpack.c.b16 %v1399, %v1391
    %v1624 = vpack.c.b16 %v1408, %v1400
    %v1625 = vpack.c.b16 %v1409, %v1401
    %v1626 = vpack.c.b16 %v1410, %v1402
    %v1627 = vpack.c.b16 %v1411, %v1403
    %v1628 = vpack.c.b16 %v1412, %v1404
    %v1629 = vpack.c.b16 %v1413, %v1405
    %v1630 = vpack.c.b16 %v1414, %v1406
    %v1631 = vpack.c.b16 %v1415, %v1407
    %v1632 = vpack.c.b16 %v1424, %v1416
    %v1633 = vpack.c.b16 %v1425, %v1417
    %v1634 = vpack.c.b16 %v1426, %v1418
    %v1635 = vpack.c.b16 %v1427, %v1419
    %v1636 = vpack.c.b16 %v1428, %v1420
    %v1637 = vpack.c.b16 %v1429, %v1421
    %v1638 = vpack.c.b16 %v1430, %v1422
    %v1639 = vpack.c.b16 %v1431, %v1423
    %v1640 = vpack.c.b16 %v1440, %v1432
    %v1641 = vpack.c.b16 %v1441, %v1433
    %v1642 = vpack.c.b16 %v1442, %v1434
    %v1643 = vpack.c.b16 %v1443, %v1435
    %v1644 = vpack.c.b16 %v1444, %v1436
    %v1645 = vpack.c.b16 %v1445, %v1437
    %v1646 = vpack.c.b16 %v1446, %v1438
    %v1647 = vpack.c.b16 %v1447, %v1439
    %v1648 = vpack.c.b16 %v1456, %v1448
    %v1649 = vpack.c.b16 %v1457, %v1449
    %v1650 = vpack.c.b16 %v1458, %v1450
    %v1651 = vpack.c.b16 %v1459, %v1451
    %v1652 = vpack.c.b16 %v1460, %v1452
    %v1653 = vpack.c.b16 %v1461, %v1453
    %v1654 = vpack.c.b16 %v1462, %v1454
    %v1655 = vpack.c.b16 %v1463, %v1455
    %v1656 = vpack.c.b16 %v1472, %v1464
    %v1657 = vpack.c.b16 %v1473, %v1465
    %v1658 = vpack.c.b16 %v1474, %v1466
    %v1659 = vpack.c.b16 %v1475, %v1467
    %v1660 = vpack.c.b16 %v1476, %v1468
    %v1661 = vpack.c.b16 %v1477, %v1469
    %v1662 = vpack.c.b16 %v1478, %v1470
    %v1663 = vpack.c.b16 %v1479, %v1471
    %v1664 = vpack.c.b16 %v1488, %v1480
    %v1665 = vpack.c.b16 %v1489, %v1481
    %v1666 = vpack.c.b16 %v1490, %v1482
    %v1667 = vpack.c.b16 %v1491, %v1483
    %v1668 = vpack.c.b16 %v1492, %v1484
    %v1669 = vpack.c.b16 %v1493, %v1485
    %v1670 = vpack.c.b16 %v1494, %v1486
    %v1671 = vpack.c.b16 %v1495, %v1487
    %v1672 = vpack.c.b16 %v1504, %v1496
    %v1673 = vpack.c.b16 %v1505, %v1497
    %v1674 = vpack.c.b16 %v1506, %v1498
    %v1675 = vpack.c.b16 %v1507, %v1499
    %v1676 = vpack.c.b16 %v1508, %v1500
    %v1677 = vpack.c.b16 %v1509, %v1501
    %v1678 = vpack.c.b16 %v1510, %v1502
    %v1679 = vpack.c.b16 %v1511, %v1503
    %v1680 = vpack.c.b16 %v1520, %v1512
    %v1681 = vpack.c.b16 %v1521, %v1513
    %v1682 = vpack.c.b16 %v1522, %v1514
    %v1683 = vpack.c.b16 %v1523, %v1515
    %v1684 = vpack.c.b16 %v1524, %v1516
    %v1685 = vpack.c.b16 %v1525, %v1517
    %v1686 = vpack.c.b16 %v1526, %v1518
    %v1687 = vpack.c.b16 %v1527, %v1519
    %v1688 = vpack.c.b16 %v1536, %v1528
    %v1689 = vpack.c.b16 %v1537, %v1529
    %v1690 = vpack.c.b16 %v1538, %v1530
    %v1691 = vpack.c.b16 %v1539, %v1531
    %v1692 = vpack.c.b16 %v1540, %v1532
    %v1693 = vpack.c.b16 %v1541, %v1533
    %v1694 = vpack.c.b16 %v1542, %v1534
    %v1695 = vpack.c.b16 %v1543, %v1535
    %v1696 = vpack.c.b16 %v1552, %v1544
    %v1697 = vpack.c.b16 %v1553, %v1545
    %v1698 = vpack.c.b16 %v1554, %v1546
    %v1699 = vpack.c.b16 %v1555, %v1547
    %v1700 = vpack.c.b16 %v1556, %v1548
    %v1701 = vpack.c.b16 %v1557, %v1549
    %v1702 = vpack.c.b16 %v1558, %v1550
    %v1703 = vpack.c.b16 %v1559, %v1551
    %v1704 = vpack.c.b16 %v1568, %v1560
    %v1705 = vpack.c.b16 %v1569, %v1561
    %v1706 = vpack.c.b16 %v1570, %v1562
    %v1707 = vpack.c.b16 %v1571, %v1563
    %v1708 = vpack.c.b16 %v1572, %v1564
    %v1709 = vpack.c.b16 %v1573, %v1565
    %v1710 = vpack.c.b16 %v1574, %v1566
    %v1711 = vpack.c.b16 %v1575, %v1567
    %v1712 = vpack.c.b16 %v1584, %v1576
    %v1713 = vpack.c.b16 %v1585, %v1577
    %v1714 = vpack.c.b16 %v1586, %v1578
    %v1715 = vpack.c.b16 %v1587, %v1579
    %v1716 = vpack.c.b16 %v1588, %v1580
    %v1717 = vpack.c.b16 %v1589, %v1581
    %v1718 = vpack.c.b16 %v1590, %v1582
    %v1719 = vpack.c.b16 %v1591, %v1583
    %1848 = vmatprep.subr.bf16.mxu0 %v1649
    %1849 = vmatpush1.bf16.msra.mxu0 %v1648
    %1850 = vmatprep.subr.bf16.mxu0 %v1641
    %1851 = vmatpush1.bf16.msra.mxu0 %v1640
    %1852 = vmatprep.subr.bf16.mxu0 %v1633
    %1853 = vmatpush1.bf16.msra.mxu0 %v1632
    %1854 = vmatprep.subr.bf16.mxu0 %v1625
    %1855 = vmatpush1.bf16.msra.mxu0 %v1624
    %1856 = vmatprep.subr.bf16.mxu0 %v1617
    %1857 = vmatpush1.bf16.msra.mxu0 %v1616
    %1858 = vmatprep.subr.bf16.mxu0 %v1609
    %1859 = vmatpush1.bf16.msra.mxu0 %v1608
    %1860 = vmatprep.subr.bf16.mxu0 %v1601
    %1861 = vmatpush1.bf16.msra.mxu0 %v1600
    %1862 = vmatprep.subr.bf16.mxu0 %v1593
    %1863 = vmatpush1.bf16.msra.mxu0 %v1592
    %1864 = vmatprep.subr.bf16.mxu0 %v1713
    %1865 = vmatpush2.bf16.msra.mxu0 %v1712
    %1866 = vmatprep.subr.bf16.mxu0 %v1705
    %1867 = vmatpush2.bf16.msra.mxu0 %v1704
    %1868 = vmatprep.subr.bf16.mxu0 %v1697
    %1869 = vmatpush2.bf16.msra.mxu0 %v1696
    %1870 = vmatprep.subr.bf16.mxu0 %v1689
    %1871 = vmatpush2.bf16.msra.mxu0 %v1688
    %1872 = vmatprep.subr.bf16.mxu0 %v1681
    %1873 = vmatpush2.bf16.msra.mxu0 %v1680
    %1874 = vmatprep.subr.bf16.mxu0 %v1673
    %1875 = vmatpush2.bf16.msra.mxu0 %v1672
    %1876 = vmatprep.subr.bf16.mxu0 %v1665
    %1877 = vmatpush2.bf16.msra.mxu0 %v1664
    %1878 = vmatprep.subr.bf16.mxu0 %v1657
    %1879 = vmatpush2.bf16.msra.mxu0 %v1656
    %1880 = vmatprep.mubr.bf16.mxu0 %v1079
    %1881 = vmatmul.mubr.bf16.gmra.mxu0 %v1078
    %v1882 = vpop.f32.mrf.mxu0
    %v1883 = vadd.f32 0.0, %v1882
    %v1884 = vpop.f32.mrf.mxu0
    %v1885 = vadd.f32 0.0, %v1884
    %v1886 = vpop.f32.mrf.mxu0
    %v1887 = vpop.f32.mrf.mxu0
    %1888 = vdwg.mxu0
    %1889 = vmatprep.subr.bf16.mxu0 %v1651
    %1890 = vmatpush1.bf16.msra.mxu0 %v1650
    %1891 = vmatprep.subr.bf16.mxu0 %v1643
    %1892 = vmatpush1.bf16.msra.mxu0 %v1642
    %1893 = vmatprep.subr.bf16.mxu0 %v1635
    %1894 = vmatpush1.bf16.msra.mxu0 %v1634
    %1895 = vmatprep.subr.bf16.mxu0 %v1627
    %1896 = vmatpush1.bf16.msra.mxu0 %v1626
    %1897 = vmatprep.subr.bf16.mxu0 %v1619
    %1898 = vmatpush1.bf16.msra.mxu0 %v1618
    %1899 = vmatprep.subr.bf16.mxu0 %v1611
    %1900 = vmatpush1.bf16.msra.mxu0 %v1610
    %1901 = vmatprep.subr.bf16.mxu0 %v1603
    %1902 = vmatpush1.bf16.msra.mxu0 %v1602
    %1903 = vmatprep.subr.bf16.mxu0 %v1595
    %1904 = vmatpush1.bf16.msra.mxu0 %v1594
    %1905 = vmatprep.subr.bf16.mxu0 %v1715
    %1906 = vmatpush2.bf16.msra.mxu0 %v1714
    %1907 = vmatprep.subr.bf16.mxu0 %v1707
    %1908 = vmatpush2.bf16.msra.mxu0 %v1706
    %1909 = vmatprep.subr.bf16.mxu0 %v1699
    %1910 = vmatpush2.bf16.msra.mxu0 %v1698
    %1911 = vmatprep.subr.bf16.mxu0 %v1691
    %1912 = vmatpush2.bf16.msra.mxu0 %v1690
    %1913 = vmatprep.subr.bf16.mxu0 %v1683
    %1914 = vmatpush2.bf16.msra.mxu0 %v1682
    %1915 = vmatprep.subr.bf16.mxu0 %v1675
    %1916 = vmatpush2.bf16.msra.mxu0 %v1674
    %1917 = vmatprep.subr.bf16.mxu0 %v1667
    %1918 = vmatpush2.bf16.msra.mxu0 %v1666
    %1919 = vmatprep.subr.bf16.mxu0 %v1659
    %1920 = vmatpush2.bf16.msra.mxu0 %v1658
    %1921 = vmatprep.mubr.bf16.mxu0 %v1079
    %1922 = vmatmul.mubr.bf16.gmra.mxu0 %v1078
    %v1923 = vpop.f32.mrf.mxu0
    %v1924 = vadd.f32 0.0, %v1923
    %v1925 = vpop.f32.mrf.mxu0
    %v1926 = vadd.f32 0.0, %v1925
    %v1927 = vpop.f32.mrf.mxu0
    %v1928 = vpop.f32.mrf.mxu0
    %1929 = vdwg.mxu0
    %1930 = vmatprep.subr.bf16.mxu0 %v1653
    %1931 = vmatpush1.bf16.msra.mxu0 %v1652
    %1932 = vmatprep.subr.bf16.mxu0 %v1645
    %1933 = vmatpush1.bf16.msra.mxu0 %v1644
    %1934 = vmatprep.subr.bf16.mxu0 %v1637
    %1935 = vmatpush1.bf16.msra.mxu0 %v1636
    %1936 = vmatprep.subr.bf16.mxu0 %v1629
    %1937 = vmatpush1.bf16.msra.mxu0 %v1628
    %1938 = vmatprep.subr.bf16.mxu0 %v1621
    %1939 = vmatpush1.bf16.msra.mxu0 %v1620
    %1940 = vmatprep.subr.bf16.mxu0 %v1613
    %1941 = vmatpush1.bf16.msra.mxu0 %v1612
    %1942 = vmatprep.subr.bf16.mxu0 %v1605
    %1943 = vmatpush1.bf16.msra.mxu0 %v1604
    %1944 = vmatprep.subr.bf16.mxu0 %v1597
    %1945 = vmatpush1.bf16.msra.mxu0 %v1596
    %1946 = vmatprep.subr.bf16.mxu0 %v1717
    %1947 = vmatpush2.bf16.msra.mxu0 %v1716
    %1948 = vmatprep.subr.bf16.mxu0 %v1709
    %1949 = vmatpush2.bf16.msra.mxu0 %v1708
    %1950 = vmatprep.subr.bf16.mxu0 %v1701
    %1951 = vmatpush2.bf16.msra.mxu0 %v1700
    %1952 = vmatprep.subr.bf16.mxu0 %v1693
    %1953 = vmatpush2.bf16.msra.mxu0 %v1692
    %1954 = vmatprep.subr.bf16.mxu0 %v1685
    %1955 = vmatpush2.bf16.msra.mxu0 %v1684
    %1956 = vmatprep.subr.bf16.mxu0 %v1677
    %1957 = vmatpush2.bf16.msra.mxu0 %v1676
    %1958 = vmatprep.subr.bf16.mxu0 %v1669
    %1959 = vmatpush2.bf16.msra.mxu0 %v1668
    %1960 = vmatprep.subr.bf16.mxu0 %v1661
    %1961 = vmatpush2.bf16.msra.mxu0 %v1660
    %1962 = vmatprep.mubr.bf16.mxu0 %v1079
    %1963 = vmatmul.mubr.bf16.gmra.mxu0 %v1078
    %v1964 = vpop.f32.mrf.mxu0
    %v1965 = vadd.f32 0.0, %v1964
    %v1966 = vpop.f32.mrf.mxu0
    %v1967 = vadd.f32 0.0, %v1966
    %v1968 = vpop.f32.mrf.mxu0
    %v1969 = vpop.f32.mrf.mxu0
    %1970 = vdwg.mxu0
    %1971 = vmatprep.subr.bf16.mxu0 %v1655
    %1972 = vmatpush1.bf16.msra.mxu0 %v1654
    %1973 = vmatprep.subr.bf16.mxu0 %v1647
    %1974 = vmatpush1.bf16.msra.mxu0 %v1646
    %1975 = vmatprep.subr.bf16.mxu0 %v1639
    %1976 = vmatpush1.bf16.msra.mxu0 %v1638
    %1977 = vmatprep.subr.bf16.mxu0 %v1631
    %1978 = vmatpush1.bf16.msra.mxu0 %v1630
    %1979 = vmatprep.subr.bf16.mxu0 %v1623
    %1980 = vmatpush1.bf16.msra.mxu0 %v1622
    %1981 = vmatprep.subr.bf16.mxu0 %v1615
    %1982 = vmatpush1.bf16.msra.mxu0 %v1614
    %1983 = vmatprep.subr.bf16.mxu0 %v1607
    %1984 = vmatpush1.bf16.msra.mxu0 %v1606
    %1985 = vmatprep.subr.bf16.mxu0 %v1599
    %1986 = vmatpush1.bf16.msra.mxu0 %v1598
    %1987 = vmatprep.subr.bf16.mxu0 %v1719
    %1988 = vmatpush2.bf16.msra.mxu0 %v1718
    %1989 = vmatprep.subr.bf16.mxu0 %v1711
    %1990 = vmatpush2.bf16.msra.mxu0 %v1710
    %1991 = vmatprep.subr.bf16.mxu0 %v1703
    %1992 = vmatpush2.bf16.msra.mxu0 %v1702
    %1993 = vmatprep.subr.bf16.mxu0 %v1695
    %1994 = vmatpush2.bf16.msra.mxu0 %v1694
    %1995 = vmatprep.subr.bf16.mxu0 %v1687
    %1996 = vmatpush2.bf16.msra.mxu0 %v1686
    %1997 = vmatprep.subr.bf16.mxu0 %v1679
    %1998 = vmatpush2.bf16.msra.mxu0 %v1678
    %1999 = vmatprep.subr.bf16.mxu0 %v1671
    %2000 = vmatpush2.bf16.msra.mxu0 %v1670
    %2001 = vmatprep.subr.bf16.mxu0 %v1663
    %2002 = vmatpush2.bf16.msra.mxu0 %v1662
    %2003 = vmatprep.mubr.bf16.mxu0 %v1079
    %2004 = vmatmul.mubr.bf16.gmra.mxu0 %v1078
    %v2005 = vpop.f32.mrf.mxu0
    %v2006 = vadd.f32 0.0, %v2005
    %v2007 = vpop.f32.mrf.mxu0
    %v2008 = vadd.f32 0.0, %v2007
    %v2009 = vpop.f32.mrf.mxu0
    %v2010 = vpop.f32.mrf.mxu0
    %2011 = vdwg.mxu0
    %v2012 = vadd.f32 %v1965, %v34
    %v2013 = vadd.f32 %v1967, %v38
    %v2014 = vadd.f32 %v2006, %v42
    %v2015 = vadd.f32 %v2008, %v46
    %v2016 = vxor.u32 %v2012, 2147483648
    %v2017 = vmul.f32 %v2016, 1.442695
    %v2018 = vpow.pop %v2017
    %v2019 = vadd.f32 %v2018, 1.0
    %v2020 = vrcp.pop %v2019
    %v2021 = vmul.f32 1.0, %v2020
    %v2022 = vxor.u32 %v2013, 2147483648
    %v2023 = vmul.f32 %v2022, 1.442695
    %v2024 = vpow.pop %v2023
    %v2025 = vadd.f32 %v2024, 1.0
    %v2026 = vrcp.pop %v2025
    %v2027 = vmul.f32 1.0, %v2026
    %v2028 = vtanh.pop %v2014
    %v2029 = vxor.u32 %v2015, 2147483648
    %v2030 = vmul.f32 %v2029, 1.442695
    %v2031 = vpow.pop %v2030
    %v2032 = vadd.f32 %v2031, 1.0
    %v2033 = vrcp.pop %v2032
    %v2034 = vmul.f32 1.0, %v2033
    %v2035 = vmul.f32 %v2027, %v1041
    %v2036 = vmul.f32 %v2021, %v2028
    %v2037 = vadd.f32 %v2035, %v2036
    %v2038 = vtanh.pop %v2037
    %v2039 = vmul.f32 %v2034, %v2038
    %s2040 = scalar_lea.vmem %s3, 8
    %2041 = vst [vmem:[%s2040] sm:$0xff] %v2039
    %s2042 = scalar_lea.vmem %s0, 64
    %v2043 = vld [vmem:[%s2042] sm:$0xff]
    %v2044 = vld [vmem:[%s2042 + $0x8] sm:$0xff]
    %v2045 = vld [vmem:[%s2042 + $0x10] sm:$0xff]
    %v2046 = vld [vmem:[%s2042 + $0x18] sm:$0xff]
    %v2047 = vadd.f32 %v2043, %v1883
    %v2048 = vadd.f32 %v2044, %v1885
    %v2049 = vadd.f32 %v2045, %v1924
    %v2050 = vadd.f32 %v2046, %v1926
    %v2051 = vxor.u32 %v2047, 2147483648
    %v2052 = vmul.f32 %v2051, 1.442695
    %v2053 = vpow.pop %v2052
    %v2054 = vadd.f32 %v2053, 1.0
    %v2055 = vrcp.pop %v2054
    %v2056 = vmul.f32 1.0, %v2055
    %v2057 = vxor.u32 %v2048, 2147483648
    %v2058 = vmul.f32 %v2057, 1.442695
    %v2059 = vpow.pop %v2058
    %v2060 = vadd.f32 %v2059, 1.0
    %v2061 = vrcp.pop %v2060
    %v2062 = vmul.f32 1.0, %v2061
    %v2063 = vtanh.pop %v2049
    %v2064 = vxor.u32 %v2050, 2147483648
    %v2065 = vmul.f32 %v2064, 1.442695
    %v2066 = vpow.pop %v2065
    %v2067 = vadd.f32 %v2066, 1.0
    %v2068 = vrcp.pop %v2067
    %v2069 = vmul.f32 1.0, %v2068
    %v2070 = vmul.f32 %v2062, %v1075
    %v2071 = vmul.f32 %v2056, %v2063
    %v2072 = vadd.f32 %v2070, %v2071
    %v2073 = vtanh.pop %v2072
    %v2074 = vmul.f32 %v2069, %v2073
    %v2075 = vpack.c.bf16 %v2074, %v2074
    %v2076 = vpack.c.bf16 %v2039, %v2039
    %v2077 = vld [vmem:[#allocation2] sm:$0xff]
    %v2078 = vld [vmem:[#allocation2 + $0x8] sm:$0xff]
    %v2079 = vld [vmem:[#allocation2 + $0x10] sm:$0xff]
    %v2080 = vld [vmem:[#allocation2 + $0x18] sm:$0xff]
    %v2081 = vld [vmem:[#allocation2 + $0x20] sm:$0xff]
    %v2082 = vld [vmem:[#allocation2 + $0x28] sm:$0xff]
    %v2083 = vld [vmem:[#allocation2 + $0x30] sm:$0xff]
    %v2084 = vld [vmem:[#allocation2 + $0x38] sm:$0xff]
    %v2085 = vld [vmem:[#allocation2 + $0x40] sm:$0xff]
    %v2086 = vld [vmem:[#allocation2 + $0x48] sm:$0xff]
    %v2087 = vld [vmem:[#allocation2 + $0x50] sm:$0xff]
    %v2088 = vld [vmem:[#allocation2 + $0x58] sm:$0xff]
    %v2089 = vld [vmem:[#allocation2 + $0x60] sm:$0xff]
    %v2090 = vld [vmem:[#allocation2 + $0x68] sm:$0xff]
    %v2091 = vld [vmem:[#allocation2 + $0x70] sm:$0xff]
    %v2092 = vld [vmem:[#allocation2 + $0x78] sm:$0xff]
    %v2093 = vld [vmem:[#allocation2 + $0x80] sm:$0xff]
    %v2094 = vld [vmem:[#allocation2 + $0x88] sm:$0xff]
    %v2095 = vld [vmem:[#allocation2 + $0x90] sm:$0xff]
    %v2096 = vld [vmem:[#allocation2 + $0x98] sm:$0xff]
    %v2097 = vld [vmem:[#allocation2 + $0xa0] sm:$0xff]
    %v2098 = vld [vmem:[#allocation2 + $0xa8] sm:$0xff]
    %v2099 = vld [vmem:[#allocation2 + $0xb0] sm:$0xff]
    %v2100 = vld [vmem:[#allocation2 + $0xb8] sm:$0xff]
    %v2101 = vld [vmem:[#allocation2 + $0xc0] sm:$0xff]
    %v2102 = vld [vmem:[#allocation2 + $0xc8] sm:$0xff]
    %v2103 = vld [vmem:[#allocation2 + $0xd0] sm:$0xff]
    %v2104 = vld [vmem:[#allocation2 + $0xd8] sm:$0xff]
    %v2105 = vld [vmem:[#allocation2 + $0xe0] sm:$0xff]
    %v2106 = vld [vmem:[#allocation2 + $0xe8] sm:$0xff]
    %v2107 = vld [vmem:[#allocation2 + $0xf0] sm:$0xff]
    %v2108 = vld [vmem:[#allocation2 + $0xf8] sm:$0xff]
    %v2109 = vld [vmem:[#allocation2 + $0x100] sm:$0xff]
    %v2110 = vld [vmem:[#allocation2 + $0x108] sm:$0xff]
    %v2111 = vld [vmem:[#allocation2 + $0x110] sm:$0xff]
    %v2112 = vld [vmem:[#allocation2 + $0x118] sm:$0xff]
    %v2113 = vld [vmem:[#allocation2 + $0x120] sm:$0xff]
    %v2114 = vld [vmem:[#allocation2 + $0x128] sm:$0xff]
    %v2115 = vld [vmem:[#allocation2 + $0x130] sm:$0xff]
    %v2116 = vld [vmem:[#allocation2 + $0x138] sm:$0xff]
    %v2117 = vld [vmem:[#allocation2 + $0x140] sm:$0xff]
    %v2118 = vld [vmem:[#allocation2 + $0x148] sm:$0xff]
    %v2119 = vld [vmem:[#allocation2 + $0x150] sm:$0xff]
    %v2120 = vld [vmem:[#allocation2 + $0x158] sm:$0xff]
    %v2121 = vld [vmem:[#allocation2 + $0x160] sm:$0xff]
    %v2122 = vld [vmem:[#allocation2 + $0x168] sm:$0xff]
    %v2123 = vld [vmem:[#allocation2 + $0x170] sm:$0xff]
    %v2124 = vld [vmem:[#allocation2 + $0x178] sm:$0xff]
    %v2125 = vld [vmem:[#allocation2 + $0x180] sm:$0xff]
    %v2126 = vld [vmem:[#allocation2 + $0x188] sm:$0xff]
    %v2127 = vld [vmem:[#allocation2 + $0x190] sm:$0xff]
    %v2128 = vld [vmem:[#allocation2 + $0x198] sm:$0xff]
    %v2129 = vld [vmem:[#allocation2 + $0x1a0] sm:$0xff]
    %v2130 = vld [vmem:[#allocation2 + $0x1a8] sm:$0xff]
    %v2131 = vld [vmem:[#allocation2 + $0x1b0] sm:$0xff]
    %v2132 = vld [vmem:[#allocation2 + $0x1b8] sm:$0xff]
    %v2133 = vld [vmem:[#allocation2 + $0x1c0] sm:$0xff]
    %v2134 = vld [vmem:[#allocation2 + $0x1c8] sm:$0xff]
    %v2135 = vld [vmem:[#allocation2 + $0x1d0] sm:$0xff]
    %v2136 = vld [vmem:[#allocation2 + $0x1d8] sm:$0xff]
    %v2137 = vld [vmem:[#allocation2 + $0x1e0] sm:$0xff]
    %v2138 = vld [vmem:[#allocation2 + $0x1e8] sm:$0xff]
    %v2139 = vld [vmem:[#allocation2 + $0x1f0] sm:$0xff]
    %v2140 = vld [vmem:[#allocation2 + $0x1f8] sm:$0xff]
    %v2141 = vld [vmem:[#allocation2 + $0x200] sm:$0xff]
    %v2142 = vld [vmem:[#allocation2 + $0x208] sm:$0xff]
    %v2143 = vld [vmem:[#allocation2 + $0x210] sm:$0xff]
    %v2144 = vld [vmem:[#allocation2 + $0x218] sm:$0xff]
    %v2145 = vld [vmem:[#allocation2 + $0x220] sm:$0xff]
    %v2146 = vld [vmem:[#allocation2 + $0x228] sm:$0xff]
    %v2147 = vld [vmem:[#allocation2 + $0x230] sm:$0xff]
    %v2148 = vld [vmem:[#allocation2 + $0x238] sm:$0xff]
    %v2149 = vld [vmem:[#allocation2 + $0x240] sm:$0xff]
    %v2150 = vld [vmem:[#allocation2 + $0x248] sm:$0xff]
    %v2151 = vld [vmem:[#allocation2 + $0x250] sm:$0xff]
    %v2152 = vld [vmem:[#allocation2 + $0x258] sm:$0xff]
    %v2153 = vld [vmem:[#allocation2 + $0x260] sm:$0xff]
    %v2154 = vld [vmem:[#allocation2 + $0x268] sm:$0xff]
    %v2155 = vld [vmem:[#allocation2 + $0x270] sm:$0xff]
    %v2156 = vld [vmem:[#allocation2 + $0x278] sm:$0xff]
    %v2157 = vld [vmem:[#allocation2 + $0x280] sm:$0xff]
    %v2158 = vld [vmem:[#allocation2 + $0x288] sm:$0xff]
    %v2159 = vld [vmem:[#allocation2 + $0x290] sm:$0xff]
    %v2160 = vld [vmem:[#allocation2 + $0x298] sm:$0xff]
    %v2161 = vld [vmem:[#allocation2 + $0x2a0] sm:$0xff]
    %v2162 = vld [vmem:[#allocation2 + $0x2a8] sm:$0xff]
    %v2163 = vld [vmem:[#allocation2 + $0x2b0] sm:$0xff]
    %v2164 = vld [vmem:[#allocation2 + $0x2b8] sm:$0xff]
    %v2165 = vld [vmem:[#allocation2 + $0x2c0] sm:$0xff]
    %v2166 = vld [vmem:[#allocation2 + $0x2c8] sm:$0xff]
    %v2167 = vld [vmem:[#allocation2 + $0x2d0] sm:$0xff]
    %v2168 = vld [vmem:[#allocation2 + $0x2d8] sm:$0xff]
    %v2169 = vld [vmem:[#allocation2 + $0x2e0] sm:$0xff]
    %v2170 = vld [vmem:[#allocation2 + $0x2e8] sm:$0xff]
    %v2171 = vld [vmem:[#allocation2 + $0x2f0] sm:$0xff]
    %v2172 = vld [vmem:[#allocation2 + $0x2f8] sm:$0xff]
    %v2173 = vld [vmem:[#allocation2 + $0x300] sm:$0xff]
    %v2174 = vld [vmem:[#allocation2 + $0x308] sm:$0xff]
    %v2175 = vld [vmem:[#allocation2 + $0x310] sm:$0xff]
    %v2176 = vld [vmem:[#allocation2 + $0x318] sm:$0xff]
    %v2177 = vld [vmem:[#allocation2 + $0x320] sm:$0xff]
    %v2178 = vld [vmem:[#allocation2 + $0x328] sm:$0xff]
    %v2179 = vld [vmem:[#allocation2 + $0x330] sm:$0xff]
    %v2180 = vld [vmem:[#allocation2 + $0x338] sm:$0xff]
    %v2181 = vld [vmem:[#allocation2 + $0x340] sm:$0xff]
    %v2182 = vld [vmem:[#allocation2 + $0x348] sm:$0xff]
    %v2183 = vld [vmem:[#allocation2 + $0x350] sm:$0xff]
    %v2184 = vld [vmem:[#allocation2 + $0x358] sm:$0xff]
    %v2185 = vld [vmem:[#allocation2 + $0x360] sm:$0xff]
    %v2186 = vld [vmem:[#allocation2 + $0x368] sm:$0xff]
    %v2187 = vld [vmem:[#allocation2 + $0x370] sm:$0xff]
    %v2188 = vld [vmem:[#allocation2 + $0x378] sm:$0xff]
    %v2189 = vld [vmem:[#allocation2 + $0x380] sm:$0xff]
    %v2190 = vld [vmem:[#allocation2 + $0x388] sm:$0xff]
    %v2191 = vld [vmem:[#allocation2 + $0x390] sm:$0xff]
    %v2192 = vld [vmem:[#allocation2 + $0x398] sm:$0xff]
    %v2193 = vld [vmem:[#allocation2 + $0x3a0] sm:$0xff]
    %v2194 = vld [vmem:[#allocation2 + $0x3a8] sm:$0xff]
    %v2195 = vld [vmem:[#allocation2 + $0x3b0] sm:$0xff]
    %v2196 = vld [vmem:[#allocation2 + $0x3b8] sm:$0xff]
    %v2197 = vld [vmem:[#allocation2 + $0x3c0] sm:$0xff]
    %v2198 = vld [vmem:[#allocation2 + $0x3c8] sm:$0xff]
    %v2199 = vld [vmem:[#allocation2 + $0x3d0] sm:$0xff]
    %v2200 = vld [vmem:[#allocation2 + $0x3d8] sm:$0xff]
    %v2201 = vld [vmem:[#allocation2 + $0x3e0] sm:$0xff]
    %v2202 = vld [vmem:[#allocation2 + $0x3e8] sm:$0xff]
    %v2203 = vld [vmem:[#allocation2 + $0x3f0] sm:$0xff]
    %v2204 = vld [vmem:[#allocation2 + $0x3f8] sm:$0xff]
    %v2333 = vunpack.c.l.b16 %v2077
    %v2334 = vunpack.c.h.b16 %v2077
    %v2335 = vunpack.c.l.b16 %v2078
    %v2336 = vunpack.c.h.b16 %v2078
    %v2337 = vunpack.c.l.b16 %v2079
    %v2338 = vunpack.c.h.b16 %v2079
    %v2339 = vunpack.c.l.b16 %v2080
    %v2340 = vunpack.c.h.b16 %v2080
    %v2341 = vunpack.c.l.b16 %v2081
    %v2342 = vunpack.c.h.b16 %v2081
    %v2343 = vunpack.c.l.b16 %v2082
    %v2344 = vunpack.c.h.b16 %v2082
    %v2345 = vunpack.c.l.b16 %v2083
    %v2346 = vunpack.c.h.b16 %v2083
    %v2347 = vunpack.c.l.b16 %v2084
    %v2348 = vunpack.c.h.b16 %v2084
    %v2349 = vunpack.c.l.b16 %v2085
    %v2350 = vunpack.c.h.b16 %v2085
    %v2351 = vunpack.c.l.b16 %v2086
    %v2352 = vunpack.c.h.b16 %v2086
    %v2353 = vunpack.c.l.b16 %v2087
    %v2354 = vunpack.c.h.b16 %v2087
    %v2355 = vunpack.c.l.b16 %v2088
    %v2356 = vunpack.c.h.b16 %v2088
    %v2357 = vunpack.c.l.b16 %v2089
    %v2358 = vunpack.c.h.b16 %v2089
    %v2359 = vunpack.c.l.b16 %v2090
    %v2360 = vunpack.c.h.b16 %v2090
    %v2361 = vunpack.c.l.b16 %v2091
    %v2362 = vunpack.c.h.b16 %v2091
    %v2363 = vunpack.c.l.b16 %v2092
    %v2364 = vunpack.c.h.b16 %v2092
    %v2365 = vunpack.c.l.b16 %v2093
    %v2366 = vunpack.c.h.b16 %v2093
    %v2367 = vunpack.c.l.b16 %v2094
    %v2368 = vunpack.c.h.b16 %v2094
    %v2369 = vunpack.c.l.b16 %v2095
    %v2370 = vunpack.c.h.b16 %v2095
    %v2371 = vunpack.c.l.b16 %v2096
    %v2372 = vunpack.c.h.b16 %v2096
    %v2373 = vunpack.c.l.b16 %v2097
    %v2374 = vunpack.c.h.b16 %v2097
    %v2375 = vunpack.c.l.b16 %v2098
    %v2376 = vunpack.c.h.b16 %v2098
    %v2377 = vunpack.c.l.b16 %v2099
    %v2378 = vunpack.c.h.b16 %v2099
    %v2379 = vunpack.c.l.b16 %v2100
    %v2380 = vunpack.c.h.b16 %v2100
    %v2381 = vunpack.c.l.b16 %v2101
    %v2382 = vunpack.c.h.b16 %v2101
    %v2383 = vunpack.c.l.b16 %v2102
    %v2384 = vunpack.c.h.b16 %v2102
    %v2385 = vunpack.c.l.b16 %v2103
    %v2386 = vunpack.c.h.b16 %v2103
    %v2387 = vunpack.c.l.b16 %v2104
    %v2388 = vunpack.c.h.b16 %v2104
    %v2389 = vunpack.c.l.b16 %v2105
    %v2390 = vunpack.c.h.b16 %v2105
    %v2391 = vunpack.c.l.b16 %v2106
    %v2392 = vunpack.c.h.b16 %v2106
    %v2393 = vunpack.c.l.b16 %v2107
    %v2394 = vunpack.c.h.b16 %v2107
    %v2395 = vunpack.c.l.b16 %v2108
    %v2396 = vunpack.c.h.b16 %v2108
    %v2397 = vunpack.c.l.b16 %v2109
    %v2398 = vunpack.c.h.b16 %v2109
    %v2399 = vunpack.c.l.b16 %v2110
    %v2400 = vunpack.c.h.b16 %v2110
    %v2401 = vunpack.c.l.b16 %v2111
    %v2402 = vunpack.c.h.b16 %v2111
    %v2403 = vunpack.c.l.b16 %v2112
    %v2404 = vunpack.c.h.b16 %v2112
    %v2405 = vunpack.c.l.b16 %v2113
    %v2406 = vunpack.c.h.b16 %v2113
    %v2407 = vunpack.c.l.b16 %v2114
    %v2408 = vunpack.c.h.b16 %v2114
    %v2409 = vunpack.c.l.b16 %v2115
    %v2410 = vunpack.c.h.b16 %v2115
    %v2411 = vunpack.c.l.b16 %v2116
    %v2412 = vunpack.c.h.b16 %v2116
    %v2413 = vunpack.c.l.b16 %v2117
    %v2414 = vunpack.c.h.b16 %v2117
    %v2415 = vunpack.c.l.b16 %v2118
    %v2416 = vunpack.c.h.b16 %v2118
    %v2417 = vunpack.c.l.b16 %v2119
    %v2418 = vunpack.c.h.b16 %v2119
    %v2419 = vunpack.c.l.b16 %v2120
    %v2420 = vunpack.c.h.b16 %v2120
    %v2421 = vunpack.c.l.b16 %v2121
    %v2422 = vunpack.c.h.b16 %v2121
    %v2423 = vunpack.c.l.b16 %v2122
    %v2424 = vunpack.c.h.b16 %v2122
    %v2425 = vunpack.c.l.b16 %v2123
    %v2426 = vunpack.c.h.b16 %v2123
    %v2427 = vunpack.c.l.b16 %v2124
    %v2428 = vunpack.c.h.b16 %v2124
    %v2429 = vunpack.c.l.b16 %v2125
    %v2430 = vunpack.c.h.b16 %v2125
    %v2431 = vunpack.c.l.b16 %v2126
    %v2432 = vunpack.c.h.b16 %v2126
    %v2433 = vunpack.c.l.b16 %v2127
    %v2434 = vunpack.c.h.b16 %v2127
    %v2435 = vunpack.c.l.b16 %v2128
    %v2436 = vunpack.c.h.b16 %v2128
    %v2437 = vunpack.c.l.b16 %v2129
    %v2438 = vunpack.c.h.b16 %v2129
    %v2439 = vunpack.c.l.b16 %v2130
    %v2440 = vunpack.c.h.b16 %v2130
    %v2441 = vunpack.c.l.b16 %v2131
    %v2442 = vunpack.c.h.b16 %v2131
    %v2443 = vunpack.c.l.b16 %v2132
    %v2444 = vunpack.c.h.b16 %v2132
    %v2445 = vunpack.c.l.b16 %v2133
    %v2446 = vunpack.c.h.b16 %v2133
    %v2447 = vunpack.c.l.b16 %v2134
    %v2448 = vunpack.c.h.b16 %v2134
    %v2449 = vunpack.c.l.b16 %v2135
    %v2450 = vunpack.c.h.b16 %v2135
    %v2451 = vunpack.c.l.b16 %v2136
    %v2452 = vunpack.c.h.b16 %v2136
    %v2453 = vunpack.c.l.b16 %v2137
    %v2454 = vunpack.c.h.b16 %v2137
    %v2455 = vunpack.c.l.b16 %v2138
    %v2456 = vunpack.c.h.b16 %v2138
    %v2457 = vunpack.c.l.b16 %v2139
    %v2458 = vunpack.c.h.b16 %v2139
    %v2459 = vunpack.c.l.b16 %v2140
    %v2460 = vunpack.c.h.b16 %v2140
    %v2461 = vunpack.c.l.b16 %v2141
    %v2462 = vunpack.c.h.b16 %v2141
    %v2463 = vunpack.c.l.b16 %v2142
    %v2464 = vunpack.c.h.b16 %v2142
    %v2465 = vunpack.c.l.b16 %v2143
    %v2466 = vunpack.c.h.b16 %v2143
    %v2467 = vunpack.c.l.b16 %v2144
    %v2468 = vunpack.c.h.b16 %v2144
    %v2469 = vunpack.c.l.b16 %v2145
    %v2470 = vunpack.c.h.b16 %v2145
    %v2471 = vunpack.c.l.b16 %v2146
    %v2472 = vunpack.c.h.b16 %v2146
    %v2473 = vunpack.c.l.b16 %v2147
    %v2474 = vunpack.c.h.b16 %v2147
    %v2475 = vunpack.c.l.b16 %v2148
    %v2476 = vunpack.c.h.b16 %v2148
    %v2477 = vunpack.c.l.b16 %v2149
    %v2478 = vunpack.c.h.b16 %v2149
    %v2479 = vunpack.c.l.b16 %v2150
    %v2480 = vunpack.c.h.b16 %v2150
    %v2481 = vunpack.c.l.b16 %v2151
    %v2482 = vunpack.c.h.b16 %v2151
    %v2483 = vunpack.c.l.b16 %v2152
    %v2484 = vunpack.c.h.b16 %v2152
    %v2485 = vunpack.c.l.b16 %v2153
    %v2486 = vunpack.c.h.b16 %v2153
    %v2487 = vunpack.c.l.b16 %v2154
    %v2488 = vunpack.c.h.b16 %v2154
    %v2489 = vunpack.c.l.b16 %v2155
    %v2490 = vunpack.c.h.b16 %v2155
    %v2491 = vunpack.c.l.b16 %v2156
    %v2492 = vunpack.c.h.b16 %v2156
    %v2493 = vunpack.c.l.b16 %v2157
    %v2494 = vunpack.c.h.b16 %v2157
    %v2495 = vunpack.c.l.b16 %v2158
    %v2496 = vunpack.c.h.b16 %v2158
    %v2497 = vunpack.c.l.b16 %v2159
    %v2498 = vunpack.c.h.b16 %v2159
    %v2499 = vunpack.c.l.b16 %v2160
    %v2500 = vunpack.c.h.b16 %v2160
    %v2501 = vunpack.c.l.b16 %v2161
    %v2502 = vunpack.c.h.b16 %v2161
    %v2503 = vunpack.c.l.b16 %v2162
    %v2504 = vunpack.c.h.b16 %v2162
    %v2505 = vunpack.c.l.b16 %v2163
    %v2506 = vunpack.c.h.b16 %v2163
    %v2507 = vunpack.c.l.b16 %v2164
    %v2508 = vunpack.c.h.b16 %v2164
    %v2509 = vunpack.c.l.b16 %v2165
    %v2510 = vunpack.c.h.b16 %v2165
    %v2511 = vunpack.c.l.b16 %v2166
    %v2512 = vunpack.c.h.b16 %v2166
    %v2513 = vunpack.c.l.b16 %v2167
    %v2514 = vunpack.c.h.b16 %v2167
    %v2515 = vunpack.c.l.b16 %v2168
    %v2516 = vunpack.c.h.b16 %v2168
    %v2517 = vunpack.c.l.b16 %v2169
    %v2518 = vunpack.c.h.b16 %v2169
    %v2519 = vunpack.c.l.b16 %v2170
    %v2520 = vunpack.c.h.b16 %v2170
    %v2521 = vunpack.c.l.b16 %v2171
    %v2522 = vunpack.c.h.b16 %v2171
    %v2523 = vunpack.c.l.b16 %v2172
    %v2524 = vunpack.c.h.b16 %v2172
    %v2525 = vunpack.c.l.b16 %v2173
    %v2526 = vunpack.c.h.b16 %v2173
    %v2527 = vunpack.c.l.b16 %v2174
    %v2528 = vunpack.c.h.b16 %v2174
    %v2529 = vunpack.c.l.b16 %v2175
    %v2530 = vunpack.c.h.b16 %v2175
    %v2531 = vunpack.c.l.b16 %v2176
    %v2532 = vunpack.c.h.b16 %v2176
    %v2533 = vunpack.c.l.b16 %v2177
    %v2534 = vunpack.c.h.b16 %v2177
    %v2535 = vunpack.c.l.b16 %v2178
    %v2536 = vunpack.c.h.b16 %v2178
    %v2537 = vunpack.c.l.b16 %v2179
    %v2538 = vunpack.c.h.b16 %v2179
    %v2539 = vunpack.c.l.b16 %v2180
    %v2540 = vunpack.c.h.b16 %v2180
    %v2541 = vunpack.c.l.b16 %v2181
    %v2542 = vunpack.c.h.b16 %v2181
    %v2543 = vunpack.c.l.b16 %v2182
    %v2544 = vunpack.c.h.b16 %v2182
    %v2545 = vunpack.c.l.b16 %v2183
    %v2546 = vunpack.c.h.b16 %v2183
    %v2547 = vunpack.c.l.b16 %v2184
    %v2548 = vunpack.c.h.b16 %v2184
    %v2549 = vunpack.c.l.b16 %v2185
    %v2550 = vunpack.c.h.b16 %v2185
    %v2551 = vunpack.c.l.b16 %v2186
    %v2552 = vunpack.c.h.b16 %v2186
    %v2553 = vunpack.c.l.b16 %v2187
    %v2554 = vunpack.c.h.b16 %v2187
    %v2555 = vunpack.c.l.b16 %v2188
    %v2556 = vunpack.c.h.b16 %v2188
    %v2557 = vunpack.c.l.b16 %v2189
    %v2558 = vunpack.c.h.b16 %v2189
    %v2559 = vunpack.c.l.b16 %v2190
    %v2560 = vunpack.c.h.b16 %v2190
    %v2561 = vunpack.c.l.b16 %v2191
    %v2562 = vunpack.c.h.b16 %v2191
    %v2563 = vunpack.c.l.b16 %v2192
    %v2564 = vunpack.c.h.b16 %v2192
    %v2565 = vunpack.c.l.b16 %v2193
    %v2566 = vunpack.c.h.b16 %v2193
    %v2567 = vunpack.c.l.b16 %v2194
    %v2568 = vunpack.c.h.b16 %v2194
    %v2569 = vunpack.c.l.b16 %v2195
    %v2570 = vunpack.c.h.b16 %v2195
    %v2571 = vunpack.c.l.b16 %v2196
    %v2572 = vunpack.c.h.b16 %v2196
    %v2573 = vunpack.c.l.b16 %v2197
    %v2574 = vunpack.c.h.b16 %v2197
    %v2575 = vunpack.c.l.b16 %v2198
    %v2576 = vunpack.c.h.b16 %v2198
    %v2577 = vunpack.c.l.b16 %v2199
    %v2578 = vunpack.c.h.b16 %v2199
    %v2579 = vunpack.c.l.b16 %v2200
    %v2580 = vunpack.c.h.b16 %v2200
    %v2581 = vunpack.c.l.b16 %v2201
    %v2582 = vunpack.c.h.b16 %v2201
    %v2583 = vunpack.c.l.b16 %v2202
    %v2584 = vunpack.c.h.b16 %v2202
    %v2585 = vunpack.c.l.b16 %v2203
    %v2586 = vunpack.c.h.b16 %v2203
    %v2587 = vunpack.c.l.b16 %v2204
    %v2588 = vunpack.c.h.b16 %v2204
    %v2589 = vpack.c.b16 %v2341, %v2333
    %v2590 = vpack.c.b16 %v2342, %v2334
    %v2591 = vpack.c.b16 %v2343, %v2335
    %v2592 = vpack.c.b16 %v2344, %v2336
    %v2593 = vpack.c.b16 %v2345, %v2337
    %v2594 = vpack.c.b16 %v2346, %v2338
    %v2595 = vpack.c.b16 %v2347, %v2339
    %v2596 = vpack.c.b16 %v2348, %v2340
    %v2597 = vpack.c.b16 %v2357, %v2349
    %v2598 = vpack.c.b16 %v2358, %v2350
    %v2599 = vpack.c.b16 %v2359, %v2351
    %v2600 = vpack.c.b16 %v2360, %v2352
    %v2601 = vpack.c.b16 %v2361, %v2353
    %v2602 = vpack.c.b16 %v2362, %v2354
    %v2603 = vpack.c.b16 %v2363, %v2355
    %v2604 = vpack.c.b16 %v2364, %v2356
    %v2605 = vpack.c.b16 %v2373, %v2365
    %v2606 = vpack.c.b16 %v2374, %v2366
    %v2607 = vpack.c.b16 %v2375, %v2367
    %v2608 = vpack.c.b16 %v2376, %v2368
    %v2609 = vpack.c.b16 %v2377, %v2369
    %v2610 = vpack.c.b16 %v2378, %v2370
    %v2611 = vpack.c.b16 %v2379, %v2371
    %v2612 = vpack.c.b16 %v2380, %v2372
    %v2613 = vpack.c.b16 %v2389, %v2381
    %v2614 = vpack.c.b16 %v2390, %v2382
    %v2615 = vpack.c.b16 %v2391, %v2383
    %v2616 = vpack.c.b16 %v2392, %v2384
    %v2617 = vpack.c.b16 %v2393, %v2385
    %v2618 = vpack.c.b16 %v2394, %v2386
    %v2619 = vpack.c.b16 %v2395, %v2387
    %v2620 = vpack.c.b16 %v2396, %v2388
    %v2621 = vpack.c.b16 %v2405, %v2397
    %v2622 = vpack.c.b16 %v2406, %v2398
    %v2623 = vpack.c.b16 %v2407, %v2399
    %v2624 = vpack.c.b16 %v2408, %v2400
    %v2625 = vpack.c.b16 %v2409, %v2401
    %v2626 = vpack.c.b16 %v2410, %v2402
    %v2627 = vpack.c.b16 %v2411, %v2403
    %v2628 = vpack.c.b16 %v2412, %v2404
    %v2629 = vpack.c.b16 %v2421, %v2413
    %v2630 = vpack.c.b16 %v2422, %v2414
    %v2631 = vpack.c.b16 %v2423, %v2415
    %v2632 = vpack.c.b16 %v2424, %v2416
    %v2633 = vpack.c.b16 %v2425, %v2417
    %v2634 = vpack.c.b16 %v2426, %v2418
    %v2635 = vpack.c.b16 %v2427, %v2419
    %v2636 = vpack.c.b16 %v2428, %v2420
    %v2637 = vpack.c.b16 %v2437, %v2429
    %v2638 = vpack.c.b16 %v2438, %v2430
    %v2639 = vpack.c.b16 %v2439, %v2431
    %v2640 = vpack.c.b16 %v2440, %v2432
    %v2641 = vpack.c.b16 %v2441, %v2433
    %v2642 = vpack.c.b16 %v2442, %v2434
    %v2643 = vpack.c.b16 %v2443, %v2435
    %v2644 = vpack.c.b16 %v2444, %v2436
    %v2645 = vpack.c.b16 %v2453, %v2445
    %v2646 = vpack.c.b16 %v2454, %v2446
    %v2647 = vpack.c.b16 %v2455, %v2447
    %v2648 = vpack.c.b16 %v2456, %v2448
    %v2649 = vpack.c.b16 %v2457, %v2449
    %v2650 = vpack.c.b16 %v2458, %v2450
    %v2651 = vpack.c.b16 %v2459, %v2451
    %v2652 = vpack.c.b16 %v2460, %v2452
    %v2653 = vpack.c.b16 %v2469, %v2461
    %v2654 = vpack.c.b16 %v2470, %v2462
    %v2655 = vpack.c.b16 %v2471, %v2463
    %v2656 = vpack.c.b16 %v2472, %v2464
    %v2657 = vpack.c.b16 %v2473, %v2465
    %v2658 = vpack.c.b16 %v2474, %v2466
    %v2659 = vpack.c.b16 %v2475, %v2467
    %v2660 = vpack.c.b16 %v2476, %v2468
    %v2661 = vpack.c.b16 %v2485, %v2477
    %v2662 = vpack.c.b16 %v2486, %v2478
    %v2663 = vpack.c.b16 %v2487, %v2479
    %v2664 = vpack.c.b16 %v2488, %v2480
    %v2665 = vpack.c.b16 %v2489, %v2481
    %v2666 = vpack.c.b16 %v2490, %v2482
    %v2667 = vpack.c.b16 %v2491, %v2483
    %v2668 = vpack.c.b16 %v2492, %v2484
    %v2669 = vpack.c.b16 %v2501, %v2493
    %v2670 = vpack.c.b16 %v2502, %v2494
    %v2671 = vpack.c.b16 %v2503, %v2495
    %v2672 = vpack.c.b16 %v2504, %v2496
    %v2673 = vpack.c.b16 %v2505, %v2497
    %v2674 = vpack.c.b16 %v2506, %v2498
    %v2675 = vpack.c.b16 %v2507, %v2499
    %v2676 = vpack.c.b16 %v2508, %v2500
    %v2677 = vpack.c.b16 %v2517, %v2509
    %v2678 = vpack.c.b16 %v2518, %v2510
    %v2679 = vpack.c.b16 %v2519, %v2511
    %v2680 = vpack.c.b16 %v2520, %v2512
    %v2681 = vpack.c.b16 %v2521, %v2513
    %v2682 = vpack.c.b16 %v2522, %v2514
    %v2683 = vpack.c.b16 %v2523, %v2515
    %v2684 = vpack.c.b16 %v2524, %v2516
    %v2685 = vpack.c.b16 %v2533, %v2525
    %v2686 = vpack.c.b16 %v2534, %v2526
    %v2687 = vpack.c.b16 %v2535, %v2527
    %v2688 = vpack.c.b16 %v2536, %v2528
    %v2689 = vpack.c.b16 %v2537, %v2529
    %v2690 = vpack.c.b16 %v2538, %v2530
    %v2691 = vpack.c.b16 %v2539, %v2531
    %v2692 = vpack.c.b16 %v2540, %v2532
    %v2693 = vpack.c.b16 %v2549, %v2541
    %v2694 = vpack.c.b16 %v2550, %v2542
    %v2695 = vpack.c.b16 %v2551, %v2543
    %v2696 = vpack.c.b16 %v2552, %v2544
    %v2697 = vpack.c.b16 %v2553, %v2545
    %v2698 = vpack.c.b16 %v2554, %v2546
    %v2699 = vpack.c.b16 %v2555, %v2547
    %v2700 = vpack.c.b16 %v2556, %v2548
    %v2701 = vpack.c.b16 %v2565, %v2557
    %v2702 = vpack.c.b16 %v2566, %v2558
    %v2703 = vpack.c.b16 %v2567, %v2559
    %v2704 = vpack.c.b16 %v2568, %v2560
    %v2705 = vpack.c.b16 %v2569, %v2561
    %v2706 = vpack.c.b16 %v2570, %v2562
    %v2707 = vpack.c.b16 %v2571, %v2563
    %v2708 = vpack.c.b16 %v2572, %v2564
    %v2709 = vpack.c.b16 %v2581, %v2573
    %v2710 = vpack.c.b16 %v2582, %v2574
    %v2711 = vpack.c.b16 %v2583, %v2575
    %v2712 = vpack.c.b16 %v2584, %v2576
    %v2713 = vpack.c.b16 %v2585, %v2577
    %v2714 = vpack.c.b16 %v2586, %v2578
    %v2715 = vpack.c.b16 %v2587, %v2579
    %v2716 = vpack.c.b16 %v2588, %v2580
    %2845 = vmatprep.subr.bf16.mxu0 %v2646
    %2846 = vmatpush1.bf16.msra.mxu0 %v2645
    %2847 = vmatprep.subr.bf16.mxu0 %v2638
    %2848 = vmatpush1.bf16.msra.mxu0 %v2637
    %2849 = vmatprep.subr.bf16.mxu0 %v2630
    %2850 = vmatpush1.bf16.msra.mxu0 %v2629
    %2851 = vmatprep.subr.bf16.mxu0 %v2622
    %2852 = vmatpush1.bf16.msra.mxu0 %v2621
    %2853 = vmatprep.subr.bf16.mxu0 %v2614
    %2854 = vmatpush1.bf16.msra.mxu0 %v2613
    %2855 = vmatprep.subr.bf16.mxu0 %v2606
    %2856 = vmatpush1.bf16.msra.mxu0 %v2605
    %2857 = vmatprep.subr.bf16.mxu0 %v2598
    %2858 = vmatpush1.bf16.msra.mxu0 %v2597
    %2859 = vmatprep.subr.bf16.mxu0 %v2590
    %2860 = vmatpush1.bf16.msra.mxu0 %v2589
    %2861 = vmatprep.subr.bf16.mxu0 %v2710
    %2862 = vmatpush2.bf16.msra.mxu0 %v2709
    %2863 = vmatprep.subr.bf16.mxu0 %v2702
    %2864 = vmatpush2.bf16.msra.mxu0 %v2701
    %2865 = vmatprep.subr.bf16.mxu0 %v2694
    %2866 = vmatpush2.bf16.msra.mxu0 %v2693
    %2867 = vmatprep.subr.bf16.mxu0 %v2686
    %2868 = vmatpush2.bf16.msra.mxu0 %v2685
    %2869 = vmatprep.subr.bf16.mxu0 %v2678
    %2870 = vmatpush2.bf16.msra.mxu0 %v2677
    %2871 = vmatprep.subr.bf16.mxu0 %v2670
    %2872 = vmatpush2.bf16.msra.mxu0 %v2669
    %2873 = vmatprep.subr.bf16.mxu0 %v2662
    %2874 = vmatpush2.bf16.msra.mxu0 %v2661
    %2875 = vmatprep.subr.bf16.mxu0 %v2654
    %2876 = vmatpush2.bf16.msra.mxu0 %v2653
    %2877 = vmatprep.mubr.bf16.mxu0 %v2076
    %2878 = vmatmul.mubr.bf16.gmra.mxu0 %v2075
    %v2879 = vpop.f32.mrf.mxu0
    %v2880 = vadd.f32 0.0, %v2879
    %v2881 = vpop.f32.mrf.mxu0
    %v2882 = vadd.f32 0.0, %v2881
    %v2883 = vpop.f32.mrf.mxu0
    %v2884 = vpop.f32.mrf.mxu0
    %2885 = vdwg.mxu0
    %2886 = vmatprep.subr.bf16.mxu0 %v2648
    %2887 = vmatpush1.bf16.msra.mxu0 %v2647
    %2888 = vmatprep.subr.bf16.mxu0 %v2640
    %2889 = vmatpush1.bf16.msra.mxu0 %v2639
    %2890 = vmatprep.subr.bf16.mxu0 %v2632
    %2891 = vmatpush1.bf16.msra.mxu0 %v2631
    %2892 = vmatprep.subr.bf16.mxu0 %v2624
    %2893 = vmatpush1.bf16.msra.mxu0 %v2623
    %2894 = vmatprep.subr.bf16.mxu0 %v2616
    %2895 = vmatpush1.bf16.msra.mxu0 %v2615
    %2896 = vmatprep.subr.bf16.mxu0 %v2608
    %2897 = vmatpush1.bf16.msra.mxu0 %v2607
    %2898 = vmatprep.subr.bf16.mxu0 %v2600
    %2899 = vmatpush1.bf16.msra.mxu0 %v2599
    %2900 = vmatprep.subr.bf16.mxu0 %v2592
    %2901 = vmatpush1.bf16.msra.mxu0 %v2591
    %2902 = vmatprep.subr.bf16.mxu0 %v2712
    %2903 = vmatpush2.bf16.msra.mxu0 %v2711
    %2904 = vmatprep.subr.bf16.mxu0 %v2704
    %2905 = vmatpush2.bf16.msra.mxu0 %v2703
    %2906 = vmatprep.subr.bf16.mxu0 %v2696
    %2907 = vmatpush2.bf16.msra.mxu0 %v2695
    %2908 = vmatprep.subr.bf16.mxu0 %v2688
    %2909 = vmatpush2.bf16.msra.mxu0 %v2687
    %2910 = vmatprep.subr.bf16.mxu0 %v2680
    %2911 = vmatpush2.bf16.msra.mxu0 %v2679
    %2912 = vmatprep.subr.bf16.mxu0 %v2672
    %2913 = vmatpush2.bf16.msra.mxu0 %v2671
    %2914 = vmatprep.subr.bf16.mxu0 %v2664
    %2915 = vmatpush2.bf16.msra.mxu0 %v2663
    %2916 = vmatprep.subr.bf16.mxu0 %v2656
    %2917 = vmatpush2.bf16.msra.mxu0 %v2655
    %2918 = vmatprep.mubr.bf16.mxu0 %v2076
    %2919 = vmatmul.mubr.bf16.gmra.mxu0 %v2075
    %v2920 = vpop.f32.mrf.mxu0
    %v2921 = vadd.f32 0.0, %v2920
    %v2922 = vpop.f32.mrf.mxu0
    %v2923 = vadd.f32 0.0, %v2922
    %v2924 = vpop.f32.mrf.mxu0
    %v2925 = vpop.f32.mrf.mxu0
    %2926 = vdwg.mxu0
    %2927 = vmatprep.subr.bf16.mxu0 %v2650
    %2928 = vmatpush1.bf16.msra.mxu0 %v2649
    %2929 = vmatprep.subr.bf16.mxu0 %v2642
    %2930 = vmatpush1.bf16.msra.mxu0 %v2641
    %2931 = vmatprep.subr.bf16.mxu0 %v2634
    %2932 = vmatpush1.bf16.msra.mxu0 %v2633
    %2933 = vmatprep.subr.bf16.mxu0 %v2626
    %2934 = vmatpush1.bf16.msra.mxu0 %v2625
    %2935 = vmatprep.subr.bf16.mxu0 %v2618
    %2936 = vmatpush1.bf16.msra.mxu0 %v2617
    %2937 = vmatprep.subr.bf16.mxu0 %v2610
    %2938 = vmatpush1.bf16.msra.mxu0 %v2609
    %2939 = vmatprep.subr.bf16.mxu0 %v2602
    %2940 = vmatpush1.bf16.msra.mxu0 %v2601
    %2941 = vmatprep.subr.bf16.mxu0 %v2594
    %2942 = vmatpush1.bf16.msra.mxu0 %v2593
    %2943 = vmatprep.subr.bf16.mxu0 %v2714
    %2944 = vmatpush2.bf16.msra.mxu0 %v2713
    %2945 = vmatprep.subr.bf16.mxu0 %v2706
    %2946 = vmatpush2.bf16.msra.mxu0 %v2705
    %2947 = vmatprep.subr.bf16.mxu0 %v2698
    %2948 = vmatpush2.bf16.msra.mxu0 %v2697
    %2949 = vmatprep.subr.bf16.mxu0 %v2690
    %2950 = vmatpush2.bf16.msra.mxu0 %v2689
    %2951 = vmatprep.subr.bf16.mxu0 %v2682
    %2952 = vmatpush2.bf16.msra.mxu0 %v2681
    %2953 = vmatprep.subr.bf16.mxu0 %v2674
    %2954 = vmatpush2.bf16.msra.mxu0 %v2673
    %2955 = vmatprep.subr.bf16.mxu0 %v2666
    %2956 = vmatpush2.bf16.msra.mxu0 %v2665
    %2957 = vmatprep.subr.bf16.mxu0 %v2658
    %2958 = vmatpush2.bf16.msra.mxu0 %v2657
    %2959 = vmatprep.mubr.bf16.mxu0 %v2076
    %2960 = vmatmul.mubr.bf16.gmra.mxu0 %v2075
    %v2961 = vpop.f32.mrf.mxu0
    %v2962 = vadd.f32 0.0, %v2961
    %v2963 = vpop.f32.mrf.mxu0
    %v2964 = vadd.f32 0.0, %v2963
    %v2965 = vpop.f32.mrf.mxu0
    %v2966 = vpop.f32.mrf.mxu0
    %2967 = vdwg.mxu0
    %2968 = vmatprep.subr.bf16.mxu0 %v2652
    %2969 = vmatpush1.bf16.msra.mxu0 %v2651
    %2970 = vmatprep.subr.bf16.mxu0 %v2644
    %2971 = vmatpush1.bf16.msra.mxu0 %v2643
    %2972 = vmatprep.subr.bf16.mxu0 %v2636
    %2973 = vmatpush1.bf16.msra.mxu0 %v2635
    %2974 = vmatprep.subr.bf16.mxu0 %v2628
    %2975 = vmatpush1.bf16.msra.mxu0 %v2627
    %2976 = vmatprep.subr.bf16.mxu0 %v2620
    %2977 = vmatpush1.bf16.msra.mxu0 %v2619
    %2978 = vmatprep.subr.bf16.mxu0 %v2612
    %2979 = vmatpush1.bf16.msra.mxu0 %v2611
    %2980 = vmatprep.subr.bf16.mxu0 %v2604
    %2981 = vmatpush1.bf16.msra.mxu0 %v2603
    %2982 = vmatprep.subr.bf16.mxu0 %v2596
    %2983 = vmatpush1.bf16.msra.mxu0 %v2595
    %2984 = vmatprep.subr.bf16.mxu0 %v2716
    %2985 = vmatpush2.bf16.msra.mxu0 %v2715
    %2986 = vmatprep.subr.bf16.mxu0 %v2708
    %2987 = vmatpush2.bf16.msra.mxu0 %v2707
    %2988 = vmatprep.subr.bf16.mxu0 %v2700
    %2989 = vmatpush2.bf16.msra.mxu0 %v2699
    %2990 = vmatprep.subr.bf16.mxu0 %v2692
    %2991 = vmatpush2.bf16.msra.mxu0 %v2691
    %2992 = vmatprep.subr.bf16.mxu0 %v2684
    %2993 = vmatpush2.bf16.msra.mxu0 %v2683
    %2994 = vmatprep.subr.bf16.mxu0 %v2676
    %2995 = vmatpush2.bf16.msra.mxu0 %v2675
    %2996 = vmatprep.subr.bf16.mxu0 %v2668
    %2997 = vmatpush2.bf16.msra.mxu0 %v2667
    %2998 = vmatprep.subr.bf16.mxu0 %v2660
    %2999 = vmatpush2.bf16.msra.mxu0 %v2659
    %3000 = vmatprep.mubr.bf16.mxu0 %v2076
    %3001 = vmatmul.mubr.bf16.gmra.mxu0 %v2075
    %v3002 = vpop.f32.mrf.mxu0
    %v3003 = vadd.f32 0.0, %v3002
    %v3004 = vpop.f32.mrf.mxu0
    %v3005 = vadd.f32 0.0, %v3004
    %v3006 = vpop.f32.mrf.mxu0
    %v3007 = vpop.f32.mrf.mxu0
    %3008 = vdwg.mxu0
    %v3009 = vadd.f32 %v2962, %v34
    %v3010 = vadd.f32 %v2964, %v38
    %v3011 = vadd.f32 %v3003, %v42
    %v3012 = vadd.f32 %v3005, %v46
    %v3013 = vxor.u32 %v3009, 2147483648
    %v3014 = vmul.f32 %v3013, 1.442695
    %v3015 = vpow.pop %v3014
    %v3016 = vadd.f32 %v3015, 1.0
    %v3017 = vrcp.pop %v3016
    %v3018 = vmul.f32 1.0, %v3017
    %v3019 = vxor.u32 %v3010, 2147483648
    %v3020 = vmul.f32 %v3019, 1.442695
    %v3021 = vpow.pop %v3020
    %v3022 = vadd.f32 %v3021, 1.0
    %v3023 = vrcp.pop %v3022
    %v3024 = vmul.f32 1.0, %v3023
    %v3025 = vtanh.pop %v3011
    %v3026 = vxor.u32 %v3012, 2147483648
    %v3027 = vmul.f32 %v3026, 1.442695
    %v3028 = vpow.pop %v3027
    %v3029 = vadd.f32 %v3028, 1.0
    %v3030 = vrcp.pop %v3029
    %v3031 = vmul.f32 1.0, %v3030
    %v3032 = vmul.f32 %v3024, %v2037
    %v3033 = vmul.f32 %v3018, %v3025
    %v3034 = vadd.f32 %v3032, %v3033
    %v3035 = vtanh.pop %v3034
    %v3036 = vmul.f32 %v3031, %v3035
    %s3037 = scalar_lea.vmem %s3, 16
    %3038 = vst [vmem:[%s3037] sm:$0xff] %v3036
    %s3039 = scalar_lea.vmem %s0, 96
    %v3040 = vld [vmem:[%s3039] sm:$0xff]
    %v3041 = vld [vmem:[%s3039 + $0x8] sm:$0xff]
    %v3042 = vld [vmem:[%s3039 + $0x10] sm:$0xff]
    %v3043 = vld [vmem:[%s3039 + $0x18] sm:$0xff]
    %v3044 = vadd.f32 %v3040, %v2880
    %v3045 = vadd.f32 %v3041, %v2882
    %v3046 = vadd.f32 %v3042, %v2921
    %v3047 = vadd.f32 %v3043, %v2923
    %v3048 = vxor.u32 %v3044, 2147483648
    %v3049 = vmul.f32 %v3048, 1.442695
    %v3050 = vpow.pop %v3049
    %v3051 = vadd.f32 %v3050, 1.0
    %v3052 = vrcp.pop %v3051
    %v3053 = vmul.f32 1.0, %v3052
    %v3054 = vxor.u32 %v3045, 2147483648
    %v3055 = vmul.f32 %v3054, 1.442695
    %v3056 = vpow.pop %v3055
    %v3057 = vadd.f32 %v3056, 1.0
    %v3058 = vrcp.pop %v3057
    %v3059 = vmul.f32 1.0, %v3058
    %v3060 = vtanh.pop %v3046
    %v3061 = vxor.u32 %v3047, 2147483648
    %v3062 = vmul.f32 %v3061, 1.442695
    %v3063 = vpow.pop %v3062
    %v3064 = vadd.f32 %v3063, 1.0
    %v3065 = vrcp.pop %v3064
    %v3066 = vmul.f32 1.0, %v3065
    %v3067 = vmul.f32 %v3059, %v2072
    %v3068 = vmul.f32 %v3053, %v3060
    %v3069 = vadd.f32 %v3067, %v3068
    %v3070 = vtanh.pop %v3069
    %v3071 = vmul.f32 %v3066, %v3070
    %v3072 = vpack.c.bf16 %v3071, %v3071
    %v3073 = vpack.c.bf16 %v3036, %v3036
    %v3074 = vld [vmem:[#allocation2] sm:$0xff]
    %v3075 = vld [vmem:[#allocation2 + $0x8] sm:$0xff]
    %v3076 = vld [vmem:[#allocation2 + $0x10] sm:$0xff]
    %v3077 = vld [vmem:[#allocation2 + $0x18] sm:$0xff]
    %v3078 = vld [vmem:[#allocation2 + $0x20] sm:$0xff]
    %v3079 = vld [vmem:[#allocation2 + $0x28] sm:$0xff]
    %v3080 = vld [vmem:[#allocation2 + $0x30] sm:$0xff]
    %v3081 = vld [vmem:[#allocation2 + $0x38] sm:$0xff]
    %v3082 = vld [vmem:[#allocation2 + $0x40] sm:$0xff]
    %v3083 = vld [vmem:[#allocation2 + $0x48] sm:$0xff]
    %v3084 = vld [vmem:[#allocation2 + $0x50] sm:$0xff]
    %v3085 = vld [vmem:[#allocation2 + $0x58] sm:$0xff]
    %v3086 = vld [vmem:[#allocation2 + $0x60] sm:$0xff]
    %v3087 = vld [vmem:[#allocation2 + $0x68] sm:$0xff]
    %v3088 = vld [vmem:[#allocation2 + $0x70] sm:$0xff]
    %v3089 = vld [vmem:[#allocation2 + $0x78] sm:$0xff]
    %v3090 = vld [vmem:[#allocation2 + $0x80] sm:$0xff]
    %v3091 = vld [vmem:[#allocation2 + $0x88] sm:$0xff]
    %v3092 = vld [vmem:[#allocation2 + $0x90] sm:$0xff]
    %v3093 = vld [vmem:[#allocation2 + $0x98] sm:$0xff]
    %v3094 = vld [vmem:[#allocation2 + $0xa0] sm:$0xff]
    %v3095 = vld [vmem:[#allocation2 + $0xa8] sm:$0xff]
    %v3096 = vld [vmem:[#allocation2 + $0xb0] sm:$0xff]
    %v3097 = vld [vmem:[#allocation2 + $0xb8] sm:$0xff]
    %v3098 = vld [vmem:[#allocation2 + $0xc0] sm:$0xff]
    %v3099 = vld [vmem:[#allocation2 + $0xc8] sm:$0xff]
    %v3100 = vld [vmem:[#allocation2 + $0xd0] sm:$0xff]
    %v3101 = vld [vmem:[#allocation2 + $0xd8] sm:$0xff]
    %v3102 = vld [vmem:[#allocation2 + $0xe0] sm:$0xff]
    %v3103 = vld [vmem:[#allocation2 + $0xe8] sm:$0xff]
    %v3104 = vld [vmem:[#allocation2 + $0xf0] sm:$0xff]
    %v3105 = vld [vmem:[#allocation2 + $0xf8] sm:$0xff]
    %v3106 = vld [vmem:[#allocation2 + $0x100] sm:$0xff]
    %v3107 = vld [vmem:[#allocation2 + $0x108] sm:$0xff]
    %v3108 = vld [vmem:[#allocation2 + $0x110] sm:$0xff]
    %v3109 = vld [vmem:[#allocation2 + $0x118] sm:$0xff]
    %v3110 = vld [vmem:[#allocation2 + $0x120] sm:$0xff]
    %v3111 = vld [vmem:[#allocation2 + $0x128] sm:$0xff]
    %v3112 = vld [vmem:[#allocation2 + $0x130] sm:$0xff]
    %v3113 = vld [vmem:[#allocation2 + $0x138] sm:$0xff]
    %v3114 = vld [vmem:[#allocation2 + $0x140] sm:$0xff]
    %v3115 = vld [vmem:[#allocation2 + $0x148] sm:$0xff]
    %v3116 = vld [vmem:[#allocation2 + $0x150] sm:$0xff]
    %v3117 = vld [vmem:[#allocation2 + $0x158] sm:$0xff]
    %v3118 = vld [vmem:[#allocation2 + $0x160] sm:$0xff]
    %v3119 = vld [vmem:[#allocation2 + $0x168] sm:$0xff]
    %v3120 = vld [vmem:[#allocation2 + $0x170] sm:$0xff]
    %v3121 = vld [vmem:[#allocation2 + $0x178] sm:$0xff]
    %v3122 = vld [vmem:[#allocation2 + $0x180] sm:$0xff]
    %v3123 = vld [vmem:[#allocation2 + $0x188] sm:$0xff]
    %v3124 = vld [vmem:[#allocation2 + $0x190] sm:$0xff]
    %v3125 = vld [vmem:[#allocation2 + $0x198] sm:$0xff]
    %v3126 = vld [vmem:[#allocation2 + $0x1a0] sm:$0xff]
    %v3127 = vld [vmem:[#allocation2 + $0x1a8] sm:$0xff]
    %v3128 = vld [vmem:[#allocation2 + $0x1b0] sm:$0xff]
    %v3129 = vld [vmem:[#allocation2 + $0x1b8] sm:$0xff]
    %v3130 = vld [vmem:[#allocation2 + $0x1c0] sm:$0xff]
    %v3131 = vld [vmem:[#allocation2 + $0x1c8] sm:$0xff]
    %v3132 = vld [vmem:[#allocation2 + $0x1d0] sm:$0xff]
    %v3133 = vld [vmem:[#allocation2 + $0x1d8] sm:$0xff]
    %v3134 = vld [vmem:[#allocation2 + $0x1e0] sm:$0xff]
    %v3135 = vld [vmem:[#allocation2 + $0x1e8] sm:$0xff]
    %v3136 = vld [vmem:[#allocation2 + $0x1f0] sm:$0xff]
    %v3137 = vld [vmem:[#allocation2 + $0x1f8] sm:$0xff]
    %v3138 = vld [vmem:[#allocation2 + $0x200] sm:$0xff]
    %v3139 = vld [vmem:[#allocation2 + $0x208] sm:$0xff]
    %v3140 = vld [vmem:[#allocation2 + $0x210] sm:$0xff]
    %v3141 = vld [vmem:[#allocation2 + $0x218] sm:$0xff]
    %v3142 = vld [vmem:[#allocation2 + $0x220] sm:$0xff]
    %v3143 = vld [vmem:[#allocation2 + $0x228] sm:$0xff]
    %v3144 = vld [vmem:[#allocation2 + $0x230] sm:$0xff]
    %v3145 = vld [vmem:[#allocation2 + $0x238] sm:$0xff]
    %v3146 = vld [vmem:[#allocation2 + $0x240] sm:$0xff]
    %v3147 = vld [vmem:[#allocation2 + $0x248] sm:$0xff]
    %v3148 = vld [vmem:[#allocation2 + $0x250] sm:$0xff]
    %v3149 = vld [vmem:[#allocation2 + $0x258] sm:$0xff]
    %v3150 = vld [vmem:[#allocation2 + $0x260] sm:$0xff]
    %v3151 = vld [vmem:[#allocation2 + $0x268] sm:$0xff]
    %v3152 = vld [vmem:[#allocation2 + $0x270] sm:$0xff]
    %v3153 = vld [vmem:[#allocation2 + $0x278] sm:$0xff]
    %v3154 = vld [vmem:[#allocation2 + $0x280] sm:$0xff]
    %v3155 = vld [vmem:[#allocation2 + $0x288] sm:$0xff]
    %v3156 = vld [vmem:[#allocation2 + $0x290] sm:$0xff]
    %v3157 = vld [vmem:[#allocation2 + $0x298] sm:$0xff]
    %v3158 = vld [vmem:[#allocation2 + $0x2a0] sm:$0xff]
    %v3159 = vld [vmem:[#allocation2 + $0x2a8] sm:$0xff]
    %v3160 = vld [vmem:[#allocation2 + $0x2b0] sm:$0xff]
    %v3161 = vld [vmem:[#allocation2 + $0x2b8] sm:$0xff]
    %v3162 = vld [vmem:[#allocation2 + $0x2c0] sm:$0xff]
    %v3163 = vld [vmem:[#allocation2 + $0x2c8] sm:$0xff]
    %v3164 = vld [vmem:[#allocation2 + $0x2d0] sm:$0xff]
    %v3165 = vld [vmem:[#allocation2 + $0x2d8] sm:$0xff]
    %v3166 = vld [vmem:[#allocation2 + $0x2e0] sm:$0xff]
    %v3167 = vld [vmem:[#allocation2 + $0x2e8] sm:$0xff]
    %v3168 = vld [vmem:[#allocation2 + $0x2f0] sm:$0xff]
    %v3169 = vld [vmem:[#allocation2 + $0x2f8] sm:$0xff]
    %v3170 = vld [vmem:[#allocation2 + $0x300] sm:$0xff]
    %v3171 = vld [vmem:[#allocation2 + $0x308] sm:$0xff]
    %v3172 = vld [vmem:[#allocation2 + $0x310] sm:$0xff]
    %v3173 = vld [vmem:[#allocation2 + $0x318] sm:$0xff]
    %v3174 = vld [vmem:[#allocation2 + $0x320] sm:$0xff]
    %v3175 = vld [vmem:[#allocation2 + $0x328] sm:$0xff]
    %v3176 = vld [vmem:[#allocation2 + $0x330] sm:$0xff]
    %v3177 = vld [vmem:[#allocation2 + $0x338] sm:$0xff]
    %v3178 = vld [vmem:[#allocation2 + $0x340] sm:$0xff]
    %v3179 = vld [vmem:[#allocation2 + $0x348] sm:$0xff]
    %v3180 = vld [vmem:[#allocation2 + $0x350] sm:$0xff]
    %v3181 = vld [vmem:[#allocation2 + $0x358] sm:$0xff]
    %v3182 = vld [vmem:[#allocation2 + $0x360] sm:$0xff]
    %v3183 = vld [vmem:[#allocation2 + $0x368] sm:$0xff]
    %v3184 = vld [vmem:[#allocation2 + $0x370] sm:$0xff]
    %v3185 = vld [vmem:[#allocation2 + $0x378] sm:$0xff]
    %v3186 = vld [vmem:[#allocation2 + $0x380] sm:$0xff]
    %v3187 = vld [vmem:[#allocation2 + $0x388] sm:$0xff]
    %v3188 = vld [vmem:[#allocation2 + $0x390] sm:$0xff]
    %v3189 = vld [vmem:[#allocation2 + $0x398] sm:$0xff]
    %v3190 = vld [vmem:[#allocation2 + $0x3a0] sm:$0xff]
    %v3191 = vld [vmem:[#allocation2 + $0x3a8] sm:$0xff]
    %v3192 = vld [vmem:[#allocation2 + $0x3b0] sm:$0xff]
    %v3193 = vld [vmem:[#allocation2 + $0x3b8] sm:$0xff]
    %v3194 = vld [vmem:[#allocation2 + $0x3c0] sm:$0xff]
    %v3195 = vld [vmem:[#allocation2 + $0x3c8] sm:$0xff]
    %v3196 = vld [vmem:[#allocation2 + $0x3d0] sm:$0xff]
    %v3197 = vld [vmem:[#allocation2 + $0x3d8] sm:$0xff]
    %v3198 = vld [vmem:[#allocation2 + $0x3e0] sm:$0xff]
    %v3199 = vld [vmem:[#allocation2 + $0x3e8] sm:$0xff]
    %v3200 = vld [vmem:[#allocation2 + $0x3f0] sm:$0xff]
    %v3201 = vld [vmem:[#allocation2 + $0x3f8] sm:$0xff]
    %v3330 = vunpack.c.l.b16 %v3074
    %v3331 = vunpack.c.h.b16 %v3074
    %v3332 = vunpack.c.l.b16 %v3075
    %v3333 = vunpack.c.h.b16 %v3075
    %v3334 = vunpack.c.l.b16 %v3076
    %v3335 = vunpack.c.h.b16 %v3076
    %v3336 = vunpack.c.l.b16 %v3077
    %v3337 = vunpack.c.h.b16 %v3077
    %v3338 = vunpack.c.l.b16 %v3078
    %v3339 = vunpack.c.h.b16 %v3078
    %v3340 = vunpack.c.l.b16 %v3079
    %v3341 = vunpack.c.h.b16 %v3079
    %v3342 = vunpack.c.l.b16 %v3080
    %v3343 = vunpack.c.h.b16 %v3080
    %v3344 = vunpack.c.l.b16 %v3081
    %v3345 = vunpack.c.h.b16 %v3081
    %v3346 = vunpack.c.l.b16 %v3082
    %v3347 = vunpack.c.h.b16 %v3082
    %v3348 = vunpack.c.l.b16 %v3083
    %v3349 = vunpack.c.h.b16 %v3083
    %v3350 = vunpack.c.l.b16 %v3084
    %v3351 = vunpack.c.h.b16 %v3084
    %v3352 = vunpack.c.l.b16 %v3085
    %v3353 = vunpack.c.h.b16 %v3085
    %v3354 = vunpack.c.l.b16 %v3086
    %v3355 = vunpack.c.h.b16 %v3086
    %v3356 = vunpack.c.l.b16 %v3087
    %v3357 = vunpack.c.h.b16 %v3087
    %v3358 = vunpack.c.l.b16 %v3088
    %v3359 = vunpack.c.h.b16 %v3088
    %v3360 = vunpack.c.l.b16 %v3089
    %v3361 = vunpack.c.h.b16 %v3089
    %v3362 = vunpack.c.l.b16 %v3090
    %v3363 = vunpack.c.h.b16 %v3090
    %v3364 = vunpack.c.l.b16 %v3091
    %v3365 = vunpack.c.h.b16 %v3091
    %v3366 = vunpack.c.l.b16 %v3092
    %v3367 = vunpack.c.h.b16 %v3092
    %v3368 = vunpack.c.l.b16 %v3093
    %v3369 = vunpack.c.h.b16 %v3093
    %v3370 = vunpack.c.l.b16 %v3094
    %v3371 = vunpack.c.h.b16 %v3094
    %v3372 = vunpack.c.l.b16 %v3095
    %v3373 = vunpack.c.h.b16 %v3095
    %v3374 = vunpack.c.l.b16 %v3096
    %v3375 = vunpack.c.h.b16 %v3096
    %v3376 = vunpack.c.l.b16 %v3097
    %v3377 = vunpack.c.h.b16 %v3097
    %v3378 = vunpack.c.l.b16 %v3098
    %v3379 = vunpack.c.h.b16 %v3098
    %v3380 = vunpack.c.l.b16 %v3099
    %v3381 = vunpack.c.h.b16 %v3099
    %v3382 = vunpack.c.l.b16 %v3100
    %v3383 = vunpack.c.h.b16 %v3100
    %v3384 = vunpack.c.l.b16 %v3101
    %v3385 = vunpack.c.h.b16 %v3101
    %v3386 = vunpack.c.l.b16 %v3102
    %v3387 = vunpack.c.h.b16 %v3102
    %v3388 = vunpack.c.l.b16 %v3103
    %v3389 = vunpack.c.h.b16 %v3103
    %v3390 = vunpack.c.l.b16 %v3104
    %v3391 = vunpack.c.h.b16 %v3104
    %v3392 = vunpack.c.l.b16 %v3105
    %v3393 = vunpack.c.h.b16 %v3105
    %v3394 = vunpack.c.l.b16 %v3106
    %v3395 = vunpack.c.h.b16 %v3106
    %v3396 = vunpack.c.l.b16 %v3107
    %v3397 = vunpack.c.h.b16 %v3107
    %v3398 = vunpack.c.l.b16 %v3108
    %v3399 = vunpack.c.h.b16 %v3108
    %v3400 = vunpack.c.l.b16 %v3109
    %v3401 = vunpack.c.h.b16 %v3109
    %v3402 = vunpack.c.l.b16 %v3110
    %v3403 = vunpack.c.h.b16 %v3110
    %v3404 = vunpack.c.l.b16 %v3111
    %v3405 = vunpack.c.h.b16 %v3111
    %v3406 = vunpack.c.l.b16 %v3112
    %v3407 = vunpack.c.h.b16 %v3112
    %v3408 = vunpack.c.l.b16 %v3113
    %v3409 = vunpack.c.h.b16 %v3113
    %v3410 = vunpack.c.l.b16 %v3114
    %v3411 = vunpack.c.h.b16 %v3114
    %v3412 = vunpack.c.l.b16 %v3115
    %v3413 = vunpack.c.h.b16 %v3115
    %v3414 = vunpack.c.l.b16 %v3116
    %v3415 = vunpack.c.h.b16 %v3116
    %v3416 = vunpack.c.l.b16 %v3117
    %v3417 = vunpack.c.h.b16 %v3117
    %v3418 = vunpack.c.l.b16 %v3118
    %v3419 = vunpack.c.h.b16 %v3118
    %v3420 = vunpack.c.l.b16 %v3119
    %v3421 = vunpack.c.h.b16 %v3119
    %v3422 = vunpack.c.l.b16 %v3120
    %v3423 = vunpack.c.h.b16 %v3120
    %v3424 = vunpack.c.l.b16 %v3121
    %v3425 = vunpack.c.h.b16 %v3121
    %v3426 = vunpack.c.l.b16 %v3122
    %v3427 = vunpack.c.h.b16 %v3122
    %v3428 = vunpack.c.l.b16 %v3123
    %v3429 = vunpack.c.h.b16 %v3123
    %v3430 = vunpack.c.l.b16 %v3124
    %v3431 = vunpack.c.h.b16 %v3124
    %v3432 = vunpack.c.l.b16 %v3125
    %v3433 = vunpack.c.h.b16 %v3125
    %v3434 = vunpack.c.l.b16 %v3126
    %v3435 = vunpack.c.h.b16 %v3126
    %v3436 = vunpack.c.l.b16 %v3127
    %v3437 = vunpack.c.h.b16 %v3127
    %v3438 = vunpack.c.l.b16 %v3128
    %v3439 = vunpack.c.h.b16 %v3128
    %v3440 = vunpack.c.l.b16 %v3129
    %v3441 = vunpack.c.h.b16 %v3129
    %v3442 = vunpack.c.l.b16 %v3130
    %v3443 = vunpack.c.h.b16 %v3130
    %v3444 = vunpack.c.l.b16 %v3131
    %v3445 = vunpack.c.h.b16 %v3131
    %v3446 = vunpack.c.l.b16 %v3132
    %v3447 = vunpack.c.h.b16 %v3132
    %v3448 = vunpack.c.l.b16 %v3133
    %v3449 = vunpack.c.h.b16 %v3133
    %v3450 = vunpack.c.l.b16 %v3134
    %v3451 = vunpack.c.h.b16 %v3134
    %v3452 = vunpack.c.l.b16 %v3135
    %v3453 = vunpack.c.h.b16 %v3135
    %v3454 = vunpack.c.l.b16 %v3136
    %v3455 = vunpack.c.h.b16 %v3136
    %v3456 = vunpack.c.l.b16 %v3137
    %v3457 = vunpack.c.h.b16 %v3137
    %v3458 = vunpack.c.l.b16 %v3138
    %v3459 = vunpack.c.h.b16 %v3138
    %v3460 = vunpack.c.l.b16 %v3139
    %v3461 = vunpack.c.h.b16 %v3139
    %v3462 = vunpack.c.l.b16 %v3140
    %v3463 = vunpack.c.h.b16 %v3140
    %v3464 = vunpack.c.l.b16 %v3141
    %v3465 = vunpack.c.h.b16 %v3141
    %v3466 = vunpack.c.l.b16 %v3142
    %v3467 = vunpack.c.h.b16 %v3142
    %v3468 = vunpack.c.l.b16 %v3143
    %v3469 = vunpack.c.h.b16 %v3143
    %v3470 = vunpack.c.l.b16 %v3144
    %v3471 = vunpack.c.h.b16 %v3144
    %v3472 = vunpack.c.l.b16 %v3145
    %v3473 = vunpack.c.h.b16 %v3145
    %v3474 = vunpack.c.l.b16 %v3146
    %v3475 = vunpack.c.h.b16 %v3146
    %v3476 = vunpack.c.l.b16 %v3147
    %v3477 = vunpack.c.h.b16 %v3147
    %v3478 = vunpack.c.l.b16 %v3148
    %v3479 = vunpack.c.h.b16 %v3148
    %v3480 = vunpack.c.l.b16 %v3149
    %v3481 = vunpack.c.h.b16 %v3149
    %v3482 = vunpack.c.l.b16 %v3150
    %v3483 = vunpack.c.h.b16 %v3150
    %v3484 = vunpack.c.l.b16 %v3151
    %v3485 = vunpack.c.h.b16 %v3151
    %v3486 = vunpack.c.l.b16 %v3152
    %v3487 = vunpack.c.h.b16 %v3152
    %v3488 = vunpack.c.l.b16 %v3153
    %v3489 = vunpack.c.h.b16 %v3153
    %v3490 = vunpack.c.l.b16 %v3154
    %v3491 = vunpack.c.h.b16 %v3154
    %v3492 = vunpack.c.l.b16 %v3155
    %v3493 = vunpack.c.h.b16 %v3155
    %v3494 = vunpack.c.l.b16 %v3156
    %v3495 = vunpack.c.h.b16 %v3156
    %v3496 = vunpack.c.l.b16 %v3157
    %v3497 = vunpack.c.h.b16 %v3157
    %v3498 = vunpack.c.l.b16 %v3158
    %v3499 = vunpack.c.h.b16 %v3158
    %v3500 = vunpack.c.l.b16 %v3159
    %v3501 = vunpack.c.h.b16 %v3159
    %v3502 = vunpack.c.l.b16 %v3160
    %v3503 = vunpack.c.h.b16 %v3160
    %v3504 = vunpack.c.l.b16 %v3161
    %v3505 = vunpack.c.h.b16 %v3161
    %v3506 = vunpack.c.l.b16 %v3162
    %v3507 = vunpack.c.h.b16 %v3162
    %v3508 = vunpack.c.l.b16 %v3163
    %v3509 = vunpack.c.h.b16 %v3163
    %v3510 = vunpack.c.l.b16 %v3164
    %v3511 = vunpack.c.h.b16 %v3164
    %v3512 = vunpack.c.l.b16 %v3165
    %v3513 = vunpack.c.h.b16 %v3165
    %v3514 = vunpack.c.l.b16 %v3166
    %v3515 = vunpack.c.h.b16 %v3166
    %v3516 = vunpack.c.l.b16 %v3167
    %v3517 = vunpack.c.h.b16 %v3167
    %v3518 = vunpack.c.l.b16 %v3168
    %v3519 = vunpack.c.h.b16 %v3168
    %v3520 = vunpack.c.l.b16 %v3169
    %v3521 = vunpack.c.h.b16 %v3169
    %v3522 = vunpack.c.l.b16 %v3170
    %v3523 = vunpack.c.h.b16 %v3170
    %v3524 = vunpack.c.l.b16 %v3171
    %v3525 = vunpack.c.h.b16 %v3171
    %v3526 = vunpack.c.l.b16 %v3172
    %v3527 = vunpack.c.h.b16 %v3172
    %v3528 = vunpack.c.l.b16 %v3173
    %v3529 = vunpack.c.h.b16 %v3173
    %v3530 = vunpack.c.l.b16 %v3174
    %v3531 = vunpack.c.h.b16 %v3174
    %v3532 = vunpack.c.l.b16 %v3175
    %v3533 = vunpack.c.h.b16 %v3175
    %v3534 = vunpack.c.l.b16 %v3176
    %v3535 = vunpack.c.h.b16 %v3176
    %v3536 = vunpack.c.l.b16 %v3177
    %v3537 = vunpack.c.h.b16 %v3177
    %v3538 = vunpack.c.l.b16 %v3178
    %v3539 = vunpack.c.h.b16 %v3178
    %v3540 = vunpack.c.l.b16 %v3179
    %v3541 = vunpack.c.h.b16 %v3179
    %v3542 = vunpack.c.l.b16 %v3180
    %v3543 = vunpack.c.h.b16 %v3180
    %v3544 = vunpack.c.l.b16 %v3181
    %v3545 = vunpack.c.h.b16 %v3181
    %v3546 = vunpack.c.l.b16 %v3182
    %v3547 = vunpack.c.h.b16 %v3182
    %v3548 = vunpack.c.l.b16 %v3183
    %v3549 = vunpack.c.h.b16 %v3183
    %v3550 = vunpack.c.l.b16 %v3184
    %v3551 = vunpack.c.h.b16 %v3184
    %v3552 = vunpack.c.l.b16 %v3185
    %v3553 = vunpack.c.h.b16 %v3185
    %v3554 = vunpack.c.l.b16 %v3186
    %v3555 = vunpack.c.h.b16 %v3186
    %v3556 = vunpack.c.l.b16 %v3187
    %v3557 = vunpack.c.h.b16 %v3187
    %v3558 = vunpack.c.l.b16 %v3188
    %v3559 = vunpack.c.h.b16 %v3188
    %v3560 = vunpack.c.l.b16 %v3189
    %v3561 = vunpack.c.h.b16 %v3189
    %v3562 = vunpack.c.l.b16 %v3190
    %v3563 = vunpack.c.h.b16 %v3190
    %v3564 = vunpack.c.l.b16 %v3191
    %v3565 = vunpack.c.h.b16 %v3191
    %v3566 = vunpack.c.l.b16 %v3192
    %v3567 = vunpack.c.h.b16 %v3192
    %v3568 = vunpack.c.l.b16 %v3193
    %v3569 = vunpack.c.h.b16 %v3193
    %v3570 = vunpack.c.l.b16 %v3194
    %v3571 = vunpack.c.h.b16 %v3194
    %v3572 = vunpack.c.l.b16 %v3195
    %v3573 = vunpack.c.h.b16 %v3195
    %v3574 = vunpack.c.l.b16 %v3196
    %v3575 = vunpack.c.h.b16 %v3196
    %v3576 = vunpack.c.l.b16 %v3197
    %v3577 = vunpack.c.h.b16 %v3197
    %v3578 = vunpack.c.l.b16 %v3198
    %v3579 = vunpack.c.h.b16 %v3198
    %v3580 = vunpack.c.l.b16 %v3199
    %v3581 = vunpack.c.h.b16 %v3199
    %v3582 = vunpack.c.l.b16 %v3200
    %v3583 = vunpack.c.h.b16 %v3200
    %v3584 = vunpack.c.l.b16 %v3201
    %v3585 = vunpack.c.h.b16 %v3201
    %v3586 = vpack.c.b16 %v3338, %v3330
    %v3587 = vpack.c.b16 %v3339, %v3331
    %v3588 = vpack.c.b16 %v3340, %v3332
    %v3589 = vpack.c.b16 %v3341, %v3333
    %v3590 = vpack.c.b16 %v3342, %v3334
    %v3591 = vpack.c.b16 %v3343, %v3335
    %v3592 = vpack.c.b16 %v3344, %v3336
    %v3593 = vpack.c.b16 %v3345, %v3337
    %v3594 = vpack.c.b16 %v3354, %v3346
    %v3595 = vpack.c.b16 %v3355, %v3347
    %v3596 = vpack.c.b16 %v3356, %v3348
    %v3597 = vpack.c.b16 %v3357, %v3349
    %v3598 = vpack.c.b16 %v3358, %v3350
    %v3599 = vpack.c.b16 %v3359, %v3351
    %v3600 = vpack.c.b16 %v3360, %v3352
    %v3601 = vpack.c.b16 %v3361, %v3353
    %v3602 = vpack.c.b16 %v3370, %v3362
    %v3603 = vpack.c.b16 %v3371, %v3363
    %v3604 = vpack.c.b16 %v3372, %v3364
    %v3605 = vpack.c.b16 %v3373, %v3365
    %v3606 = vpack.c.b16 %v3374, %v3366
    %v3607 = vpack.c.b16 %v3375, %v3367
    %v3608 = vpack.c.b16 %v3376, %v3368
    %v3609 = vpack.c.b16 %v3377, %v3369
    %v3610 = vpack.c.b16 %v3386, %v3378
    %v3611 = vpack.c.b16 %v3387, %v3379
    %v3612 = vpack.c.b16 %v3388, %v3380
    %v3613 = vpack.c.b16 %v3389, %v3381
    %v3614 = vpack.c.b16 %v3390, %v3382
    %v3615 = vpack.c.b16 %v3391, %v3383
    %v3616 = vpack.c.b16 %v3392, %v3384
    %v3617 = vpack.c.b16 %v3393, %v3385
    %v3618 = vpack.c.b16 %v3402, %v3394
    %v3619 = vpack.c.b16 %v3403, %v3395
    %v3620 = vpack.c.b16 %v3404, %v3396
    %v3621 = vpack.c.b16 %v3405, %v3397
    %v3622 = vpack.c.b16 %v3406, %v3398
    %v3623 = vpack.c.b16 %v3407, %v3399
    %v3624 = vpack.c.b16 %v3408, %v3400
    %v3625 = vpack.c.b16 %v3409, %v3401
    %v3626 = vpack.c.b16 %v3418, %v3410
    %v3627 = vpack.c.b16 %v3419, %v3411
    %v3628 = vpack.c.b16 %v3420, %v3412
    %v3629 = vpack.c.b16 %v3421, %v3413
    %v3630 = vpack.c.b16 %v3422, %v3414
    %v3631 = vpack.c.b16 %v3423, %v3415
    %v3632 = vpack.c.b16 %v3424, %v3416
    %v3633 = vpack.c.b16 %v3425, %v3417
    %v3634 = vpack.c.b16 %v3434, %v3426
    %v3635 = vpack.c.b16 %v3435, %v3427
    %v3636 = vpack.c.b16 %v3436, %v3428
    %v3637 = vpack.c.b16 %v3437, %v3429
    %v3638 = vpack.c.b16 %v3438, %v3430
    %v3639 = vpack.c.b16 %v3439, %v3431
    %v3640 = vpack.c.b16 %v3440, %v3432
    %v3641 = vpack.c.b16 %v3441, %v3433
    %v3642 = vpack.c.b16 %v3450, %v3442
    %v3643 = vpack.c.b16 %v3451, %v3443
    %v3644 = vpack.c.b16 %v3452, %v3444
    %v3645 = vpack.c.b16 %v3453, %v3445
    %v3646 = vpack.c.b16 %v3454, %v3446
    %v3647 = vpack.c.b16 %v3455, %v3447
    %v3648 = vpack.c.b16 %v3456, %v3448
    %v3649 = vpack.c.b16 %v3457, %v3449
    %v3650 = vpack.c.b16 %v3466, %v3458
    %v3651 = vpack.c.b16 %v3467, %v3459
    %v3652 = vpack.c.b16 %v3468, %v3460
    %v3653 = vpack.c.b16 %v3469, %v3461
    %v3654 = vpack.c.b16 %v3470, %v3462
    %v3655 = vpack.c.b16 %v3471, %v3463
    %v3656 = vpack.c.b16 %v3472, %v3464
    %v3657 = vpack.c.b16 %v3473, %v3465
    %v3658 = vpack.c.b16 %v3482, %v3474
    %v3659 = vpack.c.b16 %v3483, %v3475
    %v3660 = vpack.c.b16 %v3484, %v3476
    %v3661 = vpack.c.b16 %v3485, %v3477
    %v3662 = vpack.c.b16 %v3486, %v3478
    %v3663 = vpack.c.b16 %v3487, %v3479
    %v3664 = vpack.c.b16 %v3488, %v3480
    %v3665 = vpack.c.b16 %v3489, %v3481
    %v3666 = vpack.c.b16 %v3498, %v3490
    %v3667 = vpack.c.b16 %v3499, %v3491
    %v3668 = vpack.c.b16 %v3500, %v3492
    %v3669 = vpack.c.b16 %v3501, %v3493
    %v3670 = vpack.c.b16 %v3502, %v3494
    %v3671 = vpack.c.b16 %v3503, %v3495
    %v3672 = vpack.c.b16 %v3504, %v3496
    %v3673 = vpack.c.b16 %v3505, %v3497
    %v3674 = vpack.c.b16 %v3514, %v3506
    %v3675 = vpack.c.b16 %v3515, %v3507
    %v3676 = vpack.c.b16 %v3516, %v3508
    %v3677 = vpack.c.b16 %v3517, %v3509
    %v3678 = vpack.c.b16 %v3518, %v3510
    %v3679 = vpack.c.b16 %v3519, %v3511
    %v3680 = vpack.c.b16 %v3520, %v3512
    %v3681 = vpack.c.b16 %v3521, %v3513
    %v3682 = vpack.c.b16 %v3530, %v3522
    %v3683 = vpack.c.b16 %v3531, %v3523
    %v3684 = vpack.c.b16 %v3532, %v3524
    %v3685 = vpack.c.b16 %v3533, %v3525
    %v3686 = vpack.c.b16 %v3534, %v3526
    %v3687 = vpack.c.b16 %v3535, %v3527
    %v3688 = vpack.c.b16 %v3536, %v3528
    %v3689 = vpack.c.b16 %v3537, %v3529
    %v3690 = vpack.c.b16 %v3546, %v3538
    %v3691 = vpack.c.b16 %v3547, %v3539
    %v3692 = vpack.c.b16 %v3548, %v3540
    %v3693 = vpack.c.b16 %v3549, %v3541
    %v3694 = vpack.c.b16 %v3550, %v3542
    %v3695 = vpack.c.b16 %v3551, %v3543
    %v3696 = vpack.c.b16 %v3552, %v3544
    %v3697 = vpack.c.b16 %v3553, %v3545
    %v3698 = vpack.c.b16 %v3562, %v3554
    %v3699 = vpack.c.b16 %v3563, %v3555
    %v3700 = vpack.c.b16 %v3564, %v3556
    %v3701 = vpack.c.b16 %v3565, %v3557
    %v3702 = vpack.c.b16 %v3566, %v3558
    %v3703 = vpack.c.b16 %v3567, %v3559
    %v3704 = vpack.c.b16 %v3568, %v3560
    %v3705 = vpack.c.b16 %v3569, %v3561
    %v3706 = vpack.c.b16 %v3578, %v3570
    %v3707 = vpack.c.b16 %v3579, %v3571
    %v3708 = vpack.c.b16 %v3580, %v3572
    %v3709 = vpack.c.b16 %v3581, %v3573
    %v3710 = vpack.c.b16 %v3582, %v3574
    %v3711 = vpack.c.b16 %v3583, %v3575
    %v3712 = vpack.c.b16 %v3584, %v3576
    %v3713 = vpack.c.b16 %v3585, %v3577
    %3842 = vmatprep.subr.bf16.mxu0 %v3643
    %3843 = vmatpush1.bf16.msra.mxu0 %v3642
    %3844 = vmatprep.subr.bf16.mxu0 %v3635
    %3845 = vmatpush1.bf16.msra.mxu0 %v3634
    %3846 = vmatprep.subr.bf16.mxu0 %v3627
    %3847 = vmatpush1.bf16.msra.mxu0 %v3626
    %3848 = vmatprep.subr.bf16.mxu0 %v3619
    %3849 = vmatpush1.bf16.msra.mxu0 %v3618
    %3850 = vmatprep.subr.bf16.mxu0 %v3611
    %3851 = vmatpush1.bf16.msra.mxu0 %v3610
    %3852 = vmatprep.subr.bf16.mxu0 %v3603
    %3853 = vmatpush1.bf16.msra.mxu0 %v3602
    %3854 = vmatprep.subr.bf16.mxu0 %v3595
    %3855 = vmatpush1.bf16.msra.mxu0 %v3594
    %3856 = vmatprep.subr.bf16.mxu0 %v3587
    %3857 = vmatpush1.bf16.msra.mxu0 %v3586
    %3858 = vmatprep.subr.bf16.mxu0 %v3707
    %3859 = vmatpush2.bf16.msra.mxu0 %v3706
    %3860 = vmatprep.subr.bf16.mxu0 %v3699
    %3861 = vmatpush2.bf16.msra.mxu0 %v3698
    %3862 = vmatprep.subr.bf16.mxu0 %v3691
    %3863 = vmatpush2.bf16.msra.mxu0 %v3690
    %3864 = vmatprep.subr.bf16.mxu0 %v3683
    %3865 = vmatpush2.bf16.msra.mxu0 %v3682
    %3866 = vmatprep.subr.bf16.mxu0 %v3675
    %3867 = vmatpush2.bf16.msra.mxu0 %v3674
    %3868 = vmatprep.subr.bf16.mxu0 %v3667
    %3869 = vmatpush2.bf16.msra.mxu0 %v3666
    %3870 = vmatprep.subr.bf16.mxu0 %v3659
    %3871 = vmatpush2.bf16.msra.mxu0 %v3658
    %3872 = vmatprep.subr.bf16.mxu0 %v3651
    %3873 = vmatpush2.bf16.msra.mxu0 %v3650
    %3874 = vmatprep.mubr.bf16.mxu0 %v3073
    %3875 = vmatmul.mubr.bf16.gmra.mxu0 %v3072
    %v3876 = vpop.f32.mrf.mxu0
    %v3877 = vadd.f32 0.0, %v3876
    %v3878 = vpop.f32.mrf.mxu0
    %v3879 = vadd.f32 0.0, %v3878
    %v3880 = vpop.f32.mrf.mxu0
    %v3881 = vpop.f32.mrf.mxu0
    %3882 = vdwg.mxu0
    %3883 = vmatprep.subr.bf16.mxu0 %v3645
    %3884 = vmatpush1.bf16.msra.mxu0 %v3644
    %3885 = vmatprep.subr.bf16.mxu0 %v3637
    %3886 = vmatpush1.bf16.msra.mxu0 %v3636
    %3887 = vmatprep.subr.bf16.mxu0 %v3629
    %3888 = vmatpush1.bf16.msra.mxu0 %v3628
    %3889 = vmatprep.subr.bf16.mxu0 %v3621
    %3890 = vmatpush1.bf16.msra.mxu0 %v3620
    %3891 = vmatprep.subr.bf16.mxu0 %v3613
    %3892 = vmatpush1.bf16.msra.mxu0 %v3612
    %3893 = vmatprep.subr.bf16.mxu0 %v3605
    %3894 = vmatpush1.bf16.msra.mxu0 %v3604
    %3895 = vmatprep.subr.bf16.mxu0 %v3597
    %3896 = vmatpush1.bf16.msra.mxu0 %v3596
    %3897 = vmatprep.subr.bf16.mxu0 %v3589
    %3898 = vmatpush1.bf16.msra.mxu0 %v3588
    %3899 = vmatprep.subr.bf16.mxu0 %v3709
    %3900 = vmatpush2.bf16.msra.mxu0 %v3708
    %3901 = vmatprep.subr.bf16.mxu0 %v3701
    %3902 = vmatpush2.bf16.msra.mxu0 %v3700
    %3903 = vmatprep.subr.bf16.mxu0 %v3693
    %3904 = vmatpush2.bf16.msra.mxu0 %v3692
    %3905 = vmatprep.subr.bf16.mxu0 %v3685
    %3906 = vmatpush2.bf16.msra.mxu0 %v3684
    %3907 = vmatprep.subr.bf16.mxu0 %v3677
    %3908 = vmatpush2.bf16.msra.mxu0 %v3676
    %3909 = vmatprep.subr.bf16.mxu0 %v3669
    %3910 = vmatpush2.bf16.msra.mxu0 %v3668
    %3911 = vmatprep.subr.bf16.mxu0 %v3661
    %3912 = vmatpush2.bf16.msra.mxu0 %v3660
    %3913 = vmatprep.subr.bf16.mxu0 %v3653
    %3914 = vmatpush2.bf16.msra.mxu0 %v3652
    %3915 = vmatprep.mubr.bf16.mxu0 %v3073
    %3916 = vmatmul.mubr.bf16.gmra.mxu0 %v3072
    %v3917 = vpop.f32.mrf.mxu0
    %v3918 = vadd.f32 0.0, %v3917
    %v3919 = vpop.f32.mrf.mxu0
    %v3920 = vadd.f32 0.0, %v3919
    %v3921 = vpop.f32.mrf.mxu0
    %v3922 = vpop.f32.mrf.mxu0
    %3923 = vdwg.mxu0
    %3924 = vmatprep.subr.bf16.mxu0 %v3647
    %3925 = vmatpush1.bf16.msra.mxu0 %v3646
    %3926 = vmatprep.subr.bf16.mxu0 %v3639
    %3927 = vmatpush1.bf16.msra.mxu0 %v3638
    %3928 = vmatprep.subr.bf16.mxu0 %v3631
    %3929 = vmatpush1.bf16.msra.mxu0 %v3630
    %3930 = vmatprep.subr.bf16.mxu0 %v3623
    %3931 = vmatpush1.bf16.msra.mxu0 %v3622
    %3932 = vmatprep.subr.bf16.mxu0 %v3615
    %3933 = vmatpush1.bf16.msra.mxu0 %v3614
    %3934 = vmatprep.subr.bf16.mxu0 %v3607
    %3935 = vmatpush1.bf16.msra.mxu0 %v3606
    %3936 = vmatprep.subr.bf16.mxu0 %v3599
    %3937 = vmatpush1.bf16.msra.mxu0 %v3598
    %3938 = vmatprep.subr.bf16.mxu0 %v3591
    %3939 = vmatpush1.bf16.msra.mxu0 %v3590
    %3940 = vmatprep.subr.bf16.mxu0 %v3711
    %3941 = vmatpush2.bf16.msra.mxu0 %v3710
    %3942 = vmatprep.subr.bf16.mxu0 %v3703
    %3943 = vmatpush2.bf16.msra.mxu0 %v3702
    %3944 = vmatprep.subr.bf16.mxu0 %v3695
    %3945 = vmatpush2.bf16.msra.mxu0 %v3694
    %3946 = vmatprep.subr.bf16.mxu0 %v3687
    %3947 = vmatpush2.bf16.msra.mxu0 %v3686
    %3948 = vmatprep.subr.bf16.mxu0 %v3679
    %3949 = vmatpush2.bf16.msra.mxu0 %v3678
    %3950 = vmatprep.subr.bf16.mxu0 %v3671
    %3951 = vmatpush2.bf16.msra.mxu0 %v3670
    %3952 = vmatprep.subr.bf16.mxu0 %v3663
    %3953 = vmatpush2.bf16.msra.mxu0 %v3662
    %3954 = vmatprep.subr.bf16.mxu0 %v3655
    %3955 = vmatpush2.bf16.msra.mxu0 %v3654
    %3956 = vmatprep.mubr.bf16.mxu0 %v3073
    %3957 = vmatmul.mubr.bf16.gmra.mxu0 %v3072
    %v3958 = vpop.f32.mrf.mxu0
    %v3959 = vadd.f32 0.0, %v3958
    %v3960 = vpop.f32.mrf.mxu0
    %v3961 = vadd.f32 0.0, %v3960
    %v3962 = vpop.f32.mrf.mxu0
    %v3963 = vpop.f32.mrf.mxu0
    %3964 = vdwg.mxu0
    %3965 = vmatprep.subr.bf16.mxu0 %v3649
    %3966 = vmatpush1.bf16.msra.mxu0 %v3648
    %3967 = vmatprep.subr.bf16.mxu0 %v3641
    %3968 = vmatpush1.bf16.msra.mxu0 %v3640
    %3969 = vmatprep.subr.bf16.mxu0 %v3633
    %3970 = vmatpush1.bf16.msra.mxu0 %v3632
    %3971 = vmatprep.subr.bf16.mxu0 %v3625
    %3972 = vmatpush1.bf16.msra.mxu0 %v3624
    %3973 = vmatprep.subr.bf16.mxu0 %v3617
    %3974 = vmatpush1.bf16.msra.mxu0 %v3616
    %3975 = vmatprep.subr.bf16.mxu0 %v3609
    %3976 = vmatpush1.bf16.msra.mxu0 %v3608
    %3977 = vmatprep.subr.bf16.mxu0 %v3601
    %3978 = vmatpush1.bf16.msra.mxu0 %v3600
    %3979 = vmatprep.subr.bf16.mxu0 %v3593
    %3980 = vmatpush1.bf16.msra.mxu0 %v3592
    %3981 = vmatprep.subr.bf16.mxu0 %v3713
    %3982 = vmatpush2.bf16.msra.mxu0 %v3712
    %3983 = vmatprep.subr.bf16.mxu0 %v3705
    %3984 = vmatpush2.bf16.msra.mxu0 %v3704
    %3985 = vmatprep.subr.bf16.mxu0 %v3697
    %3986 = vmatpush2.bf16.msra.mxu0 %v3696
    %3987 = vmatprep.subr.bf16.mxu0 %v3689
    %3988 = vmatpush2.bf16.msra.mxu0 %v3688
    %3989 = vmatprep.subr.bf16.mxu0 %v3681
    %3990 = vmatpush2.bf16.msra.mxu0 %v3680
    %3991 = vmatprep.subr.bf16.mxu0 %v3673
    %3992 = vmatpush2.bf16.msra.mxu0 %v3672
    %3993 = vmatprep.subr.bf16.mxu0 %v3665
    %3994 = vmatpush2.bf16.msra.mxu0 %v3664
    %3995 = vmatprep.subr.bf16.mxu0 %v3657
    %3996 = vmatpush2.bf16.msra.mxu0 %v3656
    %3997 = vmatprep.mubr.bf16.mxu0 %v3073
    %3998 = vmatmul.mubr.bf16.gmra.mxu0 %v3072
    %v3999 = vpop.f32.mrf.mxu0
    %v4000 = vadd.f32 0.0, %v3999
    %v4001 = vpop.f32.mrf.mxu0
    %v4002 = vadd.f32 0.0, %v4001
    %v4003 = vpop.f32.mrf.mxu0
    %v4004 = vpop.f32.mrf.mxu0
    %4005 = vdwg.mxu0
    %v4006 = vadd.f32 %v3959, %v34
    %v4007 = vadd.f32 %v3961, %v38
    %v4008 = vadd.f32 %v4000, %v42
    %v4009 = vadd.f32 %v4002, %v46
    %v4010 = vxor.u32 %v4006, 2147483648
    %v4011 = vmul.f32 %v4010, 1.442695
    %v4012 = vpow.pop %v4011
    %v4013 = vadd.f32 %v4012, 1.0
    %v4014 = vrcp.pop %v4013
    %v4015 = vmul.f32 1.0, %v4014
    %v4016 = vxor.u32 %v4007, 2147483648
    %v4017 = vmul.f32 %v4016, 1.442695
    %v4018 = vpow.pop %v4017
    %v4019 = vadd.f32 %v4018, 1.0
    %v4020 = vrcp.pop %v4019
    %v4021 = vmul.f32 1.0, %v4020
    %v4022 = vtanh.pop %v4008
    %v4023 = vxor.u32 %v4009, 2147483648
    %v4024 = vmul.f32 %v4023, 1.442695
    %v4025 = vpow.pop %v4024
    %v4026 = vadd.f32 %v4025, 1.0
    %v4027 = vrcp.pop %v4026
    %v4028 = vmul.f32 1.0, %v4027
    %v4029 = vmul.f32 %v4021, %v3034
    %v4030 = vmul.f32 %v4015, %v4022
    %v4031 = vadd.f32 %v4029, %v4030
    %v4032 = vtanh.pop %v4031
    %v4033 = vmul.f32 %v4028, %v4032
    %s4034 = scalar_lea.vmem %s3, 24
    %4035 = vst [vmem:[%s4034] sm:$0xff] %v4033
    %s4036 = scalar_lea.vmem %s0, 128
    %v4037 = vld [vmem:[%s4036] sm:$0xff]
    %v4038 = vld [vmem:[%s4036 + $0x8] sm:$0xff]
    %v4039 = vld [vmem:[%s4036 + $0x10] sm:$0xff]
    %v4040 = vld [vmem:[%s4036 + $0x18] sm:$0xff]
    %v4041 = vadd.f32 %v4037, %v3877
    %v4042 = vadd.f32 %v4038, %v3879
    %v4043 = vadd.f32 %v4039, %v3918
    %v4044 = vadd.f32 %v4040, %v3920
    %v4045 = vxor.u32 %v4041, 2147483648
    %v4046 = vmul.f32 %v4045, 1.442695
    %v4047 = vpow.pop %v4046
    %v4048 = vadd.f32 %v4047, 1.0
    %v4049 = vrcp.pop %v4048
    %v4050 = vmul.f32 1.0, %v4049
    %v4051 = vxor.u32 %v4042, 2147483648
    %v4052 = vmul.f32 %v4051, 1.442695
    %v4053 = vpow.pop %v4052
    %v4054 = vadd.f32 %v4053, 1.0
    %v4055 = vrcp.pop %v4054
    %v4056 = vmul.f32 1.0, %v4055
    %v4057 = vtanh.pop %v4043
    %v4058 = vxor.u32 %v4044, 2147483648
    %v4059 = vmul.f32 %v4058, 1.442695
    %v4060 = vpow.pop %v4059
    %v4061 = vadd.f32 %v4060, 1.0
    %v4062 = vrcp.pop %v4061
    %v4063 = vmul.f32 1.0, %v4062
    %v4064 = vmul.f32 %v4056, %v3069
    %v4065 = vmul.f32 %v4050, %v4057
    %v4066 = vadd.f32 %v4064, %v4065
    %v4067 = vtanh.pop %v4066
    %v4068 = vmul.f32 %v4063, %v4067
    %v4069 = vpack.c.bf16 %v4068, %v4068
    %v4070 = vpack.c.bf16 %v4033, %v4033
    %v4071 = vld [vmem:[#allocation2] sm:$0xff]
    %v4072 = vld [vmem:[#allocation2 + $0x8] sm:$0xff]
    %v4073 = vld [vmem:[#allocation2 + $0x10] sm:$0xff]
    %v4074 = vld [vmem:[#allocation2 + $0x18] sm:$0xff]
    %v4075 = vld [vmem:[#allocation2 + $0x20] sm:$0xff]
    %v4076 = vld [vmem:[#allocation2 + $0x28] sm:$0xff]
    %v4077 = vld [vmem:[#allocation2 + $0x30] sm:$0xff]
    %v4078 = vld [vmem:[#allocation2 + $0x38] sm:$0xff]
    %v4079 = vld [vmem:[#allocation2 + $0x40] sm:$0xff]
    %v4080 = vld [vmem:[#allocation2 + $0x48] sm:$0xff]
    %v4081 = vld [vmem:[#allocation2 + $0x50] sm:$0xff]
    %v4082 = vld [vmem:[#allocation2 + $0x58] sm:$0xff]
    %v4083 = vld [vmem:[#allocation2 + $0x60] sm:$0xff]
    %v4084 = vld [vmem:[#allocation2 + $0x68] sm:$0xff]
    %v4085 = vld [vmem:[#allocation2 + $0x70] sm:$0xff]
    %v4086 = vld [vmem:[#allocation2 + $0x78] sm:$0xff]
    %v4087 = vld [vmem:[#allocation2 + $0x80] sm:$0xff]
    %v4088 = vld [vmem:[#allocation2 + $0x88] sm:$0xff]
    %v4089 = vld [vmem:[#allocation2 + $0x90] sm:$0xff]
    %v4090 = vld [vmem:[#allocation2 + $0x98] sm:$0xff]
    %v4091 = vld [vmem:[#allocation2 + $0xa0] sm:$0xff]
    %v4092 = vld [vmem:[#allocation2 + $0xa8] sm:$0xff]
    %v4093 = vld [vmem:[#allocation2 + $0xb0] sm:$0xff]
    %v4094 = vld [vmem:[#allocation2 + $0xb8] sm:$0xff]
    %v4095 = vld [vmem:[#allocation2 + $0xc0] sm:$0xff]
    %v4096 = vld [vmem:[#allocation2 + $0xc8] sm:$0xff]
    %v4097 = vld [vmem:[#allocation2 + $0xd0] sm:$0xff]
    %v4098 = vld [vmem:[#allocation2 + $0xd8] sm:$0xff]
    %v4099 = vld [vmem:[#allocation2 + $0xe0] sm:$0xff]
    %v4100 = vld [vmem:[#allocation2 + $0xe8] sm:$0xff]
    %v4101 = vld [vmem:[#allocation2 + $0xf0] sm:$0xff]
    %v4102 = vld [vmem:[#allocation2 + $0xf8] sm:$0xff]
    %v4103 = vld [vmem:[#allocation2 + $0x100] sm:$0xff]
    %v4104 = vld [vmem:[#allocation2 + $0x108] sm:$0xff]
    %v4105 = vld [vmem:[#allocation2 + $0x110] sm:$0xff]
    %v4106 = vld [vmem:[#allocation2 + $0x118] sm:$0xff]
    %v4107 = vld [vmem:[#allocation2 + $0x120] sm:$0xff]
    %v4108 = vld [vmem:[#allocation2 + $0x128] sm:$0xff]
    %v4109 = vld [vmem:[#allocation2 + $0x130] sm:$0xff]
    %v4110 = vld [vmem:[#allocation2 + $0x138] sm:$0xff]
    %v4111 = vld [vmem:[#allocation2 + $0x140] sm:$0xff]
    %v4112 = vld [vmem:[#allocation2 + $0x148] sm:$0xff]
    %v4113 = vld [vmem:[#allocation2 + $0x150] sm:$0xff]
    %v4114 = vld [vmem:[#allocation2 + $0x158] sm:$0xff]
    %v4115 = vld [vmem:[#allocation2 + $0x160] sm:$0xff]
    %v4116 = vld [vmem:[#allocation2 + $0x168] sm:$0xff]
    %v4117 = vld [vmem:[#allocation2 + $0x170] sm:$0xff]
    %v4118 = vld [vmem:[#allocation2 + $0x178] sm:$0xff]
    %v4119 = vld [vmem:[#allocation2 + $0x180] sm:$0xff]
    %v4120 = vld [vmem:[#allocation2 + $0x188] sm:$0xff]
    %v4121 = vld [vmem:[#allocation2 + $0x190] sm:$0xff]
    %v4122 = vld [vmem:[#allocation2 + $0x198] sm:$0xff]
    %v4123 = vld [vmem:[#allocation2 + $0x1a0] sm:$0xff]
    %v4124 = vld [vmem:[#allocation2 + $0x1a8] sm:$0xff]
    %v4125 = vld [vmem:[#allocation2 + $0x1b0] sm:$0xff]
    %v4126 = vld [vmem:[#allocation2 + $0x1b8] sm:$0xff]
    %v4127 = vld [vmem:[#allocation2 + $0x1c0] sm:$0xff]
    %v4128 = vld [vmem:[#allocation2 + $0x1c8] sm:$0xff]
    %v4129 = vld [vmem:[#allocation2 + $0x1d0] sm:$0xff]
    %v4130 = vld [vmem:[#allocation2 + $0x1d8] sm:$0xff]
    %v4131 = vld [vmem:[#allocation2 + $0x1e0] sm:$0xff]
    %v4132 = vld [vmem:[#allocation2 + $0x1e8] sm:$0xff]
    %v4133 = vld [vmem:[#allocation2 + $0x1f0] sm:$0xff]
    %v4134 = vld [vmem:[#allocation2 + $0x1f8] sm:$0xff]
    %v4135 = vld [vmem:[#allocation2 + $0x200] sm:$0xff]
    %v4136 = vld [vmem:[#allocation2 + $0x208] sm:$0xff]
    %v4137 = vld [vmem:[#allocation2 + $0x210] sm:$0xff]
    %v4138 = vld [vmem:[#allocation2 + $0x218] sm:$0xff]
    %v4139 = vld [vmem:[#allocation2 + $0x220] sm:$0xff]
    %v4140 = vld [vmem:[#allocation2 + $0x228] sm:$0xff]
    %v4141 = vld [vmem:[#allocation2 + $0x230] sm:$0xff]
    %v4142 = vld [vmem:[#allocation2 + $0x238] sm:$0xff]
    %v4143 = vld [vmem:[#allocation2 + $0x240] sm:$0xff]
    %v4144 = vld [vmem:[#allocation2 + $0x248] sm:$0xff]
    %v4145 = vld [vmem:[#allocation2 + $0x250] sm:$0xff]
    %v4146 = vld [vmem:[#allocation2 + $0x258] sm:$0xff]
    %v4147 = vld [vmem:[#allocation2 + $0x260] sm:$0xff]
    %v4148 = vld [vmem:[#allocation2 + $0x268] sm:$0xff]
    %v4149 = vld [vmem:[#allocation2 + $0x270] sm:$0xff]
    %v4150 = vld [vmem:[#allocation2 + $0x278] sm:$0xff]
    %v4151 = vld [vmem:[#allocation2 + $0x280] sm:$0xff]
    %v4152 = vld [vmem:[#allocation2 + $0x288] sm:$0xff]
    %v4153 = vld [vmem:[#allocation2 + $0x290] sm:$0xff]
    %v4154 = vld [vmem:[#allocation2 + $0x298] sm:$0xff]
    %v4155 = vld [vmem:[#allocation2 + $0x2a0] sm:$0xff]
    %v4156 = vld [vmem:[#allocation2 + $0x2a8] sm:$0xff]
    %v4157 = vld [vmem:[#allocation2 + $0x2b0] sm:$0xff]
    %v4158 = vld [vmem:[#allocation2 + $0x2b8] sm:$0xff]
    %v4159 = vld [vmem:[#allocation2 + $0x2c0] sm:$0xff]
    %v4160 = vld [vmem:[#allocation2 + $0x2c8] sm:$0xff]
    %v4161 = vld [vmem:[#allocation2 + $0x2d0] sm:$0xff]
    %v4162 = vld [vmem:[#allocation2 + $0x2d8] sm:$0xff]
    %v4163 = vld [vmem:[#allocation2 + $0x2e0] sm:$0xff]
    %v4164 = vld [vmem:[#allocation2 + $0x2e8] sm:$0xff]
    %v4165 = vld [vmem:[#allocation2 + $0x2f0] sm:$0xff]
    %v4166 = vld [vmem:[#allocation2 + $0x2f8] sm:$0xff]
    %v4167 = vld [vmem:[#allocation2 + $0x300] sm:$0xff]
    %v4168 = vld [vmem:[#allocation2 + $0x308] sm:$0xff]
    %v4169 = vld [vmem:[#allocation2 + $0x310] sm:$0xff]
    %v4170 = vld [vmem:[#allocation2 + $0x318] sm:$0xff]
    %v4171 = vld [vmem:[#allocation2 + $0x320] sm:$0xff]
    %v4172 = vld [vmem:[#allocation2 + $0x328] sm:$0xff]
    %v4173 = vld [vmem:[#allocation2 + $0x330] sm:$0xff]
    %v4174 = vld [vmem:[#allocation2 + $0x338] sm:$0xff]
    %v4175 = vld [vmem:[#allocation2 + $0x340] sm:$0xff]
    %v4176 = vld [vmem:[#allocation2 + $0x348] sm:$0xff]
    %v4177 = vld [vmem:[#allocation2 + $0x350] sm:$0xff]
    %v4178 = vld [vmem:[#allocation2 + $0x358] sm:$0xff]
    %v4179 = vld [vmem:[#allocation2 + $0x360] sm:$0xff]
    %v4180 = vld [vmem:[#allocation2 + $0x368] sm:$0xff]
    %v4181 = vld [vmem:[#allocation2 + $0x370] sm:$0xff]
    %v4182 = vld [vmem:[#allocation2 + $0x378] sm:$0xff]
    %v4183 = vld [vmem:[#allocation2 + $0x380] sm:$0xff]
    %v4184 = vld [vmem:[#allocation2 + $0x388] sm:$0xff]
    %v4185 = vld [vmem:[#allocation2 + $0x390] sm:$0xff]
    %v4186 = vld [vmem:[#allocation2 + $0x398] sm:$0xff]
    %v4187 = vld [vmem:[#allocation2 + $0x3a0] sm:$0xff]
    %v4188 = vld [vmem:[#allocation2 + $0x3a8] sm:$0xff]
    %v4189 = vld [vmem:[#allocation2 + $0x3b0] sm:$0xff]
    %v4190 = vld [vmem:[#allocation2 + $0x3b8] sm:$0xff]
    %v4191 = vld [vmem:[#allocation2 + $0x3c0] sm:$0xff]
    %v4192 = vld [vmem:[#allocation2 + $0x3c8] sm:$0xff]
    %v4193 = vld [vmem:[#allocation2 + $0x3d0] sm:$0xff]
    %v4194 = vld [vmem:[#allocation2 + $0x3d8] sm:$0xff]
    %v4195 = vld [vmem:[#allocation2 + $0x3e0] sm:$0xff]
    %v4196 = vld [vmem:[#allocation2 + $0x3e8] sm:$0xff]
    %v4197 = vld [vmem:[#allocation2 + $0x3f0] sm:$0xff]
    %v4198 = vld [vmem:[#allocation2 + $0x3f8] sm:$0xff]
    %v4327 = vunpack.c.l.b16 %v4071
    %v4328 = vunpack.c.h.b16 %v4071
    %v4329 = vunpack.c.l.b16 %v4072
    %v4330 = vunpack.c.h.b16 %v4072
    %v4331 = vunpack.c.l.b16 %v4073
    %v4332 = vunpack.c.h.b16 %v4073
    %v4333 = vunpack.c.l.b16 %v4074
    %v4334 = vunpack.c.h.b16 %v4074
    %v4335 = vunpack.c.l.b16 %v4075
    %v4336 = vunpack.c.h.b16 %v4075
    %v4337 = vunpack.c.l.b16 %v4076
    %v4338 = vunpack.c.h.b16 %v4076
    %v4339 = vunpack.c.l.b16 %v4077
    %v4340 = vunpack.c.h.b16 %v4077
    %v4341 = vunpack.c.l.b16 %v4078
    %v4342 = vunpack.c.h.b16 %v4078
    %v4343 = vunpack.c.l.b16 %v4079
    %v4344 = vunpack.c.h.b16 %v4079
    %v4345 = vunpack.c.l.b16 %v4080
    %v4346 = vunpack.c.h.b16 %v4080
    %v4347 = vunpack.c.l.b16 %v4081
    %v4348 = vunpack.c.h.b16 %v4081
    %v4349 = vunpack.c.l.b16 %v4082
    %v4350 = vunpack.c.h.b16 %v4082
    %v4351 = vunpack.c.l.b16 %v4083
    %v4352 = vunpack.c.h.b16 %v4083
    %v4353 = vunpack.c.l.b16 %v4084
    %v4354 = vunpack.c.h.b16 %v4084
    %v4355 = vunpack.c.l.b16 %v4085
    %v4356 = vunpack.c.h.b16 %v4085
    %v4357 = vunpack.c.l.b16 %v4086
    %v4358 = vunpack.c.h.b16 %v4086
    %v4359 = vunpack.c.l.b16 %v4087
    %v4360 = vunpack.c.h.b16 %v4087
    %v4361 = vunpack.c.l.b16 %v4088
    %v4362 = vunpack.c.h.b16 %v4088
    %v4363 = vunpack.c.l.b16 %v4089
    %v4364 = vunpack.c.h.b16 %v4089
    %v4365 = vunpack.c.l.b16 %v4090
    %v4366 = vunpack.c.h.b16 %v4090
    %v4367 = vunpack.c.l.b16 %v4091
    %v4368 = vunpack.c.h.b16 %v4091
    %v4369 = vunpack.c.l.b16 %v4092
    %v4370 = vunpack.c.h.b16 %v4092
    %v4371 = vunpack.c.l.b16 %v4093
    %v4372 = vunpack.c.h.b16 %v4093
    %v4373 = vunpack.c.l.b16 %v4094
    %v4374 = vunpack.c.h.b16 %v4094
    %v4375 = vunpack.c.l.b16 %v4095
    %v4376 = vunpack.c.h.b16 %v4095
    %v4377 = vunpack.c.l.b16 %v4096
    %v4378 = vunpack.c.h.b16 %v4096
    %v4379 = vunpack.c.l.b16 %v4097
    %v4380 = vunpack.c.h.b16 %v4097
    %v4381 = vunpack.c.l.b16 %v4098
    %v4382 = vunpack.c.h.b16 %v4098
    %v4383 = vunpack.c.l.b16 %v4099
    %v4384 = vunpack.c.h.b16 %v4099
    %v4385 = vunpack.c.l.b16 %v4100
    %v4386 = vunpack.c.h.b16 %v4100
    %v4387 = vunpack.c.l.b16 %v4101
    %v4388 = vunpack.c.h.b16 %v4101
    %v4389 = vunpack.c.l.b16 %v4102
    %v4390 = vunpack.c.h.b16 %v4102
    %v4391 = vunpack.c.l.b16 %v4103
    %v4392 = vunpack.c.h.b16 %v4103
    %v4393 = vunpack.c.l.b16 %v4104
    %v4394 = vunpack.c.h.b16 %v4104
    %v4395 = vunpack.c.l.b16 %v4105
    %v4396 = vunpack.c.h.b16 %v4105
    %v4397 = vunpack.c.l.b16 %v4106
    %v4398 = vunpack.c.h.b16 %v4106
    %v4399 = vunpack.c.l.b16 %v4107
    %v4400 = vunpack.c.h.b16 %v4107
    %v4401 = vunpack.c.l.b16 %v4108
    %v4402 = vunpack.c.h.b16 %v4108
    %v4403 = vunpack.c.l.b16 %v4109
    %v4404 = vunpack.c.h.b16 %v4109
    %v4405 = vunpack.c.l.b16 %v4110
    %v4406 = vunpack.c.h.b16 %v4110
    %v4407 = vunpack.c.l.b16 %v4111
    %v4408 = vunpack.c.h.b16 %v4111
    %v4409 = vunpack.c.l.b16 %v4112
    %v4410 = vunpack.c.h.b16 %v4112
    %v4411 = vunpack.c.l.b16 %v4113
    %v4412 = vunpack.c.h.b16 %v4113
    %v4413 = vunpack.c.l.b16 %v4114
    %v4414 = vunpack.c.h.b16 %v4114
    %v4415 = vunpack.c.l.b16 %v4115
    %v4416 = vunpack.c.h.b16 %v4115
    %v4417 = vunpack.c.l.b16 %v4116
    %v4418 = vunpack.c.h.b16 %v4116
    %v4419 = vunpack.c.l.b16 %v4117
    %v4420 = vunpack.c.h.b16 %v4117
    %v4421 = vunpack.c.l.b16 %v4118
    %v4422 = vunpack.c.h.b16 %v4118
    %v4423 = vunpack.c.l.b16 %v4119
    %v4424 = vunpack.c.h.b16 %v4119
    %v4425 = vunpack.c.l.b16 %v4120
    %v4426 = vunpack.c.h.b16 %v4120
    %v4427 = vunpack.c.l.b16 %v4121
    %v4428 = vunpack.c.h.b16 %v4121
    %v4429 = vunpack.c.l.b16 %v4122
    %v4430 = vunpack.c.h.b16 %v4122
    %v4431 = vunpack.c.l.b16 %v4123
    %v4432 = vunpack.c.h.b16 %v4123
    %v4433 = vunpack.c.l.b16 %v4124
    %v4434 = vunpack.c.h.b16 %v4124
    %v4435 = vunpack.c.l.b16 %v4125
    %v4436 = vunpack.c.h.b16 %v4125
    %v4437 = vunpack.c.l.b16 %v4126
    %v4438 = vunpack.c.h.b16 %v4126
    %v4439 = vunpack.c.l.b16 %v4127
    %v4440 = vunpack.c.h.b16 %v4127
    %v4441 = vunpack.c.l.b16 %v4128
    %v4442 = vunpack.c.h.b16 %v4128
    %v4443 = vunpack.c.l.b16 %v4129
    %v4444 = vunpack.c.h.b16 %v4129
    %v4445 = vunpack.c.l.b16 %v4130
    %v4446 = vunpack.c.h.b16 %v4130
    %v4447 = vunpack.c.l.b16 %v4131
    %v4448 = vunpack.c.h.b16 %v4131
    %v4449 = vunpack.c.l.b16 %v4132
    %v4450 = vunpack.c.h.b16 %v4132
    %v4451 = vunpack.c.l.b16 %v4133
    %v4452 = vunpack.c.h.b16 %v4133
    %v4453 = vunpack.c.l.b16 %v4134
    %v4454 = vunpack.c.h.b16 %v4134
    %v4455 = vunpack.c.l.b16 %v4135
    %v4456 = vunpack.c.h.b16 %v4135
    %v4457 = vunpack.c.l.b16 %v4136
    %v4458 = vunpack.c.h.b16 %v4136
    %v4459 = vunpack.c.l.b16 %v4137
    %v4460 = vunpack.c.h.b16 %v4137
    %v4461 = vunpack.c.l.b16 %v4138
    %v4462 = vunpack.c.h.b16 %v4138
    %v4463 = vunpack.c.l.b16 %v4139
    %v4464 = vunpack.c.h.b16 %v4139
    %v4465 = vunpack.c.l.b16 %v4140
    %v4466 = vunpack.c.h.b16 %v4140
    %v4467 = vunpack.c.l.b16 %v4141
    %v4468 = vunpack.c.h.b16 %v4141
    %v4469 = vunpack.c.l.b16 %v4142
    %v4470 = vunpack.c.h.b16 %v4142
    %v4471 = vunpack.c.l.b16 %v4143
    %v4472 = vunpack.c.h.b16 %v4143
    %v4473 = vunpack.c.l.b16 %v4144
    %v4474 = vunpack.c.h.b16 %v4144
    %v4475 = vunpack.c.l.b16 %v4145
    %v4476 = vunpack.c.h.b16 %v4145
    %v4477 = vunpack.c.l.b16 %v4146
    %v4478 = vunpack.c.h.b16 %v4146
    %v4479 = vunpack.c.l.b16 %v4147
    %v4480 = vunpack.c.h.b16 %v4147
    %v4481 = vunpack.c.l.b16 %v4148
    %v4482 = vunpack.c.h.b16 %v4148
    %v4483 = vunpack.c.l.b16 %v4149
    %v4484 = vunpack.c.h.b16 %v4149
    %v4485 = vunpack.c.l.b16 %v4150
    %v4486 = vunpack.c.h.b16 %v4150
    %v4487 = vunpack.c.l.b16 %v4151
    %v4488 = vunpack.c.h.b16 %v4151
    %v4489 = vunpack.c.l.b16 %v4152
    %v4490 = vunpack.c.h.b16 %v4152
    %v4491 = vunpack.c.l.b16 %v4153
    %v4492 = vunpack.c.h.b16 %v4153
    %v4493 = vunpack.c.l.b16 %v4154
    %v4494 = vunpack.c.h.b16 %v4154
    %v4495 = vunpack.c.l.b16 %v4155
    %v4496 = vunpack.c.h.b16 %v4155
    %v4497 = vunpack.c.l.b16 %v4156
    %v4498 = vunpack.c.h.b16 %v4156
    %v4499 = vunpack.c.l.b16 %v4157
    %v4500 = vunpack.c.h.b16 %v4157
    %v4501 = vunpack.c.l.b16 %v4158
    %v4502 = vunpack.c.h.b16 %v4158
    %v4503 = vunpack.c.l.b16 %v4159
    %v4504 = vunpack.c.h.b16 %v4159
    %v4505 = vunpack.c.l.b16 %v4160
    %v4506 = vunpack.c.h.b16 %v4160
    %v4507 = vunpack.c.l.b16 %v4161
    %v4508 = vunpack.c.h.b16 %v4161
    %v4509 = vunpack.c.l.b16 %v4162
    %v4510 = vunpack.c.h.b16 %v4162
    %v4511 = vunpack.c.l.b16 %v4163
    %v4512 = vunpack.c.h.b16 %v4163
    %v4513 = vunpack.c.l.b16 %v4164
    %v4514 = vunpack.c.h.b16 %v4164
    %v4515 = vunpack.c.l.b16 %v4165
    %v4516 = vunpack.c.h.b16 %v4165
    %v4517 = vunpack.c.l.b16 %v4166
    %v4518 = vunpack.c.h.b16 %v4166
    %v4519 = vunpack.c.l.b16 %v4167
    %v4520 = vunpack.c.h.b16 %v4167
    %v4521 = vunpack.c.l.b16 %v4168
    %v4522 = vunpack.c.h.b16 %v4168
    %v4523 = vunpack.c.l.b16 %v4169
    %v4524 = vunpack.c.h.b16 %v4169
    %v4525 = vunpack.c.l.b16 %v4170
    %v4526 = vunpack.c.h.b16 %v4170
    %v4527 = vunpack.c.l.b16 %v4171
    %v4528 = vunpack.c.h.b16 %v4171
    %v4529 = vunpack.c.l.b16 %v4172
    %v4530 = vunpack.c.h.b16 %v4172
    %v4531 = vunpack.c.l.b16 %v4173
    %v4532 = vunpack.c.h.b16 %v4173
    %v4533 = vunpack.c.l.b16 %v4174
    %v4534 = vunpack.c.h.b16 %v4174
    %v4535 = vunpack.c.l.b16 %v4175
    %v4536 = vunpack.c.h.b16 %v4175
    %v4537 = vunpack.c.l.b16 %v4176
    %v4538 = vunpack.c.h.b16 %v4176
    %v4539 = vunpack.c.l.b16 %v4177
    %v4540 = vunpack.c.h.b16 %v4177
    %v4541 = vunpack.c.l.b16 %v4178
    %v4542 = vunpack.c.h.b16 %v4178
    %v4543 = vunpack.c.l.b16 %v4179
    %v4544 = vunpack.c.h.b16 %v4179
    %v4545 = vunpack.c.l.b16 %v4180
    %v4546 = vunpack.c.h.b16 %v4180
    %v4547 = vunpack.c.l.b16 %v4181
    %v4548 = vunpack.c.h.b16 %v4181
    %v4549 = vunpack.c.l.b16 %v4182
    %v4550 = vunpack.c.h.b16 %v4182
    %v4551 = vunpack.c.l.b16 %v4183
    %v4552 = vunpack.c.h.b16 %v4183
    %v4553 = vunpack.c.l.b16 %v4184
    %v4554 = vunpack.c.h.b16 %v4184
    %v4555 = vunpack.c.l.b16 %v4185
    %v4556 = vunpack.c.h.b16 %v4185
    %v4557 = vunpack.c.l.b16 %v4186
    %v4558 = vunpack.c.h.b16 %v4186
    %v4559 = vunpack.c.l.b16 %v4187
    %v4560 = vunpack.c.h.b16 %v4187
    %v4561 = vunpack.c.l.b16 %v4188
    %v4562 = vunpack.c.h.b16 %v4188
    %v4563 = vunpack.c.l.b16 %v4189
    %v4564 = vunpack.c.h.b16 %v4189
    %v4565 = vunpack.c.l.b16 %v4190
    %v4566 = vunpack.c.h.b16 %v4190
    %v4567 = vunpack.c.l.b16 %v4191
    %v4568 = vunpack.c.h.b16 %v4191
    %v4569 = vunpack.c.l.b16 %v4192
    %v4570 = vunpack.c.h.b16 %v4192
    %v4571 = vunpack.c.l.b16 %v4193
    %v4572 = vunpack.c.h.b16 %v4193
    %v4573 = vunpack.c.l.b16 %v4194
    %v4574 = vunpack.c.h.b16 %v4194
    %v4575 = vunpack.c.l.b16 %v4195
    %v4576 = vunpack.c.h.b16 %v4195
    %v4577 = vunpack.c.l.b16 %v4196
    %v4578 = vunpack.c.h.b16 %v4196
    %v4579 = vunpack.c.l.b16 %v4197
    %v4580 = vunpack.c.h.b16 %v4197
    %v4581 = vunpack.c.l.b16 %v4198
    %v4582 = vunpack.c.h.b16 %v4198
    %v4583 = vpack.c.b16 %v4335, %v4327
    %v4584 = vpack.c.b16 %v4336, %v4328
    %v4585 = vpack.c.b16 %v4337, %v4329
    %v4586 = vpack.c.b16 %v4338, %v4330
    %v4587 = vpack.c.b16 %v4339, %v4331
    %v4588 = vpack.c.b16 %v4340, %v4332
    %v4589 = vpack.c.b16 %v4341, %v4333
    %v4590 = vpack.c.b16 %v4342, %v4334
    %v4591 = vpack.c.b16 %v4351, %v4343
    %v4592 = vpack.c.b16 %v4352, %v4344
    %v4593 = vpack.c.b16 %v4353, %v4345
    %v4594 = vpack.c.b16 %v4354, %v4346
    %v4595 = vpack.c.b16 %v4355, %v4347
    %v4596 = vpack.c.b16 %v4356, %v4348
    %v4597 = vpack.c.b16 %v4357, %v4349
    %v4598 = vpack.c.b16 %v4358, %v4350
    %v4599 = vpack.c.b16 %v4367, %v4359
    %v4600 = vpack.c.b16 %v4368, %v4360
    %v4601 = vpack.c.b16 %v4369, %v4361
    %v4602 = vpack.c.b16 %v4370, %v4362
    %v4603 = vpack.c.b16 %v4371, %v4363
    %v4604 = vpack.c.b16 %v4372, %v4364
    %v4605 = vpack.c.b16 %v4373, %v4365
    %v4606 = vpack.c.b16 %v4374, %v4366
    %v4607 = vpack.c.b16 %v4383, %v4375
    %v4608 = vpack.c.b16 %v4384, %v4376
    %v4609 = vpack.c.b16 %v4385, %v4377
    %v4610 = vpack.c.b16 %v4386, %v4378
    %v4611 = vpack.c.b16 %v4387, %v4379
    %v4612 = vpack.c.b16 %v4388, %v4380
    %v4613 = vpack.c.b16 %v4389, %v4381
    %v4614 = vpack.c.b16 %v4390, %v4382
    %v4615 = vpack.c.b16 %v4399, %v4391
    %v4616 = vpack.c.b16 %v4400, %v4392
    %v4617 = vpack.c.b16 %v4401, %v4393
    %v4618 = vpack.c.b16 %v4402, %v4394
    %v4619 = vpack.c.b16 %v4403, %v4395
    %v4620 = vpack.c.b16 %v4404, %v4396
    %v4621 = vpack.c.b16 %v4405, %v4397
    %v4622 = vpack.c.b16 %v4406, %v4398
    %v4623 = vpack.c.b16 %v4415, %v4407
    %v4624 = vpack.c.b16 %v4416, %v4408
    %v4625 = vpack.c.b16 %v4417, %v4409
    %v4626 = vpack.c.b16 %v4418, %v4410
    %v4627 = vpack.c.b16 %v4419, %v4411
    %v4628 = vpack.c.b16 %v4420, %v4412
    %v4629 = vpack.c.b16 %v4421, %v4413
    %v4630 = vpack.c.b16 %v4422, %v4414
    %v4631 = vpack.c.b16 %v4431, %v4423
    %v4632 = vpack.c.b16 %v4432, %v4424
    %v4633 = vpack.c.b16 %v4433, %v4425
    %v4634 = vpack.c.b16 %v4434, %v4426
    %v4635 = vpack.c.b16 %v4435, %v4427
    %v4636 = vpack.c.b16 %v4436, %v4428
    %v4637 = vpack.c.b16 %v4437, %v4429
    %v4638 = vpack.c.b16 %v4438, %v4430
    %v4639 = vpack.c.b16 %v4447, %v4439
    %v4640 = vpack.c.b16 %v4448, %v4440
    %v4641 = vpack.c.b16 %v4449, %v4441
    %v4642 = vpack.c.b16 %v4450, %v4442
    %v4643 = vpack.c.b16 %v4451, %v4443
    %v4644 = vpack.c.b16 %v4452, %v4444
    %v4645 = vpack.c.b16 %v4453, %v4445
    %v4646 = vpack.c.b16 %v4454, %v4446
    %v4647 = vpack.c.b16 %v4463, %v4455
    %v4648 = vpack.c.b16 %v4464, %v4456
    %v4649 = vpack.c.b16 %v4465, %v4457
    %v4650 = vpack.c.b16 %v4466, %v4458
    %v4651 = vpack.c.b16 %v4467, %v4459
    %v4652 = vpack.c.b16 %v4468, %v4460
    %v4653 = vpack.c.b16 %v4469, %v4461
    %v4654 = vpack.c.b16 %v4470, %v4462
    %v4655 = vpack.c.b16 %v4479, %v4471
    %v4656 = vpack.c.b16 %v4480, %v4472
    %v4657 = vpack.c.b16 %v4481, %v4473
    %v4658 = vpack.c.b16 %v4482, %v4474
    %v4659 = vpack.c.b16 %v4483, %v4475
    %v4660 = vpack.c.b16 %v4484, %v4476
    %v4661 = vpack.c.b16 %v4485, %v4477
    %v4662 = vpack.c.b16 %v4486, %v4478
    %v4663 = vpack.c.b16 %v4495, %v4487
    %v4664 = vpack.c.b16 %v4496, %v4488
    %v4665 = vpack.c.b16 %v4497, %v4489
    %v4666 = vpack.c.b16 %v4498, %v4490
    %v4667 = vpack.c.b16 %v4499, %v4491
    %v4668 = vpack.c.b16 %v4500, %v4492
    %v4669 = vpack.c.b16 %v4501, %v4493
    %v4670 = vpack.c.b16 %v4502, %v4494
    %v4671 = vpack.c.b16 %v4511, %v4503
    %v4672 = vpack.c.b16 %v4512, %v4504
    %v4673 = vpack.c.b16 %v4513, %v4505
    %v4674 = vpack.c.b16 %v4514, %v4506
    %v4675 = vpack.c.b16 %v4515, %v4507
    %v4676 = vpack.c.b16 %v4516, %v4508
    %v4677 = vpack.c.b16 %v4517, %v4509
    %v4678 = vpack.c.b16 %v4518, %v4510
    %v4679 = vpack.c.b16 %v4527, %v4519
    %v4680 = vpack.c.b16 %v4528, %v4520
    %v4681 = vpack.c.b16 %v4529, %v4521
    %v4682 = vpack.c.b16 %v4530, %v4522
    %v4683 = vpack.c.b16 %v4531, %v4523
    %v4684 = vpack.c.b16 %v4532, %v4524
    %v4685 = vpack.c.b16 %v4533, %v4525
    %v4686 = vpack.c.b16 %v4534, %v4526
    %v4687 = vpack.c.b16 %v4543, %v4535
    %v4688 = vpack.c.b16 %v4544, %v4536
    %v4689 = vpack.c.b16 %v4545, %v4537
    %v4690 = vpack.c.b16 %v4546, %v4538
    %v4691 = vpack.c.b16 %v4547, %v4539
    %v4692 = vpack.c.b16 %v4548, %v4540
    %v4693 = vpack.c.b16 %v4549, %v4541
    %v4694 = vpack.c.b16 %v4550, %v4542
    %v4695 = vpack.c.b16 %v4559, %v4551
    %v4696 = vpack.c.b16 %v4560, %v4552
    %v4697 = vpack.c.b16 %v4561, %v4553
    %v4698 = vpack.c.b16 %v4562, %v4554
    %v4699 = vpack.c.b16 %v4563, %v4555
    %v4700 = vpack.c.b16 %v4564, %v4556
    %v4701 = vpack.c.b16 %v4565, %v4557
    %v4702 = vpack.c.b16 %v4566, %v4558
    %v4703 = vpack.c.b16 %v4575, %v4567
    %v4704 = vpack.c.b16 %v4576, %v4568
    %v4705 = vpack.c.b16 %v4577, %v4569
    %v4706 = vpack.c.b16 %v4578, %v4570
    %v4707 = vpack.c.b16 %v4579, %v4571
    %v4708 = vpack.c.b16 %v4580, %v4572
    %v4709 = vpack.c.b16 %v4581, %v4573
    %v4710 = vpack.c.b16 %v4582, %v4574
    %4839 = vmatprep.subr.bf16.mxu0 %v4640
    %4840 = vmatpush1.bf16.msra.mxu0 %v4639
    %4841 = vmatprep.subr.bf16.mxu0 %v4632
    %4842 = vmatpush1.bf16.msra.mxu0 %v4631
    %4843 = vmatprep.subr.bf16.mxu0 %v4624
    %4844 = vmatpush1.bf16.msra.mxu0 %v4623
    %4845 = vmatprep.subr.bf16.mxu0 %v4616
    %4846 = vmatpush1.bf16.msra.mxu0 %v4615
    %4847 = vmatprep.subr.bf16.mxu0 %v4608
    %4848 = vmatpush1.bf16.msra.mxu0 %v4607
    %4849 = vmatprep.subr.bf16.mxu0 %v4600
    %4850 = vmatpush1.bf16.msra.mxu0 %v4599
    %4851 = vmatprep.subr.bf16.mxu0 %v4592
    %4852 = vmatpush1.bf16.msra.mxu0 %v4591
    %4853 = vmatprep.subr.bf16.mxu0 %v4584
    %4854 = vmatpush1.bf16.msra.mxu0 %v4583
    %4855 = vmatprep.subr.bf16.mxu0 %v4704
    %4856 = vmatpush2.bf16.msra.mxu0 %v4703
    %4857 = vmatprep.subr.bf16.mxu0 %v4696
    %4858 = vmatpush2.bf16.msra.mxu0 %v4695
    %4859 = vmatprep.subr.bf16.mxu0 %v4688
    %4860 = vmatpush2.bf16.msra.mxu0 %v4687
    %4861 = vmatprep.subr.bf16.mxu0 %v4680
    %4862 = vmatpush2.bf16.msra.mxu0 %v4679
    %4863 = vmatprep.subr.bf16.mxu0 %v4672
    %4864 = vmatpush2.bf16.msra.mxu0 %v4671
    %4865 = vmatprep.subr.bf16.mxu0 %v4664
    %4866 = vmatpush2.bf16.msra.mxu0 %v4663
    %4867 = vmatprep.subr.bf16.mxu0 %v4656
    %4868 = vmatpush2.bf16.msra.mxu0 %v4655
    %4869 = vmatprep.subr.bf16.mxu0 %v4648
    %4870 = vmatpush2.bf16.msra.mxu0 %v4647
    %4871 = vmatprep.mubr.bf16.mxu0 %v4070
    %4872 = vmatmul.mubr.bf16.gmra.mxu0 %v4069
    %v4873 = vpop.f32.mrf.mxu0
    %v4874 = vadd.f32 0.0, %v4873
    %v4875 = vpop.f32.mrf.mxu0
    %v4876 = vadd.f32 0.0, %v4875
    %v4877 = vpop.f32.mrf.mxu0
    %v4878 = vpop.f32.mrf.mxu0
    %4879 = vdwg.mxu0
    %4880 = vmatprep.subr.bf16.mxu0 %v4642
    %4881 = vmatpush1.bf16.msra.mxu0 %v4641
    %4882 = vmatprep.subr.bf16.mxu0 %v4634
    %4883 = vmatpush1.bf16.msra.mxu0 %v4633
    %4884 = vmatprep.subr.bf16.mxu0 %v4626
    %4885 = vmatpush1.bf16.msra.mxu0 %v4625
    %4886 = vmatprep.subr.bf16.mxu0 %v4618
    %4887 = vmatpush1.bf16.msra.mxu0 %v4617
    %4888 = vmatprep.subr.bf16.mxu0 %v4610
    %4889 = vmatpush1.bf16.msra.mxu0 %v4609
    %4890 = vmatprep.subr.bf16.mxu0 %v4602
    %4891 = vmatpush1.bf16.msra.mxu0 %v4601
    %4892 = vmatprep.subr.bf16.mxu0 %v4594
    %4893 = vmatpush1.bf16.msra.mxu0 %v4593
    %4894 = vmatprep.subr.bf16.mxu0 %v4586
    %4895 = vmatpush1.bf16.msra.mxu0 %v4585
    %4896 = vmatprep.subr.bf16.mxu0 %v4706
    %4897 = vmatpush2.bf16.msra.mxu0 %v4705
    %4898 = vmatprep.subr.bf16.mxu0 %v4698
    %4899 = vmatpush2.bf16.msra.mxu0 %v4697
    %4900 = vmatprep.subr.bf16.mxu0 %v4690
    %4901 = vmatpush2.bf16.msra.mxu0 %v4689
    %4902 = vmatprep.subr.bf16.mxu0 %v4682
    %4903 = vmatpush2.bf16.msra.mxu0 %v4681
    %4904 = vmatprep.subr.bf16.mxu0 %v4674
    %4905 = vmatpush2.bf16.msra.mxu0 %v4673
    %4906 = vmatprep.subr.bf16.mxu0 %v4666
    %4907 = vmatpush2.bf16.msra.mxu0 %v4665
    %4908 = vmatprep.subr.bf16.mxu0 %v4658
    %4909 = vmatpush2.bf16.msra.mxu0 %v4657
    %4910 = vmatprep.subr.bf16.mxu0 %v4650
    %4911 = vmatpush2.bf16.msra.mxu0 %v4649
    %4912 = vmatprep.mubr.bf16.mxu0 %v4070
    %4913 = vmatmul.mubr.bf16.gmra.mxu0 %v4069
    %v4914 = vpop.f32.mrf.mxu0
    %v4915 = vadd.f32 0.0, %v4914
    %v4916 = vpop.f32.mrf.mxu0
    %v4917 = vadd.f32 0.0, %v4916
    %v4918 = vpop.f32.mrf.mxu0
    %v4919 = vpop.f32.mrf.mxu0
    %4920 = vdwg.mxu0
    %4921 = vmatprep.subr.bf16.mxu0 %v4644
    %4922 = vmatpush1.bf16.msra.mxu0 %v4643
    %4923 = vmatprep.subr.bf16.mxu0 %v4636
    %4924 = vmatpush1.bf16.msra.mxu0 %v4635
    %4925 = vmatprep.subr.bf16.mxu0 %v4628
    %4926 = vmatpush1.bf16.msra.mxu0 %v4627
    %4927 = vmatprep.subr.bf16.mxu0 %v4620
    %4928 = vmatpush1.bf16.msra.mxu0 %v4619
    %4929 = vmatprep.subr.bf16.mxu0 %v4612
    %4930 = vmatpush1.bf16.msra.mxu0 %v4611
    %4931 = vmatprep.subr.bf16.mxu0 %v4604
    %4932 = vmatpush1.bf16.msra.mxu0 %v4603
    %4933 = vmatprep.subr.bf16.mxu0 %v4596
    %4934 = vmatpush1.bf16.msra.mxu0 %v4595
    %4935 = vmatprep.subr.bf16.mxu0 %v4588
    %4936 = vmatpush1.bf16.msra.mxu0 %v4587
    %4937 = vmatprep.subr.bf16.mxu0 %v4708
    %4938 = vmatpush2.bf16.msra.mxu0 %v4707
    %4939 = vmatprep.subr.bf16.mxu0 %v4700
    %4940 = vmatpush2.bf16.msra.mxu0 %v4699
    %4941 = vmatprep.subr.bf16.mxu0 %v4692
    %4942 = vmatpush2.bf16.msra.mxu0 %v4691
    %4943 = vmatprep.subr.bf16.mxu0 %v4684
    %4944 = vmatpush2.bf16.msra.mxu0 %v4683
    %4945 = vmatprep.subr.bf16.mxu0 %v4676
    %4946 = vmatpush2.bf16.msra.mxu0 %v4675
    %4947 = vmatprep.subr.bf16.mxu0 %v4668
    %4948 = vmatpush2.bf16.msra.mxu0 %v4667
    %4949 = vmatprep.subr.bf16.mxu0 %v4660
    %4950 = vmatpush2.bf16.msra.mxu0 %v4659
    %4951 = vmatprep.subr.bf16.mxu0 %v4652
    %4952 = vmatpush2.bf16.msra.mxu0 %v4651
    %4953 = vmatprep.mubr.bf16.mxu0 %v4070
    %4954 = vmatmul.mubr.bf16.gmra.mxu0 %v4069
    %v4955 = vpop.f32.mrf.mxu0
    %v4956 = vadd.f32 0.0, %v4955
    %v4957 = vpop.f32.mrf.mxu0
    %v4958 = vadd.f32 0.0, %v4957
    %v4959 = vpop.f32.mrf.mxu0
    %v4960 = vpop.f32.mrf.mxu0
    %4961 = vdwg.mxu0
    %4962 = vmatprep.subr.bf16.mxu0 %v4646
    %4963 = vmatpush1.bf16.msra.mxu0 %v4645
    %4964 = vmatprep.subr.bf16.mxu0 %v4638
    %4965 = vmatpush1.bf16.msra.mxu0 %v4637
    %4966 = vmatprep.subr.bf16.mxu0 %v4630
    %4967 = vmatpush1.bf16.msra.mxu0 %v4629
    %4968 = vmatprep.subr.bf16.mxu0 %v4622
    %4969 = vmatpush1.bf16.msra.mxu0 %v4621
    %4970 = vmatprep.subr.bf16.mxu0 %v4614
    %4971 = vmatpush1.bf16.msra.mxu0 %v4613
    %4972 = vmatprep.subr.bf16.mxu0 %v4606
    %4973 = vmatpush1.bf16.msra.mxu0 %v4605
    %4974 = vmatprep.subr.bf16.mxu0 %v4598
    %4975 = vmatpush1.bf16.msra.mxu0 %v4597
    %4976 = vmatprep.subr.bf16.mxu0 %v4590
    %4977 = vmatpush1.bf16.msra.mxu0 %v4589
    %4978 = vmatprep.subr.bf16.mxu0 %v4710
    %4979 = vmatpush2.bf16.msra.mxu0 %v4709
    %4980 = vmatprep.subr.bf16.mxu0 %v4702
    %4981 = vmatpush2.bf16.msra.mxu0 %v4701
    %4982 = vmatprep.subr.bf16.mxu0 %v4694
    %4983 = vmatpush2.bf16.msra.mxu0 %v4693
    %4984 = vmatprep.subr.bf16.mxu0 %v4686
    %4985 = vmatpush2.bf16.msra.mxu0 %v4685
    %4986 = vmatprep.subr.bf16.mxu0 %v4678
    %4987 = vmatpush2.bf16.msra.mxu0 %v4677
    %4988 = vmatprep.subr.bf16.mxu0 %v4670
    %4989 = vmatpush2.bf16.msra.mxu0 %v4669
    %4990 = vmatprep.subr.bf16.mxu0 %v4662
    %4991 = vmatpush2.bf16.msra.mxu0 %v4661
    %4992 = vmatprep.subr.bf16.mxu0 %v4654
    %4993 = vmatpush2.bf16.msra.mxu0 %v4653
    %4994 = vmatprep.mubr.bf16.mxu0 %v4070
    %4995 = vmatmul.mubr.bf16.gmra.mxu0 %v4069
    %v4996 = vpop.f32.mrf.mxu0
    %v4997 = vadd.f32 0.0, %v4996
    %v4998 = vpop.f32.mrf.mxu0
    %v4999 = vadd.f32 0.0, %v4998
    %v5000 = vpop.f32.mrf.mxu0
    %v5001 = vpop.f32.mrf.mxu0
    %5002 = vdwg.mxu0
    %v5003 = vadd.f32 %v4956, %v34
    %v5004 = vadd.f32 %v4958, %v38
    %v5005 = vadd.f32 %v4997, %v42
    %v5006 = vadd.f32 %v4999, %v46
    %v5007 = vxor.u32 %v5003, 2147483648
    %v5008 = vmul.f32 %v5007, 1.442695
    %v5009 = vpow.pop %v5008
    %v5010 = vadd.f32 %v5009, 1.0
    %v5011 = vrcp.pop %v5010
    %v5012 = vmul.f32 1.0, %v5011
    %v5013 = vxor.u32 %v5004, 2147483648
    %v5014 = vmul.f32 %v5013, 1.442695
    %v5015 = vpow.pop %v5014
    %v5016 = vadd.f32 %v5015, 1.0
    %v5017 = vrcp.pop %v5016
    %v5018 = vmul.f32 1.0, %v5017
    %v5019 = vtanh.pop %v5005
    %v5020 = vxor.u32 %v5006, 2147483648
    %v5021 = vmul.f32 %v5020, 1.442695
    %v5022 = vpow.pop %v5021
    %v5023 = vadd.f32 %v5022, 1.0
    %v5024 = vrcp.pop %v5023
    %v5025 = vmul.f32 1.0, %v5024
    %v5026 = vmul.f32 %v5018, %v4031
    %v5027 = vmul.f32 %v5012, %v5019
    %v5028 = vadd.f32 %v5026, %v5027
    %v5029 = vtanh.pop %v5028
    %v5030 = vmul.f32 %v5025, %v5029
    %s5031 = scalar_lea.vmem %s3, 32
    %5032 = vst [vmem:[%s5031] sm:$0xff] %v5030
    %s5033 = scalar_lea.vmem %s0, 160
    %v5034 = vld [vmem:[%s5033] sm:$0xff]
    %v5035 = vld [vmem:[%s5033 + $0x8] sm:$0xff]
    %v5036 = vld [vmem:[%s5033 + $0x10] sm:$0xff]
    %v5037 = vld [vmem:[%s5033 + $0x18] sm:$0xff]
    %v5038 = vadd.f32 %v5034, %v4874
    %v5039 = vadd.f32 %v5035, %v4876
    %v5040 = vadd.f32 %v5036, %v4915
    %v5041 = vadd.f32 %v5037, %v4917
    %v5042 = vxor.u32 %v5038, 2147483648
    %v5043 = vmul.f32 %v5042, 1.442695
    %v5044 = vpow.pop %v5043
    %v5045 = vadd.f32 %v5044, 1.0
    %v5046 = vrcp.pop %v5045
    %v5047 = vmul.f32 1.0, %v5046
    %v5048 = vxor.u32 %v5039, 2147483648
    %v5049 = vmul.f32 %v5048, 1.442695
    %v5050 = vpow.pop %v5049
    %v5051 = vadd.f32 %v5050, 1.0
    %v5052 = vrcp.pop %v5051
    %v5053 = vmul.f32 1.0, %v5052
    %v5054 = vtanh.pop %v5040
    %v5055 = vxor.u32 %v5041, 2147483648
    %v5056 = vmul.f32 %v5055, 1.442695
    %v5057 = vpow.pop %v5056
    %v5058 = vadd.f32 %v5057, 1.0
    %v5059 = vrcp.pop %v5058
    %v5060 = vmul.f32 1.0, %v5059
    %v5061 = vmul.f32 %v5053, %v4066
    %v5062 = vmul.f32 %v5047, %v5054
    %v5063 = vadd.f32 %v5061, %v5062
    %v5064 = vtanh.pop %v5063
    %v5065 = vmul.f32 %v5060, %v5064
    %v5066 = vpack.c.bf16 %v5065, %v5065
    %v5067 = vpack.c.bf16 %v5030, %v5030
    %v5068 = vld [vmem:[#allocation2] sm:$0xff]
    %v5069 = vld [vmem:[#allocation2 + $0x8] sm:$0xff]
    %v5070 = vld [vmem:[#allocation2 + $0x10] sm:$0xff]
    %v5071 = vld [vmem:[#allocation2 + $0x18] sm:$0xff]
    %v5072 = vld [vmem:[#allocation2 + $0x20] sm:$0xff]
    %v5073 = vld [vmem:[#allocation2 + $0x28] sm:$0xff]
    %v5074 = vld [vmem:[#allocation2 + $0x30] sm:$0xff]
    %v5075 = vld [vmem:[#allocation2 + $0x38] sm:$0xff]
    %v5076 = vld [vmem:[#allocation2 + $0x40] sm:$0xff]
    %v5077 = vld [vmem:[#allocation2 + $0x48] sm:$0xff]
    %v5078 = vld [vmem:[#allocation2 + $0x50] sm:$0xff]
    %v5079 = vld [vmem:[#allocation2 + $0x58] sm:$0xff]
    %v5080 = vld [vmem:[#allocation2 + $0x60] sm:$0xff]
    %v5081 = vld [vmem:[#allocation2 + $0x68] sm:$0xff]
    %v5082 = vld [vmem:[#allocation2 + $0x70] sm:$0xff]
    %v5083 = vld [vmem:[#allocation2 + $0x78] sm:$0xff]
    %v5084 = vld [vmem:[#allocation2 + $0x80] sm:$0xff]
    %v5085 = vld [vmem:[#allocation2 + $0x88] sm:$0xff]
    %v5086 = vld [vmem:[#allocation2 + $0x90] sm:$0xff]
    %v5087 = vld [vmem:[#allocation2 + $0x98] sm:$0xff]
    %v5088 = vld [vmem:[#allocation2 + $0xa0] sm:$0xff]
    %v5089 = vld [vmem:[#allocation2 + $0xa8] sm:$0xff]
    %v5090 = vld [vmem:[#allocation2 + $0xb0] sm:$0xff]
    %v5091 = vld [vmem:[#allocation2 + $0xb8] sm:$0xff]
    %v5092 = vld [vmem:[#allocation2 + $0xc0] sm:$0xff]
    %v5093 = vld [vmem:[#allocation2 + $0xc8] sm:$0xff]
    %v5094 = vld [vmem:[#allocation2 + $0xd0] sm:$0xff]
    %v5095 = vld [vmem:[#allocation2 + $0xd8] sm:$0xff]
    %v5096 = vld [vmem:[#allocation2 + $0xe0] sm:$0xff]
    %v5097 = vld [vmem:[#allocation2 + $0xe8] sm:$0xff]
    %v5098 = vld [vmem:[#allocation2 + $0xf0] sm:$0xff]
    %v5099 = vld [vmem:[#allocation2 + $0xf8] sm:$0xff]
    %v5100 = vld [vmem:[#allocation2 + $0x100] sm:$0xff]
    %v5101 = vld [vmem:[#allocation2 + $0x108] sm:$0xff]
    %v5102 = vld [vmem:[#allocation2 + $0x110] sm:$0xff]
    %v5103 = vld [vmem:[#allocation2 + $0x118] sm:$0xff]
    %v5104 = vld [vmem:[#allocation2 + $0x120] sm:$0xff]
    %v5105 = vld [vmem:[#allocation2 + $0x128] sm:$0xff]
    %v5106 = vld [vmem:[#allocation2 + $0x130] sm:$0xff]
    %v5107 = vld [vmem:[#allocation2 + $0x138] sm:$0xff]
    %v5108 = vld [vmem:[#allocation2 + $0x140] sm:$0xff]
    %v5109 = vld [vmem:[#allocation2 + $0x148] sm:$0xff]
    %v5110 = vld [vmem:[#allocation2 + $0x150] sm:$0xff]
    %v5111 = vld [vmem:[#allocation2 + $0x158] sm:$0xff]
    %v5112 = vld [vmem:[#allocation2 + $0x160] sm:$0xff]
    %v5113 = vld [vmem:[#allocation2 + $0x168] sm:$0xff]
    %v5114 = vld [vmem:[#allocation2 + $0x170] sm:$0xff]
    %v5115 = vld [vmem:[#allocation2 + $0x178] sm:$0xff]
    %v5116 = vld [vmem:[#allocation2 + $0x180] sm:$0xff]
    %v5117 = vld [vmem:[#allocation2 + $0x188] sm:$0xff]
    %v5118 = vld [vmem:[#allocation2 + $0x190] sm:$0xff]
    %v5119 = vld [vmem:[#allocation2 + $0x198] sm:$0xff]
    %v5120 = vld [vmem:[#allocation2 + $0x1a0] sm:$0xff]
    %v5121 = vld [vmem:[#allocation2 + $0x1a8] sm:$0xff]
    %v5122 = vld [vmem:[#allocation2 + $0x1b0] sm:$0xff]
    %v5123 = vld [vmem:[#allocation2 + $0x1b8] sm:$0xff]
    %v5124 = vld [vmem:[#allocation2 + $0x1c0] sm:$0xff]
    %v5125 = vld [vmem:[#allocation2 + $0x1c8] sm:$0xff]
    %v5126 = vld [vmem:[#allocation2 + $0x1d0] sm:$0xff]
    %v5127 = vld [vmem:[#allocation2 + $0x1d8] sm:$0xff]
    %v5128 = vld [vmem:[#allocation2 + $0x1e0] sm:$0xff]
    %v5129 = vld [vmem:[#allocation2 + $0x1e8] sm:$0xff]
    %v5130 = vld [vmem:[#allocation2 + $0x1f0] sm:$0xff]
    %v5131 = vld [vmem:[#allocation2 + $0x1f8] sm:$0xff]
    %v5132 = vld [vmem:[#allocation2 + $0x200] sm:$0xff]
    %v5133 = vld [vmem:[#allocation2 + $0x208] sm:$0xff]
    %v5134 = vld [vmem:[#allocation2 + $0x210] sm:$0xff]
    %v5135 = vld [vmem:[#allocation2 + $0x218] sm:$0xff]
    %v5136 = vld [vmem:[#allocation2 + $0x220] sm:$0xff]
    %v5137 = vld [vmem:[#allocation2 + $0x228] sm:$0xff]
    %v5138 = vld [vmem:[#allocation2 + $0x230] sm:$0xff]
    %v5139 = vld [vmem:[#allocation2 + $0x238] sm:$0xff]
    %v5140 = vld [vmem:[#allocation2 + $0x240] sm:$0xff]
    %v5141 = vld [vmem:[#allocation2 + $0x248] sm:$0xff]
    %v5142 = vld [vmem:[#allocation2 + $0x250] sm:$0xff]
    %v5143 = vld [vmem:[#allocation2 + $0x258] sm:$0xff]
    %v5144 = vld [vmem:[#allocation2 + $0x260] sm:$0xff]
    %v5145 = vld [vmem:[#allocation2 + $0x268] sm:$0xff]
    %v5146 = vld [vmem:[#allocation2 + $0x270] sm:$0xff]
    %v5147 = vld [vmem:[#allocation2 + $0x278] sm:$0xff]
    %v5148 = vld [vmem:[#allocation2 + $0x280] sm:$0xff]
    %v5149 = vld [vmem:[#allocation2 + $0x288] sm:$0xff]
    %v5150 = vld [vmem:[#allocation2 + $0x290] sm:$0xff]
    %v5151 = vld [vmem:[#allocation2 + $0x298] sm:$0xff]
    %v5152 = vld [vmem:[#allocation2 + $0x2a0] sm:$0xff]
    %v5153 = vld [vmem:[#allocation2 + $0x2a8] sm:$0xff]
    %v5154 = vld [vmem:[#allocation2 + $0x2b0] sm:$0xff]
    %v5155 = vld [vmem:[#allocation2 + $0x2b8] sm:$0xff]
    %v5156 = vld [vmem:[#allocation2 + $0x2c0] sm:$0xff]
    %v5157 = vld [vmem:[#allocation2 + $0x2c8] sm:$0xff]
    %v5158 = vld [vmem:[#allocation2 + $0x2d0] sm:$0xff]
    %v5159 = vld [vmem:[#allocation2 + $0x2d8] sm:$0xff]
    %v5160 = vld [vmem:[#allocation2 + $0x2e0] sm:$0xff]
    %v5161 = vld [vmem:[#allocation2 + $0x2e8] sm:$0xff]
    %v5162 = vld [vmem:[#allocation2 + $0x2f0] sm:$0xff]
    %v5163 = vld [vmem:[#allocation2 + $0x2f8] sm:$0xff]
    %v5164 = vld [vmem:[#allocation2 + $0x300] sm:$0xff]
    %v5165 = vld [vmem:[#allocation2 + $0x308] sm:$0xff]
    %v5166 = vld [vmem:[#allocation2 + $0x310] sm:$0xff]
    %v5167 = vld [vmem:[#allocation2 + $0x318] sm:$0xff]
    %v5168 = vld [vmem:[#allocation2 + $0x320] sm:$0xff]
    %v5169 = vld [vmem:[#allocation2 + $0x328] sm:$0xff]
    %v5170 = vld [vmem:[#allocation2 + $0x330] sm:$0xff]
    %v5171 = vld [vmem:[#allocation2 + $0x338] sm:$0xff]
    %v5172 = vld [vmem:[#allocation2 + $0x340] sm:$0xff]
    %v5173 = vld [vmem:[#allocation2 + $0x348] sm:$0xff]
    %v5174 = vld [vmem:[#allocation2 + $0x350] sm:$0xff]
    %v5175 = vld [vmem:[#allocation2 + $0x358] sm:$0xff]
    %v5176 = vld [vmem:[#allocation2 + $0x360] sm:$0xff]
    %v5177 = vld [vmem:[#allocation2 + $0x368] sm:$0xff]
    %v5178 = vld [vmem:[#allocation2 + $0x370] sm:$0xff]
    %v5179 = vld [vmem:[#allocation2 + $0x378] sm:$0xff]
    %v5180 = vld [vmem:[#allocation2 + $0x380] sm:$0xff]
    %v5181 = vld [vmem:[#allocation2 + $0x388] sm:$0xff]
    %v5182 = vld [vmem:[#allocation2 + $0x390] sm:$0xff]
    %v5183 = vld [vmem:[#allocation2 + $0x398] sm:$0xff]
    %v5184 = vld [vmem:[#allocation2 + $0x3a0] sm:$0xff]
    %v5185 = vld [vmem:[#allocation2 + $0x3a8] sm:$0xff]
    %v5186 = vld [vmem:[#allocation2 + $0x3b0] sm:$0xff]
    %v5187 = vld [vmem:[#allocation2 + $0x3b8] sm:$0xff]
    %v5188 = vld [vmem:[#allocation2 + $0x3c0] sm:$0xff]
    %v5189 = vld [vmem:[#allocation2 + $0x3c8] sm:$0xff]
    %v5190 = vld [vmem:[#allocation2 + $0x3d0] sm:$0xff]
    %v5191 = vld [vmem:[#allocation2 + $0x3d8] sm:$0xff]
    %v5192 = vld [vmem:[#allocation2 + $0x3e0] sm:$0xff]
    %v5193 = vld [vmem:[#allocation2 + $0x3e8] sm:$0xff]
    %v5194 = vld [vmem:[#allocation2 + $0x3f0] sm:$0xff]
    %v5195 = vld [vmem:[#allocation2 + $0x3f8] sm:$0xff]
    %v5324 = vunpack.c.l.b16 %v5068
    %v5325 = vunpack.c.h.b16 %v5068
    %v5326 = vunpack.c.l.b16 %v5069
    %v5327 = vunpack.c.h.b16 %v5069
    %v5328 = vunpack.c.l.b16 %v5070
    %v5329 = vunpack.c.h.b16 %v5070
    %v5330 = vunpack.c.l.b16 %v5071
    %v5331 = vunpack.c.h.b16 %v5071
    %v5332 = vunpack.c.l.b16 %v5072
    %v5333 = vunpack.c.h.b16 %v5072
    %v5334 = vunpack.c.l.b16 %v5073
    %v5335 = vunpack.c.h.b16 %v5073
    %v5336 = vunpack.c.l.b16 %v5074
    %v5337 = vunpack.c.h.b16 %v5074
    %v5338 = vunpack.c.l.b16 %v5075
    %v5339 = vunpack.c.h.b16 %v5075
    %v5340 = vunpack.c.l.b16 %v5076
    %v5341 = vunpack.c.h.b16 %v5076
    %v5342 = vunpack.c.l.b16 %v5077
    %v5343 = vunpack.c.h.b16 %v5077
    %v5344 = vunpack.c.l.b16 %v5078
    %v5345 = vunpack.c.h.b16 %v5078
    %v5346 = vunpack.c.l.b16 %v5079
    %v5347 = vunpack.c.h.b16 %v5079
    %v5348 = vunpack.c.l.b16 %v5080
    %v5349 = vunpack.c.h.b16 %v5080
    %v5350 = vunpack.c.l.b16 %v5081
    %v5351 = vunpack.c.h.b16 %v5081
    %v5352 = vunpack.c.l.b16 %v5082
    %v5353 = vunpack.c.h.b16 %v5082
    %v5354 = vunpack.c.l.b16 %v5083
    %v5355 = vunpack.c.h.b16 %v5083
    %v5356 = vunpack.c.l.b16 %v5084
    %v5357 = vunpack.c.h.b16 %v5084
    %v5358 = vunpack.c.l.b16 %v5085
    %v5359 = vunpack.c.h.b16 %v5085
    %v5360 = vunpack.c.l.b16 %v5086
    %v5361 = vunpack.c.h.b16 %v5086
    %v5362 = vunpack.c.l.b16 %v5087
    %v5363 = vunpack.c.h.b16 %v5087
    %v5364 = vunpack.c.l.b16 %v5088
    %v5365 = vunpack.c.h.b16 %v5088
    %v5366 = vunpack.c.l.b16 %v5089
    %v5367 = vunpack.c.h.b16 %v5089
    %v5368 = vunpack.c.l.b16 %v5090
    %v5369 = vunpack.c.h.b16 %v5090
    %v5370 = vunpack.c.l.b16 %v5091
    %v5371 = vunpack.c.h.b16 %v5091
    %v5372 = vunpack.c.l.b16 %v5092
    %v5373 = vunpack.c.h.b16 %v5092
    %v5374 = vunpack.c.l.b16 %v5093
    %v5375 = vunpack.c.h.b16 %v5093
    %v5376 = vunpack.c.l.b16 %v5094
    %v5377 = vunpack.c.h.b16 %v5094
    %v5378 = vunpack.c.l.b16 %v5095
    %v5379 = vunpack.c.h.b16 %v5095
    %v5380 = vunpack.c.l.b16 %v5096
    %v5381 = vunpack.c.h.b16 %v5096
    %v5382 = vunpack.c.l.b16 %v5097
    %v5383 = vunpack.c.h.b16 %v5097
    %v5384 = vunpack.c.l.b16 %v5098
    %v5385 = vunpack.c.h.b16 %v5098
    %v5386 = vunpack.c.l.b16 %v5099
    %v5387 = vunpack.c.h.b16 %v5099
    %v5388 = vunpack.c.l.b16 %v5100
    %v5389 = vunpack.c.h.b16 %v5100
    %v5390 = vunpack.c.l.b16 %v5101
    %v5391 = vunpack.c.h.b16 %v5101
    %v5392 = vunpack.c.l.b16 %v5102
    %v5393 = vunpack.c.h.b16 %v5102
    %v5394 = vunpack.c.l.b16 %v5103
    %v5395 = vunpack.c.h.b16 %v5103
    %v5396 = vunpack.c.l.b16 %v5104
    %v5397 = vunpack.c.h.b16 %v5104
    %v5398 = vunpack.c.l.b16 %v5105
    %v5399 = vunpack.c.h.b16 %v5105
    %v5400 = vunpack.c.l.b16 %v5106
    %v5401 = vunpack.c.h.b16 %v5106
    %v5402 = vunpack.c.l.b16 %v5107
    %v5403 = vunpack.c.h.b16 %v5107
    %v5404 = vunpack.c.l.b16 %v5108
    %v5405 = vunpack.c.h.b16 %v5108
    %v5406 = vunpack.c.l.b16 %v5109
    %v5407 = vunpack.c.h.b16 %v5109
    %v5408 = vunpack.c.l.b16 %v5110
    %v5409 = vunpack.c.h.b16 %v5110
    %v5410 = vunpack.c.l.b16 %v5111
    %v5411 = vunpack.c.h.b16 %v5111
    %v5412 = vunpack.c.l.b16 %v5112
    %v5413 = vunpack.c.h.b16 %v5112
    %v5414 = vunpack.c.l.b16 %v5113
    %v5415 = vunpack.c.h.b16 %v5113
    %v5416 = vunpack.c.l.b16 %v5114
    %v5417 = vunpack.c.h.b16 %v5114
    %v5418 = vunpack.c.l.b16 %v5115
    %v5419 = vunpack.c.h.b16 %v5115
    %v5420 = vunpack.c.l.b16 %v5116
    %v5421 = vunpack.c.h.b16 %v5116
    %v5422 = vunpack.c.l.b16 %v5117
    %v5423 = vunpack.c.h.b16 %v5117
    %v5424 = vunpack.c.l.b16 %v5118
    %v5425 = vunpack.c.h.b16 %v5118
    %v5426 = vunpack.c.l.b16 %v5119
    %v5427 = vunpack.c.h.b16 %v5119
    %v5428 = vunpack.c.l.b16 %v5120
    %v5429 = vunpack.c.h.b16 %v5120
    %v5430 = vunpack.c.l.b16 %v5121
    %v5431 = vunpack.c.h.b16 %v5121
    %v5432 = vunpack.c.l.b16 %v5122
    %v5433 = vunpack.c.h.b16 %v5122
    %v5434 = vunpack.c.l.b16 %v5123
    %v5435 = vunpack.c.h.b16 %v5123
    %v5436 = vunpack.c.l.b16 %v5124
    %v5437 = vunpack.c.h.b16 %v5124
    %v5438 = vunpack.c.l.b16 %v5125
    %v5439 = vunpack.c.h.b16 %v5125
    %v5440 = vunpack.c.l.b16 %v5126
    %v5441 = vunpack.c.h.b16 %v5126
    %v5442 = vunpack.c.l.b16 %v5127
    %v5443 = vunpack.c.h.b16 %v5127
    %v5444 = vunpack.c.l.b16 %v5128
    %v5445 = vunpack.c.h.b16 %v5128
    %v5446 = vunpack.c.l.b16 %v5129
    %v5447 = vunpack.c.h.b16 %v5129
    %v5448 = vunpack.c.l.b16 %v5130
    %v5449 = vunpack.c.h.b16 %v5130
    %v5450 = vunpack.c.l.b16 %v5131
    %v5451 = vunpack.c.h.b16 %v5131
    %v5452 = vunpack.c.l.b16 %v5132
    %v5453 = vunpack.c.h.b16 %v5132
    %v5454 = vunpack.c.l.b16 %v5133
    %v5455 = vunpack.c.h.b16 %v5133
    %v5456 = vunpack.c.l.b16 %v5134
    %v5457 = vunpack.c.h.b16 %v5134
    %v5458 = vunpack.c.l.b16 %v5135
    %v5459 = vunpack.c.h.b16 %v5135
    %v5460 = vunpack.c.l.b16 %v5136
    %v5461 = vunpack.c.h.b16 %v5136
    %v5462 = vunpack.c.l.b16 %v5137
    %v5463 = vunpack.c.h.b16 %v5137
    %v5464 = vunpack.c.l.b16 %v5138
    %v5465 = vunpack.c.h.b16 %v5138
    %v5466 = vunpack.c.l.b16 %v5139
    %v5467 = vunpack.c.h.b16 %v5139
    %v5468 = vunpack.c.l.b16 %v5140
    %v5469 = vunpack.c.h.b16 %v5140
    %v5470 = vunpack.c.l.b16 %v5141
    %v5471 = vunpack.c.h.b16 %v5141
    %v5472 = vunpack.c.l.b16 %v5142
    %v5473 = vunpack.c.h.b16 %v5142
    %v5474 = vunpack.c.l.b16 %v5143
    %v5475 = vunpack.c.h.b16 %v5143
    %v5476 = vunpack.c.l.b16 %v5144
    %v5477 = vunpack.c.h.b16 %v5144
    %v5478 = vunpack.c.l.b16 %v5145
    %v5479 = vunpack.c.h.b16 %v5145
    %v5480 = vunpack.c.l.b16 %v5146
    %v5481 = vunpack.c.h.b16 %v5146
    %v5482 = vunpack.c.l.b16 %v5147
    %v5483 = vunpack.c.h.b16 %v5147
    %v5484 = vunpack.c.l.b16 %v5148
    %v5485 = vunpack.c.h.b16 %v5148
    %v5486 = vunpack.c.l.b16 %v5149
    %v5487 = vunpack.c.h.b16 %v5149
    %v5488 = vunpack.c.l.b16 %v5150
    %v5489 = vunpack.c.h.b16 %v5150
    %v5490 = vunpack.c.l.b16 %v5151
    %v5491 = vunpack.c.h.b16 %v5151
    %v5492 = vunpack.c.l.b16 %v5152
    %v5493 = vunpack.c.h.b16 %v5152
    %v5494 = vunpack.c.l.b16 %v5153
    %v5495 = vunpack.c.h.b16 %v5153
    %v5496 = vunpack.c.l.b16 %v5154
    %v5497 = vunpack.c.h.b16 %v5154
    %v5498 = vunpack.c.l.b16 %v5155
    %v5499 = vunpack.c.h.b16 %v5155
    %v5500 = vunpack.c.l.b16 %v5156
    %v5501 = vunpack.c.h.b16 %v5156
    %v5502 = vunpack.c.l.b16 %v5157
    %v5503 = vunpack.c.h.b16 %v5157
    %v5504 = vunpack.c.l.b16 %v5158
    %v5505 = vunpack.c.h.b16 %v5158
    %v5506 = vunpack.c.l.b16 %v5159
    %v5507 = vunpack.c.h.b16 %v5159
    %v5508 = vunpack.c.l.b16 %v5160
    %v5509 = vunpack.c.h.b16 %v5160
    %v5510 = vunpack.c.l.b16 %v5161
    %v5511 = vunpack.c.h.b16 %v5161
    %v5512 = vunpack.c.l.b16 %v5162
    %v5513 = vunpack.c.h.b16 %v5162
    %v5514 = vunpack.c.l.b16 %v5163
    %v5515 = vunpack.c.h.b16 %v5163
    %v5516 = vunpack.c.l.b16 %v5164
    %v5517 = vunpack.c.h.b16 %v5164
    %v5518 = vunpack.c.l.b16 %v5165
    %v5519 = vunpack.c.h.b16 %v5165
    %v5520 = vunpack.c.l.b16 %v5166
    %v5521 = vunpack.c.h.b16 %v5166
    %v5522 = vunpack.c.l.b16 %v5167
    %v5523 = vunpack.c.h.b16 %v5167
    %v5524 = vunpack.c.l.b16 %v5168
    %v5525 = vunpack.c.h.b16 %v5168
    %v5526 = vunpack.c.l.b16 %v5169
    %v5527 = vunpack.c.h.b16 %v5169
    %v5528 = vunpack.c.l.b16 %v5170
    %v5529 = vunpack.c.h.b16 %v5170
    %v5530 = vunpack.c.l.b16 %v5171
    %v5531 = vunpack.c.h.b16 %v5171
    %v5532 = vunpack.c.l.b16 %v5172
    %v5533 = vunpack.c.h.b16 %v5172
    %v5534 = vunpack.c.l.b16 %v5173
    %v5535 = vunpack.c.h.b16 %v5173
    %v5536 = vunpack.c.l.b16 %v5174
    %v5537 = vunpack.c.h.b16 %v5174
    %v5538 = vunpack.c.l.b16 %v5175
    %v5539 = vunpack.c.h.b16 %v5175
    %v5540 = vunpack.c.l.b16 %v5176
    %v5541 = vunpack.c.h.b16 %v5176
    %v5542 = vunpack.c.l.b16 %v5177
    %v5543 = vunpack.c.h.b16 %v5177
    %v5544 = vunpack.c.l.b16 %v5178
    %v5545 = vunpack.c.h.b16 %v5178
    %v5546 = vunpack.c.l.b16 %v5179
    %v5547 = vunpack.c.h.b16 %v5179
    %v5548 = vunpack.c.l.b16 %v5180
    %v5549 = vunpack.c.h.b16 %v5180
    %v5550 = vunpack.c.l.b16 %v5181
    %v5551 = vunpack.c.h.b16 %v5181
    %v5552 = vunpack.c.l.b16 %v5182
    %v5553 = vunpack.c.h.b16 %v5182
    %v5554 = vunpack.c.l.b16 %v5183
    %v5555 = vunpack.c.h.b16 %v5183
    %v5556 = vunpack.c.l.b16 %v5184
    %v5557 = vunpack.c.h.b16 %v5184
    %v5558 = vunpack.c.l.b16 %v5185
    %v5559 = vunpack.c.h.b16 %v5185
    %v5560 = vunpack.c.l.b16 %v5186
    %v5561 = vunpack.c.h.b16 %v5186
    %v5562 = vunpack.c.l.b16 %v5187
    %v5563 = vunpack.c.h.b16 %v5187
    %v5564 = vunpack.c.l.b16 %v5188
    %v5565 = vunpack.c.h.b16 %v5188
    %v5566 = vunpack.c.l.b16 %v5189
    %v5567 = vunpack.c.h.b16 %v5189
    %v5568 = vunpack.c.l.b16 %v5190
    %v5569 = vunpack.c.h.b16 %v5190
    %v5570 = vunpack.c.l.b16 %v5191
    %v5571 = vunpack.c.h.b16 %v5191
    %v5572 = vunpack.c.l.b16 %v5192
    %v5573 = vunpack.c.h.b16 %v5192
    %v5574 = vunpack.c.l.b16 %v5193
    %v5575 = vunpack.c.h.b16 %v5193
    %v5576 = vunpack.c.l.b16 %v5194
    %v5577 = vunpack.c.h.b16 %v5194
    %v5578 = vunpack.c.l.b16 %v5195
    %v5579 = vunpack.c.h.b16 %v5195
    %v5580 = vpack.c.b16 %v5332, %v5324
    %v5581 = vpack.c.b16 %v5333, %v5325
    %v5582 = vpack.c.b16 %v5334, %v5326
    %v5583 = vpack.c.b16 %v5335, %v5327
    %v5584 = vpack.c.b16 %v5336, %v5328
    %v5585 = vpack.c.b16 %v5337, %v5329
    %v5586 = vpack.c.b16 %v5338, %v5330
    %v5587 = vpack.c.b16 %v5339, %v5331
    %v5588 = vpack.c.b16 %v5348, %v5340
    %v5589 = vpack.c.b16 %v5349, %v5341
    %v5590 = vpack.c.b16 %v5350, %v5342
    %v5591 = vpack.c.b16 %v5351, %v5343
    %v5592 = vpack.c.b16 %v5352, %v5344
    %v5593 = vpack.c.b16 %v5353, %v5345
    %v5594 = vpack.c.b16 %v5354, %v5346
    %v5595 = vpack.c.b16 %v5355, %v5347
    %v5596 = vpack.c.b16 %v5364, %v5356
    %v5597 = vpack.c.b16 %v5365, %v5357
    %v5598 = vpack.c.b16 %v5366, %v5358
    %v5599 = vpack.c.b16 %v5367, %v5359
    %v5600 = vpack.c.b16 %v5368, %v5360
    %v5601 = vpack.c.b16 %v5369, %v5361
    %v5602 = vpack.c.b16 %v5370, %v5362
    %v5603 = vpack.c.b16 %v5371, %v5363
    %v5604 = vpack.c.b16 %v5380, %v5372
    %v5605 = vpack.c.b16 %v5381, %v5373
    %v5606 = vpack.c.b16 %v5382, %v5374
    %v5607 = vpack.c.b16 %v5383, %v5375
    %v5608 = vpack.c.b16 %v5384, %v5376
    %v5609 = vpack.c.b16 %v5385, %v5377
    %v5610 = vpack.c.b16 %v5386, %v5378
    %v5611 = vpack.c.b16 %v5387, %v5379
    %v5612 = vpack.c.b16 %v5396, %v5388
    %v5613 = vpack.c.b16 %v5397, %v5389
    %v5614 = vpack.c.b16 %v5398, %v5390
    %v5615 = vpack.c.b16 %v5399, %v5391
    %v5616 = vpack.c.b16 %v5400, %v5392
    %v5617 = vpack.c.b16 %v5401, %v5393
    %v5618 = vpack.c.b16 %v5402, %v5394
    %v5619 = vpack.c.b16 %v5403, %v5395
    %v5620 = vpack.c.b16 %v5412, %v5404
    %v5621 = vpack.c.b16 %v5413, %v5405
    %v5622 = vpack.c.b16 %v5414, %v5406
    %v5623 = vpack.c.b16 %v5415, %v5407
    %v5624 = vpack.c.b16 %v5416, %v5408
    %v5625 = vpack.c.b16 %v5417, %v5409
    %v5626 = vpack.c.b16 %v5418, %v5410
    %v5627 = vpack.c.b16 %v5419, %v5411
    %v5628 = vpack.c.b16 %v5428, %v5420
    %v5629 = vpack.c.b16 %v5429, %v5421
    %v5630 = vpack.c.b16 %v5430, %v5422
    %v5631 = vpack.c.b16 %v5431, %v5423
    %v5632 = vpack.c.b16 %v5432, %v5424
    %v5633 = vpack.c.b16 %v5433, %v5425
    %v5634 = vpack.c.b16 %v5434, %v5426
    %v5635 = vpack.c.b16 %v5435, %v5427
    %v5636 = vpack.c.b16 %v5444, %v5436
    %v5637 = vpack.c.b16 %v5445, %v5437
    %v5638 = vpack.c.b16 %v5446, %v5438
    %v5639 = vpack.c.b16 %v5447, %v5439
    %v5640 = vpack.c.b16 %v5448, %v5440
    %v5641 = vpack.c.b16 %v5449, %v5441
    %v5642 = vpack.c.b16 %v5450, %v5442
    %v5643 = vpack.c.b16 %v5451, %v5443
    %v5644 = vpack.c.b16 %v5460, %v5452
    %v5645 = vpack.c.b16 %v5461, %v5453
    %v5646 = vpack.c.b16 %v5462, %v5454
    %v5647 = vpack.c.b16 %v5463, %v5455
    %v5648 = vpack.c.b16 %v5464, %v5456
    %v5649 = vpack.c.b16 %v5465, %v5457
    %v5650 = vpack.c.b16 %v5466, %v5458
    %v5651 = vpack.c.b16 %v5467, %v5459
    %v5652 = vpack.c.b16 %v5476, %v5468
    %v5653 = vpack.c.b16 %v5477, %v5469
    %v5654 = vpack.c.b16 %v5478, %v5470
    %v5655 = vpack.c.b16 %v5479, %v5471
    %v5656 = vpack.c.b16 %v5480, %v5472
    %v5657 = vpack.c.b16 %v5481, %v5473
    %v5658 = vpack.c.b16 %v5482, %v5474
    %v5659 = vpack.c.b16 %v5483, %v5475
    %v5660 = vpack.c.b16 %v5492, %v5484
    %v5661 = vpack.c.b16 %v5493, %v5485
    %v5662 = vpack.c.b16 %v5494, %v5486
    %v5663 = vpack.c.b16 %v5495, %v5487
    %v5664 = vpack.c.b16 %v5496, %v5488
    %v5665 = vpack.c.b16 %v5497, %v5489
    %v5666 = vpack.c.b16 %v5498, %v5490
    %v5667 = vpack.c.b16 %v5499, %v5491
    %v5668 = vpack.c.b16 %v5508, %v5500
    %v5669 = vpack.c.b16 %v5509, %v5501
    %v5670 = vpack.c.b16 %v5510, %v5502
    %v5671 = vpack.c.b16 %v5511, %v5503
    %v5672 = vpack.c.b16 %v5512, %v5504
    %v5673 = vpack.c.b16 %v5513, %v5505
    %v5674 = vpack.c.b16 %v5514, %v5506
    %v5675 = vpack.c.b16 %v5515, %v5507
    %v5676 = vpack.c.b16 %v5524, %v5516
    %v5677 = vpack.c.b16 %v5525, %v5517
    %v5678 = vpack.c.b16 %v5526, %v5518
    %v5679 = vpack.c.b16 %v5527, %v5519
    %v5680 = vpack.c.b16 %v5528, %v5520
    %v5681 = vpack.c.b16 %v5529, %v5521
    %v5682 = vpack.c.b16 %v5530, %v5522
    %v5683 = vpack.c.b16 %v5531, %v5523
    %v5684 = vpack.c.b16 %v5540, %v5532
    %v5685 = vpack.c.b16 %v5541, %v5533
    %v5686 = vpack.c.b16 %v5542, %v5534
    %v5687 = vpack.c.b16 %v5543, %v5535
    %v5688 = vpack.c.b16 %v5544, %v5536
    %v5689 = vpack.c.b16 %v5545, %v5537
    %v5690 = vpack.c.b16 %v5546, %v5538
    %v5691 = vpack.c.b16 %v5547, %v5539
    %v5692 = vpack.c.b16 %v5556, %v5548
    %v5693 = vpack.c.b16 %v5557, %v5549
    %v5694 = vpack.c.b16 %v5558, %v5550
    %v5695 = vpack.c.b16 %v5559, %v5551
    %v5696 = vpack.c.b16 %v5560, %v5552
    %v5697 = vpack.c.b16 %v5561, %v5553
    %v5698 = vpack.c.b16 %v5562, %v5554
    %v5699 = vpack.c.b16 %v5563, %v5555
    %v5700 = vpack.c.b16 %v5572, %v5564
    %v5701 = vpack.c.b16 %v5573, %v5565
    %v5702 = vpack.c.b16 %v5574, %v5566
    %v5703 = vpack.c.b16 %v5575, %v5567
    %v5704 = vpack.c.b16 %v5576, %v5568
    %v5705 = vpack.c.b16 %v5577, %v5569
    %v5706 = vpack.c.b16 %v5578, %v5570
    %v5707 = vpack.c.b16 %v5579, %v5571
    %5836 = vmatprep.subr.bf16.mxu0 %v5637
    %5837 = vmatpush1.bf16.msra.mxu0 %v5636
    %5838 = vmatprep.subr.bf16.mxu0 %v5629
    %5839 = vmatpush1.bf16.msra.mxu0 %v5628
    %5840 = vmatprep.subr.bf16.mxu0 %v5621
    %5841 = vmatpush1.bf16.msra.mxu0 %v5620
    %5842 = vmatprep.subr.bf16.mxu0 %v5613
    %5843 = vmatpush1.bf16.msra.mxu0 %v5612
    %5844 = vmatprep.subr.bf16.mxu0 %v5605
    %5845 = vmatpush1.bf16.msra.mxu0 %v5604
    %5846 = vmatprep.subr.bf16.mxu0 %v5597
    %5847 = vmatpush1.bf16.msra.mxu0 %v5596
    %5848 = vmatprep.subr.bf16.mxu0 %v5589
    %5849 = vmatpush1.bf16.msra.mxu0 %v5588
    %5850 = vmatprep.subr.bf16.mxu0 %v5581
    %5851 = vmatpush1.bf16.msra.mxu0 %v5580
    %5852 = vmatprep.subr.bf16.mxu0 %v5701
    %5853 = vmatpush2.bf16.msra.mxu0 %v5700
    %5854 = vmatprep.subr.bf16.mxu0 %v5693
    %5855 = vmatpush2.bf16.msra.mxu0 %v5692
    %5856 = vmatprep.subr.bf16.mxu0 %v5685
    %5857 = vmatpush2.bf16.msra.mxu0 %v5684
    %5858 = vmatprep.subr.bf16.mxu0 %v5677
    %5859 = vmatpush2.bf16.msra.mxu0 %v5676
    %5860 = vmatprep.subr.bf16.mxu0 %v5669
    %5861 = vmatpush2.bf16.msra.mxu0 %v5668
    %5862 = vmatprep.subr.bf16.mxu0 %v5661
    %5863 = vmatpush2.bf16.msra.mxu0 %v5660
    %5864 = vmatprep.subr.bf16.mxu0 %v5653
    %5865 = vmatpush2.bf16.msra.mxu0 %v5652
    %5866 = vmatprep.subr.bf16.mxu0 %v5645
    %5867 = vmatpush2.bf16.msra.mxu0 %v5644
    %5868 = vmatprep.mubr.bf16.mxu0 %v5067
    %5869 = vmatmul.mubr.bf16.gmra.mxu0 %v5066
    %v5870 = vpop.f32.mrf.mxu0
    %v5871 = vadd.f32 0.0, %v5870
    %v5872 = vpop.f32.mrf.mxu0
    %v5873 = vadd.f32 0.0, %v5872
    %v5874 = vpop.f32.mrf.mxu0
    %v5875 = vpop.f32.mrf.mxu0
    %5876 = vdwg.mxu0
    %5877 = vmatprep.subr.bf16.mxu0 %v5639
    %5878 = vmatpush1.bf16.msra.mxu0 %v5638
    %5879 = vmatprep.subr.bf16.mxu0 %v5631
    %5880 = vmatpush1.bf16.msra.mxu0 %v5630
    %5881 = vmatprep.subr.bf16.mxu0 %v5623
    %5882 = vmatpush1.bf16.msra.mxu0 %v5622
    %5883 = vmatprep.subr.bf16.mxu0 %v5615
    %5884 = vmatpush1.bf16.msra.mxu0 %v5614
    %5885 = vmatprep.subr.bf16.mxu0 %v5607
    %5886 = vmatpush1.bf16.msra.mxu0 %v5606
    %5887 = vmatprep.subr.bf16.mxu0 %v5599
    %5888 = vmatpush1.bf16.msra.mxu0 %v5598
    %5889 = vmatprep.subr.bf16.mxu0 %v5591
    %5890 = vmatpush1.bf16.msra.mxu0 %v5590
    %5891 = vmatprep.subr.bf16.mxu0 %v5583
    %5892 = vmatpush1.bf16.msra.mxu0 %v5582
    %5893 = vmatprep.subr.bf16.mxu0 %v5703
    %5894 = vmatpush2.bf16.msra.mxu0 %v5702
    %5895 = vmatprep.subr.bf16.mxu0 %v5695
    %5896 = vmatpush2.bf16.msra.mxu0 %v5694
    %5897 = vmatprep.subr.bf16.mxu0 %v5687
    %5898 = vmatpush2.bf16.msra.mxu0 %v5686
    %5899 = vmatprep.subr.bf16.mxu0 %v5679
    %5900 = vmatpush2.bf16.msra.mxu0 %v5678
    %5901 = vmatprep.subr.bf16.mxu0 %v5671
    %5902 = vmatpush2.bf16.msra.mxu0 %v5670
    %5903 = vmatprep.subr.bf16.mxu0 %v5663
    %5904 = vmatpush2.bf16.msra.mxu0 %v5662
    %5905 = vmatprep.subr.bf16.mxu0 %v5655
    %5906 = vmatpush2.bf16.msra.mxu0 %v5654
    %5907 = vmatprep.subr.bf16.mxu0 %v5647
    %5908 = vmatpush2.bf16.msra.mxu0 %v5646
    %5909 = vmatprep.mubr.bf16.mxu0 %v5067
    %5910 = vmatmul.mubr.bf16.gmra.mxu0 %v5066
    %v5911 = vpop.f32.mrf.mxu0
    %v5912 = vadd.f32 0.0, %v5911
    %v5913 = vpop.f32.mrf.mxu0
    %v5914 = vadd.f32 0.0, %v5913
    %v5915 = vpop.f32.mrf.mxu0
    %v5916 = vpop.f32.mrf.mxu0
    %5917 = vdwg.mxu0
    %5918 = vmatprep.subr.bf16.mxu0 %v5641
    %5919 = vmatpush1.bf16.msra.mxu0 %v5640
    %5920 = vmatprep.subr.bf16.mxu0 %v5633
    %5921 = vmatpush1.bf16.msra.mxu0 %v5632
    %5922 = vmatprep.subr.bf16.mxu0 %v5625
    %5923 = vmatpush1.bf16.msra.mxu0 %v5624
    %5924 = vmatprep.subr.bf16.mxu0 %v5617
    %5925 = vmatpush1.bf16.msra.mxu0 %v5616
    %5926 = vmatprep.subr.bf16.mxu0 %v5609
    %5927 = vmatpush1.bf16.msra.mxu0 %v5608
    %5928 = vmatprep.subr.bf16.mxu0 %v5601
    %5929 = vmatpush1.bf16.msra.mxu0 %v5600
    %5930 = vmatprep.subr.bf16.mxu0 %v5593
    %5931 = vmatpush1.bf16.msra.mxu0 %v5592
    %5932 = vmatprep.subr.bf16.mxu0 %v5585
    %5933 = vmatpush1.bf16.msra.mxu0 %v5584
    %5934 = vmatprep.subr.bf16.mxu0 %v5705
    %5935 = vmatpush2.bf16.msra.mxu0 %v5704
    %5936 = vmatprep.subr.bf16.mxu0 %v5697
    %5937 = vmatpush2.bf16.msra.mxu0 %v5696
    %5938 = vmatprep.subr.bf16.mxu0 %v5689
    %5939 = vmatpush2.bf16.msra.mxu0 %v5688
    %5940 = vmatprep.subr.bf16.mxu0 %v5681
    %5941 = vmatpush2.bf16.msra.mxu0 %v5680
    %5942 = vmatprep.subr.bf16.mxu0 %v5673
    %5943 = vmatpush2.bf16.msra.mxu0 %v5672
    %5944 = vmatprep.subr.bf16.mxu0 %v5665
    %5945 = vmatpush2.bf16.msra.mxu0 %v5664
    %5946 = vmatprep.subr.bf16.mxu0 %v5657
    %5947 = vmatpush2.bf16.msra.mxu0 %v5656
    %5948 = vmatprep.subr.bf16.mxu0 %v5649
    %5949 = vmatpush2.bf16.msra.mxu0 %v5648
    %5950 = vmatprep.mubr.bf16.mxu0 %v5067
    %5951 = vmatmul.mubr.bf16.gmra.mxu0 %v5066
    %v5952 = vpop.f32.mrf.mxu0
    %v5953 = vadd.f32 0.0, %v5952
    %v5954 = vpop.f32.mrf.mxu0
    %v5955 = vadd.f32 0.0, %v5954
    %v5956 = vpop.f32.mrf.mxu0
    %v5957 = vpop.f32.mrf.mxu0
    %5958 = vdwg.mxu0
    %5959 = vmatprep.subr.bf16.mxu0 %v5643
    %5960 = vmatpush1.bf16.msra.mxu0 %v5642
    %5961 = vmatprep.subr.bf16.mxu0 %v5635
    %5962 = vmatpush1.bf16.msra.mxu0 %v5634
    %5963 = vmatprep.subr.bf16.mxu0 %v5627
    %5964 = vmatpush1.bf16.msra.mxu0 %v5626
    %5965 = vmatprep.subr.bf16.mxu0 %v5619
    %5966 = vmatpush1.bf16.msra.mxu0 %v5618
    %5967 = vmatprep.subr.bf16.mxu0 %v5611
    %5968 = vmatpush1.bf16.msra.mxu0 %v5610
    %5969 = vmatprep.subr.bf16.mxu0 %v5603
    %5970 = vmatpush1.bf16.msra.mxu0 %v5602
    %5971 = vmatprep.subr.bf16.mxu0 %v5595
    %5972 = vmatpush1.bf16.msra.mxu0 %v5594
    %5973 = vmatprep.subr.bf16.mxu0 %v5587
    %5974 = vmatpush1.bf16.msra.mxu0 %v5586
    %5975 = vmatprep.subr.bf16.mxu0 %v5707
    %5976 = vmatpush2.bf16.msra.mxu0 %v5706
    %5977 = vmatprep.subr.bf16.mxu0 %v5699
    %5978 = vmatpush2.bf16.msra.mxu0 %v5698
    %5979 = vmatprep.subr.bf16.mxu0 %v5691
    %5980 = vmatpush2.bf16.msra.mxu0 %v5690
    %5981 = vmatprep.subr.bf16.mxu0 %v5683
    %5982 = vmatpush2.bf16.msra.mxu0 %v5682
    %5983 = vmatprep.subr.bf16.mxu0 %v5675
    %5984 = vmatpush2.bf16.msra.mxu0 %v5674
    %5985 = vmatprep.subr.bf16.mxu0 %v5667
    %5986 = vmatpush2.bf16.msra.mxu0 %v5666
    %5987 = vmatprep.subr.bf16.mxu0 %v5659
    %5988 = vmatpush2.bf16.msra.mxu0 %v5658
    %5989 = vmatprep.subr.bf16.mxu0 %v5651
    %5990 = vmatpush2.bf16.msra.mxu0 %v5650
    %5991 = vmatprep.mubr.bf16.mxu0 %v5067
    %5992 = vmatmul.mubr.bf16.gmra.mxu0 %v5066
    %v5993 = vpop.f32.mrf.mxu0
    %v5994 = vadd.f32 0.0, %v5993
    %v5995 = vpop.f32.mrf.mxu0
    %v5996 = vadd.f32 0.0, %v5995
    %v5997 = vpop.f32.mrf.mxu0
    %v5998 = vpop.f32.mrf.mxu0
    %5999 = vdwg.mxu0
    %v6000 = vadd.f32 %v5953, %v34
    %v6001 = vadd.f32 %v5955, %v38
    %v6002 = vadd.f32 %v5994, %v42
    %v6003 = vadd.f32 %v5996, %v46
    %v6004 = vxor.u32 %v6000, 2147483648
    %v6005 = vmul.f32 %v6004, 1.442695
    %v6006 = vpow.pop %v6005
    %v6007 = vadd.f32 %v6006, 1.0
    %v6008 = vrcp.pop %v6007
    %v6009 = vmul.f32 1.0, %v6008
    %v6010 = vxor.u32 %v6001, 2147483648
    %v6011 = vmul.f32 %v6010, 1.442695
    %v6012 = vpow.pop %v6011
    %v6013 = vadd.f32 %v6012, 1.0
    %v6014 = vrcp.pop %v6013
    %v6015 = vmul.f32 1.0, %v6014
    %v6016 = vtanh.pop %v6002
    %v6017 = vxor.u32 %v6003, 2147483648
    %v6018 = vmul.f32 %v6017, 1.442695
    %v6019 = vpow.pop %v6018
    %v6020 = vadd.f32 %v6019, 1.0
    %v6021 = vrcp.pop %v6020
    %v6022 = vmul.f32 1.0, %v6021
    %v6023 = vmul.f32 %v6015, %v5028
    %v6024 = vmul.f32 %v6009, %v6016
    %v6025 = vadd.f32 %v6023, %v6024
    %v6026 = vtanh.pop %v6025
    %v6027 = vmul.f32 %v6022, %v6026
    %s6028 = scalar_lea.vmem %s3, 40
    %6029 = vst [vmem:[%s6028] sm:$0xff] %v6027
    %s6030 = scalar_lea.vmem %s0, 192
    %v6031 = vld [vmem:[%s6030] sm:$0xff]
    %v6032 = vld [vmem:[%s6030 + $0x8] sm:$0xff]
    %v6033 = vld [vmem:[%s6030 + $0x10] sm:$0xff]
    %v6034 = vld [vmem:[%s6030 + $0x18] sm:$0xff]
    %v6035 = vadd.f32 %v6031, %v5871
    %v6036 = vadd.f32 %v6032, %v5873
    %v6037 = vadd.f32 %v6033, %v5912
    %v6038 = vadd.f32 %v6034, %v5914
    %v6039 = vxor.u32 %v6035, 2147483648
    %v6040 = vmul.f32 %v6039, 1.442695
    %v6041 = vpow.pop %v6040
    %v6042 = vadd.f32 %v6041, 1.0
    %v6043 = vrcp.pop %v6042
    %v6044 = vmul.f32 1.0, %v6043
    %v6045 = vxor.u32 %v6036, 2147483648
    %v6046 = vmul.f32 %v6045, 1.442695
    %v6047 = vpow.pop %v6046
    %v6048 = vadd.f32 %v6047, 1.0
    %v6049 = vrcp.pop %v6048
    %v6050 = vmul.f32 1.0, %v6049
    %v6051 = vtanh.pop %v6037
    %v6052 = vxor.u32 %v6038, 2147483648
    %v6053 = vmul.f32 %v6052, 1.442695
    %v6054 = vpow.pop %v6053
    %v6055 = vadd.f32 %v6054, 1.0
    %v6056 = vrcp.pop %v6055
    %v6057 = vmul.f32 1.0, %v6056
    %v6058 = vmul.f32 %v6050, %v5063
    %v6059 = vmul.f32 %v6044, %v6051
    %v6060 = vadd.f32 %v6058, %v6059
    %v6061 = vtanh.pop %v6060
    %v6062 = vmul.f32 %v6057, %v6061
    %v6063 = vpack.c.bf16 %v6062, %v6062
    %v6064 = vpack.c.bf16 %v6027, %v6027
    %v6065 = vld [vmem:[#allocation2] sm:$0xff]
    %v6066 = vld [vmem:[#allocation2 + $0x8] sm:$0xff]
    %v6067 = vld [vmem:[#allocation2 + $0x10] sm:$0xff]
    %v6068 = vld [vmem:[#allocation2 + $0x18] sm:$0xff]
    %v6069 = vld [vmem:[#allocation2 + $0x20] sm:$0xff]
    %v6070 = vld [vmem:[#allocation2 + $0x28] sm:$0xff]
    %v6071 = vld [vmem:[#allocation2 + $0x30] sm:$0xff]
    %v6072 = vld [vmem:[#allocation2 + $0x38] sm:$0xff]
    %v6073 = vld [vmem:[#allocation2 + $0x40] sm:$0xff]
    %v6074 = vld [vmem:[#allocation2 + $0x48] sm:$0xff]
    %v6075 = vld [vmem:[#allocation2 + $0x50] sm:$0xff]
    %v6076 = vld [vmem:[#allocation2 + $0x58] sm:$0xff]
    %v6077 = vld [vmem:[#allocation2 + $0x60] sm:$0xff]
    %v6078 = vld [vmem:[#allocation2 + $0x68] sm:$0xff]
    %v6079 = vld [vmem:[#allocation2 + $0x70] sm:$0xff]
    %v6080 = vld [vmem:[#allocation2 + $0x78] sm:$0xff]
    %v6081 = vld [vmem:[#allocation2 + $0x80] sm:$0xff]
    %v6082 = vld [vmem:[#allocation2 + $0x88] sm:$0xff]
    %v6083 = vld [vmem:[#allocation2 + $0x90] sm:$0xff]
    %v6084 = vld [vmem:[#allocation2 + $0x98] sm:$0xff]
    %v6085 = vld [vmem:[#allocation2 + $0xa0] sm:$0xff]
    %v6086 = vld [vmem:[#allocation2 + $0xa8] sm:$0xff]
    %v6087 = vld [vmem:[#allocation2 + $0xb0] sm:$0xff]
    %v6088 = vld [vmem:[#allocation2 + $0xb8] sm:$0xff]
    %v6089 = vld [vmem:[#allocation2 + $0xc0] sm:$0xff]
    %v6090 = vld [vmem:[#allocation2 + $0xc8] sm:$0xff]
    %v6091 = vld [vmem:[#allocation2 + $0xd0] sm:$0xff]
    %v6092 = vld [vmem:[#allocation2 + $0xd8] sm:$0xff]
    %v6093 = vld [vmem:[#allocation2 + $0xe0] sm:$0xff]
    %v6094 = vld [vmem:[#allocation2 + $0xe8] sm:$0xff]
    %v6095 = vld [vmem:[#allocation2 + $0xf0] sm:$0xff]
    %v6096 = vld [vmem:[#allocation2 + $0xf8] sm:$0xff]
    %v6097 = vld [vmem:[#allocation2 + $0x100] sm:$0xff]
    %v6098 = vld [vmem:[#allocation2 + $0x108] sm:$0xff]
    %v6099 = vld [vmem:[#allocation2 + $0x110] sm:$0xff]
    %v6100 = vld [vmem:[#allocation2 + $0x118] sm:$0xff]
    %v6101 = vld [vmem:[#allocation2 + $0x120] sm:$0xff]
    %v6102 = vld [vmem:[#allocation2 + $0x128] sm:$0xff]
    %v6103 = vld [vmem:[#allocation2 + $0x130] sm:$0xff]
    %v6104 = vld [vmem:[#allocation2 + $0x138] sm:$0xff]
    %v6105 = vld [vmem:[#allocation2 + $0x140] sm:$0xff]
    %v6106 = vld [vmem:[#allocation2 + $0x148] sm:$0xff]
    %v6107 = vld [vmem:[#allocation2 + $0x150] sm:$0xff]
    %v6108 = vld [vmem:[#allocation2 + $0x158] sm:$0xff]
    %v6109 = vld [vmem:[#allocation2 + $0x160] sm:$0xff]
    %v6110 = vld [vmem:[#allocation2 + $0x168] sm:$0xff]
    %v6111 = vld [vmem:[#allocation2 + $0x170] sm:$0xff]
    %v6112 = vld [vmem:[#allocation2 + $0x178] sm:$0xff]
    %v6113 = vld [vmem:[#allocation2 + $0x180] sm:$0xff]
    %v6114 = vld [vmem:[#allocation2 + $0x188] sm:$0xff]
    %v6115 = vld [vmem:[#allocation2 + $0x190] sm:$0xff]
    %v6116 = vld [vmem:[#allocation2 + $0x198] sm:$0xff]
    %v6117 = vld [vmem:[#allocation2 + $0x1a0] sm:$0xff]
    %v6118 = vld [vmem:[#allocation2 + $0x1a8] sm:$0xff]
    %v6119 = vld [vmem:[#allocation2 + $0x1b0] sm:$0xff]
    %v6120 = vld [vmem:[#allocation2 + $0x1b8] sm:$0xff]
    %v6121 = vld [vmem:[#allocation2 + $0x1c0] sm:$0xff]
    %v6122 = vld [vmem:[#allocation2 + $0x1c8] sm:$0xff]
    %v6123 = vld [vmem:[#allocation2 + $0x1d0] sm:$0xff]
    %v6124 = vld [vmem:[#allocation2 + $0x1d8] sm:$0xff]
    %v6125 = vld [vmem:[#allocation2 + $0x1e0] sm:$0xff]
    %v6126 = vld [vmem:[#allocation2 + $0x1e8] sm:$0xff]
    %v6127 = vld [vmem:[#allocation2 + $0x1f0] sm:$0xff]
    %v6128 = vld [vmem:[#allocation2 + $0x1f8] sm:$0xff]
    %v6129 = vld [vmem:[#allocation2 + $0x200] sm:$0xff]
    %v6130 = vld [vmem:[#allocation2 + $0x208] sm:$0xff]
    %v6131 = vld [vmem:[#allocation2 + $0x210] sm:$0xff]
    %v6132 = vld [vmem:[#allocation2 + $0x218] sm:$0xff]
    %v6133 = vld [vmem:[#allocation2 + $0x220] sm:$0xff]
    %v6134 = vld [vmem:[#allocation2 + $0x228] sm:$0xff]
    %v6135 = vld [vmem:[#allocation2 + $0x230] sm:$0xff]
    %v6136 = vld [vmem:[#allocation2 + $0x238] sm:$0xff]
    %v6137 = vld [vmem:[#allocation2 + $0x240] sm:$0xff]
    %v6138 = vld [vmem:[#allocation2 + $0x248] sm:$0xff]
    %v6139 = vld [vmem:[#allocation2 + $0x250] sm:$0xff]
    %v6140 = vld [vmem:[#allocation2 + $0x258] sm:$0xff]
    %v6141 = vld [vmem:[#allocation2 + $0x260] sm:$0xff]
    %v6142 = vld [vmem:[#allocation2 + $0x268] sm:$0xff]
    %v6143 = vld [vmem:[#allocation2 + $0x270] sm:$0xff]
    %v6144 = vld [vmem:[#allocation2 + $0x278] sm:$0xff]
    %v6145 = vld [vmem:[#allocation2 + $0x280] sm:$0xff]
    %v6146 = vld [vmem:[#allocation2 + $0x288] sm:$0xff]
    %v6147 = vld [vmem:[#allocation2 + $0x290] sm:$0xff]
    %v6148 = vld [vmem:[#allocation2 + $0x298] sm:$0xff]
    %v6149 = vld [vmem:[#allocation2 + $0x2a0] sm:$0xff]
    %v6150 = vld [vmem:[#allocation2 + $0x2a8] sm:$0xff]
    %v6151 = vld [vmem:[#allocation2 + $0x2b0] sm:$0xff]
    %v6152 = vld [vmem:[#allocation2 + $0x2b8] sm:$0xff]
    %v6153 = vld [vmem:[#allocation2 + $0x2c0] sm:$0xff]
    %v6154 = vld [vmem:[#allocation2 + $0x2c8] sm:$0xff]
    %v6155 = vld [vmem:[#allocation2 + $0x2d0] sm:$0xff]
    %v6156 = vld [vmem:[#allocation2 + $0x2d8] sm:$0xff]
    %v6157 = vld [vmem:[#allocation2 + $0x2e0] sm:$0xff]
    %v6158 = vld [vmem:[#allocation2 + $0x2e8] sm:$0xff]
    %v6159 = vld [vmem:[#allocation2 + $0x2f0] sm:$0xff]
    %v6160 = vld [vmem:[#allocation2 + $0x2f8] sm:$0xff]
    %v6161 = vld [vmem:[#allocation2 + $0x300] sm:$0xff]
    %v6162 = vld [vmem:[#allocation2 + $0x308] sm:$0xff]
    %v6163 = vld [vmem:[#allocation2 + $0x310] sm:$0xff]
    %v6164 = vld [vmem:[#allocation2 + $0x318] sm:$0xff]
    %v6165 = vld [vmem:[#allocation2 + $0x320] sm:$0xff]
    %v6166 = vld [vmem:[#allocation2 + $0x328] sm:$0xff]
    %v6167 = vld [vmem:[#allocation2 + $0x330] sm:$0xff]
    %v6168 = vld [vmem:[#allocation2 + $0x338] sm:$0xff]
    %v6169 = vld [vmem:[#allocation2 + $0x340] sm:$0xff]
    %v6170 = vld [vmem:[#allocation2 + $0x348] sm:$0xff]
    %v6171 = vld [vmem:[#allocation2 + $0x350] sm:$0xff]
    %v6172 = vld [vmem:[#allocation2 + $0x358] sm:$0xff]
    %v6173 = vld [vmem:[#allocation2 + $0x360] sm:$0xff]
    %v6174 = vld [vmem:[#allocation2 + $0x368] sm:$0xff]
    %v6175 = vld [vmem:[#allocation2 + $0x370] sm:$0xff]
    %v6176 = vld [vmem:[#allocation2 + $0x378] sm:$0xff]
    %v6177 = vld [vmem:[#allocation2 + $0x380] sm:$0xff]
    %v6178 = vld [vmem:[#allocation2 + $0x388] sm:$0xff]
    %v6179 = vld [vmem:[#allocation2 + $0x390] sm:$0xff]
    %v6180 = vld [vmem:[#allocation2 + $0x398] sm:$0xff]
    %v6181 = vld [vmem:[#allocation2 + $0x3a0] sm:$0xff]
    %v6182 = vld [vmem:[#allocation2 + $0x3a8] sm:$0xff]
    %v6183 = vld [vmem:[#allocation2 + $0x3b0] sm:$0xff]
    %v6184 = vld [vmem:[#allocation2 + $0x3b8] sm:$0xff]
    %v6185 = vld [vmem:[#allocation2 + $0x3c0] sm:$0xff]
    %v6186 = vld [vmem:[#allocation2 + $0x3c8] sm:$0xff]
    %v6187 = vld [vmem:[#allocation2 + $0x3d0] sm:$0xff]
    %v6188 = vld [vmem:[#allocation2 + $0x3d8] sm:$0xff]
    %v6189 = vld [vmem:[#allocation2 + $0x3e0] sm:$0xff]
    %v6190 = vld [vmem:[#allocation2 + $0x3e8] sm:$0xff]
    %v6191 = vld [vmem:[#allocation2 + $0x3f0] sm:$0xff]
    %v6192 = vld [vmem:[#allocation2 + $0x3f8] sm:$0xff]
    %v6321 = vunpack.c.l.b16 %v6065
    %v6322 = vunpack.c.h.b16 %v6065
    %v6323 = vunpack.c.l.b16 %v6066
    %v6324 = vunpack.c.h.b16 %v6066
    %v6325 = vunpack.c.l.b16 %v6067
    %v6326 = vunpack.c.h.b16 %v6067
    %v6327 = vunpack.c.l.b16 %v6068
    %v6328 = vunpack.c.h.b16 %v6068
    %v6329 = vunpack.c.l.b16 %v6069
    %v6330 = vunpack.c.h.b16 %v6069
    %v6331 = vunpack.c.l.b16 %v6070
    %v6332 = vunpack.c.h.b16 %v6070
    %v6333 = vunpack.c.l.b16 %v6071
    %v6334 = vunpack.c.h.b16 %v6071
    %v6335 = vunpack.c.l.b16 %v6072
    %v6336 = vunpack.c.h.b16 %v6072
    %v6337 = vunpack.c.l.b16 %v6073
    %v6338 = vunpack.c.h.b16 %v6073
    %v6339 = vunpack.c.l.b16 %v6074
    %v6340 = vunpack.c.h.b16 %v6074
    %v6341 = vunpack.c.l.b16 %v6075
    %v6342 = vunpack.c.h.b16 %v6075
    %v6343 = vunpack.c.l.b16 %v6076
    %v6344 = vunpack.c.h.b16 %v6076
    %v6345 = vunpack.c.l.b16 %v6077
    %v6346 = vunpack.c.h.b16 %v6077
    %v6347 = vunpack.c.l.b16 %v6078
    %v6348 = vunpack.c.h.b16 %v6078
    %v6349 = vunpack.c.l.b16 %v6079
    %v6350 = vunpack.c.h.b16 %v6079
    %v6351 = vunpack.c.l.b16 %v6080
    %v6352 = vunpack.c.h.b16 %v6080
    %v6353 = vunpack.c.l.b16 %v6081
    %v6354 = vunpack.c.h.b16 %v6081
    %v6355 = vunpack.c.l.b16 %v6082
    %v6356 = vunpack.c.h.b16 %v6082
    %v6357 = vunpack.c.l.b16 %v6083
    %v6358 = vunpack.c.h.b16 %v6083
    %v6359 = vunpack.c.l.b16 %v6084
    %v6360 = vunpack.c.h.b16 %v6084
    %v6361 = vunpack.c.l.b16 %v6085
    %v6362 = vunpack.c.h.b16 %v6085
    %v6363 = vunpack.c.l.b16 %v6086
    %v6364 = vunpack.c.h.b16 %v6086
    %v6365 = vunpack.c.l.b16 %v6087
    %v6366 = vunpack.c.h.b16 %v6087
    %v6367 = vunpack.c.l.b16 %v6088
    %v6368 = vunpack.c.h.b16 %v6088
    %v6369 = vunpack.c.l.b16 %v6089
    %v6370 = vunpack.c.h.b16 %v6089
    %v6371 = vunpack.c.l.b16 %v6090
    %v6372 = vunpack.c.h.b16 %v6090
    %v6373 = vunpack.c.l.b16 %v6091
    %v6374 = vunpack.c.h.b16 %v6091
    %v6375 = vunpack.c.l.b16 %v6092
    %v6376 = vunpack.c.h.b16 %v6092
    %v6377 = vunpack.c.l.b16 %v6093
    %v6378 = vunpack.c.h.b16 %v6093
    %v6379 = vunpack.c.l.b16 %v6094
    %v6380 = vunpack.c.h.b16 %v6094
    %v6381 = vunpack.c.l.b16 %v6095
    %v6382 = vunpack.c.h.b16 %v6095
    %v6383 = vunpack.c.l.b16 %v6096
    %v6384 = vunpack.c.h.b16 %v6096
    %v6385 = vunpack.c.l.b16 %v6097
    %v6386 = vunpack.c.h.b16 %v6097
    %v6387 = vunpack.c.l.b16 %v6098
    %v6388 = vunpack.c.h.b16 %v6098
    %v6389 = vunpack.c.l.b16 %v6099
    %v6390 = vunpack.c.h.b16 %v6099
    %v6391 = vunpack.c.l.b16 %v6100
    %v6392 = vunpack.c.h.b16 %v6100
    %v6393 = vunpack.c.l.b16 %v6101
    %v6394 = vunpack.c.h.b16 %v6101
    %v6395 = vunpack.c.l.b16 %v6102
    %v6396 = vunpack.c.h.b16 %v6102
    %v6397 = vunpack.c.l.b16 %v6103
    %v6398 = vunpack.c.h.b16 %v6103
    %v6399 = vunpack.c.l.b16 %v6104
    %v6400 = vunpack.c.h.b16 %v6104
    %v6401 = vunpack.c.l.b16 %v6105
    %v6402 = vunpack.c.h.b16 %v6105
    %v6403 = vunpack.c.l.b16 %v6106
    %v6404 = vunpack.c.h.b16 %v6106
    %v6405 = vunpack.c.l.b16 %v6107
    %v6406 = vunpack.c.h.b16 %v6107
    %v6407 = vunpack.c.l.b16 %v6108
    %v6408 = vunpack.c.h.b16 %v6108
    %v6409 = vunpack.c.l.b16 %v6109
    %v6410 = vunpack.c.h.b16 %v6109
    %v6411 = vunpack.c.l.b16 %v6110
    %v6412 = vunpack.c.h.b16 %v6110
    %v6413 = vunpack.c.l.b16 %v6111
    %v6414 = vunpack.c.h.b16 %v6111
    %v6415 = vunpack.c.l.b16 %v6112
    %v6416 = vunpack.c.h.b16 %v6112
    %v6417 = vunpack.c.l.b16 %v6113
    %v6418 = vunpack.c.h.b16 %v6113
    %v6419 = vunpack.c.l.b16 %v6114
    %v6420 = vunpack.c.h.b16 %v6114
    %v6421 = vunpack.c.l.b16 %v6115
    %v6422 = vunpack.c.h.b16 %v6115
    %v6423 = vunpack.c.l.b16 %v6116
    %v6424 = vunpack.c.h.b16 %v6116
    %v6425 = vunpack.c.l.b16 %v6117
    %v6426 = vunpack.c.h.b16 %v6117
    %v6427 = vunpack.c.l.b16 %v6118
    %v6428 = vunpack.c.h.b16 %v6118
    %v6429 = vunpack.c.l.b16 %v6119
    %v6430 = vunpack.c.h.b16 %v6119
    %v6431 = vunpack.c.l.b16 %v6120
    %v6432 = vunpack.c.h.b16 %v6120
    %v6433 = vunpack.c.l.b16 %v6121
    %v6434 = vunpack.c.h.b16 %v6121
    %v6435 = vunpack.c.l.b16 %v6122
    %v6436 = vunpack.c.h.b16 %v6122
    %v6437 = vunpack.c.l.b16 %v6123
    %v6438 = vunpack.c.h.b16 %v6123
    %v6439 = vunpack.c.l.b16 %v6124
    %v6440 = vunpack.c.h.b16 %v6124
    %v6441 = vunpack.c.l.b16 %v6125
    %v6442 = vunpack.c.h.b16 %v6125
    %v6443 = vunpack.c.l.b16 %v6126
    %v6444 = vunpack.c.h.b16 %v6126
    %v6445 = vunpack.c.l.b16 %v6127
    %v6446 = vunpack.c.h.b16 %v6127
    %v6447 = vunpack.c.l.b16 %v6128
    %v6448 = vunpack.c.h.b16 %v6128
    %v6449 = vunpack.c.l.b16 %v6129
    %v6450 = vunpack.c.h.b16 %v6129
    %v6451 = vunpack.c.l.b16 %v6130
    %v6452 = vunpack.c.h.b16 %v6130
    %v6453 = vunpack.c.l.b16 %v6131
    %v6454 = vunpack.c.h.b16 %v6131
    %v6455 = vunpack.c.l.b16 %v6132
    %v6456 = vunpack.c.h.b16 %v6132
    %v6457 = vunpack.c.l.b16 %v6133
    %v6458 = vunpack.c.h.b16 %v6133
    %v6459 = vunpack.c.l.b16 %v6134
    %v6460 = vunpack.c.h.b16 %v6134
    %v6461 = vunpack.c.l.b16 %v6135
    %v6462 = vunpack.c.h.b16 %v6135
    %v6463 = vunpack.c.l.b16 %v6136
    %v6464 = vunpack.c.h.b16 %v6136
    %v6465 = vunpack.c.l.b16 %v6137
    %v6466 = vunpack.c.h.b16 %v6137
    %v6467 = vunpack.c.l.b16 %v6138
    %v6468 = vunpack.c.h.b16 %v6138
    %v6469 = vunpack.c.l.b16 %v6139
    %v6470 = vunpack.c.h.b16 %v6139
    %v6471 = vunpack.c.l.b16 %v6140
    %v6472 = vunpack.c.h.b16 %v6140
    %v6473 = vunpack.c.l.b16 %v6141
    %v6474 = vunpack.c.h.b16 %v6141
    %v6475 = vunpack.c.l.b16 %v6142
    %v6476 = vunpack.c.h.b16 %v6142
    %v6477 = vunpack.c.l.b16 %v6143
    %v6478 = vunpack.c.h.b16 %v6143
    %v6479 = vunpack.c.l.b16 %v6144
    %v6480 = vunpack.c.h.b16 %v6144
    %v6481 = vunpack.c.l.b16 %v6145
    %v6482 = vunpack.c.h.b16 %v6145
    %v6483 = vunpack.c.l.b16 %v6146
    %v6484 = vunpack.c.h.b16 %v6146
    %v6485 = vunpack.c.l.b16 %v6147
    %v6486 = vunpack.c.h.b16 %v6147
    %v6487 = vunpack.c.l.b16 %v6148
    %v6488 = vunpack.c.h.b16 %v6148
    %v6489 = vunpack.c.l.b16 %v6149
    %v6490 = vunpack.c.h.b16 %v6149
    %v6491 = vunpack.c.l.b16 %v6150
    %v6492 = vunpack.c.h.b16 %v6150
    %v6493 = vunpack.c.l.b16 %v6151
    %v6494 = vunpack.c.h.b16 %v6151
    %v6495 = vunpack.c.l.b16 %v6152
    %v6496 = vunpack.c.h.b16 %v6152
    %v6497 = vunpack.c.l.b16 %v6153
    %v6498 = vunpack.c.h.b16 %v6153
    %v6499 = vunpack.c.l.b16 %v6154
    %v6500 = vunpack.c.h.b16 %v6154
    %v6501 = vunpack.c.l.b16 %v6155
    %v6502 = vunpack.c.h.b16 %v6155
    %v6503 = vunpack.c.l.b16 %v6156
    %v6504 = vunpack.c.h.b16 %v6156
    %v6505 = vunpack.c.l.b16 %v6157
    %v6506 = vunpack.c.h.b16 %v6157
    %v6507 = vunpack.c.l.b16 %v6158
    %v6508 = vunpack.c.h.b16 %v6158
    %v6509 = vunpack.c.l.b16 %v6159
    %v6510 = vunpack.c.h.b16 %v6159
    %v6511 = vunpack.c.l.b16 %v6160
    %v6512 = vunpack.c.h.b16 %v6160
    %v6513 = vunpack.c.l.b16 %v6161
    %v6514 = vunpack.c.h.b16 %v6161
    %v6515 = vunpack.c.l.b16 %v6162
    %v6516 = vunpack.c.h.b16 %v6162
    %v6517 = vunpack.c.l.b16 %v6163
    %v6518 = vunpack.c.h.b16 %v6163
    %v6519 = vunpack.c.l.b16 %v6164
    %v6520 = vunpack.c.h.b16 %v6164
    %v6521 = vunpack.c.l.b16 %v6165
    %v6522 = vunpack.c.h.b16 %v6165
    %v6523 = vunpack.c.l.b16 %v6166
    %v6524 = vunpack.c.h.b16 %v6166
    %v6525 = vunpack.c.l.b16 %v6167
    %v6526 = vunpack.c.h.b16 %v6167
    %v6527 = vunpack.c.l.b16 %v6168
    %v6528 = vunpack.c.h.b16 %v6168
    %v6529 = vunpack.c.l.b16 %v6169
    %v6530 = vunpack.c.h.b16 %v6169
    %v6531 = vunpack.c.l.b16 %v6170
    %v6532 = vunpack.c.h.b16 %v6170
    %v6533 = vunpack.c.l.b16 %v6171
    %v6534 = vunpack.c.h.b16 %v6171
    %v6535 = vunpack.c.l.b16 %v6172
    %v6536 = vunpack.c.h.b16 %v6172
    %v6537 = vunpack.c.l.b16 %v6173
    %v6538 = vunpack.c.h.b16 %v6173
    %v6539 = vunpack.c.l.b16 %v6174
    %v6540 = vunpack.c.h.b16 %v6174
    %v6541 = vunpack.c.l.b16 %v6175
    %v6542 = vunpack.c.h.b16 %v6175
    %v6543 = vunpack.c.l.b16 %v6176
    %v6544 = vunpack.c.h.b16 %v6176
    %v6545 = vunpack.c.l.b16 %v6177
    %v6546 = vunpack.c.h.b16 %v6177
    %v6547 = vunpack.c.l.b16 %v6178
    %v6548 = vunpack.c.h.b16 %v6178
    %v6549 = vunpack.c.l.b16 %v6179
    %v6550 = vunpack.c.h.b16 %v6179
    %v6551 = vunpack.c.l.b16 %v6180
    %v6552 = vunpack.c.h.b16 %v6180
    %v6553 = vunpack.c.l.b16 %v6181
    %v6554 = vunpack.c.h.b16 %v6181
    %v6555 = vunpack.c.l.b16 %v6182
    %v6556 = vunpack.c.h.b16 %v6182
    %v6557 = vunpack.c.l.b16 %v6183
    %v6558 = vunpack.c.h.b16 %v6183
    %v6559 = vunpack.c.l.b16 %v6184
    %v6560 = vunpack.c.h.b16 %v6184
    %v6561 = vunpack.c.l.b16 %v6185
    %v6562 = vunpack.c.h.b16 %v6185
    %v6563 = vunpack.c.l.b16 %v6186
    %v6564 = vunpack.c.h.b16 %v6186
    %v6565 = vunpack.c.l.b16 %v6187
    %v6566 = vunpack.c.h.b16 %v6187
    %v6567 = vunpack.c.l.b16 %v6188
    %v6568 = vunpack.c.h.b16 %v6188
    %v6569 = vunpack.c.l.b16 %v6189
    %v6570 = vunpack.c.h.b16 %v6189
    %v6571 = vunpack.c.l.b16 %v6190
    %v6572 = vunpack.c.h.b16 %v6190
    %v6573 = vunpack.c.l.b16 %v6191
    %v6574 = vunpack.c.h.b16 %v6191
    %v6575 = vunpack.c.l.b16 %v6192
    %v6576 = vunpack.c.h.b16 %v6192
    %v6577 = vpack.c.b16 %v6329, %v6321
    %v6578 = vpack.c.b16 %v6330, %v6322
    %v6579 = vpack.c.b16 %v6331, %v6323
    %v6580 = vpack.c.b16 %v6332, %v6324
    %v6581 = vpack.c.b16 %v6333, %v6325
    %v6582 = vpack.c.b16 %v6334, %v6326
    %v6583 = vpack.c.b16 %v6335, %v6327
    %v6584 = vpack.c.b16 %v6336, %v6328
    %v6585 = vpack.c.b16 %v6345, %v6337
    %v6586 = vpack.c.b16 %v6346, %v6338
    %v6587 = vpack.c.b16 %v6347, %v6339
    %v6588 = vpack.c.b16 %v6348, %v6340
    %v6589 = vpack.c.b16 %v6349, %v6341
    %v6590 = vpack.c.b16 %v6350, %v6342
    %v6591 = vpack.c.b16 %v6351, %v6343
    %v6592 = vpack.c.b16 %v6352, %v6344
    %v6593 = vpack.c.b16 %v6361, %v6353
    %v6594 = vpack.c.b16 %v6362, %v6354
    %v6595 = vpack.c.b16 %v6363, %v6355
    %v6596 = vpack.c.b16 %v6364, %v6356
    %v6597 = vpack.c.b16 %v6365, %v6357
    %v6598 = vpack.c.b16 %v6366, %v6358
    %v6599 = vpack.c.b16 %v6367, %v6359
    %v6600 = vpack.c.b16 %v6368, %v6360
    %v6601 = vpack.c.b16 %v6377, %v6369
    %v6602 = vpack.c.b16 %v6378, %v6370
    %v6603 = vpack.c.b16 %v6379, %v6371
    %v6604 = vpack.c.b16 %v6380, %v6372
    %v6605 = vpack.c.b16 %v6381, %v6373
    %v6606 = vpack.c.b16 %v6382, %v6374
    %v6607 = vpack.c.b16 %v6383, %v6375
    %v6608 = vpack.c.b16 %v6384, %v6376
    %v6609 = vpack.c.b16 %v6393, %v6385
    %v6610 = vpack.c.b16 %v6394, %v6386
    %v6611 = vpack.c.b16 %v6395, %v6387
    %v6612 = vpack.c.b16 %v6396, %v6388
    %v6613 = vpack.c.b16 %v6397, %v6389
    %v6614 = vpack.c.b16 %v6398, %v6390
    %v6615 = vpack.c.b16 %v6399, %v6391
    %v6616 = vpack.c.b16 %v6400, %v6392
    %v6617 = vpack.c.b16 %v6409, %v6401
    %v6618 = vpack.c.b16 %v6410, %v6402
    %v6619 = vpack.c.b16 %v6411, %v6403
    %v6620 = vpack.c.b16 %v6412, %v6404
    %v6621 = vpack.c.b16 %v6413, %v6405
    %v6622 = vpack.c.b16 %v6414, %v6406
    %v6623 = vpack.c.b16 %v6415, %v6407
    %v6624 = vpack.c.b16 %v6416, %v6408
    %v6625 = vpack.c.b16 %v6425, %v6417
    %v6626 = vpack.c.b16 %v6426, %v6418
    %v6627 = vpack.c.b16 %v6427, %v6419
    %v6628 = vpack.c.b16 %v6428, %v6420
    %v6629 = vpack.c.b16 %v6429, %v6421
    %v6630 = vpack.c.b16 %v6430, %v6422
    %v6631 = vpack.c.b16 %v6431, %v6423
    %v6632 = vpack.c.b16 %v6432, %v6424
    %v6633 = vpack.c.b16 %v6441, %v6433
    %v6634 = vpack.c.b16 %v6442, %v6434
    %v6635 = vpack.c.b16 %v6443, %v6435
    %v6636 = vpack.c.b16 %v6444, %v6436
    %v6637 = vpack.c.b16 %v6445, %v6437
    %v6638 = vpack.c.b16 %v6446, %v6438
    %v6639 = vpack.c.b16 %v6447, %v6439
    %v6640 = vpack.c.b16 %v6448, %v6440
    %v6641 = vpack.c.b16 %v6457, %v6449
    %v6642 = vpack.c.b16 %v6458, %v6450
    %v6643 = vpack.c.b16 %v6459, %v6451
    %v6644 = vpack.c.b16 %v6460, %v6452
    %v6645 = vpack.c.b16 %v6461, %v6453
    %v6646 = vpack.c.b16 %v6462, %v6454
    %v6647 = vpack.c.b16 %v6463, %v6455
    %v6648 = vpack.c.b16 %v6464, %v6456
    %v6649 = vpack.c.b16 %v6473, %v6465
    %v6650 = vpack.c.b16 %v6474, %v6466
    %v6651 = vpack.c.b16 %v6475, %v6467
    %v6652 = vpack.c.b16 %v6476, %v6468
    %v6653 = vpack.c.b16 %v6477, %v6469
    %v6654 = vpack.c.b16 %v6478, %v6470
    %v6655 = vpack.c.b16 %v6479, %v6471
    %v6656 = vpack.c.b16 %v6480, %v6472
    %v6657 = vpack.c.b16 %v6489, %v6481
    %v6658 = vpack.c.b16 %v6490, %v6482
    %v6659 = vpack.c.b16 %v6491, %v6483
    %v6660 = vpack.c.b16 %v6492, %v6484
    %v6661 = vpack.c.b16 %v6493, %v6485
    %v6662 = vpack.c.b16 %v6494, %v6486
    %v6663 = vpack.c.b16 %v6495, %v6487
    %v6664 = vpack.c.b16 %v6496, %v6488
    %v6665 = vpack.c.b16 %v6505, %v6497
    %v6666 = vpack.c.b16 %v6506, %v6498
    %v6667 = vpack.c.b16 %v6507, %v6499
    %v6668 = vpack.c.b16 %v6508, %v6500
    %v6669 = vpack.c.b16 %v6509, %v6501
    %v6670 = vpack.c.b16 %v6510, %v6502
    %v6671 = vpack.c.b16 %v6511, %v6503
    %v6672 = vpack.c.b16 %v6512, %v6504
    %v6673 = vpack.c.b16 %v6521, %v6513
    %v6674 = vpack.c.b16 %v6522, %v6514
    %v6675 = vpack.c.b16 %v6523, %v6515
    %v6676 = vpack.c.b16 %v6524, %v6516
    %v6677 = vpack.c.b16 %v6525, %v6517
    %v6678 = vpack.c.b16 %v6526, %v6518
    %v6679 = vpack.c.b16 %v6527, %v6519
    %v6680 = vpack.c.b16 %v6528, %v6520
    %v6681 = vpack.c.b16 %v6537, %v6529
    %v6682 = vpack.c.b16 %v6538, %v6530
    %v6683 = vpack.c.b16 %v6539, %v6531
    %v6684 = vpack.c.b16 %v6540, %v6532
    %v6685 = vpack.c.b16 %v6541, %v6533
    %v6686 = vpack.c.b16 %v6542, %v6534
    %v6687 = vpack.c.b16 %v6543, %v6535
    %v6688 = vpack.c.b16 %v6544, %v6536
    %v6689 = vpack.c.b16 %v6553, %v6545
    %v6690 = vpack.c.b16 %v6554, %v6546
    %v6691 = vpack.c.b16 %v6555, %v6547
    %v6692 = vpack.c.b16 %v6556, %v6548
    %v6693 = vpack.c.b16 %v6557, %v6549
    %v6694 = vpack.c.b16 %v6558, %v6550
    %v6695 = vpack.c.b16 %v6559, %v6551
    %v6696 = vpack.c.b16 %v6560, %v6552
    %v6697 = vpack.c.b16 %v6569, %v6561
    %v6698 = vpack.c.b16 %v6570, %v6562
    %v6699 = vpack.c.b16 %v6571, %v6563
    %v6700 = vpack.c.b16 %v6572, %v6564
    %v6701 = vpack.c.b16 %v6573, %v6565
    %v6702 = vpack.c.b16 %v6574, %v6566
    %v6703 = vpack.c.b16 %v6575, %v6567
    %v6704 = vpack.c.b16 %v6576, %v6568
    %6833 = vmatprep.subr.bf16.mxu0 %v6634
    %6834 = vmatpush1.bf16.msra.mxu0 %v6633
    %6835 = vmatprep.subr.bf16.mxu0 %v6626
    %6836 = vmatpush1.bf16.msra.mxu0 %v6625
    %6837 = vmatprep.subr.bf16.mxu0 %v6618
    %6838 = vmatpush1.bf16.msra.mxu0 %v6617
    %6839 = vmatprep.subr.bf16.mxu0 %v6610
    %6840 = vmatpush1.bf16.msra.mxu0 %v6609
    %6841 = vmatprep.subr.bf16.mxu0 %v6602
    %6842 = vmatpush1.bf16.msra.mxu0 %v6601
    %6843 = vmatprep.subr.bf16.mxu0 %v6594
    %6844 = vmatpush1.bf16.msra.mxu0 %v6593
    %6845 = vmatprep.subr.bf16.mxu0 %v6586
    %6846 = vmatpush1.bf16.msra.mxu0 %v6585
    %6847 = vmatprep.subr.bf16.mxu0 %v6578
    %6848 = vmatpush1.bf16.msra.mxu0 %v6577
    %6849 = vmatprep.subr.bf16.mxu0 %v6698
    %6850 = vmatpush2.bf16.msra.mxu0 %v6697
    %6851 = vmatprep.subr.bf16.mxu0 %v6690
    %6852 = vmatpush2.bf16.msra.mxu0 %v6689
    %6853 = vmatprep.subr.bf16.mxu0 %v6682
    %6854 = vmatpush2.bf16.msra.mxu0 %v6681
    %6855 = vmatprep.subr.bf16.mxu0 %v6674
    %6856 = vmatpush2.bf16.msra.mxu0 %v6673
    %6857 = vmatprep.subr.bf16.mxu0 %v6666
    %6858 = vmatpush2.bf16.msra.mxu0 %v6665
    %6859 = vmatprep.subr.bf16.mxu0 %v6658
    %6860 = vmatpush2.bf16.msra.mxu0 %v6657
    %6861 = vmatprep.subr.bf16.mxu0 %v6650
    %6862 = vmatpush2.bf16.msra.mxu0 %v6649
    %6863 = vmatprep.subr.bf16.mxu0 %v6642
    %6864 = vmatpush2.bf16.msra.mxu0 %v6641
    %6865 = vmatprep.mubr.bf16.mxu0 %v6064
    %6866 = vmatmul.mubr.bf16.gmra.mxu0 %v6063
    %v6867 = vpop.f32.mrf.mxu0
    %v6868 = vadd.f32 0.0, %v6867
    %v6869 = vpop.f32.mrf.mxu0
    %v6870 = vadd.f32 0.0, %v6869
    %v6871 = vpop.f32.mrf.mxu0
    %v6872 = vpop.f32.mrf.mxu0
    %6873 = vdwg.mxu0
    %6874 = vmatprep.subr.bf16.mxu0 %v6636
    %6875 = vmatpush1.bf16.msra.mxu0 %v6635
    %6876 = vmatprep.subr.bf16.mxu0 %v6628
    %6877 = vmatpush1.bf16.msra.mxu0 %v6627
    %6878 = vmatprep.subr.bf16.mxu0 %v6620
    %6879 = vmatpush1.bf16.msra.mxu0 %v6619
    %6880 = vmatprep.subr.bf16.mxu0 %v6612
    %6881 = vmatpush1.bf16.msra.mxu0 %v6611
    %6882 = vmatprep.subr.bf16.mxu0 %v6604
    %6883 = vmatpush1.bf16.msra.mxu0 %v6603
    %6884 = vmatprep.subr.bf16.mxu0 %v6596
    %6885 = vmatpush1.bf16.msra.mxu0 %v6595
    %6886 = vmatprep.subr.bf16.mxu0 %v6588
    %6887 = vmatpush1.bf16.msra.mxu0 %v6587
    %6888 = vmatprep.subr.bf16.mxu0 %v6580
    %6889 = vmatpush1.bf16.msra.mxu0 %v6579
    %6890 = vmatprep.subr.bf16.mxu0 %v6700
    %6891 = vmatpush2.bf16.msra.mxu0 %v6699
    %6892 = vmatprep.subr.bf16.mxu0 %v6692
    %6893 = vmatpush2.bf16.msra.mxu0 %v6691
    %6894 = vmatprep.subr.bf16.mxu0 %v6684
    %6895 = vmatpush2.bf16.msra.mxu0 %v6683
    %6896 = vmatprep.subr.bf16.mxu0 %v6676
    %6897 = vmatpush2.bf16.msra.mxu0 %v6675
    %6898 = vmatprep.subr.bf16.mxu0 %v6668
    %6899 = vmatpush2.bf16.msra.mxu0 %v6667
    %6900 = vmatprep.subr.bf16.mxu0 %v6660
    %6901 = vmatpush2.bf16.msra.mxu0 %v6659
    %6902 = vmatprep.subr.bf16.mxu0 %v6652
    %6903 = vmatpush2.bf16.msra.mxu0 %v6651
    %6904 = vmatprep.subr.bf16.mxu0 %v6644
    %6905 = vmatpush2.bf16.msra.mxu0 %v6643
    %6906 = vmatprep.mubr.bf16.mxu0 %v6064
    %6907 = vmatmul.mubr.bf16.gmra.mxu0 %v6063
    %v6908 = vpop.f32.mrf.mxu0
    %v6909 = vadd.f32 0.0, %v6908
    %v6910 = vpop.f32.mrf.mxu0
    %v6911 = vadd.f32 0.0, %v6910
    %v6912 = vpop.f32.mrf.mxu0
    %v6913 = vpop.f32.mrf.mxu0
    %6914 = vdwg.mxu0
    %6915 = vmatprep.subr.bf16.mxu0 %v6638
    %6916 = vmatpush1.bf16.msra.mxu0 %v6637
    %6917 = vmatprep.subr.bf16.mxu0 %v6630
    %6918 = vmatpush1.bf16.msra.mxu0 %v6629
    %6919 = vmatprep.subr.bf16.mxu0 %v6622
    %6920 = vmatpush1.bf16.msra.mxu0 %v6621
    %6921 = vmatprep.subr.bf16.mxu0 %v6614
    %6922 = vmatpush1.bf16.msra.mxu0 %v6613
    %6923 = vmatprep.subr.bf16.mxu0 %v6606
    %6924 = vmatpush1.bf16.msra.mxu0 %v6605
    %6925 = vmatprep.subr.bf16.mxu0 %v6598
    %6926 = vmatpush1.bf16.msra.mxu0 %v6597
    %6927 = vmatprep.subr.bf16.mxu0 %v6590
    %6928 = vmatpush1.bf16.msra.mxu0 %v6589
    %6929 = vmatprep.subr.bf16.mxu0 %v6582
    %6930 = vmatpush1.bf16.msra.mxu0 %v6581
    %6931 = vmatprep.subr.bf16.mxu0 %v6702
    %6932 = vmatpush2.bf16.msra.mxu0 %v6701
    %6933 = vmatprep.subr.bf16.mxu0 %v6694
    %6934 = vmatpush2.bf16.msra.mxu0 %v6693
    %6935 = vmatprep.subr.bf16.mxu0 %v6686
    %6936 = vmatpush2.bf16.msra.mxu0 %v6685
    %6937 = vmatprep.subr.bf16.mxu0 %v6678
    %6938 = vmatpush2.bf16.msra.mxu0 %v6677
    %6939 = vmatprep.subr.bf16.mxu0 %v6670
    %6940 = vmatpush2.bf16.msra.mxu0 %v6669
    %6941 = vmatprep.subr.bf16.mxu0 %v6662
    %6942 = vmatpush2.bf16.msra.mxu0 %v6661
    %6943 = vmatprep.subr.bf16.mxu0 %v6654
    %6944 = vmatpush2.bf16.msra.mxu0 %v6653
    %6945 = vmatprep.subr.bf16.mxu0 %v6646
    %6946 = vmatpush2.bf16.msra.mxu0 %v6645
    %6947 = vmatprep.mubr.bf16.mxu0 %v6064
    %6948 = vmatmul.mubr.bf16.gmra.mxu0 %v6063
    %v6949 = vpop.f32.mrf.mxu0
    %v6950 = vadd.f32 0.0, %v6949
    %v6951 = vpop.f32.mrf.mxu0
    %v6952 = vadd.f32 0.0, %v6951
    %v6953 = vpop.f32.mrf.mxu0
    %v6954 = vpop.f32.mrf.mxu0
    %6955 = vdwg.mxu0
    %6956 = vmatprep.subr.bf16.mxu0 %v6640
    %6957 = vmatpush1.bf16.msra.mxu0 %v6639
    %6958 = vmatprep.subr.bf16.mxu0 %v6632
    %6959 = vmatpush1.bf16.msra.mxu0 %v6631
    %6960 = vmatprep.subr.bf16.mxu0 %v6624
    %6961 = vmatpush1.bf16.msra.mxu0 %v6623
    %6962 = vmatprep.subr.bf16.mxu0 %v6616
    %6963 = vmatpush1.bf16.msra.mxu0 %v6615
    %6964 = vmatprep.subr.bf16.mxu0 %v6608
    %6965 = vmatpush1.bf16.msra.mxu0 %v6607
    %6966 = vmatprep.subr.bf16.mxu0 %v6600
    %6967 = vmatpush1.bf16.msra.mxu0 %v6599
    %6968 = vmatprep.subr.bf16.mxu0 %v6592
    %6969 = vmatpush1.bf16.msra.mxu0 %v6591
    %6970 = vmatprep.subr.bf16.mxu0 %v6584
    %6971 = vmatpush1.bf16.msra.mxu0 %v6583
    %6972 = vmatprep.subr.bf16.mxu0 %v6704
    %6973 = vmatpush2.bf16.msra.mxu0 %v6703
    %6974 = vmatprep.subr.bf16.mxu0 %v6696
    %6975 = vmatpush2.bf16.msra.mxu0 %v6695
    %6976 = vmatprep.subr.bf16.mxu0 %v6688
    %6977 = vmatpush2.bf16.msra.mxu0 %v6687
    %6978 = vmatprep.subr.bf16.mxu0 %v6680
    %6979 = vmatpush2.bf16.msra.mxu0 %v6679
    %6980 = vmatprep.subr.bf16.mxu0 %v6672
    %6981 = vmatpush2.bf16.msra.mxu0 %v6671
    %6982 = vmatprep.subr.bf16.mxu0 %v6664
    %6983 = vmatpush2.bf16.msra.mxu0 %v6663
    %6984 = vmatprep.subr.bf16.mxu0 %v6656
    %6985 = vmatpush2.bf16.msra.mxu0 %v6655
    %6986 = vmatprep.subr.bf16.mxu0 %v6648
    %6987 = vmatpush2.bf16.msra.mxu0 %v6647
    %6988 = vmatprep.mubr.bf16.mxu0 %v6064
    %6989 = vmatmul.mubr.bf16.gmra.mxu0 %v6063
    %v6990 = vpop.f32.mrf.mxu0
    %v6991 = vadd.f32 0.0, %v6990
    %v6992 = vpop.f32.mrf.mxu0
    %v6993 = vadd.f32 0.0, %v6992
    %v6994 = vpop.f32.mrf.mxu0
    %v6995 = vpop.f32.mrf.mxu0
    %6996 = vdwg.mxu0
    %v6997 = vadd.f32 %v6950, %v34
    %v6998 = vadd.f32 %v6952, %v38
    %v6999 = vadd.f32 %v6991, %v42
    %v7000 = vadd.f32 %v6993, %v46
    %v7001 = vxor.u32 %v6997, 2147483648
    %v7002 = vmul.f32 %v7001, 1.442695
    %v7003 = vpow.pop %v7002
    %v7004 = vadd.f32 %v7003, 1.0
    %v7005 = vrcp.pop %v7004
    %v7006 = vmul.f32 1.0, %v7005
    %v7007 = vxor.u32 %v6998, 2147483648
    %v7008 = vmul.f32 %v7007, 1.442695
    %v7009 = vpow.pop %v7008
    %v7010 = vadd.f32 %v7009, 1.0
    %v7011 = vrcp.pop %v7010
    %v7012 = vmul.f32 1.0, %v7011
    %v7013 = vtanh.pop %v6999
    %v7014 = vxor.u32 %v7000, 2147483648
    %v7015 = vmul.f32 %v7014, 1.442695
    %v7016 = vpow.pop %v7015
    %v7017 = vadd.f32 %v7016, 1.0
    %v7018 = vrcp.pop %v7017
    %v7019 = vmul.f32 1.0, %v7018
    %v7020 = vmul.f32 %v7012, %v6025
    %v7021 = vmul.f32 %v7006, %v7013
    %v7022 = vadd.f32 %v7020, %v7021
    %v7023 = vtanh.pop %v7022
    %v7024 = vmul.f32 %v7019, %v7023
    %s7025 = scalar_lea.vmem %s3, 48
    %7026 = vst [vmem:[%s7025] sm:$0xff] %v7024
    %s7027 = scalar_lea.vmem %s0, 224
    %v7028 = vld [vmem:[%s7027] sm:$0xff]
    %v7029 = vld [vmem:[%s7027 + $0x8] sm:$0xff]
    %v7030 = vld [vmem:[%s7027 + $0x10] sm:$0xff]
    %v7031 = vld [vmem:[%s7027 + $0x18] sm:$0xff]
    %v7032 = vadd.f32 %v7028, %v6868
    %v7033 = vadd.f32 %v7029, %v6870
    %v7034 = vadd.f32 %v7030, %v6909
    %v7035 = vadd.f32 %v7031, %v6911
    %v7036 = vxor.u32 %v7032, 2147483648
    %v7037 = vmul.f32 %v7036, 1.442695
    %v7038 = vpow.pop %v7037
    %v7039 = vadd.f32 %v7038, 1.0
    %v7040 = vrcp.pop %v7039
    %v7041 = vmul.f32 1.0, %v7040
    %v7042 = vxor.u32 %v7033, 2147483648
    %v7043 = vmul.f32 %v7042, 1.442695
    %v7044 = vpow.pop %v7043
    %v7045 = vadd.f32 %v7044, 1.0
    %v7046 = vrcp.pop %v7045
    %v7047 = vmul.f32 1.0, %v7046
    %v7048 = vtanh.pop %v7034
    %v7049 = vxor.u32 %v7035, 2147483648
    %v7050 = vmul.f32 %v7049, 1.442695
    %v7051 = vpow.pop %v7050
    %v7052 = vadd.f32 %v7051, 1.0
    %v7053 = vrcp.pop %v7052
    %v7054 = vmul.f32 1.0, %v7053
    %v7055 = vmul.f32 %v7047, %v6060
    %v7056 = vmul.f32 %v7041, %v7048
    %v7057 = vadd.f32 %v7055, %v7056
    %v7058 = vtanh.pop %v7057
    %v7059 = vmul.f32 %v7054, %v7058
    %v7060 = vpack.c.bf16 %v7059, %v7059
    %v7061 = vpack.c.bf16 %v7024, %v7024
    %v7062 = vld [vmem:[#allocation2 + $0x10] sm:$0xff]
    %v7063 = vld [vmem:[#allocation2 + $0x18] sm:$0xff]
    %v7064 = vld [vmem:[#allocation2 + $0x30] sm:$0xff]
    %v7065 = vld [vmem:[#allocation2 + $0x38] sm:$0xff]
    %v7066 = vld [vmem:[#allocation2 + $0x50] sm:$0xff]
    %v7067 = vld [vmem:[#allocation2 + $0x58] sm:$0xff]
    %v7068 = vld [vmem:[#allocation2 + $0x70] sm:$0xff]
    %v7069 = vld [vmem:[#allocation2 + $0x78] sm:$0xff]
    %v7070 = vld [vmem:[#allocation2 + $0x90] sm:$0xff]
    %v7071 = vld [vmem:[#allocation2 + $0x98] sm:$0xff]
    %v7072 = vld [vmem:[#allocation2 + $0xb0] sm:$0xff]
    %v7073 = vld [vmem:[#allocation2 + $0xb8] sm:$0xff]
    %v7074 = vld [vmem:[#allocation2 + $0xd0] sm:$0xff]
    %v7075 = vld [vmem:[#allocation2 + $0xd8] sm:$0xff]
    %v7076 = vld [vmem:[#allocation2 + $0xf0] sm:$0xff]
    %v7077 = vld [vmem:[#allocation2 + $0xf8] sm:$0xff]
    %v7078 = vld [vmem:[#allocation2 + $0x110] sm:$0xff]
    %v7079 = vld [vmem:[#allocation2 + $0x118] sm:$0xff]
    %v7080 = vld [vmem:[#allocation2 + $0x130] sm:$0xff]
    %v7081 = vld [vmem:[#allocation2 + $0x138] sm:$0xff]
    %v7082 = vld [vmem:[#allocation2 + $0x150] sm:$0xff]
    %v7083 = vld [vmem:[#allocation2 + $0x158] sm:$0xff]
    %v7084 = vld [vmem:[#allocation2 + $0x170] sm:$0xff]
    %v7085 = vld [vmem:[#allocation2 + $0x178] sm:$0xff]
    %v7086 = vld [vmem:[#allocation2 + $0x190] sm:$0xff]
    %v7087 = vld [vmem:[#allocation2 + $0x198] sm:$0xff]
    %v7088 = vld [vmem:[#allocation2 + $0x1b0] sm:$0xff]
    %v7089 = vld [vmem:[#allocation2 + $0x1b8] sm:$0xff]
    %v7090 = vld [vmem:[#allocation2 + $0x1d0] sm:$0xff]
    %v7091 = vld [vmem:[#allocation2 + $0x1d8] sm:$0xff]
    %v7092 = vld [vmem:[#allocation2 + $0x1f0] sm:$0xff]
    %v7093 = vld [vmem:[#allocation2 + $0x1f8] sm:$0xff]
    %v7094 = vld [vmem:[#allocation2 + $0x210] sm:$0xff]
    %v7095 = vld [vmem:[#allocation2 + $0x218] sm:$0xff]
    %v7096 = vld [vmem:[#allocation2 + $0x230] sm:$0xff]
    %v7097 = vld [vmem:[#allocation2 + $0x238] sm:$0xff]
    %v7098 = vld [vmem:[#allocation2 + $0x250] sm:$0xff]
    %v7099 = vld [vmem:[#allocation2 + $0x258] sm:$0xff]
    %v7100 = vld [vmem:[#allocation2 + $0x270] sm:$0xff]
    %v7101 = vld [vmem:[#allocation2 + $0x278] sm:$0xff]
    %v7102 = vld [vmem:[#allocation2 + $0x290] sm:$0xff]
    %v7103 = vld [vmem:[#allocation2 + $0x298] sm:$0xff]
    %v7104 = vld [vmem:[#allocation2 + $0x2b0] sm:$0xff]
    %v7105 = vld [vmem:[#allocation2 + $0x2b8] sm:$0xff]
    %v7106 = vld [vmem:[#allocation2 + $0x2d0] sm:$0xff]
    %v7107 = vld [vmem:[#allocation2 + $0x2d8] sm:$0xff]
    %v7108 = vld [vmem:[#allocation2 + $0x2f0] sm:$0xff]
    %v7109 = vld [vmem:[#allocation2 + $0x2f8] sm:$0xff]
    %v7110 = vld [vmem:[#allocation2 + $0x310] sm:$0xff]
    %v7111 = vld [vmem:[#allocation2 + $0x318] sm:$0xff]
    %v7112 = vld [vmem:[#allocation2 + $0x330] sm:$0xff]
    %v7113 = vld [vmem:[#allocation2 + $0x338] sm:$0xff]
    %v7114 = vld [vmem:[#allocation2 + $0x350] sm:$0xff]
    %v7115 = vld [vmem:[#allocation2 + $0x358] sm:$0xff]
    %v7116 = vld [vmem:[#allocation2 + $0x370] sm:$0xff]
    %v7117 = vld [vmem:[#allocation2 + $0x378] sm:$0xff]
    %v7118 = vld [vmem:[#allocation2 + $0x390] sm:$0xff]
    %v7119 = vld [vmem:[#allocation2 + $0x398] sm:$0xff]
    %v7120 = vld [vmem:[#allocation2 + $0x3b0] sm:$0xff]
    %v7121 = vld [vmem:[#allocation2 + $0x3b8] sm:$0xff]
    %v7122 = vld [vmem:[#allocation2 + $0x3d0] sm:$0xff]
    %v7123 = vld [vmem:[#allocation2 + $0x3d8] sm:$0xff]
    %v7124 = vld [vmem:[#allocation2 + $0x3f0] sm:$0xff]
    %v7125 = vld [vmem:[#allocation2 + $0x3f8] sm:$0xff]
    %v7190 = vunpack.c.l.b16 %v7062
    %v7191 = vunpack.c.h.b16 %v7062
    %v7192 = vunpack.c.l.b16 %v7063
    %v7193 = vunpack.c.h.b16 %v7063
    %v7194 = vunpack.c.l.b16 %v7064
    %v7195 = vunpack.c.h.b16 %v7064
    %v7196 = vunpack.c.l.b16 %v7065
    %v7197 = vunpack.c.h.b16 %v7065
    %v7198 = vunpack.c.l.b16 %v7066
    %v7199 = vunpack.c.h.b16 %v7066
    %v7200 = vunpack.c.l.b16 %v7067
    %v7201 = vunpack.c.h.b16 %v7067
    %v7202 = vunpack.c.l.b16 %v7068
    %v7203 = vunpack.c.h.b16 %v7068
    %v7204 = vunpack.c.l.b16 %v7069
    %v7205 = vunpack.c.h.b16 %v7069
    %v7206 = vunpack.c.l.b16 %v7070
    %v7207 = vunpack.c.h.b16 %v7070
    %v7208 = vunpack.c.l.b16 %v7071
    %v7209 = vunpack.c.h.b16 %v7071
    %v7210 = vunpack.c.l.b16 %v7072
    %v7211 = vunpack.c.h.b16 %v7072
    %v7212 = vunpack.c.l.b16 %v7073
    %v7213 = vunpack.c.h.b16 %v7073
    %v7214 = vunpack.c.l.b16 %v7074
    %v7215 = vunpack.c.h.b16 %v7074
    %v7216 = vunpack.c.l.b16 %v7075
    %v7217 = vunpack.c.h.b16 %v7075
    %v7218 = vunpack.c.l.b16 %v7076
    %v7219 = vunpack.c.h.b16 %v7076
    %v7220 = vunpack.c.l.b16 %v7077
    %v7221 = vunpack.c.h.b16 %v7077
    %v7222 = vunpack.c.l.b16 %v7078
    %v7223 = vunpack.c.h.b16 %v7078
    %v7224 = vunpack.c.l.b16 %v7079
    %v7225 = vunpack.c.h.b16 %v7079
    %v7226 = vunpack.c.l.b16 %v7080
    %v7227 = vunpack.c.h.b16 %v7080
    %v7228 = vunpack.c.l.b16 %v7081
    %v7229 = vunpack.c.h.b16 %v7081
    %v7230 = vunpack.c.l.b16 %v7082
    %v7231 = vunpack.c.h.b16 %v7082
    %v7232 = vunpack.c.l.b16 %v7083
    %v7233 = vunpack.c.h.b16 %v7083
    %v7234 = vunpack.c.l.b16 %v7084
    %v7235 = vunpack.c.h.b16 %v7084
    %v7236 = vunpack.c.l.b16 %v7085
    %v7237 = vunpack.c.h.b16 %v7085
    %v7238 = vunpack.c.l.b16 %v7086
    %v7239 = vunpack.c.h.b16 %v7086
    %v7240 = vunpack.c.l.b16 %v7087
    %v7241 = vunpack.c.h.b16 %v7087
    %v7242 = vunpack.c.l.b16 %v7088
    %v7243 = vunpack.c.h.b16 %v7088
    %v7244 = vunpack.c.l.b16 %v7089
    %v7245 = vunpack.c.h.b16 %v7089
    %v7246 = vunpack.c.l.b16 %v7090
    %v7247 = vunpack.c.h.b16 %v7090
    %v7248 = vunpack.c.l.b16 %v7091
    %v7249 = vunpack.c.h.b16 %v7091
    %v7250 = vunpack.c.l.b16 %v7092
    %v7251 = vunpack.c.h.b16 %v7092
    %v7252 = vunpack.c.l.b16 %v7093
    %v7253 = vunpack.c.h.b16 %v7093
    %v7254 = vunpack.c.l.b16 %v7094
    %v7255 = vunpack.c.h.b16 %v7094
    %v7256 = vunpack.c.l.b16 %v7095
    %v7257 = vunpack.c.h.b16 %v7095
    %v7258 = vunpack.c.l.b16 %v7096
    %v7259 = vunpack.c.h.b16 %v7096
    %v7260 = vunpack.c.l.b16 %v7097
    %v7261 = vunpack.c.h.b16 %v7097
    %v7262 = vunpack.c.l.b16 %v7098
    %v7263 = vunpack.c.h.b16 %v7098
    %v7264 = vunpack.c.l.b16 %v7099
    %v7265 = vunpack.c.h.b16 %v7099
    %v7266 = vunpack.c.l.b16 %v7100
    %v7267 = vunpack.c.h.b16 %v7100
    %v7268 = vunpack.c.l.b16 %v7101
    %v7269 = vunpack.c.h.b16 %v7101
    %v7270 = vunpack.c.l.b16 %v7102
    %v7271 = vunpack.c.h.b16 %v7102
    %v7272 = vunpack.c.l.b16 %v7103
    %v7273 = vunpack.c.h.b16 %v7103
    %v7274 = vunpack.c.l.b16 %v7104
    %v7275 = vunpack.c.h.b16 %v7104
    %v7276 = vunpack.c.l.b16 %v7105
    %v7277 = vunpack.c.h.b16 %v7105
    %v7278 = vunpack.c.l.b16 %v7106
    %v7279 = vunpack.c.h.b16 %v7106
    %v7280 = vunpack.c.l.b16 %v7107
    %v7281 = vunpack.c.h.b16 %v7107
    %v7282 = vunpack.c.l.b16 %v7108
    %v7283 = vunpack.c.h.b16 %v7108
    %v7284 = vunpack.c.l.b16 %v7109
    %v7285 = vunpack.c.h.b16 %v7109
    %v7286 = vunpack.c.l.b16 %v7110
    %v7287 = vunpack.c.h.b16 %v7110
    %v7288 = vunpack.c.l.b16 %v7111
    %v7289 = vunpack.c.h.b16 %v7111
    %v7290 = vunpack.c.l.b16 %v7112
    %v7291 = vunpack.c.h.b16 %v7112
    %v7292 = vunpack.c.l.b16 %v7113
    %v7293 = vunpack.c.h.b16 %v7113
    %v7294 = vunpack.c.l.b16 %v7114
    %v7295 = vunpack.c.h.b16 %v7114
    %v7296 = vunpack.c.l.b16 %v7115
    %v7297 = vunpack.c.h.b16 %v7115
    %v7298 = vunpack.c.l.b16 %v7116
    %v7299 = vunpack.c.h.b16 %v7116
    %v7300 = vunpack.c.l.b16 %v7117
    %v7301 = vunpack.c.h.b16 %v7117
    %v7302 = vunpack.c.l.b16 %v7118
    %v7303 = vunpack.c.h.b16 %v7118
    %v7304 = vunpack.c.l.b16 %v7119
    %v7305 = vunpack.c.h.b16 %v7119
    %v7306 = vunpack.c.l.b16 %v7120
    %v7307 = vunpack.c.h.b16 %v7120
    %v7308 = vunpack.c.l.b16 %v7121
    %v7309 = vunpack.c.h.b16 %v7121
    %v7310 = vunpack.c.l.b16 %v7122
    %v7311 = vunpack.c.h.b16 %v7122
    %v7312 = vunpack.c.l.b16 %v7123
    %v7313 = vunpack.c.h.b16 %v7123
    %v7314 = vunpack.c.l.b16 %v7124
    %v7315 = vunpack.c.h.b16 %v7124
    %v7316 = vunpack.c.l.b16 %v7125
    %v7317 = vunpack.c.h.b16 %v7125
    %v7318 = vpack.c.b16 %v7194, %v7190
    %v7319 = vpack.c.b16 %v7195, %v7191
    %v7320 = vpack.c.b16 %v7196, %v7192
    %v7321 = vpack.c.b16 %v7197, %v7193
    %v7322 = vpack.c.b16 %v7202, %v7198
    %v7323 = vpack.c.b16 %v7203, %v7199
    %v7324 = vpack.c.b16 %v7204, %v7200
    %v7325 = vpack.c.b16 %v7205, %v7201
    %v7326 = vpack.c.b16 %v7210, %v7206
    %v7327 = vpack.c.b16 %v7211, %v7207
    %v7328 = vpack.c.b16 %v7212, %v7208
    %v7329 = vpack.c.b16 %v7213, %v7209
    %v7330 = vpack.c.b16 %v7218, %v7214
    %v7331 = vpack.c.b16 %v7219, %v7215
    %v7332 = vpack.c.b16 %v7220, %v7216
    %v7333 = vpack.c.b16 %v7221, %v7217
    %v7334 = vpack.c.b16 %v7226, %v7222
    %v7335 = vpack.c.b16 %v7227, %v7223
    %v7336 = vpack.c.b16 %v7228, %v7224
    %v7337 = vpack.c.b16 %v7229, %v7225
    %v7338 = vpack.c.b16 %v7234, %v7230
    %v7339 = vpack.c.b16 %v7235, %v7231
    %v7340 = vpack.c.b16 %v7236, %v7232
    %v7341 = vpack.c.b16 %v7237, %v7233
    %v7342 = vpack.c.b16 %v7242, %v7238
    %v7343 = vpack.c.b16 %v7243, %v7239
    %v7344 = vpack.c.b16 %v7244, %v7240
    %v7345 = vpack.c.b16 %v7245, %v7241
    %v7346 = vpack.c.b16 %v7250, %v7246
    %v7347 = vpack.c.b16 %v7251, %v7247
    %v7348 = vpack.c.b16 %v7252, %v7248
    %v7349 = vpack.c.b16 %v7253, %v7249
    %v7350 = vpack.c.b16 %v7258, %v7254
    %v7351 = vpack.c.b16 %v7259, %v7255
    %v7352 = vpack.c.b16 %v7260, %v7256
    %v7353 = vpack.c.b16 %v7261, %v7257
    %v7354 = vpack.c.b16 %v7266, %v7262
    %v7355 = vpack.c.b16 %v7267, %v7263
    %v7356 = vpack.c.b16 %v7268, %v7264
    %v7357 = vpack.c.b16 %v7269, %v7265
    %v7358 = vpack.c.b16 %v7274, %v7270
    %v7359 = vpack.c.b16 %v7275, %v7271
    %v7360 = vpack.c.b16 %v7276, %v7272
    %v7361 = vpack.c.b16 %v7277, %v7273
    %v7362 = vpack.c.b16 %v7282, %v7278
    %v7363 = vpack.c.b16 %v7283, %v7279
    %v7364 = vpack.c.b16 %v7284, %v7280
    %v7365 = vpack.c.b16 %v7285, %v7281
    %v7366 = vpack.c.b16 %v7290, %v7286
    %v7367 = vpack.c.b16 %v7291, %v7287
    %v7368 = vpack.c.b16 %v7292, %v7288
    %v7369 = vpack.c.b16 %v7293, %v7289
    %v7370 = vpack.c.b16 %v7298, %v7294
    %v7371 = vpack.c.b16 %v7299, %v7295
    %v7372 = vpack.c.b16 %v7300, %v7296
    %v7373 = vpack.c.b16 %v7301, %v7297
    %v7374 = vpack.c.b16 %v7306, %v7302
    %v7375 = vpack.c.b16 %v7307, %v7303
    %v7376 = vpack.c.b16 %v7308, %v7304
    %v7377 = vpack.c.b16 %v7309, %v7305
    %v7378 = vpack.c.b16 %v7314, %v7310
    %v7379 = vpack.c.b16 %v7315, %v7311
    %v7380 = vpack.c.b16 %v7316, %v7312
    %v7381 = vpack.c.b16 %v7317, %v7313
    %7446 = vmatprep.subr.bf16.mxu0 %v7347
    %7447 = vmatpush1.bf16.msra.mxu0 %v7346
    %7448 = vmatprep.subr.bf16.mxu0 %v7343
    %7449 = vmatpush1.bf16.msra.mxu0 %v7342
    %7450 = vmatprep.subr.bf16.mxu0 %v7339
    %7451 = vmatpush1.bf16.msra.mxu0 %v7338
    %7452 = vmatprep.subr.bf16.mxu0 %v7335
    %7453 = vmatpush1.bf16.msra.mxu0 %v7334
    %7454 = vmatprep.subr.bf16.mxu0 %v7331
    %7455 = vmatpush1.bf16.msra.mxu0 %v7330
    %7456 = vmatprep.subr.bf16.mxu0 %v7327
    %7457 = vmatpush1.bf16.msra.mxu0 %v7326
    %7458 = vmatprep.subr.bf16.mxu0 %v7323
    %7459 = vmatpush1.bf16.msra.mxu0 %v7322
    %7460 = vmatprep.subr.bf16.mxu0 %v7319
    %7461 = vmatpush1.bf16.msra.mxu0 %v7318
    %7462 = vmatprep.subr.bf16.mxu0 %v7379
    %7463 = vmatpush2.bf16.msra.mxu0 %v7378
    %7464 = vmatprep.subr.bf16.mxu0 %v7375
    %7465 = vmatpush2.bf16.msra.mxu0 %v7374
    %7466 = vmatprep.subr.bf16.mxu0 %v7371
    %7467 = vmatpush2.bf16.msra.mxu0 %v7370
    %7468 = vmatprep.subr.bf16.mxu0 %v7367
    %7469 = vmatpush2.bf16.msra.mxu0 %v7366
    %7470 = vmatprep.subr.bf16.mxu0 %v7363
    %7471 = vmatpush2.bf16.msra.mxu0 %v7362
    %7472 = vmatprep.subr.bf16.mxu0 %v7359
    %7473 = vmatpush2.bf16.msra.mxu0 %v7358
    %7474 = vmatprep.subr.bf16.mxu0 %v7355
    %7475 = vmatpush2.bf16.msra.mxu0 %v7354
    %7476 = vmatprep.subr.bf16.mxu0 %v7351
    %7477 = vmatpush2.bf16.msra.mxu0 %v7350
    %7478 = vmatprep.mubr.bf16.mxu0 %v7061
    %7479 = vmatmul.mubr.bf16.gmra.mxu0 %v7060
    %v7480 = vpop.f32.mrf.mxu0
    %v7481 = vadd.f32 0.0, %v7480
    %v7482 = vpop.f32.mrf.mxu0
    %v7483 = vadd.f32 0.0, %v7482
    %v7484 = vpop.f32.mrf.mxu0
    %v7485 = vpop.f32.mrf.mxu0
    %7486 = vdwg.mxu0
    %7487 = vmatprep.subr.bf16.mxu0 %v7349
    %7488 = vmatpush1.bf16.msra.mxu0 %v7348
    %7489 = vmatprep.subr.bf16.mxu0 %v7345
    %7490 = vmatpush1.bf16.msra.mxu0 %v7344
    %7491 = vmatprep.subr.bf16.mxu0 %v7341
    %7492 = vmatpush1.bf16.msra.mxu0 %v7340
    %7493 = vmatprep.subr.bf16.mxu0 %v7337
    %7494 = vmatpush1.bf16.msra.mxu0 %v7336
    %7495 = vmatprep.subr.bf16.mxu0 %v7333
    %7496 = vmatpush1.bf16.msra.mxu0 %v7332
    %7497 = vmatprep.subr.bf16.mxu0 %v7329
    %7498 = vmatpush1.bf16.msra.mxu0 %v7328
    %7499 = vmatprep.subr.bf16.mxu0 %v7325
    %7500 = vmatpush1.bf16.msra.mxu0 %v7324
    %7501 = vmatprep.subr.bf16.mxu0 %v7321
    %7502 = vmatpush1.bf16.msra.mxu0 %v7320
    %7503 = vmatprep.subr.bf16.mxu0 %v7381
    %7504 = vmatpush2.bf16.msra.mxu0 %v7380
    %7505 = vmatprep.subr.bf16.mxu0 %v7377
    %7506 = vmatpush2.bf16.msra.mxu0 %v7376
    %7507 = vmatprep.subr.bf16.mxu0 %v7373
    %7508 = vmatpush2.bf16.msra.mxu0 %v7372
    %7509 = vmatprep.subr.bf16.mxu0 %v7369
    %7510 = vmatpush2.bf16.msra.mxu0 %v7368
    %7511 = vmatprep.subr.bf16.mxu0 %v7365
    %7512 = vmatpush2.bf16.msra.mxu0 %v7364
    %7513 = vmatprep.subr.bf16.mxu0 %v7361
    %7514 = vmatpush2.bf16.msra.mxu0 %v7360
    %7515 = vmatprep.subr.bf16.mxu0 %v7357
    %7516 = vmatpush2.bf16.msra.mxu0 %v7356
    %7517 = vmatprep.subr.bf16.mxu0 %v7353
    %7518 = vmatpush2.bf16.msra.mxu0 %v7352
    %7519 = vmatprep.mubr.bf16.mxu0 %v7061
    %7520 = vmatmul.mubr.bf16.gmra.mxu0 %v7060
    %v7521 = vpop.f32.mrf.mxu0
    %v7522 = vadd.f32 0.0, %v7521
    %v7523 = vpop.f32.mrf.mxu0
    %v7524 = vadd.f32 0.0, %v7523
    %v7525 = vpop.f32.mrf.mxu0
    %v7526 = vpop.f32.mrf.mxu0
    %7527 = vdwg.mxu0
    %v7528 = vadd.f32 %v7481, %v34
    %v7529 = vadd.f32 %v7483, %v38
    %v7530 = vadd.f32 %v7522, %v42
    %v7531 = vadd.f32 %v7524, %v46
    %v7532 = vxor.u32 %v7528, 2147483648
    %v7533 = vmul.f32 %v7532, 1.442695
    %v7534 = vpow.pop %v7533
    %v7535 = vadd.f32 %v7534, 1.0
    %v7536 = vrcp.pop %v7535
    %v7537 = vmul.f32 1.0, %v7536
    %v7538 = vxor.u32 %v7529, 2147483648
    %v7539 = vmul.f32 %v7538, 1.442695
    %v7540 = vpow.pop %v7539
    %v7541 = vadd.f32 %v7540, 1.0
    %v7542 = vrcp.pop %v7541
    %v7543 = vmul.f32 1.0, %v7542
    %v7544 = vtanh.pop %v7530
    %v7545 = vxor.u32 %v7531, 2147483648
    %v7546 = vmul.f32 %v7545, 1.442695
    %v7547 = vpow.pop %v7546
    %v7548 = vadd.f32 %v7547, 1.0
    %v7549 = vrcp.pop %v7548
    %v7550 = vmul.f32 1.0, %v7549
    %v7551 = vmul.f32 %v7543, %v7022
    %v7552 = vmul.f32 %v7537, %v7544
    %v7553 = vadd.f32 %v7551, %v7552
    %v7554 = vtanh.pop %v7553
    %v7555 = vmul.f32 %v7550, %v7554
    %s7556 = scalar_lea.vmem %s3, 56
    %7557 = vst [vmem:[%s7556] sm:$0xff] %v7555
    // Predicated region
    $region18: #{lstm_model_forward.1} parent=1 // pred_check
      _
    $region19: #{lstm_model_forward.1} parent=1 // pred_check_branch
      %7559 = sbr.rel (0) target = $region21
    $region20: #{lstm_model_forward.1} parent=1 // pred_region
      _
    $region21: #{lstm_model_forward.1} parent=1 // pred_fallthru
      _
    // Predicated region
    $region22: #{lstm_model_forward.1} parent=1 // pred_check
      _
    $region23: #{lstm_model_forward.1} parent=1 // pred_check_branch
      %7561 = sbr.rel (0) target = $region25
    $region24: #{lstm_model_forward.1} parent=1 // pred_region
      _
    $region25: #{lstm_model_forward.1} parent=1 // pred_fallthru
      _
    %7562 = vsyncpa [#allocation3], 1

</llo_original>
